<compile_context>
chip_gen: v7x
topology: tpu7x:2x2x1
jax: 0.10.0
libtpu: 0.0.40
codegen_flags: <defaults>
</compile_context>

<pallas_src>
import jax
import jax.numpy as jnp
from jax.experimental import pallas as pl
from jax.experimental.pallas import tpu as pltpu

LN_EPS = 1e-5                      # PyTorch nn.LayerNorm default eps
COMMON_DIMS = (768, 512, 256, 256, 51)
COARSE_DIMS = (768, 512, 256, 128, 7)
IN_DIM = 768
OUT_W = 128                        # packed output width: fine in [:, :51], coarse in [:, 64:71]
COARSE_COL0 = 64
VEC_W = 512                        # width of packed bias/LN slab rows
VEC_ROWS = 24                      # 19 used rows padded to a multiple of 8


def _fused_mlp_kernel(x_ref,
                      w1_ref, w2_ref, w3_ref, cw2_ref, cw3_ref, w4_ref,
                      vec_ref, out_ref):
    """Fused common_mlp + coarse_mlp.

    x_ref:  (tm, 768) bf16 activations.
    w1_ref: (768, 1024) bf16  = [common.w1 | coarse.w1] (fused first layer).
    w2/w3:  common mid layers; cw2/cw3: coarse mid layers (bf16).
    w4_ref: (384, 128) bf16 block-diagonal fused final layer
            (rows 0:256 x cols 0:51 = common.w4, rows 256:384 x cols 64:71 = coarse.w4).
    vec_ref: (24, 512) f32 packed bias / LayerNorm vectors, sliced lazily.
    out_ref: (tm, 128) f32 packed logits.
    """

    def ln_relu(y, row, width):
        # y: (tm, width) f32 pre-bias matmul result.
        b = vec_ref[row:row + 1, :width]
        g = vec_ref[row + 1:row + 2, :width]
        be = vec_ref[row + 2:row + 3, :width]
        y = y + b
        inv_n = 1.0 / float(width)
        s1 = jnp.sum(y, axis=-1, keepdims=True)
        s2 = jnp.sum(y * y, axis=-1, keepdims=True)
        mu = s1 * inv_n
        var = jnp.maximum(s2 * inv_n - mu * mu, 0.0)   # clamp: guard cancellation
        yn = (y - mu) * jax.lax.rsqrt(var + LN_EPS)
        # ReLU (Dropout = identity in eval); cast to bf16 for the next MXU op.
        return jnp.maximum(yn * g + be, 0.0).astype(jnp.bfloat16)

    def mid(h_bf16, w_ref, row, width):
        y = jnp.dot(h_bf16, w_ref[...], preferred_element_type=jnp.float32)
        return ln_relu(y, row, width)

    # Fused first layer: one 768 -> 1024 MXU stream, split at the 512 lane boundary.
    y1 = jnp.dot(x_ref[...], w1_ref[...], preferred_element_type=jnp.float32)
    hf = ln_relu(y1[:, :512], 0, 512)      # common_mlp layer 1
    hc = ln_relu(y1[:, 512:], 9, 512)      # coarse_mlp layer 1

    hf = mid(hf, w2_ref, 3, 256)           # common layer 2
    hf = mid(hf, w3_ref, 6, 256)           # common layer 3
    hc = mid(hc, cw2_ref, 12, 256)         # coarse layer 2
    hc = mid(hc, cw3_ref, 15, 128)         # coarse layer 3

    # Fused block-diagonal final layer -> one lane-dense (tm, 128) store.
    h_cat = jnp.concatenate([hf, hc], axis=-1)              # (tm, 384) bf16, lane-aligned
    out = jnp.dot(h_cat, w4_ref[...], preferred_element_type=jnp.float32)
    out_ref[...] = out + vec_ref[18:19, :OUT_W]


def init_mlp_params(key, dims):
    """dims = (d_in, h1, h2, h3, d_out). Weights stored [in, out] (pre-transposed vs
    PyTorch's [out, in]); biases / LN params kept 1-D for packing."""
    params = []
    for i in range(3):
        key, k1, k2 = jax.random.split(key, 3)
        fan_in, fan_out = dims[i], dims[i + 1]
        w = jax.random.normal(k1, (fan_in, fan_out), jnp.float32) / jnp.sqrt(float(fan_in))
        b = jax.random.normal(k2, (fan_out,), jnp.float32) * 0.01
        g = jnp.ones((fan_out,), jnp.float32)      # LayerNorm weight
        be = jnp.zeros((fan_out,), jnp.float32)    # LayerNorm bias
        params += [w, b, g, be]
    key, k1, k2 = jax.random.split(key, 3)
    w = jax.random.normal(k1, (dims[3], dims[4]), jnp.float32) / jnp.sqrt(float(dims[3]))
    b = jax.random.normal(k2, (dims[4],), jnp.float32) * 0.01
    params += [w, b]
    return params


def _pack_weights(common, coarse):
    """bf16 kernel weights: fused first layer, mid layers, block-diag fused final layer."""
    w1f = jnp.concatenate([common[0], coarse[0]], axis=1)          # (768, 1024)
    w2, w3 = common[4], common[8]                                  # (512,256), (256,256)
    cw2, cw3 = coarse[4], coarse[8]                                # (512,256), (256,128)
    w4, cw4 = common[12], coarse[12]                               # (256,51),  (128,7)
    w4p = jnp.zeros((w4.shape[0] + cw4.shape[0], OUT_W), jnp.float32)
    w4p = w4p.at[: w4.shape[0], : w4.shape[1]].set(w4)
    w4p = w4p.at[w4.shape[0]:, COARSE_COL0: COARSE_COL0 + cw4.shape[1]].set(cw4)
    return tuple(m.astype(jnp.bfloat16) for m in (w1f, w2, w3, cw2, cw3, w4p))


def _pack_vec_slab(common, coarse):
    """Pack all bias / LN vectors into one (VEC_ROWS, VEC_W) f32 slab.

    Rows 0-8:  common layers 1-3 (b, gamma, beta each).
    Rows 9-17: coarse layers 1-3.
    Row 18:    packed final bias (fine bias in cols 0:51, coarse bias in cols 64:71).
    """
    def row_of(v):
        return jnp.zeros((VEC_W,), jnp.float32).at[: v.shape[0]].set(v)

    rows = []
    for params in (common, coarse):
        for i in range(3):
            _, b, g, be = params[4 * i: 4 * i + 4]
            rows += [row_of(b), row_of(g), row_of(be)]
    fb = jnp.zeros((VEC_W,), jnp.float32)
    fb = fb.at[: common[13].shape[0]].set(common[13])
    fb = fb.at[COARSE_COL0: COARSE_COL0 + coarse[13].shape[0]].set(coarse[13])
    rows.append(fb)
    while len(rows) < VEC_ROWS:
        rows.append(jnp.zeros((VEC_W,), jnp.float32))
    return jnp.stack(rows, axis=0)


def aggregation_forward(text, weights_bf16, vec_slab, *, max_tile=512):
    """Single fused pallas_call producing (coarse, fine)."""
    B, D = text.shape
    assert D == IN_DIM

    # Balanced batch tiling: >=2 grid steps when B > 8 (v7x has 2 TensorCores sharded
    # over the "parallel" axis); tiles sized to avoid padded-row waste, capped at
    # max_tile rows (good per-step amortization on v6e/v7x, 128+ rows on v5e).
    min_steps = 2 if B > 8 else 1
    n_steps = max(min_steps, pl.cdiv(B, max_tile))
    tm = ((pl.cdiv(B, n_steps) + 7) // 8) * 8
    b_pad = tm * n_steps

    x = text.astype(jnp.bfloat16)                 # halve per-row input DMA
    if b_pad != B:
        x = jnp.pad(x, ((0, b_pad - B), (0, 0)))  # pad only the ragged tail

    flops_per_row = 2 * (768 * 1024 + 512 * 256 + 256 * 256
                         + 512 * 256 + 256 * 128 + 384 * OUT_W)
    weight_bytes = sum(int(w.size) * w.dtype.itemsize for w in weights_bf16)
    bytes_accessed = (weight_bytes + int(vec_slab.size) * 4      # weights DMA'd once
                      + b_pad * D * 2                            # bf16 input
                      + b_pad * OUT_W * 4)                       # packed f32 output
    cost = pl.CostEstimate(flops=b_pad * flops_per_row,
                           transcendentals=6 * b_pad,
                           bytes_accessed=bytes_accessed)

    def make_call(single_buffer):
        def const_spec(shape):
            if single_buffer:
                # Constant-index blocks don't need double buffering.
                return pl.BlockSpec(shape, lambda i: (0, 0), pipeline_mode=pl.Buffered(1))
            return pl.BlockSpec(shape, lambda i: (0, 0))

        in_specs = ([pl.BlockSpec((tm, D), lambda i: (i, 0))]
                    + [const_spec(tuple(w.shape)) for w in weights_bf16]
                    + [const_spec(tuple(vec_slab.shape))])
        out_spec = pl.BlockSpec((tm, OUT_W), lambda i: (i, 0))

        return pl.pallas_call(
            _fused_mlp_kernel,
            out_shape=jax.ShapeDtypeStruct((b_pad, OUT_W), jnp.float32),
            grid_spec=pltpu.PrefetchScalarGridSpec(
                num_scalar_prefetch=0,
                grid=(n_steps,),
                in_specs=in_specs,
                out_specs=out_spec,
            ),
            compiler_params=pltpu.CompilerParams(
                dimension_semantics=("parallel",),
                vmem_limit_bytes=32 * 1024 * 1024),
            cost_estimate=cost,
        )

    try:
        out_pad = make_call(single_buffer=True)(x, *weights_bf16, vec_slab)
        out_pad = jax.block_until_ready(out_pad)
    except Exception:
        # pipeline_mode=pl.Buffered(1) not supported on this jax version -> default buffering.
        out_pad = make_call(single_buffer=False)(x, *weights_bf16, vec_slab)

    fine = out_pad[:B, : COMMON_DIMS[-1]]
    coarse = out_pad[:B, COARSE_COL0: COARSE_COL0 + COARSE_DIMS[-1]]
    return coarse, fine


def _mlp_reference(x, params):
    """Pure-JAX reference mirroring the kernel numerics (bf16 matmuls, f32 LN)."""
    h = x.astype(jnp.float32)
    for i in range(3):
        w, b, g, be = params[4 * i: 4 * i + 4]
        y = jnp.dot(h.astype(jnp.bfloat16), w.astype(jnp.bfloat16),
                    preferred_element_type=jnp.float32) + b
        mu = jnp.mean(y, axis=-1, keepdims=True)
        var = jnp.mean((y - mu) ** 2, axis=-1, keepdims=True)
        y = (y - mu) * jax.lax.rsqrt(var + LN_EPS) * g + be
        h = jnp.maximum(y, 0.0)
    w, b = params[12], params[13]
    return jnp.dot(h.astype(jnp.bfloat16), w.astype(jnp.bfloat16),
                   preferred_element_type=jnp.float32) + b


class AggregationTransformerPallas:
    def __init__(self, key):
        k1, k2 = jax.random.split(key)
        self.common_params = init_mlp_params(k1, COMMON_DIMS)
        self.coarse_params = init_mlp_params(k2, COARSE_DIMS)
        # Precompute the packed kernel-side parameter layout once.
        self.weights_bf16 = _pack_weights(self.common_params, self.coarse_params)
        self.vec_slab = _pack_vec_slab(self.common_params, self.coarse_params)

    def __call__(self, x):
        rgb_t, flow_t, text = x          # rgb_t / flow_t unused in this config
        return aggregation_forward(text, self.weights_bf16, self.vec_slab)


if __name__ == "__main__":
    key = jax.random.PRNGKey(0)
    kparam, kdata = jax.random.split(key)
    model = AggregationTransformerPallas(kparam)

    B, T, Dsmall = 2, 8, 32
    k1, k2, k3 = jax.random.split(kdata, 3)
    rgb_t = jax.random.normal(k1, (B, T, Dsmall), jnp.float32)    # placeholder (unused branch)
    flow_t = jax.random.normal(k2, (B, T, Dsmall), jnp.float32)   # placeholder (unused branch)
    text = jax.random.normal(k3, (B, IN_DIM), jnp.float32)

    coarse, fine = model((rgb_t, flow_t, text))
    jax.block_until_ready((coarse, fine))

    assert coarse.shape == (B, 7), coarse.shape
    assert fine.shape == (B, 51), fine.shape

    # Correctness vs. pure-JAX reference (same bf16-weight / f32-LN numerics).
    fine_ref = _mlp_reference(text, model.common_params)
    coarse_ref = _mlp_reference(text, model.coarse_params)
    assert jnp.allclose(fine, fine_ref, rtol=2e-2, atol=2e-2), \
        float(jnp.max(jnp.abs(fine - fine_ref)))
    assert jnp.allclose(coarse, coarse_ref, rtol=2e-2, atol=2e-2), \
        float(jnp.max(jnp.abs(coarse - coarse_ref)))

    print("KERNEL_OK")
</pallas_src>

<mosaic_0001>
module attributes {stable_mosaic.version = 11 : i64} {
  func.func @_fused_mlp_kernel(%arg0: i32, %arg1: memref<8x768xbf16, #tpu.memory_space<vmem>>, %arg2: memref<768x1024xbf16, #tpu.memory_space<vmem>>, %arg3: memref<512x256xbf16, #tpu.memory_space<vmem>>, %arg4: memref<256x256xbf16, #tpu.memory_space<vmem>>, %arg5: memref<512x256xbf16, #tpu.memory_space<vmem>>, %arg6: memref<256x128xbf16, #tpu.memory_space<vmem>>, %arg7: memref<384x128xbf16, #tpu.memory_space<vmem>>, %arg8: memref<24x512xf32, #tpu.memory_space<vmem>>, %arg9: memref<8x128xf32, #tpu.memory_space<vmem>>) attributes {dimension_semantics = [#tpu.dimension_semantics<parallel>], iteration_bounds = array<i64: 1>, scalar_prefetch = 0 : i64, scratch_operands = 0 : i64, tpu.core_type = #tpu.core_type<tc>, window_params = [{transform_indices = @transform_0, window_bounds = array<i64: 8, 768>}, {pipeline_mode = #tpu.pipeline_mode<synchronous>, transform_indices = @transform_1, window_bounds = array<i64: 768, 1024>}, {pipeline_mode = #tpu.pipeline_mode<synchronous>, transform_indices = @transform_2, window_bounds = array<i64: 512, 256>}, {pipeline_mode = #tpu.pipeline_mode<synchronous>, transform_indices = @transform_3, window_bounds = array<i64: 256, 256>}, {pipeline_mode = #tpu.pipeline_mode<synchronous>, transform_indices = @transform_4, window_bounds = array<i64: 512, 256>}, {pipeline_mode = #tpu.pipeline_mode<synchronous>, transform_indices = @transform_5, window_bounds = array<i64: 256, 128>}, {pipeline_mode = #tpu.pipeline_mode<synchronous>, transform_indices = @transform_6, window_bounds = array<i64: 384, 128>}, {pipeline_mode = #tpu.pipeline_mode<synchronous>, transform_indices = @transform_7, window_bounds = array<i64: 24, 512>}, {transform_indices = @transform_8, window_bounds = array<i64: 8, 128>}]} {
    %c0 = arith.constant 0 : index
    %c0_0 = arith.constant 0 : index
    %0 = vector.load %arg1[%c0, %c0_0] : memref<8x768xbf16, #tpu.memory_space<vmem>>, vector<8x768xbf16>
    %c0_1 = arith.constant 0 : index
    %c0_2 = arith.constant 0 : index
    %1 = vector.load %arg2[%c0_1, %c0_2] : memref<768x1024xbf16, #tpu.memory_space<vmem>>, vector<768x1024xbf16>
    %cst = arith.constant dense<0.000000e+00> : vector<8x1024xf32>
    %2 = tpu.matmul %0, %1, %cst {dimension_numbers = #tpu.dot_dimension_numbers<[1], [0], [0], [1], [0, 0, 1, 1], [], []>} : vector<8x768xbf16>, vector<768x1024xbf16>, vector<8x1024xf32> -> vector<8x1024xf32>
    %3 = vector.extract_strided_slice %2 {offsets = [0, 0], sizes = [8, 512], strides = [1, 1]} : vector<8x1024xf32> to vector<8x512xf32>
    %c0_3 = arith.constant 0 : index
    %c0_4 = arith.constant 0 : index
    %4 = vector.load %arg8[%c0_3, %c0_4] : memref<24x512xf32, #tpu.memory_space<vmem>>, vector<1x512xf32>
    %c1 = arith.constant 1 : index
    %c0_5 = arith.constant 0 : index
    %5 = vector.load %arg8[%c1, %c0_5] : memref<24x512xf32, #tpu.memory_space<vmem>>, vector<1x512xf32>
    %c2 = arith.constant 2 : index
    %c0_6 = arith.constant 0 : index
    %6 = vector.load %arg8[%c2, %c0_6] : memref<24x512xf32, #tpu.memory_space<vmem>>, vector<1x512xf32>
    %7 = vector.broadcast %4 : vector<1x512xf32> to vector<8x512xf32>
    %8 = arith.addf %3, %7 : vector<8x512xf32>
    %cst_7 = arith.constant dense<0.000000e+00> : vector<8xf32>
    %9 = vector.multi_reduction <add>, %8, %cst_7 [1] : vector<8x512xf32> to vector<8xf32>
    %10 = vector.shape_cast %9 : vector<8xf32> to vector<8x1xf32>
    %11 = arith.mulf %8, %8 : vector<8x512xf32>
    %cst_8 = arith.constant dense<0.000000e+00> : vector<8xf32>
    %12 = vector.multi_reduction <add>, %11, %cst_8 [1] : vector<8x512xf32> to vector<8xf32>
    %13 = vector.shape_cast %12 : vector<8xf32> to vector<8x1xf32>
    %cst_9 = arith.constant 0.001953125 : f32
    %14 = vector.broadcast %cst_9 : f32 to vector<8x1xf32>
    %15 = arith.mulf %10, %14 : vector<8x1xf32>
    %cst_10 = arith.constant 0.001953125 : f32
    %16 = vector.broadcast %cst_10 : f32 to vector<8x1xf32>
    %17 = arith.mulf %13, %16 : vector<8x1xf32>
    %18 = arith.mulf %15, %15 : vector<8x1xf32>
    %19 = arith.subf %17, %18 : vector<8x1xf32>
    %cst_11 = arith.constant 0.000000e+00 : f32
    %20 = vector.broadcast %cst_11 : f32 to vector<8x1xf32>
    %21 = arith.maximumf %19, %20 : vector<8x1xf32>
    %22 = vector.broadcast %15 : vector<8x1xf32> to vector<8x512xf32>
    %23 = arith.subf %8, %22 : vector<8x512xf32>
    %cst_12 = arith.constant 9.99999974E-6 : f32
    %24 = vector.broadcast %cst_12 : f32 to vector<8x1xf32>
    %25 = arith.addf %21, %24 : vector<8x1xf32>
    %26 = math.rsqrt %25 : vector<8x1xf32>
    %27 = vector.broadcast %26 : vector<8x1xf32> to vector<8x512xf32>
    %28 = arith.mulf %23, %27 : vector<8x512xf32>
    %29 = vector.broadcast %5 : vector<1x512xf32> to vector<8x512xf32>
    %30 = arith.mulf %28, %29 : vector<8x512xf32>
    %31 = vector.broadcast %6 : vector<1x512xf32> to vector<8x512xf32>
    %32 = arith.addf %30, %31 : vector<8x512xf32>
    %cst_13 = arith.constant 0.000000e+00 : f32
    %33 = vector.broadcast %cst_13 : f32 to vector<8x512xf32>
    %34 = arith.maximumf %32, %33 : vector<8x512xf32>
    %35 = arith.truncf %34 : vector<8x512xf32> to vector<8x512xbf16>
    %36 = vector.extract_strided_slice %2 {offsets = [0, 512], sizes = [8, 512], strides = [1, 1]} : vector<8x1024xf32> to vector<8x512xf32>
    %c9 = arith.constant 9 : index
    %c0_14 = arith.constant 0 : index
    %37 = vector.load %arg8[%c9, %c0_14] : memref<24x512xf32, #tpu.memory_space<vmem>>, vector<1x512xf32>
    %c10 = arith.constant 10 : index
    %c0_15 = arith.constant 0 : index
    %38 = vector.load %arg8[%c10, %c0_15] : memref<24x512xf32, #tpu.memory_space<vmem>>, vector<1x512xf32>
    %c11 = arith.constant 11 : index
    %c0_16 = arith.constant 0 : index
    %39 = vector.load %arg8[%c11, %c0_16] : memref<24x512xf32, #tpu.memory_space<vmem>>, vector<1x512xf32>
    %40 = vector.broadcast %37 : vector<1x512xf32> to vector<8x512xf32>
    %41 = arith.addf %36, %40 : vector<8x512xf32>
    %cst_17 = arith.constant dense<0.000000e+00> : vector<8xf32>
    %42 = vector.multi_reduction <add>, %41, %cst_17 [1] : vector<8x512xf32> to vector<8xf32>
    %43 = vector.shape_cast %42 : vector<8xf32> to vector<8x1xf32>
    %44 = arith.mulf %41, %41 : vector<8x512xf32>
    %cst_18 = arith.constant dense<0.000000e+00> : vector<8xf32>
    %45 = vector.multi_reduction <add>, %44, %cst_18 [1] : vector<8x512xf32> to vector<8xf32>
    %46 = vector.shape_cast %45 : vector<8xf32> to vector<8x1xf32>
    %cst_19 = arith.constant 0.001953125 : f32
    %47 = vector.broadcast %cst_19 : f32 to vector<8x1xf32>
    %48 = arith.mulf %43, %47 : vector<8x1xf32>
    %cst_20 = arith.constant 0.001953125 : f32
    %49 = vector.broadcast %cst_20 : f32 to vector<8x1xf32>
    %50 = arith.mulf %46, %49 : vector<8x1xf32>
    %51 = arith.mulf %48, %48 : vector<8x1xf32>
    %52 = arith.subf %50, %51 : vector<8x1xf32>
    %cst_21 = arith.constant 0.000000e+00 : f32
    %53 = vector.broadcast %cst_21 : f32 to vector<8x1xf32>
    %54 = arith.maximumf %52, %53 : vector<8x1xf32>
    %55 = vector.broadcast %48 : vector<8x1xf32> to vector<8x512xf32>
    %56 = arith.subf %41, %55 : vector<8x512xf32>
    %cst_22 = arith.constant 9.99999974E-6 : f32
    %57 = vector.broadcast %cst_22 : f32 to vector<8x1xf32>
    %58 = arith.addf %54, %57 : vector<8x1xf32>
    %59 = math.rsqrt %58 : vector<8x1xf32>
    %60 = vector.broadcast %59 : vector<8x1xf32> to vector<8x512xf32>
    %61 = arith.mulf %56, %60 : vector<8x512xf32>
    %62 = vector.broadcast %38 : vector<1x512xf32> to vector<8x512xf32>
    %63 = arith.mulf %61, %62 : vector<8x512xf32>
    %64 = vector.broadcast %39 : vector<1x512xf32> to vector<8x512xf32>
    %65 = arith.addf %63, %64 : vector<8x512xf32>
    %cst_23 = arith.constant 0.000000e+00 : f32
    %66 = vector.broadcast %cst_23 : f32 to vector<8x512xf32>
    %67 = arith.maximumf %65, %66 : vector<8x512xf32>
    %68 = arith.truncf %67 : vector<8x512xf32> to vector<8x512xbf16>
    %c0_24 = arith.constant 0 : index
    %c0_25 = arith.constant 0 : index
    %69 = vector.load %arg3[%c0_24, %c0_25] : memref<512x256xbf16, #tpu.memory_space<vmem>>, vector<512x256xbf16>
    %cst_26 = arith.constant dense<0.000000e+00> : vector<8x256xf32>
    %70 = tpu.matmul %35, %69, %cst_26 {dimension_numbers = #tpu.dot_dimension_numbers<[1], [0], [0], [1], [0, 0, 1, 1], [], []>} : vector<8x512xbf16>, vector<512x256xbf16>, vector<8x256xf32> -> vector<8x256xf32>
    %c3 = arith.constant 3 : index
    %c0_27 = arith.constant 0 : index
    %71 = vector.load %arg8[%c3, %c0_27] : memref<24x512xf32, #tpu.memory_space<vmem>>, vector<1x256xf32>
    %c4 = arith.constant 4 : index
    %c0_28 = arith.constant 0 : index
    %72 = vector.load %arg8[%c4, %c0_28] : memref<24x512xf32, #tpu.memory_space<vmem>>, vector<1x256xf32>
    %c5 = arith.constant 5 : index
    %c0_29 = arith.constant 0 : index
    %73 = vector.load %arg8[%c5, %c0_29] : memref<24x512xf32, #tpu.memory_space<vmem>>, vector<1x256xf32>
    %74 = vector.broadcast %71 : vector<1x256xf32> to vector<8x256xf32>
    %75 = arith.addf %70, %74 : vector<8x256xf32>
    %cst_30 = arith.constant dense<0.000000e+00> : vector<8xf32>
    %76 = vector.multi_reduction <add>, %75, %cst_30 [1] : vector<8x256xf32> to vector<8xf32>
    %77 = vector.shape_cast %76 : vector<8xf32> to vector<8x1xf32>
    %78 = arith.mulf %75, %75 : vector<8x256xf32>
    %cst_31 = arith.constant dense<0.000000e+00> : vector<8xf32>
    %79 = vector.multi_reduction <add>, %78, %cst_31 [1] : vector<8x256xf32> to vector<8xf32>
    %80 = vector.shape_cast %79 : vector<8xf32> to vector<8x1xf32>
    %cst_32 = arith.constant 3.906250e-03 : f32
    %81 = vector.broadcast %cst_32 : f32 to vector<8x1xf32>
    %82 = arith.mulf %77, %81 : vector<8x1xf32>
    %cst_33 = arith.constant 3.906250e-03 : f32
    %83 = vector.broadcast %cst_33 : f32 to vector<8x1xf32>
    %84 = arith.mulf %80, %83 : vector<8x1xf32>
    %85 = arith.mulf %82, %82 : vector<8x1xf32>
    %86 = arith.subf %84, %85 : vector<8x1xf32>
    %cst_34 = arith.constant 0.000000e+00 : f32
    %87 = vector.broadcast %cst_34 : f32 to vector<8x1xf32>
    %88 = arith.maximumf %86, %87 : vector<8x1xf32>
    %89 = vector.broadcast %82 : vector<8x1xf32> to vector<8x256xf32>
    %90 = arith.subf %75, %89 : vector<8x256xf32>
    %cst_35 = arith.constant 9.99999974E-6 : f32
    %91 = vector.broadcast %cst_35 : f32 to vector<8x1xf32>
    %92 = arith.addf %88, %91 : vector<8x1xf32>
    %93 = math.rsqrt %92 : vector<8x1xf32>
    %94 = vector.broadcast %93 : vector<8x1xf32> to vector<8x256xf32>
    %95 = arith.mulf %90, %94 : vector<8x256xf32>
    %96 = vector.broadcast %72 : vector<1x256xf32> to vector<8x256xf32>
    %97 = arith.mulf %95, %96 : vector<8x256xf32>
    %98 = vector.broadcast %73 : vector<1x256xf32> to vector<8x256xf32>
    %99 = arith.addf %97, %98 : vector<8x256xf32>
    %cst_36 = arith.constant 0.000000e+00 : f32
    %100 = vector.broadcast %cst_36 : f32 to vector<8x256xf32>
    %101 = arith.maximumf %99, %100 : vector<8x256xf32>
    %102 = arith.truncf %101 : vector<8x256xf32> to vector<8x256xbf16>
    %c0_37 = arith.constant 0 : index
    %c0_38 = arith.constant 0 : index
    %103 = vector.load %arg4[%c0_37, %c0_38] : memref<256x256xbf16, #tpu.memory_space<vmem>>, vector<256x256xbf16>
    %cst_39 = arith.constant dense<0.000000e+00> : vector<8x256xf32>
    %104 = tpu.matmul %102, %103, %cst_39 {dimension_numbers = #tpu.dot_dimension_numbers<[1], [0], [0], [1], [0, 0, 1, 1], [], []>} : vector<8x256xbf16>, vector<256x256xbf16>, vector<8x256xf32> -> vector<8x256xf32>
    %c6 = arith.constant 6 : index
    %c0_40 = arith.constant 0 : index
    %105 = vector.load %arg8[%c6, %c0_40] : memref<24x512xf32, #tpu.memory_space<vmem>>, vector<1x256xf32>
    %c7 = arith.constant 7 : index
    %c0_41 = arith.constant 0 : index
    %106 = vector.load %arg8[%c7, %c0_41] : memref<24x512xf32, #tpu.memory_space<vmem>>, vector<1x256xf32>
    %c8 = arith.constant 8 : index
    %c0_42 = arith.constant 0 : index
    %107 = vector.load %arg8[%c8, %c0_42] : memref<24x512xf32, #tpu.memory_space<vmem>>, vector<1x256xf32>
    %108 = vector.broadcast %105 : vector<1x256xf32> to vector<8x256xf32>
    %109 = arith.addf %104, %108 : vector<8x256xf32>
    %cst_43 = arith.constant dense<0.000000e+00> : vector<8xf32>
    %110 = vector.multi_reduction <add>, %109, %cst_43 [1] : vector<8x256xf32> to vector<8xf32>
    %111 = vector.shape_cast %110 : vector<8xf32> to vector<8x1xf32>
    %112 = arith.mulf %109, %109 : vector<8x256xf32>
    %cst_44 = arith.constant dense<0.000000e+00> : vector<8xf32>
    %113 = vector.multi_reduction <add>, %112, %cst_44 [1] : vector<8x256xf32> to vector<8xf32>
    %114 = vector.shape_cast %113 : vector<8xf32> to vector<8x1xf32>
    %cst_45 = arith.constant 3.906250e-03 : f32
    %115 = vector.broadcast %cst_45 : f32 to vector<8x1xf32>
    %116 = arith.mulf %111, %115 : vector<8x1xf32>
    %cst_46 = arith.constant 3.906250e-03 : f32
    %117 = vector.broadcast %cst_46 : f32 to vector<8x1xf32>
    %118 = arith.mulf %114, %117 : vector<8x1xf32>
    %119 = arith.mulf %116, %116 : vector<8x1xf32>
    %120 = arith.subf %118, %119 : vector<8x1xf32>
    %cst_47 = arith.constant 0.000000e+00 : f32
    %121 = vector.broadcast %cst_47 : f32 to vector<8x1xf32>
    %122 = arith.maximumf %120, %121 : vector<8x1xf32>
    %123 = vector.broadcast %116 : vector<8x1xf32> to vector<8x256xf32>
    %124 = arith.subf %109, %123 : vector<8x256xf32>
    %cst_48 = arith.constant 9.99999974E-6 : f32
    %125 = vector.broadcast %cst_48 : f32 to vector<8x1xf32>
    %126 = arith.addf %122, %125 : vector<8x1xf32>
    %127 = math.rsqrt %126 : vector<8x1xf32>
    %128 = vector.broadcast %127 : vector<8x1xf32> to vector<8x256xf32>
    %129 = arith.mulf %124, %128 : vector<8x256xf32>
    %130 = vector.broadcast %106 : vector<1x256xf32> to vector<8x256xf32>
    %131 = arith.mulf %129, %130 : vector<8x256xf32>
    %132 = vector.broadcast %107 : vector<1x256xf32> to vector<8x256xf32>
    %133 = arith.addf %131, %132 : vector<8x256xf32>
    %cst_49 = arith.constant 0.000000e+00 : f32
    %134 = vector.broadcast %cst_49 : f32 to vector<8x256xf32>
    %135 = arith.maximumf %133, %134 : vector<8x256xf32>
    %136 = arith.truncf %135 : vector<8x256xf32> to vector<8x256xbf16>
    %c0_50 = arith.constant 0 : index
    %c0_51 = arith.constant 0 : index
    %137 = vector.load %arg5[%c0_50, %c0_51] : memref<512x256xbf16, #tpu.memory_space<vmem>>, vector<512x256xbf16>
    %cst_52 = arith.constant dense<0.000000e+00> : vector<8x256xf32>
    %138 = tpu.matmul %68, %137, %cst_52 {dimension_numbers = #tpu.dot_dimension_numbers<[1], [0], [0], [1], [0, 0, 1, 1], [], []>} : vector<8x512xbf16>, vector<512x256xbf16>, vector<8x256xf32> -> vector<8x256xf32>
    %c12 = arith.constant 12 : index
    %c0_53 = arith.constant 0 : index
    %139 = vector.load %arg8[%c12, %c0_53] : memref<24x512xf32, #tpu.memory_space<vmem>>, vector<1x256xf32>
    %c13 = arith.constant 13 : index
    %c0_54 = arith.constant 0 : index
    %140 = vector.load %arg8[%c13, %c0_54] : memref<24x512xf32, #tpu.memory_space<vmem>>, vector<1x256xf32>
    %c14 = arith.constant 14 : index
    %c0_55 = arith.constant 0 : index
    %141 = vector.load %arg8[%c14, %c0_55] : memref<24x512xf32, #tpu.memory_space<vmem>>, vector<1x256xf32>
    %142 = vector.broadcast %139 : vector<1x256xf32> to vector<8x256xf32>
    %143 = arith.addf %138, %142 : vector<8x256xf32>
    %cst_56 = arith.constant dense<0.000000e+00> : vector<8xf32>
    %144 = vector.multi_reduction <add>, %143, %cst_56 [1] : vector<8x256xf32> to vector<8xf32>
    %145 = vector.shape_cast %144 : vector<8xf32> to vector<8x1xf32>
    %146 = arith.mulf %143, %143 : vector<8x256xf32>
    %cst_57 = arith.constant dense<0.000000e+00> : vector<8xf32>
    %147 = vector.multi_reduction <add>, %146, %cst_57 [1] : vector<8x256xf32> to vector<8xf32>
    %148 = vector.shape_cast %147 : vector<8xf32> to vector<8x1xf32>
    %cst_58 = arith.constant 3.906250e-03 : f32
    %149 = vector.broadcast %cst_58 : f32 to vector<8x1xf32>
    %150 = arith.mulf %145, %149 : vector<8x1xf32>
    %cst_59 = arith.constant 3.906250e-03 : f32
    %151 = vector.broadcast %cst_59 : f32 to vector<8x1xf32>
    %152 = arith.mulf %148, %151 : vector<8x1xf32>
    %153 = arith.mulf %150, %150 : vector<8x1xf32>
    %154 = arith.subf %152, %153 : vector<8x1xf32>
    %cst_60 = arith.constant 0.000000e+00 : f32
    %155 = vector.broadcast %cst_60 : f32 to vector<8x1xf32>
    %156 = arith.maximumf %154, %155 : vector<8x1xf32>
    %157 = vector.broadcast %150 : vector<8x1xf32> to vector<8x256xf32>
    %158 = arith.subf %143, %157 : vector<8x256xf32>
    %cst_61 = arith.constant 9.99999974E-6 : f32
    %159 = vector.broadcast %cst_61 : f32 to vector<8x1xf32>
    %160 = arith.addf %156, %159 : vector<8x1xf32>
    %161 = math.rsqrt %160 : vector<8x1xf32>
    %162 = vector.broadcast %161 : vector<8x1xf32> to vector<8x256xf32>
    %163 = arith.mulf %158, %162 : vector<8x256xf32>
    %164 = vector.broadcast %140 : vector<1x256xf32> to vector<8x256xf32>
    %165 = arith.mulf %163, %164 : vector<8x256xf32>
    %166 = vector.broadcast %141 : vector<1x256xf32> to vector<8x256xf32>
    %167 = arith.addf %165, %166 : vector<8x256xf32>
    %cst_62 = arith.constant 0.000000e+00 : f32
    %168 = vector.broadcast %cst_62 : f32 to vector<8x256xf32>
    %169 = arith.maximumf %167, %168 : vector<8x256xf32>
    %170 = arith.truncf %169 : vector<8x256xf32> to vector<8x256xbf16>
    %c0_63 = arith.constant 0 : index
    %c0_64 = arith.constant 0 : index
    %171 = vector.load %arg6[%c0_63, %c0_64] : memref<256x128xbf16, #tpu.memory_space<vmem>>, vector<256x128xbf16>
    %cst_65 = arith.constant dense<0.000000e+00> : vector<8x128xf32>
    %172 = tpu.matmul %170, %171, %cst_65 {dimension_numbers = #tpu.dot_dimension_numbers<[1], [0], [0], [1], [0, 0, 1, 1], [], []>} : vector<8x256xbf16>, vector<256x128xbf16>, vector<8x128xf32> -> vector<8x128xf32>
    %c15 = arith.constant 15 : index
    %c0_66 = arith.constant 0 : index
    %173 = vector.load %arg8[%c15, %c0_66] : memref<24x512xf32, #tpu.memory_space<vmem>>, vector<1x128xf32>
    %c16 = arith.constant 16 : index
    %c0_67 = arith.constant 0 : index
    %174 = vector.load %arg8[%c16, %c0_67] : memref<24x512xf32, #tpu.memory_space<vmem>>, vector<1x128xf32>
    %c17 = arith.constant 17 : index
    %c0_68 = arith.constant 0 : index
    %175 = vector.load %arg8[%c17, %c0_68] : memref<24x512xf32, #tpu.memory_space<vmem>>, vector<1x128xf32>
    %176 = vector.broadcast %173 : vector<1x128xf32> to vector<8x128xf32>
    %177 = arith.addf %172, %176 : vector<8x128xf32>
    %cst_69 = arith.constant dense<0.000000e+00> : vector<8xf32>
    %178 = vector.multi_reduction <add>, %177, %cst_69 [1] : vector<8x128xf32> to vector<8xf32>
    %179 = vector.shape_cast %178 : vector<8xf32> to vector<8x1xf32>
    %180 = arith.mulf %177, %177 : vector<8x128xf32>
    %cst_70 = arith.constant dense<0.000000e+00> : vector<8xf32>
    %181 = vector.multi_reduction <add>, %180, %cst_70 [1] : vector<8x128xf32> to vector<8xf32>
    %182 = vector.shape_cast %181 : vector<8xf32> to vector<8x1xf32>
    %cst_71 = arith.constant 7.812500e-03 : f32
    %183 = vector.broadcast %cst_71 : f32 to vector<8x1xf32>
    %184 = arith.mulf %179, %183 : vector<8x1xf32>
    %cst_72 = arith.constant 7.812500e-03 : f32
    %185 = vector.broadcast %cst_72 : f32 to vector<8x1xf32>
    %186 = arith.mulf %182, %185 : vector<8x1xf32>
    %187 = arith.mulf %184, %184 : vector<8x1xf32>
    %188 = arith.subf %186, %187 : vector<8x1xf32>
    %cst_73 = arith.constant 0.000000e+00 : f32
    %189 = vector.broadcast %cst_73 : f32 to vector<8x1xf32>
    %190 = arith.maximumf %188, %189 : vector<8x1xf32>
    %191 = vector.broadcast %184 : vector<8x1xf32> to vector<8x128xf32>
    %192 = arith.subf %177, %191 : vector<8x128xf32>
    %cst_74 = arith.constant 9.99999974E-6 : f32
    %193 = vector.broadcast %cst_74 : f32 to vector<8x1xf32>
    %194 = arith.addf %190, %193 : vector<8x1xf32>
    %195 = math.rsqrt %194 : vector<8x1xf32>
    %196 = vector.broadcast %195 : vector<8x1xf32> to vector<8x128xf32>
    %197 = arith.mulf %192, %196 : vector<8x128xf32>
    %198 = vector.broadcast %174 : vector<1x128xf32> to vector<8x128xf32>
    %199 = arith.mulf %197, %198 : vector<8x128xf32>
    %200 = vector.broadcast %175 : vector<1x128xf32> to vector<8x128xf32>
    %201 = arith.addf %199, %200 : vector<8x128xf32>
    %cst_75 = arith.constant 0.000000e+00 : f32
    %202 = vector.broadcast %cst_75 : f32 to vector<8x128xf32>
    %203 = arith.maximumf %201, %202 : vector<8x128xf32>
    %204 = arith.truncf %203 : vector<8x128xf32> to vector<8x128xbf16>
    %205 = tpu.concatenate %136, %204 in 1 : vector<8x256xbf16>, vector<8x128xbf16> -> vector<8x384xbf16>
    %c0_76 = arith.constant 0 : index
    %c0_77 = arith.constant 0 : index
    %206 = vector.load %arg7[%c0_76, %c0_77] : memref<384x128xbf16, #tpu.memory_space<vmem>>, vector<384x128xbf16>
    %cst_78 = arith.constant dense<0.000000e+00> : vector<8x128xf32>
    %207 = tpu.matmul %205, %206, %cst_78 {dimension_numbers = #tpu.dot_dimension_numbers<[1], [0], [0], [1], [0, 0, 1, 1], [], []>} : vector<8x384xbf16>, vector<384x128xbf16>, vector<8x128xf32> -> vector<8x128xf32>
    %c18 = arith.constant 18 : index
    %c0_79 = arith.constant 0 : index
    %208 = vector.load %arg8[%c18, %c0_79] : memref<24x512xf32, #tpu.memory_space<vmem>>, vector<1x128xf32>
    %209 = vector.broadcast %208 : vector<1x128xf32> to vector<8x128xf32>
    %210 = arith.addf %207, %209 : vector<8x128xf32>
    %c0_80 = arith.constant 0 : index
    %c0_81 = arith.constant 0 : index
    %211 = vector.load %arg9[%c0_80, %c0_81] : memref<8x128xf32, #tpu.memory_space<vmem>>, vector<8x128xf32>
    tpu.vector_store %arg9[%c0_80, %c0_81], %210 {strides = array<i32>} : memref<8x128xf32, #tpu.memory_space<vmem>>, vector<8x128xf32>,
    return
  }
  func.func @transform_0(%arg0: i32) -> (i32, i32) {
    %c0_i32 = arith.constant 0 : i32
    %c0_i32_0 = arith.constant 0 : i32
    return %arg0, %c0_i32 : i32, i32
  }
  func.func @transform_1(%arg0: i32) -> (i32, i32) {
    %c0_i32 = arith.constant 0 : i32
    %c0_i32_0 = arith.constant 0 : i32
    %c0_i32_1 = arith.constant 0 : i32
    return %c0_i32, %c0_i32_0 : i32, i32
  }
  func.func @transform_2(%arg0: i32) -> (i32, i32) {
    %c0_i32 = arith.constant 0 : i32
    %c0_i32_0 = arith.constant 0 : i32
    %c0_i32_1 = arith.constant 0 : i32
    return %c0_i32, %c0_i32_0 : i32, i32
  }
  func.func @transform_3(%arg0: i32) -> (i32, i32) {
    %c0_i32 = arith.constant 0 : i32
    %c0_i32_0 = arith.constant 0 : i32
    %c0_i32_1 = arith.constant 0 : i32
    return %c0_i32, %c0_i32_0 : i32, i32
  }
  func.func @transform_4(%arg0: i32) -> (i32, i32) {
    %c0_i32 = arith.constant 0 : i32
    %c0_i32_0 = arith.constant 0 : i32
    %c0_i32_1 = arith.constant 0 : i32
    return %c0_i32, %c0_i32_0 : i32, i32
  }
  func.func @transform_5(%arg0: i32) -> (i32, i32) {
    %c0_i32 = arith.constant 0 : i32
    %c0_i32_0 = arith.constant 0 : i32
    %c0_i32_1 = arith.constant 0 : i32
    return %c0_i32, %c0_i32_0 : i32, i32
  }
  func.func @transform_6(%arg0: i32) -> (i32, i32) {
    %c0_i32 = arith.constant 0 : i32
    %c0_i32_0 = arith.constant 0 : i32
    %c0_i32_1 = arith.constant 0 : i32
    return %c0_i32, %c0_i32_0 : i32, i32
  }
  func.func @transform_7(%arg0: i32) -> (i32, i32) {
    %c0_i32 = arith.constant 0 : i32
    %c0_i32_0 = arith.constant 0 : i32
    %c0_i32_1 = arith.constant 0 : i32
    return %c0_i32, %c0_i32_0 : i32, i32
  }
  func.func @transform_8(%arg0: i32) -> (i32, i32) {
    %c0_i32 = arith.constant 0 : i32
    %c0_i32_0 = arith.constant 0 : i32
    return %arg0, %c0_i32 : i32, i32
  }
}

module attributes {stable_mosaic.version = 11 : i64} {
  func.func @_fused_mlp_kernel(%arg0: i32, %arg1: memref<8x768xbf16, #tpu.memory_space<vmem>>, %arg2: memref<768x1024xbf16, #tpu.memory_space<vmem>>, %arg3: memref<512x256xbf16, #tpu.memory_space<vmem>>, %arg4: memref<256x256xbf16, #tpu.memory_space<vmem>>, %arg5: memref<512x256xbf16, #tpu.memory_space<vmem>>, %arg6: memref<256x128xbf16, #tpu.memory_space<vmem>>, %arg7: memref<384x128xbf16, #tpu.memory_space<vmem>>, %arg8: memref<24x512xf32, #tpu.memory_space<vmem>>, %arg9: memref<8x128xf32, #tpu.memory_space<vmem>>) attributes {dimension_semantics = [#tpu.dimension_semantics<parallel>], iteration_bounds = array<i64: 1>, scalar_prefetch = 0 : i64, scratch_operands = 0 : i64, tpu.core_type = #tpu.core_type<tc>, window_params = [{transform_indices = @transform_0, window_bounds = array<i64: 8, 768>}, {pipeline_mode = #tpu.pipeline_mode<synchronous>, transform_indices = @transform_1, window_bounds = array<i64: 768, 1024>}, {pipeline_mode = #tpu.pipeline_mode<synchronous>, transform_indices = @transform_2, window_bounds = array<i64: 512, 256>}, {pipeline_mode = #tpu.pipeline_mode<synchronous>, transform_indices = @transform_3, window_bounds = array<i64: 256, 256>}, {pipeline_mode = #tpu.pipeline_mode<synchronous>, transform_indices = @transform_4, window_bounds = array<i64: 512, 256>}, {pipeline_mode = #tpu.pipeline_mode<synchronous>, transform_indices = @transform_5, window_bounds = array<i64: 256, 128>}, {pipeline_mode = #tpu.pipeline_mode<synchronous>, transform_indices = @transform_6, window_bounds = array<i64: 384, 128>}, {pipeline_mode = #tpu.pipeline_mode<synchronous>, transform_indices = @transform_7, window_bounds = array<i64: 24, 512>}, {transform_indices = @transform_8, window_bounds = array<i64: 8, 128>}]} {
    %c0 = arith.constant 0 : index
    %c0_0 = arith.constant 0 : index
    %0 = vector.load %arg1[%c0, %c0_0] : memref<8x768xbf16, #tpu.memory_space<vmem>>, vector<8x768xbf16>
    %c0_1 = arith.constant 0 : index
    %c0_2 = arith.constant 0 : index
    %1 = vector.load %arg2[%c0_1, %c0_2] : memref<768x1024xbf16, #tpu.memory_space<vmem>>, vector<768x1024xbf16>
    %cst = arith.constant dense<0.000000e+00> : vector<8x1024xf32>
    %2 = tpu.matmul %0, %1, %cst {dimension_numbers = #tpu.dot_dimension_numbers<[1], [0], [0], [1], [0, 0, 1, 1], [], []>} : vector<8x768xbf16>, vector<768x1024xbf16>, vector<8x1024xf32> -> vector<8x1024xf32>
    %3 = vector.extract_strided_slice %2 {offsets = [0, 0], sizes = [8, 512], strides = [1, 1]} : vector<8x1024xf32> to vector<8x512xf32>
    %c0_3 = arith.constant 0 : index
    %c0_4 = arith.constant 0 : index
    %4 = vector.load %arg8[%c0_3, %c0_4] : memref<24x512xf32, #tpu.memory_space<vmem>>, vector<1x512xf32>
    %c1 = arith.constant 1 : index
    %c0_5 = arith.constant 0 : index
    %5 = vector.load %arg8[%c1, %c0_5] : memref<24x512xf32, #tpu.memory_space<vmem>>, vector<1x512xf32>
    %c2 = arith.constant 2 : index
    %c0_6 = arith.constant 0 : index
    %6 = vector.load %arg8[%c2, %c0_6] : memref<24x512xf32, #tpu.memory_space<vmem>>, vector<1x512xf32>
    %7 = vector.broadcast %4 : vector<1x512xf32> to vector<8x512xf32>
    %8 = arith.addf %3, %7 : vector<8x512xf32>
    %cst_7 = arith.constant dense<0.000000e+00> : vector<8xf32>
    %9 = vector.multi_reduction <add>, %8, %cst_7 [1] : vector<8x512xf32> to vector<8xf32>
    %10 = vector.shape_cast %9 : vector<8xf32> to vector<8x1xf32>
    %11 = arith.mulf %8, %8 : vector<8x512xf32>
    %cst_8 = arith.constant dense<0.000000e+00> : vector<8xf32>
    %12 = vector.multi_reduction <add>, %11, %cst_8 [1] : vector<8x512xf32> to vector<8xf32>
    %13 = vector.shape_cast %12 : vector<8xf32> to vector<8x1xf32>
    %cst_9 = arith.constant 0.001953125 : f32
    %14 = vector.broadcast %cst_9 : f32 to vector<8x1xf32>
    %15 = arith.mulf %10, %14 : vector<8x1xf32>
    %cst_10 = arith.constant 0.001953125 : f32
    %16 = vector.broadcast %cst_10 : f32 to vector<8x1xf32>
    %17 = arith.mulf %13, %16 : vector<8x1xf32>
    %18 = arith.mulf %15, %15 : vector<8x1xf32>
    %19 = arith.subf %17, %18 : vector<8x1xf32>
    %cst_11 = arith.constant 0.000000e+00 : f32
    %20 = vector.broadcast %cst_11 : f32 to vector<8x1xf32>
    %21 = arith.maximumf %19, %20 : vector<8x1xf32>
    %22 = vector.broadcast %15 : vector<8x1xf32> to vector<8x512xf32>
    %23 = arith.subf %8, %22 : vector<8x512xf32>
    %cst_12 = arith.constant 9.99999974E-6 : f32
    %24 = vector.broadcast %cst_12 : f32 to vector<8x1xf32>
    %25 = arith.addf %21, %24 : vector<8x1xf32>
    %26 = math.rsqrt %25 : vector<8x1xf32>
    %27 = vector.broadcast %26 : vector<8x1xf32> to vector<8x512xf32>
    %28 = arith.mulf %23, %27 : vector<8x512xf32>
    %29 = vector.broadcast %5 : vector<1x512xf32> to vector<8x512xf32>
    %30 = arith.mulf %28, %29 : vector<8x512xf32>
    %31 = vector.broadcast %6 : vector<1x512xf32> to vector<8x512xf32>
    %32 = arith.addf %30, %31 : vector<8x512xf32>
    %cst_13 = arith.constant 0.000000e+00 : f32
    %33 = vector.broadcast %cst_13 : f32 to vector<8x512xf32>
    %34 = arith.maximumf %32, %33 : vector<8x512xf32>
    %35 = arith.truncf %34 : vector<8x512xf32> to vector<8x512xbf16>
    %36 = vector.extract_strided_slice %2 {offsets = [0, 512], sizes = [8, 512], strides = [1, 1]} : vector<8x1024xf32> to vector<8x512xf32>
    %c9 = arith.constant 9 : index
    %c0_14 = arith.constant 0 : index
    %37 = vector.load %arg8[%c9, %c0_14] : memref<24x512xf32, #tpu.memory_space<vmem>>, vector<1x512xf32>
    %c10 = arith.constant 10 : index
    %c0_15 = arith.constant 0 : index
    %38 = vector.load %arg8[%c10, %c0_15] : memref<24x512xf32, #tpu.memory_space<vmem>>, vector<1x512xf32>
    %c11 = arith.constant 11 : index
    %c0_16 = arith.constant 0 : index
    %39 = vector.load %arg8[%c11, %c0_16] : memref<24x512xf32, #tpu.memory_space<vmem>>, vector<1x512xf32>
    %40 = vector.broadcast %37 : vector<1x512xf32> to vector<8x512xf32>
    %41 = arith.addf %36, %40 : vector<8x512xf32>
    %cst_17 = arith.constant dense<0.000000e+00> : vector<8xf32>
    %42 = vector.multi_reduction <add>, %41, %cst_17 [1] : vector<8x512xf32> to vector<8xf32>
    %43 = vector.shape_cast %42 : vector<8xf32> to vector<8x1xf32>
    %44 = arith.mulf %41, %41 : vector<8x512xf32>
    %cst_18 = arith.constant dense<0.000000e+00> : vector<8xf32>
    %45 = vector.multi_reduction <add>, %44, %cst_18 [1] : vector<8x512xf32> to vector<8xf32>
    %46 = vector.shape_cast %45 : vector<8xf32> to vector<8x1xf32>
    %cst_19 = arith.constant 0.001953125 : f32
    %47 = vector.broadcast %cst_19 : f32 to vector<8x1xf32>
    %48 = arith.mulf %43, %47 : vector<8x1xf32>
    %cst_20 = arith.constant 0.001953125 : f32
    %49 = vector.broadcast %cst_20 : f32 to vector<8x1xf32>
    %50 = arith.mulf %46, %49 : vector<8x1xf32>
    %51 = arith.mulf %48, %48 : vector<8x1xf32>
    %52 = arith.subf %50, %51 : vector<8x1xf32>
    %cst_21 = arith.constant 0.000000e+00 : f32
    %53 = vector.broadcast %cst_21 : f32 to vector<8x1xf32>
    %54 = arith.maximumf %52, %53 : vector<8x1xf32>
    %55 = vector.broadcast %48 : vector<8x1xf32> to vector<8x512xf32>
    %56 = arith.subf %41, %55 : vector<8x512xf32>
    %cst_22 = arith.constant 9.99999974E-6 : f32
    %57 = vector.broadcast %cst_22 : f32 to vector<8x1xf32>
    %58 = arith.addf %54, %57 : vector<8x1xf32>
    %59 = math.rsqrt %58 : vector<8x1xf32>
    %60 = vector.broadcast %59 : vector<8x1xf32> to vector<8x512xf32>
    %61 = arith.mulf %56, %60 : vector<8x512xf32>
    %62 = vector.broadcast %38 : vector<1x512xf32> to vector<8x512xf32>
    %63 = arith.mulf %61, %62 : vector<8x512xf32>
    %64 = vector.broadcast %39 : vector<1x512xf32> to vector<8x512xf32>
    %65 = arith.addf %63, %64 : vector<8x512xf32>
    %cst_23 = arith.constant 0.000000e+00 : f32
    %66 = vector.broadcast %cst_23 : f32 to vector<8x512xf32>
    %67 = arith.maximumf %65, %66 : vector<8x512xf32>
    %68 = arith.truncf %67 : vector<8x512xf32> to vector<8x512xbf16>
    %c0_24 = arith.constant 0 : index
    %c0_25 = arith.constant 0 : index
    %69 = vector.load %arg3[%c0_24, %c0_25] : memref<512x256xbf16, #tpu.memory_space<vmem>>, vector<512x256xbf16>
    %cst_26 = arith.constant dense<0.000000e+00> : vector<8x256xf32>
    %70 = tpu.matmul %35, %69, %cst_26 {dimension_numbers = #tpu.dot_dimension_numbers<[1], [0], [0], [1], [0, 0, 1, 1], [], []>} : vector<8x512xbf16>, vector<512x256xbf16>, vector<8x256xf32> -> vector<8x256xf32>
    %c3 = arith.constant 3 : index
    %c0_27 = arith.constant 0 : index
    %71 = vector.load %arg8[%c3, %c0_27] : memref<24x512xf32, #tpu.memory_space<vmem>>, vector<1x256xf32>
    %c4 = arith.constant 4 : index
    %c0_28 = arith.constant 0 : index
    %72 = vector.load %arg8[%c4, %c0_28] : memref<24x512xf32, #tpu.memory_space<vmem>>, vector<1x256xf32>
    %c5 = arith.constant 5 : index
    %c0_29 = arith.constant 0 : index
    %73 = vector.load %arg8[%c5, %c0_29] : memref<24x512xf32, #tpu.memory_space<vmem>>, vector<1x256xf32>
    %74 = vector.broadcast %71 : vector<1x256xf32> to vector<8x256xf32>
    %75 = arith.addf %70, %74 : vector<8x256xf32>
    %cst_30 = arith.constant dense<0.000000e+00> : vector<8xf32>
    %76 = vector.multi_reduction <add>, %75, %cst_30 [1] : vector<8x256xf32> to vector<8xf32>
    %77 = vector.shape_cast %76 : vector<8xf32> to vector<8x1xf32>
    %78 = arith.mulf %75, %75 : vector<8x256xf32>
    %cst_31 = arith.constant dense<0.000000e+00> : vector<8xf32>
    %79 = vector.multi_reduction <add>, %78, %cst_31 [1] : vector<8x256xf32> to vector<8xf32>
    %80 = vector.shape_cast %79 : vector<8xf32> to vector<8x1xf32>
    %cst_32 = arith.constant 3.906250e-03 : f32
    %81 = vector.broadcast %cst_32 : f32 to vector<8x1xf32>
    %82 = arith.mulf %77, %81 : vector<8x1xf32>
    %cst_33 = arith.constant 3.906250e-03 : f32
    %83 = vector.broadcast %cst_33 : f32 to vector<8x1xf32>
    %84 = arith.mulf %80, %83 : vector<8x1xf32>
    %85 = arith.mulf %82, %82 : vector<8x1xf32>
    %86 = arith.subf %84, %85 : vector<8x1xf32>
    %cst_34 = arith.constant 0.000000e+00 : f32
    %87 = vector.broadcast %cst_34 : f32 to vector<8x1xf32>
    %88 = arith.maximumf %86, %87 : vector<8x1xf32>
    %89 = vector.broadcast %82 : vector<8x1xf32> to vector<8x256xf32>
    %90 = arith.subf %75, %89 : vector<8x256xf32>
    %cst_35 = arith.constant 9.99999974E-6 : f32
    %91 = vector.broadcast %cst_35 : f32 to vector<8x1xf32>
    %92 = arith.addf %88, %91 : vector<8x1xf32>
    %93 = math.rsqrt %92 : vector<8x1xf32>
    %94 = vector.broadcast %93 : vector<8x1xf32> to vector<8x256xf32>
    %95 = arith.mulf %90, %94 : vector<8x256xf32>
    %96 = vector.broadcast %72 : vector<1x256xf32> to vector<8x256xf32>
    %97 = arith.mulf %95, %96 : vector<8x256xf32>
    %98 = vector.broadcast %73 : vector<1x256xf32> to vector<8x256xf32>
    %99 = arith.addf %97, %98 : vector<8x256xf32>
    %cst_36 = arith.constant 0.000000e+00 : f32
    %100 = vector.broadcast %cst_36 : f32 to vector<8x256xf32>
    %101 = arith.maximumf %99, %100 : vector<8x256xf32>
    %102 = arith.truncf %101 : vector<8x256xf32> to vector<8x256xbf16>
    %c0_37 = arith.constant 0 : index
    %c0_38 = arith.constant 0 : index
    %103 = vector.load %arg4[%c0_37, %c0_38] : memref<256x256xbf16, #tpu.memory_space<vmem>>, vector<256x256xbf16>
    %cst_39 = arith.constant dense<0.000000e+00> : vector<8x256xf32>
    %104 = tpu.matmul %102, %103, %cst_39 {dimension_numbers = #tpu.dot_dimension_numbers<[1], [0], [0], [1], [0, 0, 1, 1], [], []>} : vector<8x256xbf16>, vector<256x256xbf16>, vector<8x256xf32> -> vector<8x256xf32>
    %c6 = arith.constant 6 : index
    %c0_40 = arith.constant 0 : index
    %105 = vector.load %arg8[%c6, %c0_40] : memref<24x512xf32, #tpu.memory_space<vmem>>, vector<1x256xf32>
    %c7 = arith.constant 7 : index
    %c0_41 = arith.constant 0 : index
    %106 = vector.load %arg8[%c7, %c0_41] : memref<24x512xf32, #tpu.memory_space<vmem>>, vector<1x256xf32>
    %c8 = arith.constant 8 : index
    %c0_42 = arith.constant 0 : index
    %107 = vector.load %arg8[%c8, %c0_42] : memref<24x512xf32, #tpu.memory_space<vmem>>, vector<1x256xf32>
    %108 = vector.broadcast %105 : vector<1x256xf32> to vector<8x256xf32>
    %109 = arith.addf %104, %108 : vector<8x256xf32>
    %cst_43 = arith.constant dense<0.000000e+00> : vector<8xf32>
    %110 = vector.multi_reduction <add>, %109, %cst_43 [1] : vector<8x256xf32> to vector<8xf32>
    %111 = vector.shape_cast %110 : vector<8xf32> to vector<8x1xf32>
    %112 = arith.mulf %109, %109 : vector<8x256xf32>
    %cst_44 = arith.constant dense<0.000000e+00> : vector<8xf32>
    %113 = vector.multi_reduction <add>, %112, %cst_44 [1] : vector<8x256xf32> to vector<8xf32>
    %114 = vector.shape_cast %113 : vector<8xf32> to vector<8x1xf32>
    %cst_45 = arith.constant 3.906250e-03 : f32
    %115 = vector.broadcast %cst_45 : f32 to vector<8x1xf32>
    %116 = arith.mulf %111, %115 : vector<8x1xf32>
    %cst_46 = arith.constant 3.906250e-03 : f32
    %117 = vector.broadcast %cst_46 : f32 to vector<8x1xf32>
    %118 = arith.mulf %114, %117 : vector<8x1xf32>
    %119 = arith.mulf %116, %116 : vector<8x1xf32>
    %120 = arith.subf %118, %119 : vector<8x1xf32>
    %cst_47 = arith.constant 0.000000e+00 : f32
    %121 = vector.broadcast %cst_47 : f32 to vector<8x1xf32>
    %122 = arith.maximumf %120, %121 : vector<8x1xf32>
    %123 = vector.broadcast %116 : vector<8x1xf32> to vector<8x256xf32>
    %124 = arith.subf %109, %123 : vector<8x256xf32>
    %cst_48 = arith.constant 9.99999974E-6 : f32
    %125 = vector.broadcast %cst_48 : f32 to vector<8x1xf32>
    %126 = arith.addf %122, %125 : vector<8x1xf32>
    %127 = math.rsqrt %126 : vector<8x1xf32>
    %128 = vector.broadcast %127 : vector<8x1xf32> to vector<8x256xf32>
    %129 = arith.mulf %124, %128 : vector<8x256xf32>
    %130 = vector.broadcast %106 : vector<1x256xf32> to vector<8x256xf32>
    %131 = arith.mulf %129, %130 : vector<8x256xf32>
    %132 = vector.broadcast %107 : vector<1x256xf32> to vector<8x256xf32>
    %133 = arith.addf %131, %132 : vector<8x256xf32>
    %cst_49 = arith.constant 0.000000e+00 : f32
    %134 = vector.broadcast %cst_49 : f32 to vector<8x256xf32>
    %135 = arith.maximumf %133, %134 : vector<8x256xf32>
    %136 = arith.truncf %135 : vector<8x256xf32> to vector<8x256xbf16>
    %c0_50 = arith.constant 0 : index
    %c0_51 = arith.constant 0 : index
    %137 = vector.load %arg5[%c0_50, %c0_51] : memref<512x256xbf16, #tpu.memory_space<vmem>>, vector<512x256xbf16>
    %cst_52 = arith.constant dense<0.000000e+00> : vector<8x256xf32>
    %138 = tpu.matmul %68, %137, %cst_52 {dimension_numbers = #tpu.dot_dimension_numbers<[1], [0], [0], [1], [0, 0, 1, 1], [], []>} : vector<8x512xbf16>, vector<512x256xbf16>, vector<8x256xf32> -> vector<8x256xf32>
    %c12 = arith.constant 12 : index
    %c0_53 = arith.constant 0 : index
    %139 = vector.load %arg8[%c12, %c0_53] : memref<24x512xf32, #tpu.memory_space<vmem>>, vector<1x256xf32>
    %c13 = arith.constant 13 : index
    %c0_54 = arith.constant 0 : index
    %140 = vector.load %arg8[%c13, %c0_54] : memref<24x512xf32, #tpu.memory_space<vmem>>, vector<1x256xf32>
    %c14 = arith.constant 14 : index
    %c0_55 = arith.constant 0 : index
    %141 = vector.load %arg8[%c14, %c0_55] : memref<24x512xf32, #tpu.memory_space<vmem>>, vector<1x256xf32>
    %142 = vector.broadcast %139 : vector<1x256xf32> to vector<8x256xf32>
    %143 = arith.addf %138, %142 : vector<8x256xf32>
    %cst_56 = arith.constant dense<0.000000e+00> : vector<8xf32>
    %144 = vector.multi_reduction <add>, %143, %cst_56 [1] : vector<8x256xf32> to vector<8xf32>
    %145 = vector.shape_cast %144 : vector<8xf32> to vector<8x1xf32>
    %146 = arith.mulf %143, %143 : vector<8x256xf32>
    %cst_57 = arith.constant dense<0.000000e+00> : vector<8xf32>
    %147 = vector.multi_reduction <add>, %146, %cst_57 [1] : vector<8x256xf32> to vector<8xf32>
    %148 = vector.shape_cast %147 : vector<8xf32> to vector<8x1xf32>
    %cst_58 = arith.constant 3.906250e-03 : f32
    %149 = vector.broadcast %cst_58 : f32 to vector<8x1xf32>
    %150 = arith.mulf %145, %149 : vector<8x1xf32>
    %cst_59 = arith.constant 3.906250e-03 : f32
    %151 = vector.broadcast %cst_59 : f32 to vector<8x1xf32>
    %152 = arith.mulf %148, %151 : vector<8x1xf32>
    %153 = arith.mulf %150, %150 : vector<8x1xf32>
    %154 = arith.subf %152, %153 : vector<8x1xf32>
    %cst_60 = arith.constant 0.000000e+00 : f32
    %155 = vector.broadcast %cst_60 : f32 to vector<8x1xf32>
    %156 = arith.maximumf %154, %155 : vector<8x1xf32>
    %157 = vector.broadcast %150 : vector<8x1xf32> to vector<8x256xf32>
    %158 = arith.subf %143, %157 : vector<8x256xf32>
    %cst_61 = arith.constant 9.99999974E-6 : f32
    %159 = vector.broadcast %cst_61 : f32 to vector<8x1xf32>
    %160 = arith.addf %156, %159 : vector<8x1xf32>
    %161 = math.rsqrt %160 : vector<8x1xf32>
    %162 = vector.broadcast %161 : vector<8x1xf32> to vector<8x256xf32>
    %163 = arith.mulf %158, %162 : vector<8x256xf32>
    %164 = vector.broadcast %140 : vector<1x256xf32> to vector<8x256xf32>
    %165 = arith.mulf %163, %164 : vector<8x256xf32>
    %166 = vector.broadcast %141 : vector<1x256xf32> to vector<8x256xf32>
    %167 = arith.addf %165, %166 : vector<8x256xf32>
    %cst_62 = arith.constant 0.000000e+00 : f32
    %168 = vector.broadcast %cst_62 : f32 to vector<8x256xf32>
    %169 = arith.maximumf %167, %168 : vector<8x256xf32>
    %170 = arith.truncf %169 : vector<8x256xf32> to vector<8x256xbf16>
    %c0_63 = arith.constant 0 : index
    %c0_64 = arith.constant 0 : index
    %171 = vector.load %arg6[%c0_63, %c0_64] : memref<256x128xbf16, #tpu.memory_space<vmem>>, vector<256x128xbf16>
    %cst_65 = arith.constant dense<0.000000e+00> : vector<8x128xf32>
    %172 = tpu.matmul %170, %171, %cst_65 {dimension_numbers = #tpu.dot_dimension_numbers<[1], [0], [0], [1], [0, 0, 1, 1], [], []>} : vector<8x256xbf16>, vector<256x128xbf16>, vector<8x128xf32> -> vector<8x128xf32>
    %c15 = arith.constant 15 : index
    %c0_66 = arith.constant 0 : index
    %173 = vector.load %arg8[%c15, %c0_66] : memref<24x512xf32, #tpu.memory_space<vmem>>, vector<1x128xf32>
    %c16 = arith.constant 16 : index
    %c0_67 = arith.constant 0 : index
    %174 = vector.load %arg8[%c16, %c0_67] : memref<24x512xf32, #tpu.memory_space<vmem>>, vector<1x128xf32>
    %c17 = arith.constant 17 : index
    %c0_68 = arith.constant 0 : index
    %175 = vector.load %arg8[%c17, %c0_68] : memref<24x512xf32, #tpu.memory_space<vmem>>, vector<1x128xf32>
    %176 = vector.broadcast %173 : vector<1x128xf32> to vector<8x128xf32>
    %177 = arith.addf %172, %176 : vector<8x128xf32>
    %cst_69 = arith.constant dense<0.000000e+00> : vector<8xf32>
    %178 = vector.multi_reduction <add>, %177, %cst_69 [1] : vector<8x128xf32> to vector<8xf32>
    %179 = vector.shape_cast %178 : vector<8xf32> to vector<8x1xf32>
    %180 = arith.mulf %177, %177 : vector<8x128xf32>
    %cst_70 = arith.constant dense<0.000000e+00> : vector<8xf32>
    %181 = vector.multi_reduction <add>, %180, %cst_70 [1] : vector<8x128xf32> to vector<8xf32>
    %182 = vector.shape_cast %181 : vector<8xf32> to vector<8x1xf32>
    %cst_71 = arith.constant 7.812500e-03 : f32
    %183 = vector.broadcast %cst_71 : f32 to vector<8x1xf32>
    %184 = arith.mulf %179, %183 : vector<8x1xf32>
    %cst_72 = arith.constant 7.812500e-03 : f32
    %185 = vector.broadcast %cst_72 : f32 to vector<8x1xf32>
    %186 = arith.mulf %182, %185 : vector<8x1xf32>
    %187 = arith.mulf %184, %184 : vector<8x1xf32>
    %188 = arith.subf %186, %187 : vector<8x1xf32>
    %cst_73 = arith.constant 0.000000e+00 : f32
    %189 = vector.broadcast %cst_73 : f32 to vector<8x1xf32>
    %190 = arith.maximumf %188, %189 : vector<8x1xf32>
    %191 = vector.broadcast %184 : vector<8x1xf32> to vector<8x128xf32>
    %192 = arith.subf %177, %191 : vector<8x128xf32>
    %cst_74 = arith.constant 9.99999974E-6 : f32
    %193 = vector.broadcast %cst_74 : f32 to vector<8x1xf32>
    %194 = arith.addf %190, %193 : vector<8x1xf32>
    %195 = math.rsqrt %194 : vector<8x1xf32>
    %196 = vector.broadcast %195 : vector<8x1xf32> to vector<8x128xf32>
    %197 = arith.mulf %192, %196 : vector<8x128xf32>
    %198 = vector.broadcast %174 : vector<1x128xf32> to vector<8x128xf32>
    %199 = arith.mulf %197, %198 : vector<8x128xf32>
    %200 = vector.broadcast %175 : vector<1x128xf32> to vector<8x128xf32>
    %201 = arith.addf %199, %200 : vector<8x128xf32>
    %cst_75 = arith.constant 0.000000e+00 : f32
    %202 = vector.broadcast %cst_75 : f32 to vector<8x128xf32>
    %203 = arith.maximumf %201, %202 : vector<8x128xf32>
    %204 = arith.truncf %203 : vector<8x128xf32> to vector<8x128xbf16>
    %205 = tpu.concatenate %136, %204 in 1 : vector<8x256xbf16>, vector<8x128xbf16> -> vector<8x384xbf16>
    %c0_76 = arith.constant 0 : index
    %c0_77 = arith.constant 0 : index
    %206 = vector.load %arg7[%c0_76, %c0_77] : memref<384x128xbf16, #tpu.memory_space<vmem>>, vector<384x128xbf16>
    %cst_78 = arith.constant dense<0.000000e+00> : vector<8x128xf32>
    %207 = tpu.matmul %205, %206, %cst_78 {dimension_numbers = #tpu.dot_dimension_numbers<[1], [0], [0], [1], [0, 0, 1, 1], [], []>} : vector<8x384xbf16>, vector<384x128xbf16>, vector<8x128xf32> -> vector<8x128xf32>
    %c18 = arith.constant 18 : index
    %c0_79 = arith.constant 0 : index
    %208 = vector.load %arg8[%c18, %c0_79] : memref<24x512xf32, #tpu.memory_space<vmem>>, vector<1x128xf32>
    %209 = vector.broadcast %208 : vector<1x128xf32> to vector<8x128xf32>
    %210 = arith.addf %207, %209 : vector<8x128xf32>
    %c0_80 = arith.constant 0 : index
    %c0_81 = arith.constant 0 : index
    %211 = vector.load %arg9[%c0_80, %c0_81] : memref<8x128xf32, #tpu.memory_space<vmem>>, vector<8x128xf32>
    tpu.vector_store %arg9[%c0_80, %c0_81], %210 {strides = array<i32>} : memref<8x128xf32, #tpu.memory_space<vmem>>, vector<8x128xf32>,
    return
  }
  func.func @transform_0(%arg0: i32) -> (i32, i32) {
    %c0_i32 = arith.constant 0 : i32
    %c0_i32_0 = arith.constant 0 : i32
    return %arg0, %c0_i32 : i32, i32
  }
  func.func @transform_1(%arg0: i32) -> (i32, i32) {
    %c0_i32 = arith.constant 0 : i32
    %c0_i32_0 = arith.constant 0 : i32
    %c0_i32_1 = arith.constant 0 : i32
    return %c0_i32, %c0_i32_0 : i32, i32
  }
  func.func @transform_2(%arg0: i32) -> (i32, i32) {
    %c0_i32 = arith.constant 0 : i32
    %c0_i32_0 = arith.constant 0 : i32
    %c0_i32_1 = arith.constant 0 : i32
    return %c0_i32, %c0_i32_0 : i32, i32
  }
  func.func @transform_3(%arg0: i32) -> (i32, i32) {
    %c0_i32 = arith.constant 0 : i32
    %c0_i32_0 = arith.constant 0 : i32
    %c0_i32_1 = arith.constant 0 : i32
    return %c0_i32, %c0_i32_0 : i32, i32
  }
  func.func @transform_4(%arg0: i32) -> (i32, i32) {
    %c0_i32 = arith.constant 0 : i32
    %c0_i32_0 = arith.constant 0 : i32
    %c0_i32_1 = arith.constant 0 : i32
    return %c0_i32, %c0_i32_0 : i32, i32
  }
  func.func @transform_5(%arg0: i32) -> (i32, i32) {
    %c0_i32 = arith.constant 0 : i32
    %c0_i32_0 = arith.constant 0 : i32
    %c0_i32_1 = arith.constant 0 : i32
    return %c0_i32, %c0_i32_0 : i32, i32
  }
  func.func @transform_6(%arg0: i32) -> (i32, i32) {
    %c0_i32 = arith.constant 0 : i32
    %c0_i32_0 = arith.constant 0 : i32
    %c0_i32_1 = arith.constant 0 : i32
    return %c0_i32, %c0_i32_0 : i32, i32
  }
  func.func @transform_7(%arg0: i32) -> (i32, i32) {
    %c0_i32 = arith.constant 0 : i32
    %c0_i32_0 = arith.constant 0 : i32
    %c0_i32_1 = arith.constant 0 : i32
    return %c0_i32, %c0_i32_0 : i32, i32
  }
  func.func @transform_8(%arg0: i32) -> (i32, i32) {
    %c0_i32 = arith.constant 0 : i32
    %c0_i32_0 = arith.constant 0 : i32
    return %arg0, %c0_i32 : i32, i32
  }
}

</mosaic_0001>

<llo_original>
// kernel: tpu_custom_call.1
$region0: #{tpu_custom_call.1}
  #allocation0 [shape = 'u32[]', space=smem, size = 0x4, offset = 0x4, fixed_abs, tag = 'smem constant byte address 0x4 - core index']
  #allocation1 [shape = 'u32[144,128]{1,0:T(1,128)}', space=vmem, size = 0x12000, scoped, tag = 'internal scratch']
  %s0 = inlined_call_operand.hbm [shape: bf16[8,768], index: 0, kind: input, shape index: {}]
  %s1 = inlined_call_operand.hbm [shape: bf16[768,1024], index: 1, kind: input, shape index: {}]
  %s2 = inlined_call_operand.hbm [shape: bf16[512,256], index: 2, kind: input, shape index: {}]
  %s3 = inlined_call_operand.hbm [shape: bf16[256,256], index: 3, kind: input, shape index: {}]
  %s4 = inlined_call_operand.hbm [shape: bf16[512,256], index: 4, kind: input, shape index: {}]
  %s5 = inlined_call_operand.hbm [shape: bf16[256,128], index: 5, kind: input, shape index: {}]
  %s6 = inlined_call_operand.hbm [shape: bf16[384,128], index: 6, kind: input, shape index: {}]
  %s7 = inlined_call_operand.hbm [shape: f32[24,512], index: 7, kind: input, shape index: {}]
  %s8 = inlined_call_operand.hbm [shape: f32[8,128], index: 8, kind: output, shape index: {}]
  %s9 = sld [smem:[#allocation0]]
  $region74: #{tpu_custom_call.1} parent=0
    _
  %s11 = ssub.s32 1, %s9
  %s12 = scalar_select 0, %s11, %s9
  $region1: #{tpu_custom_call.1} parent=0
    #allocation2 [shape = 'u8[12288]{0}', space=vmem, size = 0x3000, scoped, tag = 'input window, operand 0, single buffered']
    #allocation3 [shape = 's32[1]{0}', space=sflag, size = 0x4, scoped, tag = 'scoped memory for tpu_custom_call.1']
    #allocation4 [shape = 's32[1]{0}', space=sflag, size = 0x4, scoped, tag = 'scoped memory for tpu_custom_call.1']
    #allocation5 [shape = 'u8[1572864]{0}', space=vmem, size = 0x180000, scoped, tag = 'input window, operand 1, single buffered']
    #allocation6 [shape = 's32[1]{0}', space=sflag, size = 0x4, scoped, tag = 'scoped memory for tpu_custom_call.1']
    #allocation7 [shape = 'u8[262144]{0}', space=vmem, size = 0x40000, scoped, tag = 'input window, operand 2, single buffered']
    #allocation8 [shape = 'u8[131072]{0}', space=vmem, size = 0x20000, scoped, tag = 'input window, operand 3, single buffered']
    #allocation9 [shape = 's32[1]{0}', space=sflag, size = 0x4, scoped, tag = 'scoped memory for tpu_custom_call.1']
    #allocation10 [shape = 'u8[262144]{0}', space=vmem, size = 0x40000, scoped, tag = 'input window, operand 4, single buffered']
    #allocation11 [shape = 'u8[65536]{0}', space=vmem, size = 0x10000, scoped, tag = 'input window, operand 5, single buffered']
    #allocation12 [shape = 's32[1]{0}', space=sflag, size = 0x4, scoped, tag = 'scoped memory for tpu_custom_call.1']
    #allocation13 [shape = 'u8[98304]{0}', space=vmem, size = 0x18000, scoped, tag = 'input window, operand 6, single buffered']
    #allocation14 [shape = 'u8[49152]{0}', space=vmem, size = 0xc000, scoped, tag = 'input window, operand 7, single buffered']
    #allocation15 [shape = 's32[1]{0}', space=sflag, size = 0x4, scoped, tag = 'scoped memory for tpu_custom_call.1']
    #allocation16 [shape = 'u8[4096]{0}', space=vmem, size = 0x1000, scoped, tag = 'output window, operand 0, single buffered']
    %13 = vsyncpa [#allocation3], 0
    %14 = vsyncpa [#allocation6], 0
    %15 = vsyncpa [#allocation9], 0
    %16 = vsyncpa [#allocation12], 0
    %17 = vsyncpa [#allocation15], 0
    %18 = vsyncpa [#allocation4], 0
    // Predicated region
    $region2: #{tpu_custom_call.1} parent=1 // pred_check
      _
    $region3: #{tpu_custom_call.1} parent=1 // pred_check_branch
      %20 = sbr.rel (0) target = $region5
    $region4: #{tpu_custom_call.1} parent=1 // pred_region
      %s22 = ssub.s32 384, 384
      %23 = vsyncadd [#allocation3], %s22
      %s25 = sshll.u32 [#allocation2], 4
      %s26 = int_to_ptr.vmem [resolvable:$true] %s25
      %28 = dma.hbm_to_vmem [thread:$0]  %s0, 384, %s26, [#allocation3]
    $region5: #{tpu_custom_call.1} parent=1 // pred_fallthru
      _
    // Predicated region
    $region6: #{tpu_custom_call.1} parent=1 // pred_check
      _
    $region7: #{tpu_custom_call.1} parent=1 // pred_check_branch
      %30 = sbr.rel (0) target = $region9
    $region8: #{tpu_custom_call.1} parent=1 // pred_region
      %s32 = ssub.s32 49152, 49152
      %33 = vsyncadd [#allocation6], %s32
      %s34 = sshll.u32 [#allocation5], 4
      %s35 = int_to_ptr.vmem [resolvable:$true] %s34
      %40 = dma.hbm_to_vmem [thread:$0]  %s1, 49152, %s35, [#allocation6], 512, 512, 32
    $region9: #{tpu_custom_call.1} parent=1 // pred_fallthru
      _
    // Predicated region
    $region10: #{tpu_custom_call.1} parent=1 // pred_check
      _
    $region11: #{tpu_custom_call.1} parent=1 // pred_check_branch
      %42 = sbr.rel (0) target = $region13
    $region12: #{tpu_custom_call.1} parent=1 // pred_region
      %s44 = ssub.s32 8192, 8192
      %45 = vsyncadd [#allocation6], %s44
      %s46 = sshll.u32 [#allocation7], 4
      %s47 = int_to_ptr.vmem [resolvable:$true] %s46
      %52 = dma.hbm_to_vmem [thread:$0]  %s2, 8192, %s47, [#allocation6], 128, 128, 8
    $region13: #{tpu_custom_call.1} parent=1 // pred_fallthru
      _
    // Predicated region
    $region14: #{tpu_custom_call.1} parent=1 // pred_check
      _
    $region15: #{tpu_custom_call.1} parent=1 // pred_check_branch
      %54 = sbr.rel (0) target = $region17
    $region16: #{tpu_custom_call.1} parent=1 // pred_region
      %s56 = ssub.s32 4096, 4096
      %57 = vsyncadd [#allocation9], %s56
      %s58 = sshll.u32 [#allocation8], 4
      %s59 = int_to_ptr.vmem [resolvable:$true] %s58
      %64 = dma.hbm_to_vmem [thread:$0]  %s3, 4096, %s59, [#allocation9], 128, 128, 8
    $region17: #{tpu_custom_call.1} parent=1 // pred_fallthru
      _
    // Predicated region
    $region18: #{tpu_custom_call.1} parent=1 // pred_check
      _
    $region19: #{tpu_custom_call.1} parent=1 // pred_check_branch
      %66 = sbr.rel (0) target = $region21
    $region20: #{tpu_custom_call.1} parent=1 // pred_region
      %s68 = ssub.s32 8192, 8192
      %69 = vsyncadd [#allocation9], %s68
      %s70 = sshll.u32 [#allocation10], 4
      %s71 = int_to_ptr.vmem [resolvable:$true] %s70
      %76 = dma.hbm_to_vmem [thread:$0]  %s4, 8192, %s71, [#allocation9], 128, 128, 8
    $region21: #{tpu_custom_call.1} parent=1 // pred_fallthru
      _
    // Predicated region
    $region22: #{tpu_custom_call.1} parent=1 // pred_check
      _
    $region23: #{tpu_custom_call.1} parent=1 // pred_check_branch
      %78 = sbr.rel (0) target = $region25
    $region24: #{tpu_custom_call.1} parent=1 // pred_region
      %s80 = ssub.s32 2048, 2048
      %81 = vsyncadd [#allocation12], %s80
      %s82 = sshll.u32 [#allocation11], 4
      %s83 = int_to_ptr.vmem [resolvable:$true] %s82
      %88 = dma.hbm_to_vmem [thread:$0]  %s5, 2048, %s83, [#allocation12], 64, 64, 4
    $region25: #{tpu_custom_call.1} parent=1 // pred_fallthru
      _
    // Predicated region
    $region26: #{tpu_custom_call.1} parent=1 // pred_check
      _
    $region27: #{tpu_custom_call.1} parent=1 // pred_check_branch
      %90 = sbr.rel (0) target = $region29
    $region28: #{tpu_custom_call.1} parent=1 // pred_region
      %s92 = ssub.s32 3072, 3072
      %93 = vsyncadd [#allocation12], %s92
      %s94 = sshll.u32 [#allocation13], 4
      %s95 = int_to_ptr.vmem [resolvable:$true] %s94
      %100 = dma.hbm_to_vmem [thread:$0]  %s6, 3072, %s95, [#allocation12], 64, 64, 4
    $region29: #{tpu_custom_call.1} parent=1 // pred_fallthru
      _
    // Predicated region
    $region30: #{tpu_custom_call.1} parent=1 // pred_check
      _
    $region31: #{tpu_custom_call.1} parent=1 // pred_check_branch
      %102 = sbr.rel (0) target = $region33
    $region32: #{tpu_custom_call.1} parent=1 // pred_region
      %s104 = ssub.s32 1536, 1536
      %105 = vsyncadd [#allocation15], %s104
      %s106 = sshll.u32 [#allocation14], 4
      %s107 = int_to_ptr.vmem [resolvable:$true] %s106
      %112 = dma.hbm_to_vmem [thread:$0]  %s7, 1536, %s107, [#allocation15], 512, 512, 32
    $region33: #{tpu_custom_call.1} parent=1 // pred_fallthru
      _
    // Predicated region
    $region34: #{tpu_custom_call.1} parent=1 // pred_check
      _
    $region35: #{tpu_custom_call.1} parent=1 // pred_check_branch
      %114 = sbr.rel (0) target = $region37
    $region36: #{tpu_custom_call.1} parent=1 // pred_region
      %115 = dma.done [#allocation3], 384
    $region37: #{tpu_custom_call.1} parent=1 // pred_fallthru
      _
    // Predicated region
    $region38: #{tpu_custom_call.1} parent=1 // pred_check
      _
    $region39: #{tpu_custom_call.1} parent=1 // pred_check_branch
      %117 = sbr.rel (0) target = $region41
    $region40: #{tpu_custom_call.1} parent=1 // pred_region
      %118 = dma.done [#allocation6], 49152
    $region41: #{tpu_custom_call.1} parent=1 // pred_fallthru
      _
    // Predicated region
    $region42: #{tpu_custom_call.1} parent=1 // pred_check
      _
    $region43: #{tpu_custom_call.1} parent=1 // pred_check_branch
      %120 = sbr.rel (0) target = $region45
    $region44: #{tpu_custom_call.1} parent=1 // pred_region
      %121 = dma.done [#allocation6], 8192
    $region45: #{tpu_custom_call.1} parent=1 // pred_fallthru
      _
    // Predicated region
    $region46: #{tpu_custom_call.1} parent=1 // pred_check
      _
    $region47: #{tpu_custom_call.1} parent=1 // pred_check_branch
      %123 = sbr.rel (0) target = $region49
    $region48: #{tpu_custom_call.1} parent=1 // pred_region
      %124 = dma.done [#allocation9], 4096
    $region49: #{tpu_custom_call.1} parent=1 // pred_fallthru
      _
    // Predicated region
    $region50: #{tpu_custom_call.1} parent=1 // pred_check
      _
    $region51: #{tpu_custom_call.1} parent=1 // pred_check_branch
      %126 = sbr.rel (0) target = $region53
    $region52: #{tpu_custom_call.1} parent=1 // pred_region
      %127 = dma.done [#allocation9], 8192
    $region53: #{tpu_custom_call.1} parent=1 // pred_fallthru
      _
    // Predicated region
    $region54: #{tpu_custom_call.1} parent=1 // pred_check
      _
    $region55: #{tpu_custom_call.1} parent=1 // pred_check_branch
      %129 = sbr.rel (0) target = $region57
    $region56: #{tpu_custom_call.1} parent=1 // pred_region
      %130 = dma.done [#allocation12], 2048
    $region57: #{tpu_custom_call.1} parent=1 // pred_fallthru
      _
    // Predicated region
    $region58: #{tpu_custom_call.1} parent=1 // pred_check
      _
    $region59: #{tpu_custom_call.1} parent=1 // pred_check_branch
      %132 = sbr.rel (0) target = $region61
    $region60: #{tpu_custom_call.1} parent=1 // pred_region
      %133 = dma.done [#allocation12], 3072
    $region61: #{tpu_custom_call.1} parent=1 // pred_fallthru
      _
    // Predicated region
    $region62: #{tpu_custom_call.1} parent=1 // pred_check
      _
    $region63: #{tpu_custom_call.1} parent=1 // pred_check_branch
      %135 = sbr.rel (0) target = $region65
    $region64: #{tpu_custom_call.1} parent=1 // pred_region
      %136 = dma.done [#allocation15], 1536
    $region65: #{tpu_custom_call.1} parent=1 // pred_fallthru
      _
    %v138 = vld [vmem:[#allocation2] sm:$0xff]
    %v139 = vld [vmem:[#allocation2 + $0x8] sm:$0xff]
    %v140 = vld [vmem:[#allocation2 + $0x10] sm:$0xff]
    %v141 = vld [vmem:[#allocation5] sm:$0xff]
    %v142 = vld [vmem:[#allocation5 + $0x8] sm:$0xff]
    %v143 = vld [vmem:[#allocation5 + $0x10] sm:$0xff]
    %v144 = vld [vmem:[#allocation5 + $0x18] sm:$0xff]
    %v145 = vld [vmem:[#allocation5 + $0x20] sm:$0xff]
    %v146 = vld [vmem:[#allocation5 + $0x28] sm:$0xff]
    %v147 = vld [vmem:[#allocation5 + $0x30] sm:$0xff]
    %v148 = vld [vmem:[#allocation5 + $0x38] sm:$0xff]
    %v149 = vld [vmem:[#allocation5 + $0x40] sm:$0xff]
    %v150 = vld [vmem:[#allocation5 + $0x48] sm:$0xff]
    %v151 = vld [vmem:[#allocation5 + $0x50] sm:$0xff]
    %v152 = vld [vmem:[#allocation5 + $0x58] sm:$0xff]
    %v153 = vld [vmem:[#allocation5 + $0x60] sm:$0xff]
    %v154 = vld [vmem:[#allocation5 + $0x68] sm:$0xff]
    %v155 = vld [vmem:[#allocation5 + $0x70] sm:$0xff]
    %v156 = vld [vmem:[#allocation5 + $0x78] sm:$0xff]
    %v157 = vld [vmem:[#allocation5 + $0x80] sm:$0xff]
    %v158 = vld [vmem:[#allocation5 + $0x88] sm:$0xff]
    %v159 = vld [vmem:[#allocation5 + $0x90] sm:$0xff]
    %v160 = vld [vmem:[#allocation5 + $0x98] sm:$0xff]
    %v161 = vld [vmem:[#allocation5 + $0xa0] sm:$0xff]
    %v162 = vld [vmem:[#allocation5 + $0xa8] sm:$0xff]
    %v163 = vld [vmem:[#allocation5 + $0xb0] sm:$0xff]
    %v164 = vld [vmem:[#allocation5 + $0xb8] sm:$0xff]
    %v165 = vld [vmem:[#allocation5 + $0xc0] sm:$0xff]
    %v166 = vld [vmem:[#allocation5 + $0xc8] sm:$0xff]
    %v167 = vld [vmem:[#allocation5 + $0xd0] sm:$0xff]
    %v168 = vld [vmem:[#allocation5 + $0xd8] sm:$0xff]
    %v169 = vld [vmem:[#allocation5 + $0xe0] sm:$0xff]
    %v170 = vld [vmem:[#allocation5 + $0xe8] sm:$0xff]
    %v171 = vld [vmem:[#allocation5 + $0xf0] sm:$0xff]
    %v172 = vld [vmem:[#allocation5 + $0xf8] sm:$0xff]
    %v173 = vld [vmem:[#allocation5 + $0x100] sm:$0xff]
    %v174 = vld [vmem:[#allocation5 + $0x108] sm:$0xff]
    %v175 = vld [vmem:[#allocation5 + $0x110] sm:$0xff]
    %v176 = vld [vmem:[#allocation5 + $0x118] sm:$0xff]
    %v177 = vld [vmem:[#allocation5 + $0x120] sm:$0xff]
    %v178 = vld [vmem:[#allocation5 + $0x128] sm:$0xff]
    %v179 = vld [vmem:[#allocation5 + $0x130] sm:$0xff]
    %v180 = vld [vmem:[#allocation5 + $0x138] sm:$0xff]
    %v181 = vld [vmem:[#allocation5 + $0x140] sm:$0xff]
    %v182 = vld [vmem:[#allocation5 + $0x148] sm:$0xff]
    %v183 = vld [vmem:[#allocation5 + $0x150] sm:$0xff]
    %v184 = vld [vmem:[#allocation5 + $0x158] sm:$0xff]
    %v185 = vld [vmem:[#allocation5 + $0x160] sm:$0xff]
    %v186 = vld [vmem:[#allocation5 + $0x168] sm:$0xff]
    %v187 = vld [vmem:[#allocation5 + $0x170] sm:$0xff]
    %v188 = vld [vmem:[#allocation5 + $0x178] sm:$0xff]
    %v189 = vld [vmem:[#allocation5 + $0x180] sm:$0xff]
    %v190 = vld [vmem:[#allocation5 + $0x188] sm:$0xff]
    %v191 = vld [vmem:[#allocation5 + $0x190] sm:$0xff]
    %v192 = vld [vmem:[#allocation5 + $0x198] sm:$0xff]
    %v193 = vld [vmem:[#allocation5 + $0x1a0] sm:$0xff]
    %v194 = vld [vmem:[#allocation5 + $0x1a8] sm:$0xff]
    %v195 = vld [vmem:[#allocation5 + $0x1b0] sm:$0xff]
    %v196 = vld [vmem:[#allocation5 + $0x1b8] sm:$0xff]
    %v197 = vld [vmem:[#allocation5 + $0x1c0] sm:$0xff]
    %v198 = vld [vmem:[#allocation5 + $0x1c8] sm:$0xff]
    %v199 = vld [vmem:[#allocation5 + $0x1d0] sm:$0xff]
    %v200 = vld [vmem:[#allocation5 + $0x1d8] sm:$0xff]
    %v201 = vld [vmem:[#allocation5 + $0x1e0] sm:$0xff]
    %v202 = vld [vmem:[#allocation5 + $0x1e8] sm:$0xff]
    %v203 = vld [vmem:[#allocation5 + $0x1f0] sm:$0xff]
    %v204 = vld [vmem:[#allocation5 + $0x1f8] sm:$0xff]
    %v205 = vld [vmem:[#allocation5 + $0x200] sm:$0xff]
    %v206 = vld [vmem:[#allocation5 + $0x208] sm:$0xff]
    %v207 = vld [vmem:[#allocation5 + $0x210] sm:$0xff]
    %v208 = vld [vmem:[#allocation5 + $0x218] sm:$0xff]
    %v209 = vld [vmem:[#allocation5 + $0x220] sm:$0xff]
    %v210 = vld [vmem:[#allocation5 + $0x228] sm:$0xff]
    %v211 = vld [vmem:[#allocation5 + $0x230] sm:$0xff]
    %v212 = vld [vmem:[#allocation5 + $0x238] sm:$0xff]
    %v213 = vld [vmem:[#allocation5 + $0x240] sm:$0xff]
    %v214 = vld [vmem:[#allocation5 + $0x248] sm:$0xff]
    %v215 = vld [vmem:[#allocation5 + $0x250] sm:$0xff]
    %v216 = vld [vmem:[#allocation5 + $0x258] sm:$0xff]
    %v217 = vld [vmem:[#allocation5 + $0x260] sm:$0xff]
    %v218 = vld [vmem:[#allocation5 + $0x268] sm:$0xff]
    %v219 = vld [vmem:[#allocation5 + $0x270] sm:$0xff]
    %v220 = vld [vmem:[#allocation5 + $0x278] sm:$0xff]
    %v221 = vld [vmem:[#allocation5 + $0x280] sm:$0xff]
    %v222 = vld [vmem:[#allocation5 + $0x288] sm:$0xff]
    %v223 = vld [vmem:[#allocation5 + $0x290] sm:$0xff]
    %v224 = vld [vmem:[#allocation5 + $0x298] sm:$0xff]
    %v225 = vld [vmem:[#allocation5 + $0x2a0] sm:$0xff]
    %v226 = vld [vmem:[#allocation5 + $0x2a8] sm:$0xff]
    %v227 = vld [vmem:[#allocation5 + $0x2b0] sm:$0xff]
    %v228 = vld [vmem:[#allocation5 + $0x2b8] sm:$0xff]
    %v229 = vld [vmem:[#allocation5 + $0x2c0] sm:$0xff]
    %v230 = vld [vmem:[#allocation5 + $0x2c8] sm:$0xff]
    %v231 = vld [vmem:[#allocation5 + $0x2d0] sm:$0xff]
    %v232 = vld [vmem:[#allocation5 + $0x2d8] sm:$0xff]
    %v233 = vld [vmem:[#allocation5 + $0x2e0] sm:$0xff]
    %v234 = vld [vmem:[#allocation5 + $0x2e8] sm:$0xff]
    %v235 = vld [vmem:[#allocation5 + $0x2f0] sm:$0xff]
    %v236 = vld [vmem:[#allocation5 + $0x2f8] sm:$0xff]
    %v237 = vld [vmem:[#allocation5 + $0x300] sm:$0xff]
    %v238 = vld [vmem:[#allocation5 + $0x308] sm:$0xff]
    %v239 = vld [vmem:[#allocation5 + $0x310] sm:$0xff]
    %v240 = vld [vmem:[#allocation5 + $0x318] sm:$0xff]
    %v241 = vld [vmem:[#allocation5 + $0x320] sm:$0xff]
    %v242 = vld [vmem:[#allocation5 + $0x328] sm:$0xff]
    %v243 = vld [vmem:[#allocation5 + $0x330] sm:$0xff]
    %v244 = vld [vmem:[#allocation5 + $0x338] sm:$0xff]
    %v245 = vld [vmem:[#allocation5 + $0x340] sm:$0xff]
    %v246 = vld [vmem:[#allocation5 + $0x348] sm:$0xff]
    %v247 = vld [vmem:[#allocation5 + $0x350] sm:$0xff]
    %v248 = vld [vmem:[#allocation5 + $0x358] sm:$0xff]
    %v249 = vld [vmem:[#allocation5 + $0x360] sm:$0xff]
    %v250 = vld [vmem:[#allocation5 + $0x368] sm:$0xff]
    %v251 = vld [vmem:[#allocation5 + $0x370] sm:$0xff]
    %v252 = vld [vmem:[#allocation5 + $0x378] sm:$0xff]
    %v253 = vld [vmem:[#allocation5 + $0x380] sm:$0xff]
    %v254 = vld [vmem:[#allocation5 + $0x388] sm:$0xff]
    %v255 = vld [vmem:[#allocation5 + $0x390] sm:$0xff]
    %v256 = vld [vmem:[#allocation5 + $0x398] sm:$0xff]
    %v257 = vld [vmem:[#allocation5 + $0x3a0] sm:$0xff]
    %v258 = vld [vmem:[#allocation5 + $0x3a8] sm:$0xff]
    %v259 = vld [vmem:[#allocation5 + $0x3b0] sm:$0xff]
    %v260 = vld [vmem:[#allocation5 + $0x3b8] sm:$0xff]
    %v261 = vld [vmem:[#allocation5 + $0x3c0] sm:$0xff]
    %v262 = vld [vmem:[#allocation5 + $0x3c8] sm:$0xff]
    %v263 = vld [vmem:[#allocation5 + $0x3d0] sm:$0xff]
    %v264 = vld [vmem:[#allocation5 + $0x3d8] sm:$0xff]
    %v265 = vld [vmem:[#allocation5 + $0x3e0] sm:$0xff]
    %v266 = vld [vmem:[#allocation5 + $0x3e8] sm:$0xff]
    %v267 = vld [vmem:[#allocation5 + $0x3f0] sm:$0xff]
    %v268 = vld [vmem:[#allocation5 + $0x3f8] sm:$0xff]
    %v269 = vld [vmem:[#allocation5 + $0x400] sm:$0xff]
    %v270 = vld [vmem:[#allocation5 + $0x408] sm:$0xff]
    %v271 = vld [vmem:[#allocation5 + $0x410] sm:$0xff]
    %v272 = vld [vmem:[#allocation5 + $0x418] sm:$0xff]
    %v273 = vld [vmem:[#allocation5 + $0x420] sm:$0xff]
    %v274 = vld [vmem:[#allocation5 + $0x428] sm:$0xff]
    %v275 = vld [vmem:[#allocation5 + $0x430] sm:$0xff]
    %v276 = vld [vmem:[#allocation5 + $0x438] sm:$0xff]
    %v277 = vld [vmem:[#allocation5 + $0x440] sm:$0xff]
    %v278 = vld [vmem:[#allocation5 + $0x448] sm:$0xff]
    %v279 = vld [vmem:[#allocation5 + $0x450] sm:$0xff]
    %v280 = vld [vmem:[#allocation5 + $0x458] sm:$0xff]
    %v281 = vld [vmem:[#allocation5 + $0x460] sm:$0xff]
    %v282 = vld [vmem:[#allocation5 + $0x468] sm:$0xff]
    %v283 = vld [vmem:[#allocation5 + $0x470] sm:$0xff]
    %v284 = vld [vmem:[#allocation5 + $0x478] sm:$0xff]
    %v285 = vld [vmem:[#allocation5 + $0x480] sm:$0xff]
    %v286 = vld [vmem:[#allocation5 + $0x488] sm:$0xff]
    %v287 = vld [vmem:[#allocation5 + $0x490] sm:$0xff]
    %v288 = vld [vmem:[#allocation5 + $0x498] sm:$0xff]
    %v289 = vld [vmem:[#allocation5 + $0x4a0] sm:$0xff]
    %v290 = vld [vmem:[#allocation5 + $0x4a8] sm:$0xff]
    %v291 = vld [vmem:[#allocation5 + $0x4b0] sm:$0xff]
    %v292 = vld [vmem:[#allocation5 + $0x4b8] sm:$0xff]
    %v293 = vld [vmem:[#allocation5 + $0x4c0] sm:$0xff]
    %v294 = vld [vmem:[#allocation5 + $0x4c8] sm:$0xff]
    %v295 = vld [vmem:[#allocation5 + $0x4d0] sm:$0xff]
    %v296 = vld [vmem:[#allocation5 + $0x4d8] sm:$0xff]
    %v297 = vld [vmem:[#allocation5 + $0x4e0] sm:$0xff]
    %v298 = vld [vmem:[#allocation5 + $0x4e8] sm:$0xff]
    %v299 = vld [vmem:[#allocation5 + $0x4f0] sm:$0xff]
    %v300 = vld [vmem:[#allocation5 + $0x4f8] sm:$0xff]
    %v301 = vld [vmem:[#allocation5 + $0x500] sm:$0xff]
    %v302 = vld [vmem:[#allocation5 + $0x508] sm:$0xff]
    %v303 = vld [vmem:[#allocation5 + $0x510] sm:$0xff]
    %v304 = vld [vmem:[#allocation5 + $0x518] sm:$0xff]
    %v305 = vld [vmem:[#allocation5 + $0x520] sm:$0xff]
    %v306 = vld [vmem:[#allocation5 + $0x528] sm:$0xff]
    %v307 = vld [vmem:[#allocation5 + $0x530] sm:$0xff]
    %v308 = vld [vmem:[#allocation5 + $0x538] sm:$0xff]
    %v309 = vld [vmem:[#allocation5 + $0x540] sm:$0xff]
    %v310 = vld [vmem:[#allocation5 + $0x548] sm:$0xff]
    %v311 = vld [vmem:[#allocation5 + $0x550] sm:$0xff]
    %v312 = vld [vmem:[#allocation5 + $0x558] sm:$0xff]
    %v313 = vld [vmem:[#allocation5 + $0x560] sm:$0xff]
    %v314 = vld [vmem:[#allocation5 + $0x568] sm:$0xff]
    %v315 = vld [vmem:[#allocation5 + $0x570] sm:$0xff]
    %v316 = vld [vmem:[#allocation5 + $0x578] sm:$0xff]
    %v317 = vld [vmem:[#allocation5 + $0x580] sm:$0xff]
    %v318 = vld [vmem:[#allocation5 + $0x588] sm:$0xff]
    %v319 = vld [vmem:[#allocation5 + $0x590] sm:$0xff]
    %v320 = vld [vmem:[#allocation5 + $0x598] sm:$0xff]
    %v321 = vld [vmem:[#allocation5 + $0x5a0] sm:$0xff]
    %v322 = vld [vmem:[#allocation5 + $0x5a8] sm:$0xff]
    %v323 = vld [vmem:[#allocation5 + $0x5b0] sm:$0xff]
    %v324 = vld [vmem:[#allocation5 + $0x5b8] sm:$0xff]
    %v325 = vld [vmem:[#allocation5 + $0x5c0] sm:$0xff]
    %v326 = vld [vmem:[#allocation5 + $0x5c8] sm:$0xff]
    %v327 = vld [vmem:[#allocation5 + $0x5d0] sm:$0xff]
    %v328 = vld [vmem:[#allocation5 + $0x5d8] sm:$0xff]
    %v329 = vld [vmem:[#allocation5 + $0x5e0] sm:$0xff]
    %v330 = vld [vmem:[#allocation5 + $0x5e8] sm:$0xff]
    %v331 = vld [vmem:[#allocation5 + $0x5f0] sm:$0xff]
    %v332 = vld [vmem:[#allocation5 + $0x5f8] sm:$0xff]
    %v333 = vld [vmem:[#allocation5 + $0x600] sm:$0xff]
    %v334 = vld [vmem:[#allocation5 + $0x608] sm:$0xff]
    %v335 = vld [vmem:[#allocation5 + $0x610] sm:$0xff]
    %v336 = vld [vmem:[#allocation5 + $0x618] sm:$0xff]
    %v337 = vld [vmem:[#allocation5 + $0x620] sm:$0xff]
    %v338 = vld [vmem:[#allocation5 + $0x628] sm:$0xff]
    %v339 = vld [vmem:[#allocation5 + $0x630] sm:$0xff]
    %v340 = vld [vmem:[#allocation5 + $0x638] sm:$0xff]
    %v341 = vld [vmem:[#allocation5 + $0x640] sm:$0xff]
    %v342 = vld [vmem:[#allocation5 + $0x648] sm:$0xff]
    %v343 = vld [vmem:[#allocation5 + $0x650] sm:$0xff]
    %v344 = vld [vmem:[#allocation5 + $0x658] sm:$0xff]
    %v345 = vld [vmem:[#allocation5 + $0x660] sm:$0xff]
    %v346 = vld [vmem:[#allocation5 + $0x668] sm:$0xff]
    %v347 = vld [vmem:[#allocation5 + $0x670] sm:$0xff]
    %v348 = vld [vmem:[#allocation5 + $0x678] sm:$0xff]
    %v349 = vld [vmem:[#allocation5 + $0x680] sm:$0xff]
    %v350 = vld [vmem:[#allocation5 + $0x688] sm:$0xff]
    %v351 = vld [vmem:[#allocation5 + $0x690] sm:$0xff]
    %v352 = vld [vmem:[#allocation5 + $0x698] sm:$0xff]
    %v353 = vld [vmem:[#allocation5 + $0x6a0] sm:$0xff]
    %v354 = vld [vmem:[#allocation5 + $0x6a8] sm:$0xff]
    %v355 = vld [vmem:[#allocation5 + $0x6b0] sm:$0xff]
    %v356 = vld [vmem:[#allocation5 + $0x6b8] sm:$0xff]
    %v357 = vld [vmem:[#allocation5 + $0x6c0] sm:$0xff]
    %v358 = vld [vmem:[#allocation5 + $0x6c8] sm:$0xff]
    %v359 = vld [vmem:[#allocation5 + $0x6d0] sm:$0xff]
    %v360 = vld [vmem:[#allocation5 + $0x6d8] sm:$0xff]
    %v361 = vld [vmem:[#allocation5 + $0x6e0] sm:$0xff]
    %v362 = vld [vmem:[#allocation5 + $0x6e8] sm:$0xff]
    %v363 = vld [vmem:[#allocation5 + $0x6f0] sm:$0xff]
    %v364 = vld [vmem:[#allocation5 + $0x6f8] sm:$0xff]
    %v365 = vld [vmem:[#allocation5 + $0x700] sm:$0xff]
    %v366 = vld [vmem:[#allocation5 + $0x708] sm:$0xff]
    %v367 = vld [vmem:[#allocation5 + $0x710] sm:$0xff]
    %v368 = vld [vmem:[#allocation5 + $0x718] sm:$0xff]
    %v369 = vld [vmem:[#allocation5 + $0x720] sm:$0xff]
    %v370 = vld [vmem:[#allocation5 + $0x728] sm:$0xff]
    %v371 = vld [vmem:[#allocation5 + $0x730] sm:$0xff]
    %v372 = vld [vmem:[#allocation5 + $0x738] sm:$0xff]
    %v373 = vld [vmem:[#allocation5 + $0x740] sm:$0xff]
    %v374 = vld [vmem:[#allocation5 + $0x748] sm:$0xff]
    %v375 = vld [vmem:[#allocation5 + $0x750] sm:$0xff]
    %v376 = vld [vmem:[#allocation5 + $0x758] sm:$0xff]
    %v377 = vld [vmem:[#allocation5 + $0x760] sm:$0xff]
    %v378 = vld [vmem:[#allocation5 + $0x768] sm:$0xff]
    %v379 = vld [vmem:[#allocation5 + $0x770] sm:$0xff]
    %v380 = vld [vmem:[#allocation5 + $0x778] sm:$0xff]
    %v381 = vld [vmem:[#allocation5 + $0x780] sm:$0xff]
    %v382 = vld [vmem:[#allocation5 + $0x788] sm:$0xff]
    %v383 = vld [vmem:[#allocation5 + $0x790] sm:$0xff]
    %v384 = vld [vmem:[#allocation5 + $0x798] sm:$0xff]
    %v385 = vld [vmem:[#allocation5 + $0x7a0] sm:$0xff]
    %v386 = vld [vmem:[#allocation5 + $0x7a8] sm:$0xff]
    %v387 = vld [vmem:[#allocation5 + $0x7b0] sm:$0xff]
    %v388 = vld [vmem:[#allocation5 + $0x7b8] sm:$0xff]
    %v389 = vld [vmem:[#allocation5 + $0x7c0] sm:$0xff]
    %v390 = vld [vmem:[#allocation5 + $0x7c8] sm:$0xff]
    %v391 = vld [vmem:[#allocation5 + $0x7d0] sm:$0xff]
    %v392 = vld [vmem:[#allocation5 + $0x7d8] sm:$0xff]
    %v393 = vld [vmem:[#allocation5 + $0x7e0] sm:$0xff]
    %v394 = vld [vmem:[#allocation5 + $0x7e8] sm:$0xff]
    %v395 = vld [vmem:[#allocation5 + $0x7f0] sm:$0xff]
    %v396 = vld [vmem:[#allocation5 + $0x7f8] sm:$0xff]
    %v397 = vld [vmem:[#allocation5 + $0x800] sm:$0xff]
    %v398 = vld [vmem:[#allocation5 + $0x808] sm:$0xff]
    %v399 = vld [vmem:[#allocation5 + $0x810] sm:$0xff]
    %v400 = vld [vmem:[#allocation5 + $0x818] sm:$0xff]
    %v401 = vld [vmem:[#allocation5 + $0x820] sm:$0xff]
    %v402 = vld [vmem:[#allocation5 + $0x828] sm:$0xff]
    %v403 = vld [vmem:[#allocation5 + $0x830] sm:$0xff]
    %v404 = vld [vmem:[#allocation5 + $0x838] sm:$0xff]
    %v405 = vld [vmem:[#allocation5 + $0x840] sm:$0xff]
    %v406 = vld [vmem:[#allocation5 + $0x848] sm:$0xff]
    %v407 = vld [vmem:[#allocation5 + $0x850] sm:$0xff]
    %v408 = vld [vmem:[#allocation5 + $0x858] sm:$0xff]
    %v409 = vld [vmem:[#allocation5 + $0x860] sm:$0xff]
    %v410 = vld [vmem:[#allocation5 + $0x868] sm:$0xff]
    %v411 = vld [vmem:[#allocation5 + $0x870] sm:$0xff]
    %v412 = vld [vmem:[#allocation5 + $0x878] sm:$0xff]
    %v413 = vld [vmem:[#allocation5 + $0x880] sm:$0xff]
    %v414 = vld [vmem:[#allocation5 + $0x888] sm:$0xff]
    %v415 = vld [vmem:[#allocation5 + $0x890] sm:$0xff]
    %v416 = vld [vmem:[#allocation5 + $0x898] sm:$0xff]
    %v417 = vld [vmem:[#allocation5 + $0x8a0] sm:$0xff]
    %v418 = vld [vmem:[#allocation5 + $0x8a8] sm:$0xff]
    %v419 = vld [vmem:[#allocation5 + $0x8b0] sm:$0xff]
    %v420 = vld [vmem:[#allocation5 + $0x8b8] sm:$0xff]
    %v421 = vld [vmem:[#allocation5 + $0x8c0] sm:$0xff]
    %v422 = vld [vmem:[#allocation5 + $0x8c8] sm:$0xff]
    %v423 = vld [vmem:[#allocation5 + $0x8d0] sm:$0xff]
    %v424 = vld [vmem:[#allocation5 + $0x8d8] sm:$0xff]
    %v425 = vld [vmem:[#allocation5 + $0x8e0] sm:$0xff]
    %v426 = vld [vmem:[#allocation5 + $0x8e8] sm:$0xff]
    %v427 = vld [vmem:[#allocation5 + $0x8f0] sm:$0xff]
    %v428 = vld [vmem:[#allocation5 + $0x8f8] sm:$0xff]
    %v429 = vld [vmem:[#allocation5 + $0x900] sm:$0xff]
    %v430 = vld [vmem:[#allocation5 + $0x908] sm:$0xff]
    %v431 = vld [vmem:[#allocation5 + $0x910] sm:$0xff]
    %v432 = vld [vmem:[#allocation5 + $0x918] sm:$0xff]
    %v433 = vld [vmem:[#allocation5 + $0x920] sm:$0xff]
    %v434 = vld [vmem:[#allocation5 + $0x928] sm:$0xff]
    %v435 = vld [vmem:[#allocation5 + $0x930] sm:$0xff]
    %v436 = vld [vmem:[#allocation5 + $0x938] sm:$0xff]
    %v437 = vld [vmem:[#allocation5 + $0x940] sm:$0xff]
    %v438 = vld [vmem:[#allocation5 + $0x948] sm:$0xff]
    %v439 = vld [vmem:[#allocation5 + $0x950] sm:$0xff]
    %v440 = vld [vmem:[#allocation5 + $0x958] sm:$0xff]
    %v441 = vld [vmem:[#allocation5 + $0x960] sm:$0xff]
    %v442 = vld [vmem:[#allocation5 + $0x968] sm:$0xff]
    %v443 = vld [vmem:[#allocation5 + $0x970] sm:$0xff]
    %v444 = vld [vmem:[#allocation5 + $0x978] sm:$0xff]
    %v445 = vld [vmem:[#allocation5 + $0x980] sm:$0xff]
    %v446 = vld [vmem:[#allocation5 + $0x988] sm:$0xff]
    %v447 = vld [vmem:[#allocation5 + $0x990] sm:$0xff]
    %v448 = vld [vmem:[#allocation5 + $0x998] sm:$0xff]
    %v449 = vld [vmem:[#allocation5 + $0x9a0] sm:$0xff]
    %v450 = vld [vmem:[#allocation5 + $0x9a8] sm:$0xff]
    %v451 = vld [vmem:[#allocation5 + $0x9b0] sm:$0xff]
    %v452 = vld [vmem:[#allocation5 + $0x9b8] sm:$0xff]
    %v453 = vld [vmem:[#allocation5 + $0x9c0] sm:$0xff]
    %v454 = vld [vmem:[#allocation5 + $0x9c8] sm:$0xff]
    %v455 = vld [vmem:[#allocation5 + $0x9d0] sm:$0xff]
    %v456 = vld [vmem:[#allocation5 + $0x9d8] sm:$0xff]
    %v457 = vld [vmem:[#allocation5 + $0x9e0] sm:$0xff]
    %v458 = vld [vmem:[#allocation5 + $0x9e8] sm:$0xff]
    %v459 = vld [vmem:[#allocation5 + $0x9f0] sm:$0xff]
    %v460 = vld [vmem:[#allocation5 + $0x9f8] sm:$0xff]
    %v461 = vld [vmem:[#allocation5 + $0xa00] sm:$0xff]
    %v462 = vld [vmem:[#allocation5 + $0xa08] sm:$0xff]
    %v463 = vld [vmem:[#allocation5 + $0xa10] sm:$0xff]
    %v464 = vld [vmem:[#allocation5 + $0xa18] sm:$0xff]
    %v465 = vld [vmem:[#allocation5 + $0xa20] sm:$0xff]
    %v466 = vld [vmem:[#allocation5 + $0xa28] sm:$0xff]
    %v467 = vld [vmem:[#allocation5 + $0xa30] sm:$0xff]
    %v468 = vld [vmem:[#allocation5 + $0xa38] sm:$0xff]
    %v469 = vld [vmem:[#allocation5 + $0xa40] sm:$0xff]
    %v470 = vld [vmem:[#allocation5 + $0xa48] sm:$0xff]
    %v471 = vld [vmem:[#allocation5 + $0xa50] sm:$0xff]
    %v472 = vld [vmem:[#allocation5 + $0xa58] sm:$0xff]
    %v473 = vld [vmem:[#allocation5 + $0xa60] sm:$0xff]
    %v474 = vld [vmem:[#allocation5 + $0xa68] sm:$0xff]
    %v475 = vld [vmem:[#allocation5 + $0xa70] sm:$0xff]
    %v476 = vld [vmem:[#allocation5 + $0xa78] sm:$0xff]
    %v477 = vld [vmem:[#allocation5 + $0xa80] sm:$0xff]
    %v478 = vld [vmem:[#allocation5 + $0xa88] sm:$0xff]
    %v479 = vld [vmem:[#allocation5 + $0xa90] sm:$0xff]
    %v480 = vld [vmem:[#allocation5 + $0xa98] sm:$0xff]
    %v481 = vld [vmem:[#allocation5 + $0xaa0] sm:$0xff]
    %v482 = vld [vmem:[#allocation5 + $0xaa8] sm:$0xff]
    %v483 = vld [vmem:[#allocation5 + $0xab0] sm:$0xff]
    %v484 = vld [vmem:[#allocation5 + $0xab8] sm:$0xff]
    %v485 = vld [vmem:[#allocation5 + $0xac0] sm:$0xff]
    %v486 = vld [vmem:[#allocation5 + $0xac8] sm:$0xff]
    %v487 = vld [vmem:[#allocation5 + $0xad0] sm:$0xff]
    %v488 = vld [vmem:[#allocation5 + $0xad8] sm:$0xff]
    %v489 = vld [vmem:[#allocation5 + $0xae0] sm:$0xff]
    %v490 = vld [vmem:[#allocation5 + $0xae8] sm:$0xff]
    %v491 = vld [vmem:[#allocation5 + $0xaf0] sm:$0xff]
    %v492 = vld [vmem:[#allocation5 + $0xaf8] sm:$0xff]
    %v493 = vld [vmem:[#allocation5 + $0xb00] sm:$0xff]
    %v494 = vld [vmem:[#allocation5 + $0xb08] sm:$0xff]
    %v495 = vld [vmem:[#allocation5 + $0xb10] sm:$0xff]
    %v496 = vld [vmem:[#allocation5 + $0xb18] sm:$0xff]
    %v497 = vld [vmem:[#allocation5 + $0xb20] sm:$0xff]
    %v498 = vld [vmem:[#allocation5 + $0xb28] sm:$0xff]
    %v499 = vld [vmem:[#allocation5 + $0xb30] sm:$0xff]
    %v500 = vld [vmem:[#allocation5 + $0xb38] sm:$0xff]
    %v501 = vld [vmem:[#allocation5 + $0xb40] sm:$0xff]
    %v502 = vld [vmem:[#allocation5 + $0xb48] sm:$0xff]
    %v503 = vld [vmem:[#allocation5 + $0xb50] sm:$0xff]
    %v504 = vld [vmem:[#allocation5 + $0xb58] sm:$0xff]
    %v505 = vld [vmem:[#allocation5 + $0xb60] sm:$0xff]
    %v506 = vld [vmem:[#allocation5 + $0xb68] sm:$0xff]
    %v507 = vld [vmem:[#allocation5 + $0xb70] sm:$0xff]
    %v508 = vld [vmem:[#allocation5 + $0xb78] sm:$0xff]
    %v509 = vld [vmem:[#allocation5 + $0xb80] sm:$0xff]
    %v510 = vld [vmem:[#allocation5 + $0xb88] sm:$0xff]
    %v511 = vld [vmem:[#allocation5 + $0xb90] sm:$0xff]
    %v512 = vld [vmem:[#allocation5 + $0xb98] sm:$0xff]
    %v513 = vld [vmem:[#allocation5 + $0xba0] sm:$0xff]
    %v514 = vld [vmem:[#allocation5 + $0xba8] sm:$0xff]
    %v515 = vld [vmem:[#allocation5 + $0xbb0] sm:$0xff]
    %v516 = vld [vmem:[#allocation5 + $0xbb8] sm:$0xff]
    %v517 = vld [vmem:[#allocation5 + $0xbc0] sm:$0xff]
    %v518 = vld [vmem:[#allocation5 + $0xbc8] sm:$0xff]
    %v519 = vld [vmem:[#allocation5 + $0xbd0] sm:$0xff]
    %v520 = vld [vmem:[#allocation5 + $0xbd8] sm:$0xff]
    %v521 = vld [vmem:[#allocation5 + $0xbe0] sm:$0xff]
    %v522 = vld [vmem:[#allocation5 + $0xbe8] sm:$0xff]
    %v523 = vld [vmem:[#allocation5 + $0xbf0] sm:$0xff]
    %v524 = vld [vmem:[#allocation5 + $0xbf8] sm:$0xff]
    %v528 = vunpack.c.l.b16 %v138
    %v529 = vunpack.c.h.b16 %v138
    %v530 = vunpack.c.l.b16 %v139
    %v531 = vunpack.c.h.b16 %v139
    %v532 = vunpack.c.l.b16 %v140
    %v533 = vunpack.c.h.b16 %v140
    %v534 = vpack.c.b16 %v528, %v528
    %v535 = vpack.c.b16 %v529, %v529
    %v536 = vpack.c.b16 %v530, %v530
    %v537 = vpack.c.b16 %v531, %v531
    %v538 = vpack.c.b16 %v532, %v532
    %v539 = vpack.c.b16 %v533, %v533
    %v930 = vunpack.c.l.b16 %v141
    %v931 = vunpack.c.h.b16 %v141
    %v932 = vunpack.c.l.b16 %v142
    %v933 = vunpack.c.h.b16 %v142
    %v934 = vunpack.c.l.b16 %v143
    %v935 = vunpack.c.h.b16 %v143
    %v936 = vunpack.c.l.b16 %v144
    %v937 = vunpack.c.h.b16 %v144
    %v938 = vunpack.c.l.b16 %v145
    %v939 = vunpack.c.h.b16 %v145
    %v940 = vunpack.c.l.b16 %v146
    %v941 = vunpack.c.h.b16 %v146
    %v942 = vunpack.c.l.b16 %v147
    %v943 = vunpack.c.h.b16 %v147
    %v944 = vunpack.c.l.b16 %v148
    %v945 = vunpack.c.h.b16 %v148
    %v946 = vunpack.c.l.b16 %v149
    %v947 = vunpack.c.h.b16 %v149
    %v948 = vunpack.c.l.b16 %v150
    %v949 = vunpack.c.h.b16 %v150
    %v950 = vunpack.c.l.b16 %v151
    %v951 = vunpack.c.h.b16 %v151
    %v952 = vunpack.c.l.b16 %v152
    %v953 = vunpack.c.h.b16 %v152
    %v954 = vunpack.c.l.b16 %v153
    %v955 = vunpack.c.h.b16 %v153
    %v956 = vunpack.c.l.b16 %v154
    %v957 = vunpack.c.h.b16 %v154
    %v958 = vunpack.c.l.b16 %v155
    %v959 = vunpack.c.h.b16 %v155
    %v960 = vunpack.c.l.b16 %v156
    %v961 = vunpack.c.h.b16 %v156
    %v962 = vunpack.c.l.b16 %v157
    %v963 = vunpack.c.h.b16 %v157
    %v964 = vunpack.c.l.b16 %v158
    %v965 = vunpack.c.h.b16 %v158
    %v966 = vunpack.c.l.b16 %v159
    %v967 = vunpack.c.h.b16 %v159
    %v968 = vunpack.c.l.b16 %v160
    %v969 = vunpack.c.h.b16 %v160
    %v970 = vunpack.c.l.b16 %v161
    %v971 = vunpack.c.h.b16 %v161
    %v972 = vunpack.c.l.b16 %v162
    %v973 = vunpack.c.h.b16 %v162
    %v974 = vunpack.c.l.b16 %v163
    %v975 = vunpack.c.h.b16 %v163
    %v976 = vunpack.c.l.b16 %v164
    %v977 = vunpack.c.h.b16 %v164
    %v978 = vunpack.c.l.b16 %v165
    %v979 = vunpack.c.h.b16 %v165
    %v980 = vunpack.c.l.b16 %v166
    %v981 = vunpack.c.h.b16 %v166
    %v982 = vunpack.c.l.b16 %v167
    %v983 = vunpack.c.h.b16 %v167
    %v984 = vunpack.c.l.b16 %v168
    %v985 = vunpack.c.h.b16 %v168
    %v986 = vunpack.c.l.b16 %v169
    %v987 = vunpack.c.h.b16 %v169
    %v988 = vunpack.c.l.b16 %v170
    %v989 = vunpack.c.h.b16 %v170
    %v990 = vunpack.c.l.b16 %v171
    %v991 = vunpack.c.h.b16 %v171
    %v992 = vunpack.c.l.b16 %v172
    %v993 = vunpack.c.h.b16 %v172
    %v994 = vunpack.c.l.b16 %v173
    %v995 = vunpack.c.h.b16 %v173
    %v996 = vunpack.c.l.b16 %v174
    %v997 = vunpack.c.h.b16 %v174
    %v998 = vunpack.c.l.b16 %v175
    %v999 = vunpack.c.h.b16 %v175
    %v1000 = vunpack.c.l.b16 %v176
    %v1001 = vunpack.c.h.b16 %v176
    %v1002 = vunpack.c.l.b16 %v177
    %v1003 = vunpack.c.h.b16 %v177
    %v1004 = vunpack.c.l.b16 %v178
    %v1005 = vunpack.c.h.b16 %v178
    %v1006 = vunpack.c.l.b16 %v179
    %v1007 = vunpack.c.h.b16 %v179
    %v1008 = vunpack.c.l.b16 %v180
    %v1009 = vunpack.c.h.b16 %v180
    %v1010 = vunpack.c.l.b16 %v181
    %v1011 = vunpack.c.h.b16 %v181
    %v1012 = vunpack.c.l.b16 %v182
    %v1013 = vunpack.c.h.b16 %v182
    %v1014 = vunpack.c.l.b16 %v183
    %v1015 = vunpack.c.h.b16 %v183
    %v1016 = vunpack.c.l.b16 %v184
    %v1017 = vunpack.c.h.b16 %v184
    %v1018 = vunpack.c.l.b16 %v185
    %v1019 = vunpack.c.h.b16 %v185
    %v1020 = vunpack.c.l.b16 %v186
    %v1021 = vunpack.c.h.b16 %v186
    %v1022 = vunpack.c.l.b16 %v187
    %v1023 = vunpack.c.h.b16 %v187
    %v1024 = vunpack.c.l.b16 %v188
    %v1025 = vunpack.c.h.b16 %v188
    %v1026 = vunpack.c.l.b16 %v189
    %v1027 = vunpack.c.h.b16 %v189
    %v1028 = vunpack.c.l.b16 %v190
    %v1029 = vunpack.c.h.b16 %v190
    %v1030 = vunpack.c.l.b16 %v191
    %v1031 = vunpack.c.h.b16 %v191
    %v1032 = vunpack.c.l.b16 %v192
    %v1033 = vunpack.c.h.b16 %v192
    %v1034 = vunpack.c.l.b16 %v193
    %v1035 = vunpack.c.h.b16 %v193
    %v1036 = vunpack.c.l.b16 %v194
    %v1037 = vunpack.c.h.b16 %v194
    %v1038 = vunpack.c.l.b16 %v195
    %v1039 = vunpack.c.h.b16 %v195
    %v1040 = vunpack.c.l.b16 %v196
    %v1041 = vunpack.c.h.b16 %v196
    %v1042 = vunpack.c.l.b16 %v197
    %v1043 = vunpack.c.h.b16 %v197
    %v1044 = vunpack.c.l.b16 %v198
    %v1045 = vunpack.c.h.b16 %v198
    %v1046 = vunpack.c.l.b16 %v199
    %v1047 = vunpack.c.h.b16 %v199
    %v1048 = vunpack.c.l.b16 %v200
    %v1049 = vunpack.c.h.b16 %v200
    %v1050 = vunpack.c.l.b16 %v201
    %v1051 = vunpack.c.h.b16 %v201
    %v1052 = vunpack.c.l.b16 %v202
    %v1053 = vunpack.c.h.b16 %v202
    %v1054 = vunpack.c.l.b16 %v203
    %v1055 = vunpack.c.h.b16 %v203
    %v1056 = vunpack.c.l.b16 %v204
    %v1057 = vunpack.c.h.b16 %v204
    %v1058 = vunpack.c.l.b16 %v205
    %v1059 = vunpack.c.h.b16 %v205
    %v1060 = vunpack.c.l.b16 %v206
    %v1061 = vunpack.c.h.b16 %v206
    %v1062 = vunpack.c.l.b16 %v207
    %v1063 = vunpack.c.h.b16 %v207
    %v1064 = vunpack.c.l.b16 %v208
    %v1065 = vunpack.c.h.b16 %v208
    %v1066 = vunpack.c.l.b16 %v209
    %v1067 = vunpack.c.h.b16 %v209
    %v1068 = vunpack.c.l.b16 %v210
    %v1069 = vunpack.c.h.b16 %v210
    %v1070 = vunpack.c.l.b16 %v211
    %v1071 = vunpack.c.h.b16 %v211
    %v1072 = vunpack.c.l.b16 %v212
    %v1073 = vunpack.c.h.b16 %v212
    %v1074 = vunpack.c.l.b16 %v213
    %v1075 = vunpack.c.h.b16 %v213
    %v1076 = vunpack.c.l.b16 %v214
    %v1077 = vunpack.c.h.b16 %v214
    %v1078 = vunpack.c.l.b16 %v215
    %v1079 = vunpack.c.h.b16 %v215
    %v1080 = vunpack.c.l.b16 %v216
    %v1081 = vunpack.c.h.b16 %v216
    %v1082 = vunpack.c.l.b16 %v217
    %v1083 = vunpack.c.h.b16 %v217
    %v1084 = vunpack.c.l.b16 %v218
    %v1085 = vunpack.c.h.b16 %v218
    %v1086 = vunpack.c.l.b16 %v219
    %v1087 = vunpack.c.h.b16 %v219
    %v1088 = vunpack.c.l.b16 %v220
    %v1089 = vunpack.c.h.b16 %v220
    %v1090 = vunpack.c.l.b16 %v221
    %v1091 = vunpack.c.h.b16 %v221
    %v1092 = vunpack.c.l.b16 %v222
    %v1093 = vunpack.c.h.b16 %v222
    %v1094 = vunpack.c.l.b16 %v223
    %v1095 = vunpack.c.h.b16 %v223
    %v1096 = vunpack.c.l.b16 %v224
    %v1097 = vunpack.c.h.b16 %v224
    %v1098 = vunpack.c.l.b16 %v225
    %v1099 = vunpack.c.h.b16 %v225
    %v1100 = vunpack.c.l.b16 %v226
    %v1101 = vunpack.c.h.b16 %v226
    %v1102 = vunpack.c.l.b16 %v227
    %v1103 = vunpack.c.h.b16 %v227
    %v1104 = vunpack.c.l.b16 %v228
    %v1105 = vunpack.c.h.b16 %v228
    %v1106 = vunpack.c.l.b16 %v229
    %v1107 = vunpack.c.h.b16 %v229
    %v1108 = vunpack.c.l.b16 %v230
    %v1109 = vunpack.c.h.b16 %v230
    %v1110 = vunpack.c.l.b16 %v231
    %v1111 = vunpack.c.h.b16 %v231
    %v1112 = vunpack.c.l.b16 %v232
    %v1113 = vunpack.c.h.b16 %v232
    %v1114 = vunpack.c.l.b16 %v233
    %v1115 = vunpack.c.h.b16 %v233
    %v1116 = vunpack.c.l.b16 %v234
    %v1117 = vunpack.c.h.b16 %v234
    %v1118 = vunpack.c.l.b16 %v235
    %v1119 = vunpack.c.h.b16 %v235
    %v1120 = vunpack.c.l.b16 %v236
    %v1121 = vunpack.c.h.b16 %v236
    %v1122 = vunpack.c.l.b16 %v237
    %v1123 = vunpack.c.h.b16 %v237
    %v1124 = vunpack.c.l.b16 %v238
    %v1125 = vunpack.c.h.b16 %v238
    %v1126 = vunpack.c.l.b16 %v239
    %v1127 = vunpack.c.h.b16 %v239
    %v1128 = vunpack.c.l.b16 %v240
    %v1129 = vunpack.c.h.b16 %v240
    %v1130 = vunpack.c.l.b16 %v241
    %v1131 = vunpack.c.h.b16 %v241
    %v1132 = vunpack.c.l.b16 %v242
    %v1133 = vunpack.c.h.b16 %v242
    %v1134 = vunpack.c.l.b16 %v243
    %v1135 = vunpack.c.h.b16 %v243
    %v1136 = vunpack.c.l.b16 %v244
    %v1137 = vunpack.c.h.b16 %v244
    %v1138 = vunpack.c.l.b16 %v245
    %v1139 = vunpack.c.h.b16 %v245
    %v1140 = vunpack.c.l.b16 %v246
    %v1141 = vunpack.c.h.b16 %v246
    %v1142 = vunpack.c.l.b16 %v247
    %v1143 = vunpack.c.h.b16 %v247
    %v1144 = vunpack.c.l.b16 %v248
    %v1145 = vunpack.c.h.b16 %v248
    %v1146 = vunpack.c.l.b16 %v249
    %v1147 = vunpack.c.h.b16 %v249
    %v1148 = vunpack.c.l.b16 %v250
    %v1149 = vunpack.c.h.b16 %v250
    %v1150 = vunpack.c.l.b16 %v251
    %v1151 = vunpack.c.h.b16 %v251
    %v1152 = vunpack.c.l.b16 %v252
    %v1153 = vunpack.c.h.b16 %v252
    %v1154 = vunpack.c.l.b16 %v253
    %v1155 = vunpack.c.h.b16 %v253
    %v1156 = vunpack.c.l.b16 %v254
    %v1157 = vunpack.c.h.b16 %v254
    %v1158 = vunpack.c.l.b16 %v255
    %v1159 = vunpack.c.h.b16 %v255
    %v1160 = vunpack.c.l.b16 %v256
    %v1161 = vunpack.c.h.b16 %v256
    %v1162 = vunpack.c.l.b16 %v257
    %v1163 = vunpack.c.h.b16 %v257
    %v1164 = vunpack.c.l.b16 %v258
    %v1165 = vunpack.c.h.b16 %v258
    %v1166 = vunpack.c.l.b16 %v259
    %v1167 = vunpack.c.h.b16 %v259
    %v1168 = vunpack.c.l.b16 %v260
    %v1169 = vunpack.c.h.b16 %v260
    %v1170 = vunpack.c.l.b16 %v261
    %v1171 = vunpack.c.h.b16 %v261
    %v1172 = vunpack.c.l.b16 %v262
    %v1173 = vunpack.c.h.b16 %v262
    %v1174 = vunpack.c.l.b16 %v263
    %v1175 = vunpack.c.h.b16 %v263
    %v1176 = vunpack.c.l.b16 %v264
    %v1177 = vunpack.c.h.b16 %v264
    %v1178 = vunpack.c.l.b16 %v265
    %v1179 = vunpack.c.h.b16 %v265
    %v1180 = vunpack.c.l.b16 %v266
    %v1181 = vunpack.c.h.b16 %v266
    %v1182 = vunpack.c.l.b16 %v267
    %v1183 = vunpack.c.h.b16 %v267
    %v1184 = vunpack.c.l.b16 %v268
    %v1185 = vunpack.c.h.b16 %v268
    %v1186 = vunpack.c.l.b16 %v269
    %v1187 = vunpack.c.h.b16 %v269
    %v1188 = vunpack.c.l.b16 %v270
    %v1189 = vunpack.c.h.b16 %v270
    %v1190 = vunpack.c.l.b16 %v271
    %v1191 = vunpack.c.h.b16 %v271
    %v1192 = vunpack.c.l.b16 %v272
    %v1193 = vunpack.c.h.b16 %v272
    %v1194 = vunpack.c.l.b16 %v273
    %v1195 = vunpack.c.h.b16 %v273
    %v1196 = vunpack.c.l.b16 %v274
    %v1197 = vunpack.c.h.b16 %v274
    %v1198 = vunpack.c.l.b16 %v275
    %v1199 = vunpack.c.h.b16 %v275
    %v1200 = vunpack.c.l.b16 %v276
    %v1201 = vunpack.c.h.b16 %v276
    %v1202 = vunpack.c.l.b16 %v277
    %v1203 = vunpack.c.h.b16 %v277
    %v1204 = vunpack.c.l.b16 %v278
    %v1205 = vunpack.c.h.b16 %v278
    %v1206 = vunpack.c.l.b16 %v279
    %v1207 = vunpack.c.h.b16 %v279
    %v1208 = vunpack.c.l.b16 %v280
    %v1209 = vunpack.c.h.b16 %v280
    %v1210 = vunpack.c.l.b16 %v281
    %v1211 = vunpack.c.h.b16 %v281
    %v1212 = vunpack.c.l.b16 %v282
    %v1213 = vunpack.c.h.b16 %v282
    %v1214 = vunpack.c.l.b16 %v283
    %v1215 = vunpack.c.h.b16 %v283
    %v1216 = vunpack.c.l.b16 %v284
    %v1217 = vunpack.c.h.b16 %v284
    %v1218 = vunpack.c.l.b16 %v285
    %v1219 = vunpack.c.h.b16 %v285
    %v1220 = vunpack.c.l.b16 %v286
    %v1221 = vunpack.c.h.b16 %v286
    %v1222 = vunpack.c.l.b16 %v287
    %v1223 = vunpack.c.h.b16 %v287
    %v1224 = vunpack.c.l.b16 %v288
    %v1225 = vunpack.c.h.b16 %v288
    %v1226 = vunpack.c.l.b16 %v289
    %v1227 = vunpack.c.h.b16 %v289
    %v1228 = vunpack.c.l.b16 %v290
    %v1229 = vunpack.c.h.b16 %v290
    %v1230 = vunpack.c.l.b16 %v291
    %v1231 = vunpack.c.h.b16 %v291
    %v1232 = vunpack.c.l.b16 %v292
    %v1233 = vunpack.c.h.b16 %v292
    %v1234 = vunpack.c.l.b16 %v293
    %v1235 = vunpack.c.h.b16 %v293
    %v1236 = vunpack.c.l.b16 %v294
    %v1237 = vunpack.c.h.b16 %v294
    %v1238 = vunpack.c.l.b16 %v295
    %v1239 = vunpack.c.h.b16 %v295
    %v1240 = vunpack.c.l.b16 %v296
    %v1241 = vunpack.c.h.b16 %v296
    %v1242 = vunpack.c.l.b16 %v297
    %v1243 = vunpack.c.h.b16 %v297
    %v1244 = vunpack.c.l.b16 %v298
    %v1245 = vunpack.c.h.b16 %v298
    %v1246 = vunpack.c.l.b16 %v299
    %v1247 = vunpack.c.h.b16 %v299
    %v1248 = vunpack.c.l.b16 %v300
    %v1249 = vunpack.c.h.b16 %v300
    %v1250 = vunpack.c.l.b16 %v301
    %v1251 = vunpack.c.h.b16 %v301
    %v1252 = vunpack.c.l.b16 %v302
    %v1253 = vunpack.c.h.b16 %v302
    %v1254 = vunpack.c.l.b16 %v303
    %v1255 = vunpack.c.h.b16 %v303
    %v1256 = vunpack.c.l.b16 %v304
    %v1257 = vunpack.c.h.b16 %v304
    %v1258 = vunpack.c.l.b16 %v305
    %v1259 = vunpack.c.h.b16 %v305
    %v1260 = vunpack.c.l.b16 %v306
    %v1261 = vunpack.c.h.b16 %v306
    %v1262 = vunpack.c.l.b16 %v307
    %v1263 = vunpack.c.h.b16 %v307
    %v1264 = vunpack.c.l.b16 %v308
    %v1265 = vunpack.c.h.b16 %v308
    %v1266 = vunpack.c.l.b16 %v309
    %v1267 = vunpack.c.h.b16 %v309
    %v1268 = vunpack.c.l.b16 %v310
    %v1269 = vunpack.c.h.b16 %v310
    %v1270 = vunpack.c.l.b16 %v311
    %v1271 = vunpack.c.h.b16 %v311
    %v1272 = vunpack.c.l.b16 %v312
    %v1273 = vunpack.c.h.b16 %v312
    %v1274 = vunpack.c.l.b16 %v313
    %v1275 = vunpack.c.h.b16 %v313
    %v1276 = vunpack.c.l.b16 %v314
    %v1277 = vunpack.c.h.b16 %v314
    %v1278 = vunpack.c.l.b16 %v315
    %v1279 = vunpack.c.h.b16 %v315
    %v1280 = vunpack.c.l.b16 %v316
    %v1281 = vunpack.c.h.b16 %v316
    %v1282 = vunpack.c.l.b16 %v317
    %v1283 = vunpack.c.h.b16 %v317
    %v1284 = vunpack.c.l.b16 %v318
    %v1285 = vunpack.c.h.b16 %v318
    %v1286 = vunpack.c.l.b16 %v319
    %v1287 = vunpack.c.h.b16 %v319
    %v1288 = vunpack.c.l.b16 %v320
    %v1289 = vunpack.c.h.b16 %v320
    %v1290 = vunpack.c.l.b16 %v321
    %v1291 = vunpack.c.h.b16 %v321
    %v1292 = vunpack.c.l.b16 %v322
    %v1293 = vunpack.c.h.b16 %v322
    %v1294 = vunpack.c.l.b16 %v323
    %v1295 = vunpack.c.h.b16 %v323
    %v1296 = vunpack.c.l.b16 %v324
    %v1297 = vunpack.c.h.b16 %v324
    %v1298 = vunpack.c.l.b16 %v325
    %v1299 = vunpack.c.h.b16 %v325
    %v1300 = vunpack.c.l.b16 %v326
    %v1301 = vunpack.c.h.b16 %v326
    %v1302 = vunpack.c.l.b16 %v327
    %v1303 = vunpack.c.h.b16 %v327
    %v1304 = vunpack.c.l.b16 %v328
    %v1305 = vunpack.c.h.b16 %v328
    %v1306 = vunpack.c.l.b16 %v329
    %v1307 = vunpack.c.h.b16 %v329
    %v1308 = vunpack.c.l.b16 %v330
    %v1309 = vunpack.c.h.b16 %v330
    %v1310 = vunpack.c.l.b16 %v331
    %v1311 = vunpack.c.h.b16 %v331
    %v1312 = vunpack.c.l.b16 %v332
    %v1313 = vunpack.c.h.b16 %v332
    %v1314 = vunpack.c.l.b16 %v333
    %v1315 = vunpack.c.h.b16 %v333
    %v1316 = vunpack.c.l.b16 %v334
    %v1317 = vunpack.c.h.b16 %v334
    %v1318 = vunpack.c.l.b16 %v335
    %v1319 = vunpack.c.h.b16 %v335
    %v1320 = vunpack.c.l.b16 %v336
    %v1321 = vunpack.c.h.b16 %v336
    %v1322 = vunpack.c.l.b16 %v337
    %v1323 = vunpack.c.h.b16 %v337
    %v1324 = vunpack.c.l.b16 %v338
    %v1325 = vunpack.c.h.b16 %v338
    %v1326 = vunpack.c.l.b16 %v339
    %v1327 = vunpack.c.h.b16 %v339
    %v1328 = vunpack.c.l.b16 %v340
    %v1329 = vunpack.c.h.b16 %v340
    %v1330 = vunpack.c.l.b16 %v341
    %v1331 = vunpack.c.h.b16 %v341
    %v1332 = vunpack.c.l.b16 %v342
    %v1333 = vunpack.c.h.b16 %v342
    %v1334 = vunpack.c.l.b16 %v343
    %v1335 = vunpack.c.h.b16 %v343
    %v1336 = vunpack.c.l.b16 %v344
    %v1337 = vunpack.c.h.b16 %v344
    %v1338 = vunpack.c.l.b16 %v345
    %v1339 = vunpack.c.h.b16 %v345
    %v1340 = vunpack.c.l.b16 %v346
    %v1341 = vunpack.c.h.b16 %v346
    %v1342 = vunpack.c.l.b16 %v347
    %v1343 = vunpack.c.h.b16 %v347
    %v1344 = vunpack.c.l.b16 %v348
    %v1345 = vunpack.c.h.b16 %v348
    %v1346 = vunpack.c.l.b16 %v349
    %v1347 = vunpack.c.h.b16 %v349
    %v1348 = vunpack.c.l.b16 %v350
    %v1349 = vunpack.c.h.b16 %v350
    %v1350 = vunpack.c.l.b16 %v351
    %v1351 = vunpack.c.h.b16 %v351
    %v1352 = vunpack.c.l.b16 %v352
    %v1353 = vunpack.c.h.b16 %v352
    %v1354 = vunpack.c.l.b16 %v353
    %v1355 = vunpack.c.h.b16 %v353
    %v1356 = vunpack.c.l.b16 %v354
    %v1357 = vunpack.c.h.b16 %v354
    %v1358 = vunpack.c.l.b16 %v355
    %v1359 = vunpack.c.h.b16 %v355
    %v1360 = vunpack.c.l.b16 %v356
    %v1361 = vunpack.c.h.b16 %v356
    %v1362 = vunpack.c.l.b16 %v357
    %v1363 = vunpack.c.h.b16 %v357
    %v1364 = vunpack.c.l.b16 %v358
    %v1365 = vunpack.c.h.b16 %v358
    %v1366 = vunpack.c.l.b16 %v359
    %v1367 = vunpack.c.h.b16 %v359
    %v1368 = vunpack.c.l.b16 %v360
    %v1369 = vunpack.c.h.b16 %v360
    %v1370 = vunpack.c.l.b16 %v361
    %v1371 = vunpack.c.h.b16 %v361
    %v1372 = vunpack.c.l.b16 %v362
    %v1373 = vunpack.c.h.b16 %v362
    %v1374 = vunpack.c.l.b16 %v363
    %v1375 = vunpack.c.h.b16 %v363
    %v1376 = vunpack.c.l.b16 %v364
    %v1377 = vunpack.c.h.b16 %v364
    %v1378 = vunpack.c.l.b16 %v365
    %v1379 = vunpack.c.h.b16 %v365
    %v1380 = vunpack.c.l.b16 %v366
    %v1381 = vunpack.c.h.b16 %v366
    %v1382 = vunpack.c.l.b16 %v367
    %v1383 = vunpack.c.h.b16 %v367
    %v1384 = vunpack.c.l.b16 %v368
    %v1385 = vunpack.c.h.b16 %v368
    %v1386 = vunpack.c.l.b16 %v369
    %v1387 = vunpack.c.h.b16 %v369
    %v1388 = vunpack.c.l.b16 %v370
    %v1389 = vunpack.c.h.b16 %v370
    %v1390 = vunpack.c.l.b16 %v371
    %v1391 = vunpack.c.h.b16 %v371
    %v1392 = vunpack.c.l.b16 %v372
    %v1393 = vunpack.c.h.b16 %v372
    %v1394 = vunpack.c.l.b16 %v373
    %v1395 = vunpack.c.h.b16 %v373
    %v1396 = vunpack.c.l.b16 %v374
    %v1397 = vunpack.c.h.b16 %v374
    %v1398 = vunpack.c.l.b16 %v375
    %v1399 = vunpack.c.h.b16 %v375
    %v1400 = vunpack.c.l.b16 %v376
    %v1401 = vunpack.c.h.b16 %v376
    %v1402 = vunpack.c.l.b16 %v377
    %v1403 = vunpack.c.h.b16 %v377
    %v1404 = vunpack.c.l.b16 %v378
    %v1405 = vunpack.c.h.b16 %v378
    %v1406 = vunpack.c.l.b16 %v379
    %v1407 = vunpack.c.h.b16 %v379
    %v1408 = vunpack.c.l.b16 %v380
    %v1409 = vunpack.c.h.b16 %v380
    %v1410 = vunpack.c.l.b16 %v381
    %v1411 = vunpack.c.h.b16 %v381
    %v1412 = vunpack.c.l.b16 %v382
    %v1413 = vunpack.c.h.b16 %v382
    %v1414 = vunpack.c.l.b16 %v383
    %v1415 = vunpack.c.h.b16 %v383
    %v1416 = vunpack.c.l.b16 %v384
    %v1417 = vunpack.c.h.b16 %v384
    %v1418 = vunpack.c.l.b16 %v385
    %v1419 = vunpack.c.h.b16 %v385
    %v1420 = vunpack.c.l.b16 %v386
    %v1421 = vunpack.c.h.b16 %v386
    %v1422 = vunpack.c.l.b16 %v387
    %v1423 = vunpack.c.h.b16 %v387
    %v1424 = vunpack.c.l.b16 %v388
    %v1425 = vunpack.c.h.b16 %v388
    %v1426 = vunpack.c.l.b16 %v389
    %v1427 = vunpack.c.h.b16 %v389
    %v1428 = vunpack.c.l.b16 %v390
    %v1429 = vunpack.c.h.b16 %v390
    %v1430 = vunpack.c.l.b16 %v391
    %v1431 = vunpack.c.h.b16 %v391
    %v1432 = vunpack.c.l.b16 %v392
    %v1433 = vunpack.c.h.b16 %v392
    %v1434 = vunpack.c.l.b16 %v393
    %v1435 = vunpack.c.h.b16 %v393
    %v1436 = vunpack.c.l.b16 %v394
    %v1437 = vunpack.c.h.b16 %v394
    %v1438 = vunpack.c.l.b16 %v395
    %v1439 = vunpack.c.h.b16 %v395
    %v1440 = vunpack.c.l.b16 %v396
    %v1441 = vunpack.c.h.b16 %v396
    %v1442 = vunpack.c.l.b16 %v397
    %v1443 = vunpack.c.h.b16 %v397
    %v1444 = vunpack.c.l.b16 %v398
    %v1445 = vunpack.c.h.b16 %v398
    %v1446 = vunpack.c.l.b16 %v399
    %v1447 = vunpack.c.h.b16 %v399
    %v1448 = vunpack.c.l.b16 %v400
    %v1449 = vunpack.c.h.b16 %v400
    %v1450 = vunpack.c.l.b16 %v401
    %v1451 = vunpack.c.h.b16 %v401
    %v1452 = vunpack.c.l.b16 %v402
    %v1453 = vunpack.c.h.b16 %v402
    %v1454 = vunpack.c.l.b16 %v403
    %v1455 = vunpack.c.h.b16 %v403
    %v1456 = vunpack.c.l.b16 %v404
    %v1457 = vunpack.c.h.b16 %v404
    %v1458 = vunpack.c.l.b16 %v405
    %v1459 = vunpack.c.h.b16 %v405
    %v1460 = vunpack.c.l.b16 %v406
    %v1461 = vunpack.c.h.b16 %v406
    %v1462 = vunpack.c.l.b16 %v407
    %v1463 = vunpack.c.h.b16 %v407
    %v1464 = vunpack.c.l.b16 %v408
    %v1465 = vunpack.c.h.b16 %v408
    %v1466 = vunpack.c.l.b16 %v409
    %v1467 = vunpack.c.h.b16 %v409
    %v1468 = vunpack.c.l.b16 %v410
    %v1469 = vunpack.c.h.b16 %v410
    %v1470 = vunpack.c.l.b16 %v411
    %v1471 = vunpack.c.h.b16 %v411
    %v1472 = vunpack.c.l.b16 %v412
    %v1473 = vunpack.c.h.b16 %v412
    %v1474 = vunpack.c.l.b16 %v413
    %v1475 = vunpack.c.h.b16 %v413
    %v1476 = vunpack.c.l.b16 %v414
    %v1477 = vunpack.c.h.b16 %v414
    %v1478 = vunpack.c.l.b16 %v415
    %v1479 = vunpack.c.h.b16 %v415
    %v1480 = vunpack.c.l.b16 %v416
    %v1481 = vunpack.c.h.b16 %v416
    %v1482 = vunpack.c.l.b16 %v417
    %v1483 = vunpack.c.h.b16 %v417
    %v1484 = vunpack.c.l.b16 %v418
    %v1485 = vunpack.c.h.b16 %v418
    %v1486 = vunpack.c.l.b16 %v419
    %v1487 = vunpack.c.h.b16 %v419
    %v1488 = vunpack.c.l.b16 %v420
    %v1489 = vunpack.c.h.b16 %v420
    %v1490 = vunpack.c.l.b16 %v421
    %v1491 = vunpack.c.h.b16 %v421
    %v1492 = vunpack.c.l.b16 %v422
    %v1493 = vunpack.c.h.b16 %v422
    %v1494 = vunpack.c.l.b16 %v423
    %v1495 = vunpack.c.h.b16 %v423
    %v1496 = vunpack.c.l.b16 %v424
    %v1497 = vunpack.c.h.b16 %v424
    %v1498 = vunpack.c.l.b16 %v425
    %v1499 = vunpack.c.h.b16 %v425
    %v1500 = vunpack.c.l.b16 %v426
    %v1501 = vunpack.c.h.b16 %v426
    %v1502 = vunpack.c.l.b16 %v427
    %v1503 = vunpack.c.h.b16 %v427
    %v1504 = vunpack.c.l.b16 %v428
    %v1505 = vunpack.c.h.b16 %v428
    %v1506 = vunpack.c.l.b16 %v429
    %v1507 = vunpack.c.h.b16 %v429
    %v1508 = vunpack.c.l.b16 %v430
    %v1509 = vunpack.c.h.b16 %v430
    %v1510 = vunpack.c.l.b16 %v431
    %v1511 = vunpack.c.h.b16 %v431
    %v1512 = vunpack.c.l.b16 %v432
    %v1513 = vunpack.c.h.b16 %v432
    %v1514 = vunpack.c.l.b16 %v433
    %v1515 = vunpack.c.h.b16 %v433
    %v1516 = vunpack.c.l.b16 %v434
    %v1517 = vunpack.c.h.b16 %v434
    %v1518 = vunpack.c.l.b16 %v435
    %v1519 = vunpack.c.h.b16 %v435
    %v1520 = vunpack.c.l.b16 %v436
    %v1521 = vunpack.c.h.b16 %v436
    %v1522 = vunpack.c.l.b16 %v437
    %v1523 = vunpack.c.h.b16 %v437
    %v1524 = vunpack.c.l.b16 %v438
    %v1525 = vunpack.c.h.b16 %v438
    %v1526 = vunpack.c.l.b16 %v439
    %v1527 = vunpack.c.h.b16 %v439
    %v1528 = vunpack.c.l.b16 %v440
    %v1529 = vunpack.c.h.b16 %v440
    %v1530 = vunpack.c.l.b16 %v441
    %v1531 = vunpack.c.h.b16 %v441
    %v1532 = vunpack.c.l.b16 %v442
    %v1533 = vunpack.c.h.b16 %v442
    %v1534 = vunpack.c.l.b16 %v443
    %v1535 = vunpack.c.h.b16 %v443
    %v1536 = vunpack.c.l.b16 %v444
    %v1537 = vunpack.c.h.b16 %v444
    %v1538 = vunpack.c.l.b16 %v445
    %v1539 = vunpack.c.h.b16 %v445
    %v1540 = vunpack.c.l.b16 %v446
    %v1541 = vunpack.c.h.b16 %v446
    %v1542 = vunpack.c.l.b16 %v447
    %v1543 = vunpack.c.h.b16 %v447
    %v1544 = vunpack.c.l.b16 %v448
    %v1545 = vunpack.c.h.b16 %v448
    %v1546 = vunpack.c.l.b16 %v449
    %v1547 = vunpack.c.h.b16 %v449
    %v1548 = vunpack.c.l.b16 %v450
    %v1549 = vunpack.c.h.b16 %v450
    %v1550 = vunpack.c.l.b16 %v451
    %v1551 = vunpack.c.h.b16 %v451
    %v1552 = vunpack.c.l.b16 %v452
    %v1553 = vunpack.c.h.b16 %v452
    %v1554 = vunpack.c.l.b16 %v453
    %v1555 = vunpack.c.h.b16 %v453
    %v1556 = vunpack.c.l.b16 %v454
    %v1557 = vunpack.c.h.b16 %v454
    %v1558 = vunpack.c.l.b16 %v455
    %v1559 = vunpack.c.h.b16 %v455
    %v1560 = vunpack.c.l.b16 %v456
    %v1561 = vunpack.c.h.b16 %v456
    %v1562 = vunpack.c.l.b16 %v457
    %v1563 = vunpack.c.h.b16 %v457
    %v1564 = vunpack.c.l.b16 %v458
    %v1565 = vunpack.c.h.b16 %v458
    %v1566 = vunpack.c.l.b16 %v459
    %v1567 = vunpack.c.h.b16 %v459
    %v1568 = vunpack.c.l.b16 %v460
    %v1569 = vunpack.c.h.b16 %v460
    %v1570 = vunpack.c.l.b16 %v461
    %v1571 = vunpack.c.h.b16 %v461
    %v1572 = vunpack.c.l.b16 %v462
    %v1573 = vunpack.c.h.b16 %v462
    %v1574 = vunpack.c.l.b16 %v463
    %v1575 = vunpack.c.h.b16 %v463
    %v1576 = vunpack.c.l.b16 %v464
    %v1577 = vunpack.c.h.b16 %v464
    %v1578 = vunpack.c.l.b16 %v465
    %v1579 = vunpack.c.h.b16 %v465
    %v1580 = vunpack.c.l.b16 %v466
    %v1581 = vunpack.c.h.b16 %v466
    %v1582 = vunpack.c.l.b16 %v467
    %v1583 = vunpack.c.h.b16 %v467
    %v1584 = vunpack.c.l.b16 %v468
    %v1585 = vunpack.c.h.b16 %v468
    %v1586 = vunpack.c.l.b16 %v469
    %v1587 = vunpack.c.h.b16 %v469
    %v1588 = vunpack.c.l.b16 %v470
    %v1589 = vunpack.c.h.b16 %v470
    %v1590 = vunpack.c.l.b16 %v471
    %v1591 = vunpack.c.h.b16 %v471
    %v1592 = vunpack.c.l.b16 %v472
    %v1593 = vunpack.c.h.b16 %v472
    %v1594 = vunpack.c.l.b16 %v473
    %v1595 = vunpack.c.h.b16 %v473
    %v1596 = vunpack.c.l.b16 %v474
    %v1597 = vunpack.c.h.b16 %v474
    %v1598 = vunpack.c.l.b16 %v475
    %v1599 = vunpack.c.h.b16 %v475
    %v1600 = vunpack.c.l.b16 %v476
    %v1601 = vunpack.c.h.b16 %v476
    %v1602 = vunpack.c.l.b16 %v477
    %v1603 = vunpack.c.h.b16 %v477
    %v1604 = vunpack.c.l.b16 %v478
    %v1605 = vunpack.c.h.b16 %v478
    %v1606 = vunpack.c.l.b16 %v479
    %v1607 = vunpack.c.h.b16 %v479
    %v1608 = vunpack.c.l.b16 %v480
    %v1609 = vunpack.c.h.b16 %v480
    %v1610 = vunpack.c.l.b16 %v481
    %v1611 = vunpack.c.h.b16 %v481
    %v1612 = vunpack.c.l.b16 %v482
    %v1613 = vunpack.c.h.b16 %v482
    %v1614 = vunpack.c.l.b16 %v483
    %v1615 = vunpack.c.h.b16 %v483
    %v1616 = vunpack.c.l.b16 %v484
    %v1617 = vunpack.c.h.b16 %v484
    %v1618 = vunpack.c.l.b16 %v485
    %v1619 = vunpack.c.h.b16 %v485
    %v1620 = vunpack.c.l.b16 %v486
    %v1621 = vunpack.c.h.b16 %v486
    %v1622 = vunpack.c.l.b16 %v487
    %v1623 = vunpack.c.h.b16 %v487
    %v1624 = vunpack.c.l.b16 %v488
    %v1625 = vunpack.c.h.b16 %v488
    %v1626 = vunpack.c.l.b16 %v489
    %v1627 = vunpack.c.h.b16 %v489
    %v1628 = vunpack.c.l.b16 %v490
    %v1629 = vunpack.c.h.b16 %v490
    %v1630 = vunpack.c.l.b16 %v491
    %v1631 = vunpack.c.h.b16 %v491
    %v1632 = vunpack.c.l.b16 %v492
    %v1633 = vunpack.c.h.b16 %v492
    %v1634 = vunpack.c.l.b16 %v493
    %v1635 = vunpack.c.h.b16 %v493
    %v1636 = vunpack.c.l.b16 %v494
    %v1637 = vunpack.c.h.b16 %v494
    %v1638 = vunpack.c.l.b16 %v495
    %v1639 = vunpack.c.h.b16 %v495
    %v1640 = vunpack.c.l.b16 %v496
    %v1641 = vunpack.c.h.b16 %v496
    %v1642 = vunpack.c.l.b16 %v497
    %v1643 = vunpack.c.h.b16 %v497
    %v1644 = vunpack.c.l.b16 %v498
    %v1645 = vunpack.c.h.b16 %v498
    %v1646 = vunpack.c.l.b16 %v499
    %v1647 = vunpack.c.h.b16 %v499
    %v1648 = vunpack.c.l.b16 %v500
    %v1649 = vunpack.c.h.b16 %v500
    %v1650 = vunpack.c.l.b16 %v501
    %v1651 = vunpack.c.h.b16 %v501
    %v1652 = vunpack.c.l.b16 %v502
    %v1653 = vunpack.c.h.b16 %v502
    %v1654 = vunpack.c.l.b16 %v503
    %v1655 = vunpack.c.h.b16 %v503
    %v1656 = vunpack.c.l.b16 %v504
    %v1657 = vunpack.c.h.b16 %v504
    %v1658 = vunpack.c.l.b16 %v505
    %v1659 = vunpack.c.h.b16 %v505
    %v1660 = vunpack.c.l.b16 %v506
    %v1661 = vunpack.c.h.b16 %v506
    %v1662 = vunpack.c.l.b16 %v507
    %v1663 = vunpack.c.h.b16 %v507
    %v1664 = vunpack.c.l.b16 %v508
    %v1665 = vunpack.c.h.b16 %v508
    %v1666 = vunpack.c.l.b16 %v509
    %v1667 = vunpack.c.h.b16 %v509
    %v1668 = vunpack.c.l.b16 %v510
    %v1669 = vunpack.c.h.b16 %v510
    %v1670 = vunpack.c.l.b16 %v511
    %v1671 = vunpack.c.h.b16 %v511
    %v1672 = vunpack.c.l.b16 %v512
    %v1673 = vunpack.c.h.b16 %v512
    %v1674 = vunpack.c.l.b16 %v513
    %v1675 = vunpack.c.h.b16 %v513
    %v1676 = vunpack.c.l.b16 %v514
    %v1677 = vunpack.c.h.b16 %v514
    %v1678 = vunpack.c.l.b16 %v515
    %v1679 = vunpack.c.h.b16 %v515
    %v1680 = vunpack.c.l.b16 %v516
    %v1681 = vunpack.c.h.b16 %v516
    %v1682 = vunpack.c.l.b16 %v517
    %v1683 = vunpack.c.h.b16 %v517
    %v1684 = vunpack.c.l.b16 %v518
    %v1685 = vunpack.c.h.b16 %v518
    %v1686 = vunpack.c.l.b16 %v519
    %v1687 = vunpack.c.h.b16 %v519
    %v1688 = vunpack.c.l.b16 %v520
    %v1689 = vunpack.c.h.b16 %v520
    %v1690 = vunpack.c.l.b16 %v521
    %v1691 = vunpack.c.h.b16 %v521
    %v1692 = vunpack.c.l.b16 %v522
    %v1693 = vunpack.c.h.b16 %v522
    %v1694 = vunpack.c.l.b16 %v523
    %v1695 = vunpack.c.h.b16 %v523
    %v1696 = vunpack.c.l.b16 %v524
    %v1697 = vunpack.c.h.b16 %v524
    %v1698 = vpack.c.b16 %v938, %v930
    %v1699 = vpack.c.b16 %v939, %v931
    %v1700 = vpack.c.b16 %v940, %v932
    %v1701 = vpack.c.b16 %v941, %v933
    %v1702 = vpack.c.b16 %v942, %v934
    %v1703 = vpack.c.b16 %v943, %v935
    %v1704 = vpack.c.b16 %v944, %v936
    %v1705 = vpack.c.b16 %v945, %v937
    %v1706 = vpack.c.b16 %v954, %v946
    %v1707 = vpack.c.b16 %v955, %v947
    %v1708 = vpack.c.b16 %v956, %v948
    %v1709 = vpack.c.b16 %v957, %v949
    %v1710 = vpack.c.b16 %v958, %v950
    %v1711 = vpack.c.b16 %v959, %v951
    %v1712 = vpack.c.b16 %v960, %v952
    %v1713 = vpack.c.b16 %v961, %v953
    %v1714 = vpack.c.b16 %v970, %v962
    %v1715 = vpack.c.b16 %v971, %v963
    %v1716 = vpack.c.b16 %v972, %v964
    %v1717 = vpack.c.b16 %v973, %v965
    %v1718 = vpack.c.b16 %v974, %v966
    %v1719 = vpack.c.b16 %v975, %v967
    %v1720 = vpack.c.b16 %v976, %v968
    %v1721 = vpack.c.b16 %v977, %v969
    %v1722 = vpack.c.b16 %v986, %v978
    %v1723 = vpack.c.b16 %v987, %v979
    %v1724 = vpack.c.b16 %v988, %v980
    %v1725 = vpack.c.b16 %v989, %v981
    %v1726 = vpack.c.b16 %v990, %v982
    %v1727 = vpack.c.b16 %v991, %v983
    %v1728 = vpack.c.b16 %v992, %v984
    %v1729 = vpack.c.b16 %v993, %v985
    %v1730 = vpack.c.b16 %v1002, %v994
    %v1731 = vpack.c.b16 %v1003, %v995
    %v1732 = vpack.c.b16 %v1004, %v996
    %v1733 = vpack.c.b16 %v1005, %v997
    %v1734 = vpack.c.b16 %v1006, %v998
    %v1735 = vpack.c.b16 %v1007, %v999
    %v1736 = vpack.c.b16 %v1008, %v1000
    %v1737 = vpack.c.b16 %v1009, %v1001
    %v1738 = vpack.c.b16 %v1018, %v1010
    %v1739 = vpack.c.b16 %v1019, %v1011
    %v1740 = vpack.c.b16 %v1020, %v1012
    %v1741 = vpack.c.b16 %v1021, %v1013
    %v1742 = vpack.c.b16 %v1022, %v1014
    %v1743 = vpack.c.b16 %v1023, %v1015
    %v1744 = vpack.c.b16 %v1024, %v1016
    %v1745 = vpack.c.b16 %v1025, %v1017
    %v1746 = vpack.c.b16 %v1034, %v1026
    %v1747 = vpack.c.b16 %v1035, %v1027
    %v1748 = vpack.c.b16 %v1036, %v1028
    %v1749 = vpack.c.b16 %v1037, %v1029
    %v1750 = vpack.c.b16 %v1038, %v1030
    %v1751 = vpack.c.b16 %v1039, %v1031
    %v1752 = vpack.c.b16 %v1040, %v1032
    %v1753 = vpack.c.b16 %v1041, %v1033
    %v1754 = vpack.c.b16 %v1050, %v1042
    %v1755 = vpack.c.b16 %v1051, %v1043
    %v1756 = vpack.c.b16 %v1052, %v1044
    %v1757 = vpack.c.b16 %v1053, %v1045
    %v1758 = vpack.c.b16 %v1054, %v1046
    %v1759 = vpack.c.b16 %v1055, %v1047
    %v1760 = vpack.c.b16 %v1056, %v1048
    %v1761 = vpack.c.b16 %v1057, %v1049
    %v1762 = vpack.c.b16 %v1066, %v1058
    %v1763 = vpack.c.b16 %v1067, %v1059
    %v1764 = vpack.c.b16 %v1068, %v1060
    %v1765 = vpack.c.b16 %v1069, %v1061
    %v1766 = vpack.c.b16 %v1070, %v1062
    %v1767 = vpack.c.b16 %v1071, %v1063
    %v1768 = vpack.c.b16 %v1072, %v1064
    %v1769 = vpack.c.b16 %v1073, %v1065
    %v1770 = vpack.c.b16 %v1082, %v1074
    %v1771 = vpack.c.b16 %v1083, %v1075
    %v1772 = vpack.c.b16 %v1084, %v1076
    %v1773 = vpack.c.b16 %v1085, %v1077
    %v1774 = vpack.c.b16 %v1086, %v1078
    %v1775 = vpack.c.b16 %v1087, %v1079
    %v1776 = vpack.c.b16 %v1088, %v1080
    %v1777 = vpack.c.b16 %v1089, %v1081
    %v1778 = vpack.c.b16 %v1098, %v1090
    %v1779 = vpack.c.b16 %v1099, %v1091
    %v1780 = vpack.c.b16 %v1100, %v1092
    %v1781 = vpack.c.b16 %v1101, %v1093
    %v1782 = vpack.c.b16 %v1102, %v1094
    %v1783 = vpack.c.b16 %v1103, %v1095
    %v1784 = vpack.c.b16 %v1104, %v1096
    %v1785 = vpack.c.b16 %v1105, %v1097
    %v1786 = vpack.c.b16 %v1114, %v1106
    %v1787 = vpack.c.b16 %v1115, %v1107
    %v1788 = vpack.c.b16 %v1116, %v1108
    %v1789 = vpack.c.b16 %v1117, %v1109
    %v1790 = vpack.c.b16 %v1118, %v1110
    %v1791 = vpack.c.b16 %v1119, %v1111
    %v1792 = vpack.c.b16 %v1120, %v1112
    %v1793 = vpack.c.b16 %v1121, %v1113
    %v1794 = vpack.c.b16 %v1130, %v1122
    %v1795 = vpack.c.b16 %v1131, %v1123
    %v1796 = vpack.c.b16 %v1132, %v1124
    %v1797 = vpack.c.b16 %v1133, %v1125
    %v1798 = vpack.c.b16 %v1134, %v1126
    %v1799 = vpack.c.b16 %v1135, %v1127
    %v1800 = vpack.c.b16 %v1136, %v1128
    %v1801 = vpack.c.b16 %v1137, %v1129
    %v1802 = vpack.c.b16 %v1146, %v1138
    %v1803 = vpack.c.b16 %v1147, %v1139
    %v1804 = vpack.c.b16 %v1148, %v1140
    %v1805 = vpack.c.b16 %v1149, %v1141
    %v1806 = vpack.c.b16 %v1150, %v1142
    %v1807 = vpack.c.b16 %v1151, %v1143
    %v1808 = vpack.c.b16 %v1152, %v1144
    %v1809 = vpack.c.b16 %v1153, %v1145
    %v1810 = vpack.c.b16 %v1162, %v1154
    %v1811 = vpack.c.b16 %v1163, %v1155
    %v1812 = vpack.c.b16 %v1164, %v1156
    %v1813 = vpack.c.b16 %v1165, %v1157
    %v1814 = vpack.c.b16 %v1166, %v1158
    %v1815 = vpack.c.b16 %v1167, %v1159
    %v1816 = vpack.c.b16 %v1168, %v1160
    %v1817 = vpack.c.b16 %v1169, %v1161
    %v1818 = vpack.c.b16 %v1178, %v1170
    %v1819 = vpack.c.b16 %v1179, %v1171
    %v1820 = vpack.c.b16 %v1180, %v1172
    %v1821 = vpack.c.b16 %v1181, %v1173
    %v1822 = vpack.c.b16 %v1182, %v1174
    %v1823 = vpack.c.b16 %v1183, %v1175
    %v1824 = vpack.c.b16 %v1184, %v1176
    %v1825 = vpack.c.b16 %v1185, %v1177
    %v1826 = vpack.c.b16 %v1194, %v1186
    %v1827 = vpack.c.b16 %v1195, %v1187
    %v1828 = vpack.c.b16 %v1196, %v1188
    %v1829 = vpack.c.b16 %v1197, %v1189
    %v1830 = vpack.c.b16 %v1198, %v1190
    %v1831 = vpack.c.b16 %v1199, %v1191
    %v1832 = vpack.c.b16 %v1200, %v1192
    %v1833 = vpack.c.b16 %v1201, %v1193
    %v1834 = vpack.c.b16 %v1210, %v1202
    %v1835 = vpack.c.b16 %v1211, %v1203
    %v1836 = vpack.c.b16 %v1212, %v1204
    %v1837 = vpack.c.b16 %v1213, %v1205
    %v1838 = vpack.c.b16 %v1214, %v1206
    %v1839 = vpack.c.b16 %v1215, %v1207
    %v1840 = vpack.c.b16 %v1216, %v1208
    %v1841 = vpack.c.b16 %v1217, %v1209
    %v1842 = vpack.c.b16 %v1226, %v1218
    %v1843 = vpack.c.b16 %v1227, %v1219
    %v1844 = vpack.c.b16 %v1228, %v1220
    %v1845 = vpack.c.b16 %v1229, %v1221
    %v1846 = vpack.c.b16 %v1230, %v1222
    %v1847 = vpack.c.b16 %v1231, %v1223
    %v1848 = vpack.c.b16 %v1232, %v1224
    %v1849 = vpack.c.b16 %v1233, %v1225
    %v1850 = vpack.c.b16 %v1242, %v1234
    %v1851 = vpack.c.b16 %v1243, %v1235
    %v1852 = vpack.c.b16 %v1244, %v1236
    %v1853 = vpack.c.b16 %v1245, %v1237
    %v1854 = vpack.c.b16 %v1246, %v1238
    %v1855 = vpack.c.b16 %v1247, %v1239
    %v1856 = vpack.c.b16 %v1248, %v1240
    %v1857 = vpack.c.b16 %v1249, %v1241
    %v1858 = vpack.c.b16 %v1258, %v1250
    %v1859 = vpack.c.b16 %v1259, %v1251
    %v1860 = vpack.c.b16 %v1260, %v1252
    %v1861 = vpack.c.b16 %v1261, %v1253
    %v1862 = vpack.c.b16 %v1262, %v1254
    %v1863 = vpack.c.b16 %v1263, %v1255
    %v1864 = vpack.c.b16 %v1264, %v1256
    %v1865 = vpack.c.b16 %v1265, %v1257
    %v1866 = vpack.c.b16 %v1274, %v1266
    %v1867 = vpack.c.b16 %v1275, %v1267
    %v1868 = vpack.c.b16 %v1276, %v1268
    %v1869 = vpack.c.b16 %v1277, %v1269
    %v1870 = vpack.c.b16 %v1278, %v1270
    %v1871 = vpack.c.b16 %v1279, %v1271
    %v1872 = vpack.c.b16 %v1280, %v1272
    %v1873 = vpack.c.b16 %v1281, %v1273
    %v1874 = vpack.c.b16 %v1290, %v1282
    %v1875 = vpack.c.b16 %v1291, %v1283
    %v1876 = vpack.c.b16 %v1292, %v1284
    %v1877 = vpack.c.b16 %v1293, %v1285
    %v1878 = vpack.c.b16 %v1294, %v1286
    %v1879 = vpack.c.b16 %v1295, %v1287
    %v1880 = vpack.c.b16 %v1296, %v1288
    %v1881 = vpack.c.b16 %v1297, %v1289
    %v1882 = vpack.c.b16 %v1306, %v1298
    %v1883 = vpack.c.b16 %v1307, %v1299
    %v1884 = vpack.c.b16 %v1308, %v1300
    %v1885 = vpack.c.b16 %v1309, %v1301
    %v1886 = vpack.c.b16 %v1310, %v1302
    %v1887 = vpack.c.b16 %v1311, %v1303
    %v1888 = vpack.c.b16 %v1312, %v1304
    %v1889 = vpack.c.b16 %v1313, %v1305
    %v1890 = vpack.c.b16 %v1322, %v1314
    %v1891 = vpack.c.b16 %v1323, %v1315
    %v1892 = vpack.c.b16 %v1324, %v1316
    %v1893 = vpack.c.b16 %v1325, %v1317
    %v1894 = vpack.c.b16 %v1326, %v1318
    %v1895 = vpack.c.b16 %v1327, %v1319
    %v1896 = vpack.c.b16 %v1328, %v1320
    %v1897 = vpack.c.b16 %v1329, %v1321
    %v1898 = vpack.c.b16 %v1338, %v1330
    %v1899 = vpack.c.b16 %v1339, %v1331
    %v1900 = vpack.c.b16 %v1340, %v1332
    %v1901 = vpack.c.b16 %v1341, %v1333
    %v1902 = vpack.c.b16 %v1342, %v1334
    %v1903 = vpack.c.b16 %v1343, %v1335
    %v1904 = vpack.c.b16 %v1344, %v1336
    %v1905 = vpack.c.b16 %v1345, %v1337
    %v1906 = vpack.c.b16 %v1354, %v1346
    %v1907 = vpack.c.b16 %v1355, %v1347
    %v1908 = vpack.c.b16 %v1356, %v1348
    %v1909 = vpack.c.b16 %v1357, %v1349
    %v1910 = vpack.c.b16 %v1358, %v1350
    %v1911 = vpack.c.b16 %v1359, %v1351
    %v1912 = vpack.c.b16 %v1360, %v1352
    %v1913 = vpack.c.b16 %v1361, %v1353
    %v1914 = vpack.c.b16 %v1370, %v1362
    %v1915 = vpack.c.b16 %v1371, %v1363
    %v1916 = vpack.c.b16 %v1372, %v1364
    %v1917 = vpack.c.b16 %v1373, %v1365
    %v1918 = vpack.c.b16 %v1374, %v1366
    %v1919 = vpack.c.b16 %v1375, %v1367
    %v1920 = vpack.c.b16 %v1376, %v1368
    %v1921 = vpack.c.b16 %v1377, %v1369
    %v1922 = vpack.c.b16 %v1386, %v1378
    %v1923 = vpack.c.b16 %v1387, %v1379
    %v1924 = vpack.c.b16 %v1388, %v1380
    %v1925 = vpack.c.b16 %v1389, %v1381
    %v1926 = vpack.c.b16 %v1390, %v1382
    %v1927 = vpack.c.b16 %v1391, %v1383
    %v1928 = vpack.c.b16 %v1392, %v1384
    %v1929 = vpack.c.b16 %v1393, %v1385
    %v1930 = vpack.c.b16 %v1402, %v1394
    %v1931 = vpack.c.b16 %v1403, %v1395
    %v1932 = vpack.c.b16 %v1404, %v1396
    %v1933 = vpack.c.b16 %v1405, %v1397
    %v1934 = vpack.c.b16 %v1406, %v1398
    %v1935 = vpack.c.b16 %v1407, %v1399
    %v1936 = vpack.c.b16 %v1408, %v1400
    %v1937 = vpack.c.b16 %v1409, %v1401
    %v1938 = vpack.c.b16 %v1418, %v1410
    %v1939 = vpack.c.b16 %v1419, %v1411
    %v1940 = vpack.c.b16 %v1420, %v1412
    %v1941 = vpack.c.b16 %v1421, %v1413
    %v1942 = vpack.c.b16 %v1422, %v1414
    %v1943 = vpack.c.b16 %v1423, %v1415
    %v1944 = vpack.c.b16 %v1424, %v1416
    %v1945 = vpack.c.b16 %v1425, %v1417
    %v1946 = vpack.c.b16 %v1434, %v1426
    %v1947 = vpack.c.b16 %v1435, %v1427
    %v1948 = vpack.c.b16 %v1436, %v1428
    %v1949 = vpack.c.b16 %v1437, %v1429
    %v1950 = vpack.c.b16 %v1438, %v1430
    %v1951 = vpack.c.b16 %v1439, %v1431
    %v1952 = vpack.c.b16 %v1440, %v1432
    %v1953 = vpack.c.b16 %v1441, %v1433
    %v1954 = vpack.c.b16 %v1450, %v1442
    %v1955 = vpack.c.b16 %v1451, %v1443
    %v1956 = vpack.c.b16 %v1452, %v1444
    %v1957 = vpack.c.b16 %v1453, %v1445
    %v1958 = vpack.c.b16 %v1454, %v1446
    %v1959 = vpack.c.b16 %v1455, %v1447
    %v1960 = vpack.c.b16 %v1456, %v1448
    %v1961 = vpack.c.b16 %v1457, %v1449
    %v1962 = vpack.c.b16 %v1466, %v1458
    %v1963 = vpack.c.b16 %v1467, %v1459
    %v1964 = vpack.c.b16 %v1468, %v1460
    %v1965 = vpack.c.b16 %v1469, %v1461
    %v1966 = vpack.c.b16 %v1470, %v1462
    %v1967 = vpack.c.b16 %v1471, %v1463
    %v1968 = vpack.c.b16 %v1472, %v1464
    %v1969 = vpack.c.b16 %v1473, %v1465
    %v1970 = vpack.c.b16 %v1482, %v1474
    %v1971 = vpack.c.b16 %v1483, %v1475
    %v1972 = vpack.c.b16 %v1484, %v1476
    %v1973 = vpack.c.b16 %v1485, %v1477
    %v1974 = vpack.c.b16 %v1486, %v1478
    %v1975 = vpack.c.b16 %v1487, %v1479
    %v1976 = vpack.c.b16 %v1488, %v1480
    %v1977 = vpack.c.b16 %v1489, %v1481
    %v1978 = vpack.c.b16 %v1498, %v1490
    %v1979 = vpack.c.b16 %v1499, %v1491
    %v1980 = vpack.c.b16 %v1500, %v1492
    %v1981 = vpack.c.b16 %v1501, %v1493
    %v1982 = vpack.c.b16 %v1502, %v1494
    %v1983 = vpack.c.b16 %v1503, %v1495
    %v1984 = vpack.c.b16 %v1504, %v1496
    %v1985 = vpack.c.b16 %v1505, %v1497
    %v1986 = vpack.c.b16 %v1514, %v1506
    %v1987 = vpack.c.b16 %v1515, %v1507
    %v1988 = vpack.c.b16 %v1516, %v1508
    %v1989 = vpack.c.b16 %v1517, %v1509
    %v1990 = vpack.c.b16 %v1518, %v1510
    %v1991 = vpack.c.b16 %v1519, %v1511
    %v1992 = vpack.c.b16 %v1520, %v1512
    %v1993 = vpack.c.b16 %v1521, %v1513
    %v1994 = vpack.c.b16 %v1530, %v1522
    %v1995 = vpack.c.b16 %v1531, %v1523
    %v1996 = vpack.c.b16 %v1532, %v1524
    %v1997 = vpack.c.b16 %v1533, %v1525
    %v1998 = vpack.c.b16 %v1534, %v1526
    %v1999 = vpack.c.b16 %v1535, %v1527
    %v2000 = vpack.c.b16 %v1536, %v1528
    %v2001 = vpack.c.b16 %v1537, %v1529
    %v2002 = vpack.c.b16 %v1546, %v1538
    %v2003 = vpack.c.b16 %v1547, %v1539
    %v2004 = vpack.c.b16 %v1548, %v1540
    %v2005 = vpack.c.b16 %v1549, %v1541
    %v2006 = vpack.c.b16 %v1550, %v1542
    %v2007 = vpack.c.b16 %v1551, %v1543
    %v2008 = vpack.c.b16 %v1552, %v1544
    %v2009 = vpack.c.b16 %v1553, %v1545
    %v2010 = vpack.c.b16 %v1562, %v1554
    %v2011 = vpack.c.b16 %v1563, %v1555
    %v2012 = vpack.c.b16 %v1564, %v1556
    %v2013 = vpack.c.b16 %v1565, %v1557
    %v2014 = vpack.c.b16 %v1566, %v1558
    %v2015 = vpack.c.b16 %v1567, %v1559
    %v2016 = vpack.c.b16 %v1568, %v1560
    %v2017 = vpack.c.b16 %v1569, %v1561
    %v2018 = vpack.c.b16 %v1578, %v1570
    %v2019 = vpack.c.b16 %v1579, %v1571
    %v2020 = vpack.c.b16 %v1580, %v1572
    %v2021 = vpack.c.b16 %v1581, %v1573
    %v2022 = vpack.c.b16 %v1582, %v1574
    %v2023 = vpack.c.b16 %v1583, %v1575
    %v2024 = vpack.c.b16 %v1584, %v1576
    %v2025 = vpack.c.b16 %v1585, %v1577
    %v2026 = vpack.c.b16 %v1594, %v1586
    %v2027 = vpack.c.b16 %v1595, %v1587
    %v2028 = vpack.c.b16 %v1596, %v1588
    %v2029 = vpack.c.b16 %v1597, %v1589
    %v2030 = vpack.c.b16 %v1598, %v1590
    %v2031 = vpack.c.b16 %v1599, %v1591
    %v2032 = vpack.c.b16 %v1600, %v1592
    %v2033 = vpack.c.b16 %v1601, %v1593
    %v2034 = vpack.c.b16 %v1610, %v1602
    %v2035 = vpack.c.b16 %v1611, %v1603
    %v2036 = vpack.c.b16 %v1612, %v1604
    %v2037 = vpack.c.b16 %v1613, %v1605
    %v2038 = vpack.c.b16 %v1614, %v1606
    %v2039 = vpack.c.b16 %v1615, %v1607
    %v2040 = vpack.c.b16 %v1616, %v1608
    %v2041 = vpack.c.b16 %v1617, %v1609
    %v2042 = vpack.c.b16 %v1626, %v1618
    %v2043 = vpack.c.b16 %v1627, %v1619
    %v2044 = vpack.c.b16 %v1628, %v1620
    %v2045 = vpack.c.b16 %v1629, %v1621
    %v2046 = vpack.c.b16 %v1630, %v1622
    %v2047 = vpack.c.b16 %v1631, %v1623
    %v2048 = vpack.c.b16 %v1632, %v1624
    %v2049 = vpack.c.b16 %v1633, %v1625
    %v2050 = vpack.c.b16 %v1642, %v1634
    %v2051 = vpack.c.b16 %v1643, %v1635
    %v2052 = vpack.c.b16 %v1644, %v1636
    %v2053 = vpack.c.b16 %v1645, %v1637
    %v2054 = vpack.c.b16 %v1646, %v1638
    %v2055 = vpack.c.b16 %v1647, %v1639
    %v2056 = vpack.c.b16 %v1648, %v1640
    %v2057 = vpack.c.b16 %v1649, %v1641
    %v2058 = vpack.c.b16 %v1658, %v1650
    %v2059 = vpack.c.b16 %v1659, %v1651
    %v2060 = vpack.c.b16 %v1660, %v1652
    %v2061 = vpack.c.b16 %v1661, %v1653
    %v2062 = vpack.c.b16 %v1662, %v1654
    %v2063 = vpack.c.b16 %v1663, %v1655
    %v2064 = vpack.c.b16 %v1664, %v1656
    %v2065 = vpack.c.b16 %v1665, %v1657
    %v2066 = vpack.c.b16 %v1674, %v1666
    %v2067 = vpack.c.b16 %v1675, %v1667
    %v2068 = vpack.c.b16 %v1676, %v1668
    %v2069 = vpack.c.b16 %v1677, %v1669
    %v2070 = vpack.c.b16 %v1678, %v1670
    %v2071 = vpack.c.b16 %v1679, %v1671
    %v2072 = vpack.c.b16 %v1680, %v1672
    %v2073 = vpack.c.b16 %v1681, %v1673
    %v2074 = vpack.c.b16 %v1690, %v1682
    %v2075 = vpack.c.b16 %v1691, %v1683
    %v2076 = vpack.c.b16 %v1692, %v1684
    %v2077 = vpack.c.b16 %v1693, %v1685
    %v2078 = vpack.c.b16 %v1694, %v1686
    %v2079 = vpack.c.b16 %v1695, %v1687
    %v2080 = vpack.c.b16 %v1696, %v1688
    %v2081 = vpack.c.b16 %v1697, %v1689
    %2466 = vmatprep.subr.bf16.mxu0 %v1699
    %2467 = vmatpush1.bf16.msra.mxu0 %v1698
    %2468 = vmatprep.subr.bf16.mxu0 %v1707
    %2469 = vmatpush1.bf16.msra.mxu0 %v1706
    %2470 = vmatprep.subr.bf16.mxu0 %v1715
    %2471 = vmatpush1.bf16.msra.mxu0 %v1714
    %2472 = vmatprep.subr.bf16.mxu0 %v1723
    %2473 = vmatpush1.bf16.msra.mxu0 %v1722
    %2474 = vmatprep.subr.bf16.mxu0 %v1731
    %2475 = vmatpush1.bf16.msra.mxu0 %v1730
    %2476 = vmatprep.subr.bf16.mxu0 %v1739
    %2477 = vmatpush1.bf16.msra.mxu0 %v1738
    %2478 = vmatprep.subr.bf16.mxu0 %v1747
    %2479 = vmatpush1.bf16.msra.mxu0 %v1746
    %2480 = vmatprep.subr.bf16.mxu0 %v1755
    %2481 = vmatpush1.bf16.msra.mxu0 %v1754
    %2482 = vmatprep.subr.bf16.mxu0 %v1763
    %2483 = vmatpush1.bf16.msra.mxu0 %v1762
    %2484 = vmatprep.subr.bf16.mxu0 %v1771
    %2485 = vmatpush1.bf16.msra.mxu0 %v1770
    %2486 = vmatprep.subr.bf16.mxu0 %v1779
    %2487 = vmatpush1.bf16.msra.mxu0 %v1778
    %2488 = vmatprep.subr.bf16.mxu0 %v1787
    %2489 = vmatpush1.bf16.msra.mxu0 %v1786
    %2490 = vmatprep.subr.bf16.mxu0 %v1795
    %2491 = vmatpush1.bf16.msra.mxu0 %v1794
    %2492 = vmatprep.subr.bf16.mxu0 %v1803
    %2493 = vmatpush1.bf16.msra.mxu0 %v1802
    %2494 = vmatprep.subr.bf16.mxu0 %v1811
    %2495 = vmatpush1.bf16.msra.mxu0 %v1810
    %2496 = vmatprep.subr.bf16.mxu0 %v1819
    %2497 = vmatpush1.bf16.msra.mxu0 %v1818
    %2498 = vmatprep.mubr.bf16.mxu0 %v535
    %2499 = vmatmul.mubr.bf16.gmra.mrb[0].mxu0 %v534
    %v2500 = vpop.f32.mrb[0].mxu0
    %v2501 = vadd.f32 0.0, %v2500
    %v2502 = vpop.f32.mrb[0].mxu0
    %v2503 = vadd.f32 0.0, %v2502
    %v2504 = vpop.f32.mrb[0].mxu0
    %v2505 = vpop.f32.mrb[0].mxu0
    %2506 = vdwg.mxu0
    %2507 = vmatprep.subr.bf16.mxu0 %v1827
    %2508 = vmatpush1.bf16.msra.mxu0 %v1826
    %2509 = vmatprep.subr.bf16.mxu0 %v1835
    %2510 = vmatpush1.bf16.msra.mxu0 %v1834
    %2511 = vmatprep.subr.bf16.mxu0 %v1843
    %2512 = vmatpush1.bf16.msra.mxu0 %v1842
    %2513 = vmatprep.subr.bf16.mxu0 %v1851
    %2514 = vmatpush1.bf16.msra.mxu0 %v1850
    %2515 = vmatprep.subr.bf16.mxu0 %v1859
    %2516 = vmatpush1.bf16.msra.mxu0 %v1858
    %2517 = vmatprep.subr.bf16.mxu0 %v1867
    %2518 = vmatpush1.bf16.msra.mxu0 %v1866
    %2519 = vmatprep.subr.bf16.mxu0 %v1875
    %2520 = vmatpush1.bf16.msra.mxu0 %v1874
    %2521 = vmatprep.subr.bf16.mxu0 %v1883
    %2522 = vmatpush1.bf16.msra.mxu0 %v1882
    %2523 = vmatprep.subr.bf16.mxu0 %v1891
    %2524 = vmatpush1.bf16.msra.mxu0 %v1890
    %2525 = vmatprep.subr.bf16.mxu0 %v1899
    %2526 = vmatpush1.bf16.msra.mxu0 %v1898
    %2527 = vmatprep.subr.bf16.mxu0 %v1907
    %2528 = vmatpush1.bf16.msra.mxu0 %v1906
    %2529 = vmatprep.subr.bf16.mxu0 %v1915
    %2530 = vmatpush1.bf16.msra.mxu0 %v1914
    %2531 = vmatprep.subr.bf16.mxu0 %v1923
    %2532 = vmatpush1.bf16.msra.mxu0 %v1922
    %2533 = vmatprep.subr.bf16.mxu0 %v1931
    %2534 = vmatpush1.bf16.msra.mxu0 %v1930
    %2535 = vmatprep.subr.bf16.mxu0 %v1939
    %2536 = vmatpush1.bf16.msra.mxu0 %v1938
    %2537 = vmatprep.subr.bf16.mxu0 %v1947
    %2538 = vmatpush1.bf16.msra.mxu0 %v1946
    %2539 = vmatprep.mubr.bf16.mxu0 %v537
    %2540 = vmatmul.mubr.bf16.gmra.mrb[0].mxu0 %v536
    %v2541 = vpop.f32.mrb[0].mxu0
    %v2542 = vadd.f32 %v2501, %v2541
    %v2543 = vpop.f32.mrb[0].mxu0
    %v2544 = vadd.f32 %v2503, %v2543
    %v2545 = vpop.f32.mrb[0].mxu0
    %v2546 = vpop.f32.mrb[0].mxu0
    %2547 = vdwg.mxu0
    %2548 = vmatprep.subr.bf16.mxu0 %v1955
    %2549 = vmatpush1.bf16.msra.mxu0 %v1954
    %2550 = vmatprep.subr.bf16.mxu0 %v1963
    %2551 = vmatpush1.bf16.msra.mxu0 %v1962
    %2552 = vmatprep.subr.bf16.mxu0 %v1971
    %2553 = vmatpush1.bf16.msra.mxu0 %v1970
    %2554 = vmatprep.subr.bf16.mxu0 %v1979
    %2555 = vmatpush1.bf16.msra.mxu0 %v1978
    %2556 = vmatprep.subr.bf16.mxu0 %v1987
    %2557 = vmatpush1.bf16.msra.mxu0 %v1986
    %2558 = vmatprep.subr.bf16.mxu0 %v1995
    %2559 = vmatpush1.bf16.msra.mxu0 %v1994
    %2560 = vmatprep.subr.bf16.mxu0 %v2003
    %2561 = vmatpush1.bf16.msra.mxu0 %v2002
    %2562 = vmatprep.subr.bf16.mxu0 %v2011
    %2563 = vmatpush1.bf16.msra.mxu0 %v2010
    %2564 = vmatprep.subr.bf16.mxu0 %v2019
    %2565 = vmatpush1.bf16.msra.mxu0 %v2018
    %2566 = vmatprep.subr.bf16.mxu0 %v2027
    %2567 = vmatpush1.bf16.msra.mxu0 %v2026
    %2568 = vmatprep.subr.bf16.mxu0 %v2035
    %2569 = vmatpush1.bf16.msra.mxu0 %v2034
    %2570 = vmatprep.subr.bf16.mxu0 %v2043
    %2571 = vmatpush1.bf16.msra.mxu0 %v2042
    %2572 = vmatprep.subr.bf16.mxu0 %v2051
    %2573 = vmatpush1.bf16.msra.mxu0 %v2050
    %2574 = vmatprep.subr.bf16.mxu0 %v2059
    %2575 = vmatpush1.bf16.msra.mxu0 %v2058
    %2576 = vmatprep.subr.bf16.mxu0 %v2067
    %2577 = vmatpush1.bf16.msra.mxu0 %v2066
    %2578 = vmatprep.subr.bf16.mxu0 %v2075
    %2579 = vmatpush1.bf16.msra.mxu0 %v2074
    %2580 = vmatprep.mubr.bf16.mxu0 %v539
    %2581 = vmatmul.mubr.bf16.gmra.mrb[0].mxu0 %v538
    %v2582 = vpop.f32.mrb[0].mxu0
    %v2583 = vadd.f32 %v2542, %v2582
    %v2584 = vpop.f32.mrb[0].mxu0
    %v2585 = vadd.f32 %v2544, %v2584
    %v2586 = vpop.f32.mrb[0].mxu0
    %v2587 = vpop.f32.mrb[0].mxu0
    %2588 = vdwg.mxu0
    %2589 = vmatprep.subr.bf16.mxu0 %v1701
    %2590 = vmatpush1.bf16.msra.mxu0 %v1700
    %2591 = vmatprep.subr.bf16.mxu0 %v1709
    %2592 = vmatpush1.bf16.msra.mxu0 %v1708
    %2593 = vmatprep.subr.bf16.mxu0 %v1717
    %2594 = vmatpush1.bf16.msra.mxu0 %v1716
    %2595 = vmatprep.subr.bf16.mxu0 %v1725
    %2596 = vmatpush1.bf16.msra.mxu0 %v1724
    %2597 = vmatprep.subr.bf16.mxu0 %v1733
    %2598 = vmatpush1.bf16.msra.mxu0 %v1732
    %2599 = vmatprep.subr.bf16.mxu0 %v1741
    %2600 = vmatpush1.bf16.msra.mxu0 %v1740
    %2601 = vmatprep.subr.bf16.mxu0 %v1749
    %2602 = vmatpush1.bf16.msra.mxu0 %v1748
    %2603 = vmatprep.subr.bf16.mxu0 %v1757
    %2604 = vmatpush1.bf16.msra.mxu0 %v1756
    %2605 = vmatprep.subr.bf16.mxu0 %v1765
    %2606 = vmatpush1.bf16.msra.mxu0 %v1764
    %2607 = vmatprep.subr.bf16.mxu0 %v1773
    %2608 = vmatpush1.bf16.msra.mxu0 %v1772
    %2609 = vmatprep.subr.bf16.mxu0 %v1781
    %2610 = vmatpush1.bf16.msra.mxu0 %v1780
    %2611 = vmatprep.subr.bf16.mxu0 %v1789
    %2612 = vmatpush1.bf16.msra.mxu0 %v1788
    %2613 = vmatprep.subr.bf16.mxu0 %v1797
    %2614 = vmatpush1.bf16.msra.mxu0 %v1796
    %2615 = vmatprep.subr.bf16.mxu0 %v1805
    %2616 = vmatpush1.bf16.msra.mxu0 %v1804
    %2617 = vmatprep.subr.bf16.mxu0 %v1813
    %2618 = vmatpush1.bf16.msra.mxu0 %v1812
    %2619 = vmatprep.subr.bf16.mxu0 %v1821
    %2620 = vmatpush1.bf16.msra.mxu0 %v1820
    %2621 = vmatprep.mubr.bf16.mxu0 %v535
    %2622 = vmatmul.mubr.bf16.gmra.mrb[0].mxu0 %v534
    %v2623 = vpop.f32.mrb[0].mxu0
    %v2624 = vadd.f32 0.0, %v2623
    %v2625 = vpop.f32.mrb[0].mxu0
    %v2626 = vadd.f32 0.0, %v2625
    %v2627 = vpop.f32.mrb[0].mxu0
    %v2628 = vpop.f32.mrb[0].mxu0
    %2629 = vdwg.mxu0
    %2630 = vmatprep.subr.bf16.mxu0 %v1829
    %2631 = vmatpush1.bf16.msra.mxu0 %v1828
    %2632 = vmatprep.subr.bf16.mxu0 %v1837
    %2633 = vmatpush1.bf16.msra.mxu0 %v1836
    %2634 = vmatprep.subr.bf16.mxu0 %v1845
    %2635 = vmatpush1.bf16.msra.mxu0 %v1844
    %2636 = vmatprep.subr.bf16.mxu0 %v1853
    %2637 = vmatpush1.bf16.msra.mxu0 %v1852
    %2638 = vmatprep.subr.bf16.mxu0 %v1861
    %2639 = vmatpush1.bf16.msra.mxu0 %v1860
    %2640 = vmatprep.subr.bf16.mxu0 %v1869
    %2641 = vmatpush1.bf16.msra.mxu0 %v1868
    %2642 = vmatprep.subr.bf16.mxu0 %v1877
    %2643 = vmatpush1.bf16.msra.mxu0 %v1876
    %2644 = vmatprep.subr.bf16.mxu0 %v1885
    %2645 = vmatpush1.bf16.msra.mxu0 %v1884
    %2646 = vmatprep.subr.bf16.mxu0 %v1893
    %2647 = vmatpush1.bf16.msra.mxu0 %v1892
    %2648 = vmatprep.subr.bf16.mxu0 %v1901
    %2649 = vmatpush1.bf16.msra.mxu0 %v1900
    %2650 = vmatprep.subr.bf16.mxu0 %v1909
    %2651 = vmatpush1.bf16.msra.mxu0 %v1908
    %2652 = vmatprep.subr.bf16.mxu0 %v1917
    %2653 = vmatpush1.bf16.msra.mxu0 %v1916
    %2654 = vmatprep.subr.bf16.mxu0 %v1925
    %2655 = vmatpush1.bf16.msra.mxu0 %v1924
    %2656 = vmatprep.subr.bf16.mxu0 %v1933
    %2657 = vmatpush1.bf16.msra.mxu0 %v1932
    %2658 = vmatprep.subr.bf16.mxu0 %v1941
    %2659 = vmatpush1.bf16.msra.mxu0 %v1940
    %2660 = vmatprep.subr.bf16.mxu0 %v1949
    %2661 = vmatpush1.bf16.msra.mxu0 %v1948
    %2662 = vmatprep.mubr.bf16.mxu0 %v537
    %2663 = vmatmul.mubr.bf16.gmra.mrb[0].mxu0 %v536
    %v2664 = vpop.f32.mrb[0].mxu0
    %v2665 = vadd.f32 %v2624, %v2664
    %v2666 = vpop.f32.mrb[0].mxu0
    %v2667 = vadd.f32 %v2626, %v2666
    %v2668 = vpop.f32.mrb[0].mxu0
    %v2669 = vpop.f32.mrb[0].mxu0
    %2670 = vdwg.mxu0
    %2671 = vmatprep.subr.bf16.mxu0 %v1957
    %2672 = vmatpush1.bf16.msra.mxu0 %v1956
    %2673 = vmatprep.subr.bf16.mxu0 %v1965
    %2674 = vmatpush1.bf16.msra.mxu0 %v1964
    %2675 = vmatprep.subr.bf16.mxu0 %v1973
    %2676 = vmatpush1.bf16.msra.mxu0 %v1972
    %2677 = vmatprep.subr.bf16.mxu0 %v1981
    %2678 = vmatpush1.bf16.msra.mxu0 %v1980
    %2679 = vmatprep.subr.bf16.mxu0 %v1989
    %2680 = vmatpush1.bf16.msra.mxu0 %v1988
    %2681 = vmatprep.subr.bf16.mxu0 %v1997
    %2682 = vmatpush1.bf16.msra.mxu0 %v1996
    %2683 = vmatprep.subr.bf16.mxu0 %v2005
    %2684 = vmatpush1.bf16.msra.mxu0 %v2004
    %2685 = vmatprep.subr.bf16.mxu0 %v2013
    %2686 = vmatpush1.bf16.msra.mxu0 %v2012
    %2687 = vmatprep.subr.bf16.mxu0 %v2021
    %2688 = vmatpush1.bf16.msra.mxu0 %v2020
    %2689 = vmatprep.subr.bf16.mxu0 %v2029
    %2690 = vmatpush1.bf16.msra.mxu0 %v2028
    %2691 = vmatprep.subr.bf16.mxu0 %v2037
    %2692 = vmatpush1.bf16.msra.mxu0 %v2036
    %2693 = vmatprep.subr.bf16.mxu0 %v2045
    %2694 = vmatpush1.bf16.msra.mxu0 %v2044
    %2695 = vmatprep.subr.bf16.mxu0 %v2053
    %2696 = vmatpush1.bf16.msra.mxu0 %v2052
    %2697 = vmatprep.subr.bf16.mxu0 %v2061
    %2698 = vmatpush1.bf16.msra.mxu0 %v2060
    %2699 = vmatprep.subr.bf16.mxu0 %v2069
    %2700 = vmatpush1.bf16.msra.mxu0 %v2068
    %2701 = vmatprep.subr.bf16.mxu0 %v2077
    %2702 = vmatpush1.bf16.msra.mxu0 %v2076
    %2703 = vmatprep.mubr.bf16.mxu0 %v539
    %2704 = vmatmul.mubr.bf16.gmra.mrb[0].mxu0 %v538
    %v2705 = vpop.f32.mrb[0].mxu0
    %v2706 = vadd.f32 %v2665, %v2705
    %v2707 = vpop.f32.mrb[0].mxu0
    %v2708 = vadd.f32 %v2667, %v2707
    %v2709 = vpop.f32.mrb[0].mxu0
    %v2710 = vpop.f32.mrb[0].mxu0
    %2711 = vdwg.mxu0
    %2712 = vmatprep.subr.bf16.mxu0 %v1703
    %2713 = vmatpush1.bf16.msra.mxu0 %v1702
    %2714 = vmatprep.subr.bf16.mxu0 %v1711
    %2715 = vmatpush1.bf16.msra.mxu0 %v1710
    %2716 = vmatprep.subr.bf16.mxu0 %v1719
    %2717 = vmatpush1.bf16.msra.mxu0 %v1718
    %2718 = vmatprep.subr.bf16.mxu0 %v1727
    %2719 = vmatpush1.bf16.msra.mxu0 %v1726
    %2720 = vmatprep.subr.bf16.mxu0 %v1735
    %2721 = vmatpush1.bf16.msra.mxu0 %v1734
    %2722 = vmatprep.subr.bf16.mxu0 %v1743
    %2723 = vmatpush1.bf16.msra.mxu0 %v1742
    %2724 = vmatprep.subr.bf16.mxu0 %v1751
    %2725 = vmatpush1.bf16.msra.mxu0 %v1750
    %2726 = vmatprep.subr.bf16.mxu0 %v1759
    %2727 = vmatpush1.bf16.msra.mxu0 %v1758
    %2728 = vmatprep.subr.bf16.mxu0 %v1767
    %2729 = vmatpush1.bf16.msra.mxu0 %v1766
    %2730 = vmatprep.subr.bf16.mxu0 %v1775
    %2731 = vmatpush1.bf16.msra.mxu0 %v1774
    %2732 = vmatprep.subr.bf16.mxu0 %v1783
    %2733 = vmatpush1.bf16.msra.mxu0 %v1782
    %2734 = vmatprep.subr.bf16.mxu0 %v1791
    %2735 = vmatpush1.bf16.msra.mxu0 %v1790
    %2736 = vmatprep.subr.bf16.mxu0 %v1799
    %2737 = vmatpush1.bf16.msra.mxu0 %v1798
    %2738 = vmatprep.subr.bf16.mxu0 %v1807
    %2739 = vmatpush1.bf16.msra.mxu0 %v1806
    %2740 = vmatprep.subr.bf16.mxu0 %v1815
    %2741 = vmatpush1.bf16.msra.mxu0 %v1814
    %2742 = vmatprep.subr.bf16.mxu0 %v1823
    %2743 = vmatpush1.bf16.msra.mxu0 %v1822
    %2744 = vmatprep.mubr.bf16.mxu0 %v535
    %2745 = vmatmul.mubr.bf16.gmra.mrb[0].mxu0 %v534
    %v2746 = vpop.f32.mrb[0].mxu0
    %v2747 = vadd.f32 0.0, %v2746
    %v2748 = vpop.f32.mrb[0].mxu0
    %v2749 = vadd.f32 0.0, %v2748
    %v2750 = vpop.f32.mrb[0].mxu0
    %v2751 = vpop.f32.mrb[0].mxu0
    %2752 = vdwg.mxu0
    %2753 = vmatprep.subr.bf16.mxu0 %v1831
    %2754 = vmatpush1.bf16.msra.mxu0 %v1830
    %2755 = vmatprep.subr.bf16.mxu0 %v1839
    %2756 = vmatpush1.bf16.msra.mxu0 %v1838
    %2757 = vmatprep.subr.bf16.mxu0 %v1847
    %2758 = vmatpush1.bf16.msra.mxu0 %v1846
    %2759 = vmatprep.subr.bf16.mxu0 %v1855
    %2760 = vmatpush1.bf16.msra.mxu0 %v1854
    %2761 = vmatprep.subr.bf16.mxu0 %v1863
    %2762 = vmatpush1.bf16.msra.mxu0 %v1862
    %2763 = vmatprep.subr.bf16.mxu0 %v1871
    %2764 = vmatpush1.bf16.msra.mxu0 %v1870
    %2765 = vmatprep.subr.bf16.mxu0 %v1879
    %2766 = vmatpush1.bf16.msra.mxu0 %v1878
    %2767 = vmatprep.subr.bf16.mxu0 %v1887
    %2768 = vmatpush1.bf16.msra.mxu0 %v1886
    %2769 = vmatprep.subr.bf16.mxu0 %v1895
    %2770 = vmatpush1.bf16.msra.mxu0 %v1894
    %2771 = vmatprep.subr.bf16.mxu0 %v1903
    %2772 = vmatpush1.bf16.msra.mxu0 %v1902
    %2773 = vmatprep.subr.bf16.mxu0 %v1911
    %2774 = vmatpush1.bf16.msra.mxu0 %v1910
    %2775 = vmatprep.subr.bf16.mxu0 %v1919
    %2776 = vmatpush1.bf16.msra.mxu0 %v1918
    %2777 = vmatprep.subr.bf16.mxu0 %v1927
    %2778 = vmatpush1.bf16.msra.mxu0 %v1926
    %2779 = vmatprep.subr.bf16.mxu0 %v1935
    %2780 = vmatpush1.bf16.msra.mxu0 %v1934
    %2781 = vmatprep.subr.bf16.mxu0 %v1943
    %2782 = vmatpush1.bf16.msra.mxu0 %v1942
    %2783 = vmatprep.subr.bf16.mxu0 %v1951
    %2784 = vmatpush1.bf16.msra.mxu0 %v1950
    %2785 = vmatprep.mubr.bf16.mxu0 %v537
    %2786 = vmatmul.mubr.bf16.gmra.mrb[0].mxu0 %v536
    %v2787 = vpop.f32.mrb[0].mxu0
    %v2788 = vadd.f32 %v2747, %v2787
    %v2789 = vpop.f32.mrb[0].mxu0
    %v2790 = vadd.f32 %v2749, %v2789
    %v2791 = vpop.f32.mrb[0].mxu0
    %v2792 = vpop.f32.mrb[0].mxu0
    %2793 = vdwg.mxu0
    %2794 = vmatprep.subr.bf16.mxu0 %v1959
    %2795 = vmatpush1.bf16.msra.mxu0 %v1958
    %2796 = vmatprep.subr.bf16.mxu0 %v1967
    %2797 = vmatpush1.bf16.msra.mxu0 %v1966
    %2798 = vmatprep.subr.bf16.mxu0 %v1975
    %2799 = vmatpush1.bf16.msra.mxu0 %v1974
    %2800 = vmatprep.subr.bf16.mxu0 %v1983
    %2801 = vmatpush1.bf16.msra.mxu0 %v1982
    %2802 = vmatprep.subr.bf16.mxu0 %v1991
    %2803 = vmatpush1.bf16.msra.mxu0 %v1990
    %2804 = vmatprep.subr.bf16.mxu0 %v1999
    %2805 = vmatpush1.bf16.msra.mxu0 %v1998
    %2806 = vmatprep.subr.bf16.mxu0 %v2007
    %2807 = vmatpush1.bf16.msra.mxu0 %v2006
    %2808 = vmatprep.subr.bf16.mxu0 %v2015
    %2809 = vmatpush1.bf16.msra.mxu0 %v2014
    %2810 = vmatprep.subr.bf16.mxu0 %v2023
    %2811 = vmatpush1.bf16.msra.mxu0 %v2022
    %2812 = vmatprep.subr.bf16.mxu0 %v2031
    %2813 = vmatpush1.bf16.msra.mxu0 %v2030
    %2814 = vmatprep.subr.bf16.mxu0 %v2039
    %2815 = vmatpush1.bf16.msra.mxu0 %v2038
    %2816 = vmatprep.subr.bf16.mxu0 %v2047
    %2817 = vmatpush1.bf16.msra.mxu0 %v2046
    %2818 = vmatprep.subr.bf16.mxu0 %v2055
    %2819 = vmatpush1.bf16.msra.mxu0 %v2054
    %2820 = vmatprep.subr.bf16.mxu0 %v2063
    %2821 = vmatpush1.bf16.msra.mxu0 %v2062
    %2822 = vmatprep.subr.bf16.mxu0 %v2071
    %2823 = vmatpush1.bf16.msra.mxu0 %v2070
    %2824 = vmatprep.subr.bf16.mxu0 %v2079
    %2825 = vmatpush1.bf16.msra.mxu0 %v2078
    %2826 = vmatprep.mubr.bf16.mxu0 %v539
    %2827 = vmatmul.mubr.bf16.gmra.mrb[0].mxu0 %v538
    %v2828 = vpop.f32.mrb[0].mxu0
    %v2829 = vadd.f32 %v2788, %v2828
    %v2830 = vpop.f32.mrb[0].mxu0
    %v2831 = vadd.f32 %v2790, %v2830
    %v2832 = vpop.f32.mrb[0].mxu0
    %v2833 = vpop.f32.mrb[0].mxu0
    %2834 = vdwg.mxu0
    %2835 = vmatprep.subr.bf16.mxu0 %v1705
    %2836 = vmatpush1.bf16.msra.mxu0 %v1704
    %2837 = vmatprep.subr.bf16.mxu0 %v1713
    %2838 = vmatpush1.bf16.msra.mxu0 %v1712
    %2839 = vmatprep.subr.bf16.mxu0 %v1721
    %2840 = vmatpush1.bf16.msra.mxu0 %v1720
    %2841 = vmatprep.subr.bf16.mxu0 %v1729
    %2842 = vmatpush1.bf16.msra.mxu0 %v1728
    %2843 = vmatprep.subr.bf16.mxu0 %v1737
    %2844 = vmatpush1.bf16.msra.mxu0 %v1736
    %2845 = vmatprep.subr.bf16.mxu0 %v1745
    %2846 = vmatpush1.bf16.msra.mxu0 %v1744
    %2847 = vmatprep.subr.bf16.mxu0 %v1753
    %2848 = vmatpush1.bf16.msra.mxu0 %v1752
    %2849 = vmatprep.subr.bf16.mxu0 %v1761
    %2850 = vmatpush1.bf16.msra.mxu0 %v1760
    %2851 = vmatprep.subr.bf16.mxu0 %v1769
    %2852 = vmatpush1.bf16.msra.mxu0 %v1768
    %2853 = vmatprep.subr.bf16.mxu0 %v1777
    %2854 = vmatpush1.bf16.msra.mxu0 %v1776
    %2855 = vmatprep.subr.bf16.mxu0 %v1785
    %2856 = vmatpush1.bf16.msra.mxu0 %v1784
    %2857 = vmatprep.subr.bf16.mxu0 %v1793
    %2858 = vmatpush1.bf16.msra.mxu0 %v1792
    %2859 = vmatprep.subr.bf16.mxu0 %v1801
    %2860 = vmatpush1.bf16.msra.mxu0 %v1800
    %2861 = vmatprep.subr.bf16.mxu0 %v1809
    %2862 = vmatpush1.bf16.msra.mxu0 %v1808
    %2863 = vmatprep.subr.bf16.mxu0 %v1817
    %2864 = vmatpush1.bf16.msra.mxu0 %v1816
    %2865 = vmatprep.subr.bf16.mxu0 %v1825
    %2866 = vmatpush1.bf16.msra.mxu0 %v1824
    %2867 = vmatprep.mubr.bf16.mxu0 %v535
    %2868 = vmatmul.mubr.bf16.gmra.mrb[0].mxu0 %v534
    %v2869 = vpop.f32.mrb[0].mxu0
    %v2870 = vadd.f32 0.0, %v2869
    %v2871 = vpop.f32.mrb[0].mxu0
    %v2872 = vadd.f32 0.0, %v2871
    %v2873 = vpop.f32.mrb[0].mxu0
    %v2874 = vpop.f32.mrb[0].mxu0
    %2875 = vdwg.mxu0
    %2876 = vmatprep.subr.bf16.mxu0 %v1833
    %2877 = vmatpush1.bf16.msra.mxu0 %v1832
    %2878 = vmatprep.subr.bf16.mxu0 %v1841
    %2879 = vmatpush1.bf16.msra.mxu0 %v1840
    %2880 = vmatprep.subr.bf16.mxu0 %v1849
    %2881 = vmatpush1.bf16.msra.mxu0 %v1848
    %2882 = vmatprep.subr.bf16.mxu0 %v1857
    %2883 = vmatpush1.bf16.msra.mxu0 %v1856
    %2884 = vmatprep.subr.bf16.mxu0 %v1865
    %2885 = vmatpush1.bf16.msra.mxu0 %v1864
    %2886 = vmatprep.subr.bf16.mxu0 %v1873
    %2887 = vmatpush1.bf16.msra.mxu0 %v1872
    %2888 = vmatprep.subr.bf16.mxu0 %v1881
    %2889 = vmatpush1.bf16.msra.mxu0 %v1880
    %2890 = vmatprep.subr.bf16.mxu0 %v1889
    %2891 = vmatpush1.bf16.msra.mxu0 %v1888
    %2892 = vmatprep.subr.bf16.mxu0 %v1897
    %2893 = vmatpush1.bf16.msra.mxu0 %v1896
    %2894 = vmatprep.subr.bf16.mxu0 %v1905
    %2895 = vmatpush1.bf16.msra.mxu0 %v1904
    %2896 = vmatprep.subr.bf16.mxu0 %v1913
    %2897 = vmatpush1.bf16.msra.mxu0 %v1912
    %2898 = vmatprep.subr.bf16.mxu0 %v1921
    %2899 = vmatpush1.bf16.msra.mxu0 %v1920
    %2900 = vmatprep.subr.bf16.mxu0 %v1929
    %2901 = vmatpush1.bf16.msra.mxu0 %v1928
    %2902 = vmatprep.subr.bf16.mxu0 %v1937
    %2903 = vmatpush1.bf16.msra.mxu0 %v1936
    %2904 = vmatprep.subr.bf16.mxu0 %v1945
    %2905 = vmatpush1.bf16.msra.mxu0 %v1944
    %2906 = vmatprep.subr.bf16.mxu0 %v1953
    %2907 = vmatpush1.bf16.msra.mxu0 %v1952
    %2908 = vmatprep.mubr.bf16.mxu0 %v537
    %2909 = vmatmul.mubr.bf16.gmra.mrb[0].mxu0 %v536
    %v2910 = vpop.f32.mrb[0].mxu0
    %v2911 = vadd.f32 %v2870, %v2910
    %v2912 = vpop.f32.mrb[0].mxu0
    %v2913 = vadd.f32 %v2872, %v2912
    %v2914 = vpop.f32.mrb[0].mxu0
    %v2915 = vpop.f32.mrb[0].mxu0
    %2916 = vdwg.mxu0
    %2917 = vmatprep.subr.bf16.mxu0 %v1961
    %2918 = vmatpush1.bf16.msra.mxu0 %v1960
    %2919 = vmatprep.subr.bf16.mxu0 %v1969
    %2920 = vmatpush1.bf16.msra.mxu0 %v1968
    %2921 = vmatprep.subr.bf16.mxu0 %v1977
    %2922 = vmatpush1.bf16.msra.mxu0 %v1976
    %2923 = vmatprep.subr.bf16.mxu0 %v1985
    %2924 = vmatpush1.bf16.msra.mxu0 %v1984
    %2925 = vmatprep.subr.bf16.mxu0 %v1993
    %2926 = vmatpush1.bf16.msra.mxu0 %v1992
    %2927 = vmatprep.subr.bf16.mxu0 %v2001
    %2928 = vmatpush1.bf16.msra.mxu0 %v2000
    %2929 = vmatprep.subr.bf16.mxu0 %v2009
    %2930 = vmatpush1.bf16.msra.mxu0 %v2008
    %2931 = vmatprep.subr.bf16.mxu0 %v2017
    %2932 = vmatpush1.bf16.msra.mxu0 %v2016
    %2933 = vmatprep.subr.bf16.mxu0 %v2025
    %2934 = vmatpush1.bf16.msra.mxu0 %v2024
    %2935 = vmatprep.subr.bf16.mxu0 %v2033
    %2936 = vmatpush1.bf16.msra.mxu0 %v2032
    %2937 = vmatprep.subr.bf16.mxu0 %v2041
    %2938 = vmatpush1.bf16.msra.mxu0 %v2040
    %2939 = vmatprep.subr.bf16.mxu0 %v2049
    %2940 = vmatpush1.bf16.msra.mxu0 %v2048
    %2941 = vmatprep.subr.bf16.mxu0 %v2057
    %2942 = vmatpush1.bf16.msra.mxu0 %v2056
    %2943 = vmatprep.subr.bf16.mxu0 %v2065
    %2944 = vmatpush1.bf16.msra.mxu0 %v2064
    %2945 = vmatprep.subr.bf16.mxu0 %v2073
    %2946 = vmatpush1.bf16.msra.mxu0 %v2072
    %2947 = vmatprep.subr.bf16.mxu0 %v2081
    %2948 = vmatpush1.bf16.msra.mxu0 %v2080
    %2949 = vmatprep.mubr.bf16.mxu0 %v539
    %2950 = vmatmul.mubr.bf16.gmra.mrb[0].mxu0 %v538
    %v2951 = vpop.f32.mrb[0].mxu0
    %v2952 = vadd.f32 %v2911, %v2951
    %v2953 = vpop.f32.mrb[0].mxu0
    %v2954 = vadd.f32 %v2913, %v2953
    %v2955 = vpop.f32.mrb[0].mxu0
    %v2956 = vpop.f32.mrb[0].mxu0
    %2957 = vdwg.mxu0
    %v2958 = vld [vmem:[#allocation14] ss:$8 sm:$0xf]
    %s2959 = scalar_lea.vmem [#allocation14], 1
    %v2960 = vld [vmem:[%s2959] ss:$8 sm:$0xf]
    %s2961 = scalar_lea.vmem [#allocation14], 2
    %v2962 = vld [vmem:[%s2961] ss:$8 sm:$0xf]
    %v2964 = vlaneseq
    %v2965 = vshrl.u32 %v2964, 7
    %v2966 = vsub.s32 0, %v2965
    %v2967 = vrot.slane %v2958, %v2966
    %v2968 = vlaneseq
    %v2969 = vshrl.u32 %v2968, 7
    %v2970 = vsub.s32 1, %v2969
    %v2971 = vrot.slane %v2958, %v2970
    %v2972 = vlaneseq
    %v2973 = vshrl.u32 %v2972, 7
    %v2974 = vsub.s32 2, %v2973
    %v2975 = vrot.slane %v2958, %v2974
    %v2976 = vlaneseq
    %v2977 = vshrl.u32 %v2976, 7
    %v2978 = vsub.s32 3, %v2977
    %v2979 = vrot.slane %v2958, %v2978
    %v2984 = vadd.f32 %v2583, %v2967
    %v2985 = vadd.f32 %v2585, %v2971
    %v2986 = vadd.f32 %v2706, %v2975
    %v2987 = vadd.f32 %v2708, %v2979
    %v2988 = vadd.f32 %v2984, %v2985
    %v2989 = vadd.f32 %v2988, %v2986
    %v2990 = vadd.f32 %v2989, %v2987
    %2991 = vadd.xlane.f32.xlu0 %v2990
    %v2992 = vpop.xlane.xlu0 %2991
    %v2993 = vmul.f32 %v2984, %v2984
    %v2994 = vmul.f32 %v2985, %v2985
    %v2995 = vmul.f32 %v2986, %v2986
    %v2996 = vmul.f32 %v2987, %v2987
    %v2997 = vadd.f32 %v2993, %v2994
    %v2998 = vadd.f32 %v2997, %v2995
    %v2999 = vadd.f32 %v2998, %v2996
    %3000 = vadd.xlane.f32.xlu0 %v2999
    %v3001 = vpop.xlane.xlu0 %3000
    %v3002 = vmul.f32 %v2992, 0.001953125
    %v3003 = vmul.f32 %v3001, 0.001953125
    %v3004 = vmul.f32 %v3002, %v3002
    %v3005 = vsub.f32 %v3003, %v3004
    %v3006 = vmax.f32 %v3005, 0.0
    %v3007 = vsub.f32 %v2984, %v3002
    %v3008 = vsub.f32 %v2985, %v3002
    %v3009 = vsub.f32 %v2986, %v3002
    %v3010 = vsub.f32 %v2987, %v3002
    %v3011 = vadd.f32 %v3006, 1e-05
    %v3012 = vrsqrt.pop %v3011
    %v3013 = vmul.f32 %v3007, %v3012
    %v3014 = vmul.f32 %v3008, %v3012
    %v3015 = vmul.f32 %v3009, %v3012
    %v3016 = vmul.f32 %v3010, %v3012
    %v3018 = vlaneseq
    %v3019 = vshrl.u32 %v3018, 7
    %v3020 = vsub.s32 0, %v3019
    %v3021 = vrot.slane %v2960, %v3020
    %v3022 = vlaneseq
    %v3023 = vshrl.u32 %v3022, 7
    %v3024 = vsub.s32 1, %v3023
    %v3025 = vrot.slane %v2960, %v3024
    %v3026 = vlaneseq
    %v3027 = vshrl.u32 %v3026, 7
    %v3028 = vsub.s32 2, %v3027
    %v3029 = vrot.slane %v2960, %v3028
    %v3030 = vlaneseq
    %v3031 = vshrl.u32 %v3030, 7
    %v3032 = vsub.s32 3, %v3031
    %v3033 = vrot.slane %v2960, %v3032
    %v3038 = vmul.f32 %v3013, %v3021
    %v3039 = vmul.f32 %v3014, %v3025
    %v3040 = vmul.f32 %v3015, %v3029
    %v3041 = vmul.f32 %v3016, %v3033
    %v3043 = vlaneseq
    %v3044 = vshrl.u32 %v3043, 7
    %v3045 = vsub.s32 0, %v3044
    %v3046 = vrot.slane %v2962, %v3045
    %v3047 = vlaneseq
    %v3048 = vshrl.u32 %v3047, 7
    %v3049 = vsub.s32 1, %v3048
    %v3050 = vrot.slane %v2962, %v3049
    %v3051 = vlaneseq
    %v3052 = vshrl.u32 %v3051, 7
    %v3053 = vsub.s32 2, %v3052
    %v3054 = vrot.slane %v2962, %v3053
    %v3055 = vlaneseq
    %v3056 = vshrl.u32 %v3055, 7
    %v3057 = vsub.s32 3, %v3056
    %v3058 = vrot.slane %v2962, %v3057
    %v3063 = vadd.f32 %v3038, %v3046
    %v3064 = vadd.f32 %v3039, %v3050
    %v3065 = vadd.f32 %v3040, %v3054
    %v3066 = vadd.f32 %v3041, %v3058
    %v3067 = vmax.f32 %v3063, 0.0
    %v3068 = vmax.f32 %v3064, 0.0
    %v3069 = vmax.f32 %v3065, 0.0
    %v3070 = vmax.f32 %v3066, 0.0
    %v3071 = vpack.c.bf16 %v3067, %v3067
    %v3072 = vpack.c.bf16 %v3068, %v3068
    %v3073 = vpack.c.bf16 %v3069, %v3069
    %v3074 = vpack.c.bf16 %v3070, %v3070
    %s3075 = scalar_lea.vmem [#allocation14], 33
    %v3076 = vld [vmem:[%s3075] ss:$8 sm:$0xf]
    %s3077 = scalar_lea.vmem [#allocation14], 34
    %v3078 = vld [vmem:[%s3077] ss:$8 sm:$0xf]
    %s3079 = scalar_lea.vmem [#allocation14], 35
    %v3080 = vld [vmem:[%s3079] ss:$8 sm:$0xf]
    %v3082 = vlaneseq
    %v3083 = vshrl.u32 %v3082, 7
    %v3084 = vsub.s32 0, %v3083
    %v3085 = vrot.slane %v3076, %v3084
    %v3086 = vlaneseq
    %v3087 = vshrl.u32 %v3086, 7
    %v3088 = vsub.s32 1, %v3087
    %v3089 = vrot.slane %v3076, %v3088
    %v3090 = vlaneseq
    %v3091 = vshrl.u32 %v3090, 7
    %v3092 = vsub.s32 2, %v3091
    %v3093 = vrot.slane %v3076, %v3092
    %v3094 = vlaneseq
    %v3095 = vshrl.u32 %v3094, 7
    %v3096 = vsub.s32 3, %v3095
    %v3097 = vrot.slane %v3076, %v3096
    %v3102 = vadd.f32 %v2829, %v3085
    %v3103 = vadd.f32 %v2831, %v3089
    %v3104 = vadd.f32 %v2952, %v3093
    %v3105 = vadd.f32 %v2954, %v3097
    %v3106 = vadd.f32 %v3102, %v3103
    %v3107 = vadd.f32 %v3106, %v3104
    %v3108 = vadd.f32 %v3107, %v3105
    %3109 = vadd.xlane.f32.xlu0 %v3108
    %v3110 = vpop.xlane.xlu0 %3109
    %v3111 = vmul.f32 %v3102, %v3102
    %v3112 = vmul.f32 %v3103, %v3103
    %v3113 = vmul.f32 %v3104, %v3104
    %v3114 = vmul.f32 %v3105, %v3105
    %v3115 = vadd.f32 %v3111, %v3112
    %v3116 = vadd.f32 %v3115, %v3113
    %v3117 = vadd.f32 %v3116, %v3114
    %3118 = vadd.xlane.f32.xlu0 %v3117
    %v3119 = vpop.xlane.xlu0 %3118
    %v3120 = vmul.f32 %v3110, 0.001953125
    %v3121 = vmul.f32 %v3119, 0.001953125
    %v3122 = vmul.f32 %v3120, %v3120
    %v3123 = vsub.f32 %v3121, %v3122
    %v3124 = vmax.f32 %v3123, 0.0
    %v3125 = vsub.f32 %v3102, %v3120
    %v3126 = vsub.f32 %v3103, %v3120
    %v3127 = vsub.f32 %v3104, %v3120
    %v3128 = vsub.f32 %v3105, %v3120
    %v3129 = vadd.f32 %v3124, 1e-05
    %v3130 = vrsqrt.pop %v3129
    %v3131 = vmul.f32 %v3125, %v3130
    %v3132 = vmul.f32 %v3126, %v3130
    %v3133 = vmul.f32 %v3127, %v3130
    %v3134 = vmul.f32 %v3128, %v3130
    %v3136 = vlaneseq
    %v3137 = vshrl.u32 %v3136, 7
    %v3138 = vsub.s32 0, %v3137
    %v3139 = vrot.slane %v3078, %v3138
    %v3140 = vlaneseq
    %v3141 = vshrl.u32 %v3140, 7
    %v3142 = vsub.s32 1, %v3141
    %v3143 = vrot.slane %v3078, %v3142
    %v3144 = vlaneseq
    %v3145 = vshrl.u32 %v3144, 7
    %v3146 = vsub.s32 2, %v3145
    %v3147 = vrot.slane %v3078, %v3146
    %v3148 = vlaneseq
    %v3149 = vshrl.u32 %v3148, 7
    %v3150 = vsub.s32 3, %v3149
    %v3151 = vrot.slane %v3078, %v3150
    %v3156 = vmul.f32 %v3131, %v3139
    %v3157 = vmul.f32 %v3132, %v3143
    %v3158 = vmul.f32 %v3133, %v3147
    %v3159 = vmul.f32 %v3134, %v3151
    %v3161 = vlaneseq
    %v3162 = vshrl.u32 %v3161, 7
    %v3163 = vsub.s32 0, %v3162
    %v3164 = vrot.slane %v3080, %v3163
    %v3165 = vlaneseq
    %v3166 = vshrl.u32 %v3165, 7
    %v3167 = vsub.s32 1, %v3166
    %v3168 = vrot.slane %v3080, %v3167
    %v3169 = vlaneseq
    %v3170 = vshrl.u32 %v3169, 7
    %v3171 = vsub.s32 2, %v3170
    %v3172 = vrot.slane %v3080, %v3171
    %v3173 = vlaneseq
    %v3174 = vshrl.u32 %v3173, 7
    %v3175 = vsub.s32 3, %v3174
    %v3176 = vrot.slane %v3080, %v3175
    %v3181 = vadd.f32 %v3156, %v3164
    %v3182 = vadd.f32 %v3157, %v3168
    %v3183 = vadd.f32 %v3158, %v3172
    %v3184 = vadd.f32 %v3159, %v3176
    %v3185 = vmax.f32 %v3181, 0.0
    %v3186 = vmax.f32 %v3182, 0.0
    %v3187 = vmax.f32 %v3183, 0.0
    %v3188 = vmax.f32 %v3184, 0.0
    %v3189 = vpack.c.bf16 %v3185, %v3185
    %v3190 = vpack.c.bf16 %v3186, %v3186
    %v3191 = vpack.c.bf16 %v3187, %v3187
    %v3192 = vpack.c.bf16 %v3188, %v3188
    %v3193 = vld [vmem:[#allocation7] sm:$0xff]
    %v3194 = vld [vmem:[#allocation7 + $0x8] sm:$0xff]
    %v3195 = vld [vmem:[#allocation7 + $0x10] sm:$0xff]
    %v3196 = vld [vmem:[#allocation7 + $0x18] sm:$0xff]
    %v3197 = vld [vmem:[#allocation7 + $0x20] sm:$0xff]
    %v3198 = vld [vmem:[#allocation7 + $0x28] sm:$0xff]
    %v3199 = vld [vmem:[#allocation7 + $0x30] sm:$0xff]
    %v3200 = vld [vmem:[#allocation7 + $0x38] sm:$0xff]
    %v3201 = vld [vmem:[#allocation7 + $0x40] sm:$0xff]
    %v3202 = vld [vmem:[#allocation7 + $0x48] sm:$0xff]
    %v3203 = vld [vmem:[#allocation7 + $0x50] sm:$0xff]
    %v3204 = vld [vmem:[#allocation7 + $0x58] sm:$0xff]
    %v3205 = vld [vmem:[#allocation7 + $0x60] sm:$0xff]
    %v3206 = vld [vmem:[#allocation7 + $0x68] sm:$0xff]
    %v3207 = vld [vmem:[#allocation7 + $0x70] sm:$0xff]
    %v3208 = vld [vmem:[#allocation7 + $0x78] sm:$0xff]
    %v3209 = vld [vmem:[#allocation7 + $0x80] sm:$0xff]
    %v3210 = vld [vmem:[#allocation7 + $0x88] sm:$0xff]
    %v3211 = vld [vmem:[#allocation7 + $0x90] sm:$0xff]
    %v3212 = vld [vmem:[#allocation7 + $0x98] sm:$0xff]
    %v3213 = vld [vmem:[#allocation7 + $0xa0] sm:$0xff]
    %v3214 = vld [vmem:[#allocation7 + $0xa8] sm:$0xff]
    %v3215 = vld [vmem:[#allocation7 + $0xb0] sm:$0xff]
    %v3216 = vld [vmem:[#allocation7 + $0xb8] sm:$0xff]
    %v3217 = vld [vmem:[#allocation7 + $0xc0] sm:$0xff]
    %v3218 = vld [vmem:[#allocation7 + $0xc8] sm:$0xff]
    %v3219 = vld [vmem:[#allocation7 + $0xd0] sm:$0xff]
    %v3220 = vld [vmem:[#allocation7 + $0xd8] sm:$0xff]
    %v3221 = vld [vmem:[#allocation7 + $0xe0] sm:$0xff]
    %v3222 = vld [vmem:[#allocation7 + $0xe8] sm:$0xff]
    %v3223 = vld [vmem:[#allocation7 + $0xf0] sm:$0xff]
    %v3224 = vld [vmem:[#allocation7 + $0xf8] sm:$0xff]
    %v3225 = vld [vmem:[#allocation7 + $0x100] sm:$0xff]
    %v3226 = vld [vmem:[#allocation7 + $0x108] sm:$0xff]
    %v3227 = vld [vmem:[#allocation7 + $0x110] sm:$0xff]
    %v3228 = vld [vmem:[#allocation7 + $0x118] sm:$0xff]
    %v3229 = vld [vmem:[#allocation7 + $0x120] sm:$0xff]
    %v3230 = vld [vmem:[#allocation7 + $0x128] sm:$0xff]
    %v3231 = vld [vmem:[#allocation7 + $0x130] sm:$0xff]
    %v3232 = vld [vmem:[#allocation7 + $0x138] sm:$0xff]
    %v3233 = vld [vmem:[#allocation7 + $0x140] sm:$0xff]
    %v3234 = vld [vmem:[#allocation7 + $0x148] sm:$0xff]
    %v3235 = vld [vmem:[#allocation7 + $0x150] sm:$0xff]
    %v3236 = vld [vmem:[#allocation7 + $0x158] sm:$0xff]
    %v3237 = vld [vmem:[#allocation7 + $0x160] sm:$0xff]
    %v3238 = vld [vmem:[#allocation7 + $0x168] sm:$0xff]
    %v3239 = vld [vmem:[#allocation7 + $0x170] sm:$0xff]
    %v3240 = vld [vmem:[#allocation7 + $0x178] sm:$0xff]
    %v3241 = vld [vmem:[#allocation7 + $0x180] sm:$0xff]
    %v3242 = vld [vmem:[#allocation7 + $0x188] sm:$0xff]
    %v3243 = vld [vmem:[#allocation7 + $0x190] sm:$0xff]
    %v3244 = vld [vmem:[#allocation7 + $0x198] sm:$0xff]
    %v3245 = vld [vmem:[#allocation7 + $0x1a0] sm:$0xff]
    %v3246 = vld [vmem:[#allocation7 + $0x1a8] sm:$0xff]
    %v3247 = vld [vmem:[#allocation7 + $0x1b0] sm:$0xff]
    %v3248 = vld [vmem:[#allocation7 + $0x1b8] sm:$0xff]
    %v3249 = vld [vmem:[#allocation7 + $0x1c0] sm:$0xff]
    %v3250 = vld [vmem:[#allocation7 + $0x1c8] sm:$0xff]
    %v3251 = vld [vmem:[#allocation7 + $0x1d0] sm:$0xff]
    %v3252 = vld [vmem:[#allocation7 + $0x1d8] sm:$0xff]
    %v3253 = vld [vmem:[#allocation7 + $0x1e0] sm:$0xff]
    %v3254 = vld [vmem:[#allocation7 + $0x1e8] sm:$0xff]
    %v3255 = vld [vmem:[#allocation7 + $0x1f0] sm:$0xff]
    %v3256 = vld [vmem:[#allocation7 + $0x1f8] sm:$0xff]
    %s3257 = scalar_lea.vmem [#allocation14], 3
    %v3258 = vld [vmem:[%s3257] ss:$8 sm:$0x3]
    %s3259 = scalar_lea.vmem [#allocation14], 4
    %v3260 = vld [vmem:[%s3259] ss:$8 sm:$0x3]
    %s3261 = scalar_lea.vmem [#allocation14], 5
    %v3262 = vld [vmem:[%s3261] ss:$8 sm:$0x3]
    %v3264 = vlaneseq
    %v3265 = vshrl.u32 %v3264, 7
    %v3266 = vsub.s32 0, %v3265
    %v3267 = vrot.slane %v3258, %v3266
    %v3268 = vlaneseq
    %v3269 = vshrl.u32 %v3268, 7
    %v3270 = vsub.s32 1, %v3269
    %v3271 = vrot.slane %v3258, %v3270
    %v3338 = vunpack.c.l.b16 %v3193
    %v3339 = vunpack.c.h.b16 %v3193
    %v3340 = vunpack.c.l.b16 %v3194
    %v3341 = vunpack.c.h.b16 %v3194
    %v3342 = vunpack.c.l.b16 %v3195
    %v3343 = vunpack.c.h.b16 %v3195
    %v3344 = vunpack.c.l.b16 %v3196
    %v3345 = vunpack.c.h.b16 %v3196
    %v3346 = vunpack.c.l.b16 %v3197
    %v3347 = vunpack.c.h.b16 %v3197
    %v3348 = vunpack.c.l.b16 %v3198
    %v3349 = vunpack.c.h.b16 %v3198
    %v3350 = vunpack.c.l.b16 %v3199
    %v3351 = vunpack.c.h.b16 %v3199
    %v3352 = vunpack.c.l.b16 %v3200
    %v3353 = vunpack.c.h.b16 %v3200
    %v3354 = vunpack.c.l.b16 %v3201
    %v3355 = vunpack.c.h.b16 %v3201
    %v3356 = vunpack.c.l.b16 %v3202
    %v3357 = vunpack.c.h.b16 %v3202
    %v3358 = vunpack.c.l.b16 %v3203
    %v3359 = vunpack.c.h.b16 %v3203
    %v3360 = vunpack.c.l.b16 %v3204
    %v3361 = vunpack.c.h.b16 %v3204
    %v3362 = vunpack.c.l.b16 %v3205
    %v3363 = vunpack.c.h.b16 %v3205
    %v3364 = vunpack.c.l.b16 %v3206
    %v3365 = vunpack.c.h.b16 %v3206
    %v3366 = vunpack.c.l.b16 %v3207
    %v3367 = vunpack.c.h.b16 %v3207
    %v3368 = vunpack.c.l.b16 %v3208
    %v3369 = vunpack.c.h.b16 %v3208
    %v3370 = vunpack.c.l.b16 %v3209
    %v3371 = vunpack.c.h.b16 %v3209
    %v3372 = vunpack.c.l.b16 %v3210
    %v3373 = vunpack.c.h.b16 %v3210
    %v3374 = vunpack.c.l.b16 %v3211
    %v3375 = vunpack.c.h.b16 %v3211
    %v3376 = vunpack.c.l.b16 %v3212
    %v3377 = vunpack.c.h.b16 %v3212
    %v3378 = vunpack.c.l.b16 %v3213
    %v3379 = vunpack.c.h.b16 %v3213
    %v3380 = vunpack.c.l.b16 %v3214
    %v3381 = vunpack.c.h.b16 %v3214
    %v3382 = vunpack.c.l.b16 %v3215
    %v3383 = vunpack.c.h.b16 %v3215
    %v3384 = vunpack.c.l.b16 %v3216
    %v3385 = vunpack.c.h.b16 %v3216
    %v3386 = vunpack.c.l.b16 %v3217
    %v3387 = vunpack.c.h.b16 %v3217
    %v3388 = vunpack.c.l.b16 %v3218
    %v3389 = vunpack.c.h.b16 %v3218
    %v3390 = vunpack.c.l.b16 %v3219
    %v3391 = vunpack.c.h.b16 %v3219
    %v3392 = vunpack.c.l.b16 %v3220
    %v3393 = vunpack.c.h.b16 %v3220
    %v3394 = vunpack.c.l.b16 %v3221
    %v3395 = vunpack.c.h.b16 %v3221
    %v3396 = vunpack.c.l.b16 %v3222
    %v3397 = vunpack.c.h.b16 %v3222
    %v3398 = vunpack.c.l.b16 %v3223
    %v3399 = vunpack.c.h.b16 %v3223
    %v3400 = vunpack.c.l.b16 %v3224
    %v3401 = vunpack.c.h.b16 %v3224
    %v3402 = vunpack.c.l.b16 %v3225
    %v3403 = vunpack.c.h.b16 %v3225
    %v3404 = vunpack.c.l.b16 %v3226
    %v3405 = vunpack.c.h.b16 %v3226
    %v3406 = vunpack.c.l.b16 %v3227
    %v3407 = vunpack.c.h.b16 %v3227
    %v3408 = vunpack.c.l.b16 %v3228
    %v3409 = vunpack.c.h.b16 %v3228
    %v3410 = vunpack.c.l.b16 %v3229
    %v3411 = vunpack.c.h.b16 %v3229
    %v3412 = vunpack.c.l.b16 %v3230
    %v3413 = vunpack.c.h.b16 %v3230
    %v3414 = vunpack.c.l.b16 %v3231
    %v3415 = vunpack.c.h.b16 %v3231
    %v3416 = vunpack.c.l.b16 %v3232
    %v3417 = vunpack.c.h.b16 %v3232
    %v3418 = vunpack.c.l.b16 %v3233
    %v3419 = vunpack.c.h.b16 %v3233
    %v3420 = vunpack.c.l.b16 %v3234
    %v3421 = vunpack.c.h.b16 %v3234
    %v3422 = vunpack.c.l.b16 %v3235
    %v3423 = vunpack.c.h.b16 %v3235
    %v3424 = vunpack.c.l.b16 %v3236
    %v3425 = vunpack.c.h.b16 %v3236
    %v3426 = vunpack.c.l.b16 %v3237
    %v3427 = vunpack.c.h.b16 %v3237
    %v3428 = vunpack.c.l.b16 %v3238
    %v3429 = vunpack.c.h.b16 %v3238
    %v3430 = vunpack.c.l.b16 %v3239
    %v3431 = vunpack.c.h.b16 %v3239
    %v3432 = vunpack.c.l.b16 %v3240
    %v3433 = vunpack.c.h.b16 %v3240
    %v3434 = vunpack.c.l.b16 %v3241
    %v3435 = vunpack.c.h.b16 %v3241
    %v3436 = vunpack.c.l.b16 %v3242
    %v3437 = vunpack.c.h.b16 %v3242
    %v3438 = vunpack.c.l.b16 %v3243
    %v3439 = vunpack.c.h.b16 %v3243
    %v3440 = vunpack.c.l.b16 %v3244
    %v3441 = vunpack.c.h.b16 %v3244
    %v3442 = vunpack.c.l.b16 %v3245
    %v3443 = vunpack.c.h.b16 %v3245
    %v3444 = vunpack.c.l.b16 %v3246
    %v3445 = vunpack.c.h.b16 %v3246
    %v3446 = vunpack.c.l.b16 %v3247
    %v3447 = vunpack.c.h.b16 %v3247
    %v3448 = vunpack.c.l.b16 %v3248
    %v3449 = vunpack.c.h.b16 %v3248
    %v3450 = vunpack.c.l.b16 %v3249
    %v3451 = vunpack.c.h.b16 %v3249
    %v3452 = vunpack.c.l.b16 %v3250
    %v3453 = vunpack.c.h.b16 %v3250
    %v3454 = vunpack.c.l.b16 %v3251
    %v3455 = vunpack.c.h.b16 %v3251
    %v3456 = vunpack.c.l.b16 %v3252
    %v3457 = vunpack.c.h.b16 %v3252
    %v3458 = vunpack.c.l.b16 %v3253
    %v3459 = vunpack.c.h.b16 %v3253
    %v3460 = vunpack.c.l.b16 %v3254
    %v3461 = vunpack.c.h.b16 %v3254
    %v3462 = vunpack.c.l.b16 %v3255
    %v3463 = vunpack.c.h.b16 %v3255
    %v3464 = vunpack.c.l.b16 %v3256
    %v3465 = vunpack.c.h.b16 %v3256
    %v3466 = vpack.c.b16 %v3340, %v3338
    %v3467 = vpack.c.b16 %v3341, %v3339
    %v3468 = vpack.c.b16 %v3344, %v3342
    %v3469 = vpack.c.b16 %v3345, %v3343
    %v3470 = vpack.c.b16 %v3348, %v3346
    %v3471 = vpack.c.b16 %v3349, %v3347
    %v3472 = vpack.c.b16 %v3352, %v3350
    %v3473 = vpack.c.b16 %v3353, %v3351
    %v3474 = vpack.c.b16 %v3356, %v3354
    %v3475 = vpack.c.b16 %v3357, %v3355
    %v3476 = vpack.c.b16 %v3360, %v3358
    %v3477 = vpack.c.b16 %v3361, %v3359
    %v3478 = vpack.c.b16 %v3364, %v3362
    %v3479 = vpack.c.b16 %v3365, %v3363
    %v3480 = vpack.c.b16 %v3368, %v3366
    %v3481 = vpack.c.b16 %v3369, %v3367
    %v3482 = vpack.c.b16 %v3372, %v3370
    %v3483 = vpack.c.b16 %v3373, %v3371
    %v3484 = vpack.c.b16 %v3376, %v3374
    %v3485 = vpack.c.b16 %v3377, %v3375
    %v3486 = vpack.c.b16 %v3380, %v3378
    %v3487 = vpack.c.b16 %v3381, %v3379
    %v3488 = vpack.c.b16 %v3384, %v3382
    %v3489 = vpack.c.b16 %v3385, %v3383
    %v3490 = vpack.c.b16 %v3388, %v3386
    %v3491 = vpack.c.b16 %v3389, %v3387
    %v3492 = vpack.c.b16 %v3392, %v3390
    %v3493 = vpack.c.b16 %v3393, %v3391
    %v3494 = vpack.c.b16 %v3396, %v3394
    %v3495 = vpack.c.b16 %v3397, %v3395
    %v3496 = vpack.c.b16 %v3400, %v3398
    %v3497 = vpack.c.b16 %v3401, %v3399
    %v3498 = vpack.c.b16 %v3404, %v3402
    %v3499 = vpack.c.b16 %v3405, %v3403
    %v3500 = vpack.c.b16 %v3408, %v3406
    %v3501 = vpack.c.b16 %v3409, %v3407
    %v3502 = vpack.c.b16 %v3412, %v3410
    %v3503 = vpack.c.b16 %v3413, %v3411
    %v3504 = vpack.c.b16 %v3416, %v3414
    %v3505 = vpack.c.b16 %v3417, %v3415
    %v3506 = vpack.c.b16 %v3420, %v3418
    %v3507 = vpack.c.b16 %v3421, %v3419
    %v3508 = vpack.c.b16 %v3424, %v3422
    %v3509 = vpack.c.b16 %v3425, %v3423
    %v3510 = vpack.c.b16 %v3428, %v3426
    %v3511 = vpack.c.b16 %v3429, %v3427
    %v3512 = vpack.c.b16 %v3432, %v3430
    %v3513 = vpack.c.b16 %v3433, %v3431
    %v3514 = vpack.c.b16 %v3436, %v3434
    %v3515 = vpack.c.b16 %v3437, %v3435
    %v3516 = vpack.c.b16 %v3440, %v3438
    %v3517 = vpack.c.b16 %v3441, %v3439
    %v3518 = vpack.c.b16 %v3444, %v3442
    %v3519 = vpack.c.b16 %v3445, %v3443
    %v3520 = vpack.c.b16 %v3448, %v3446
    %v3521 = vpack.c.b16 %v3449, %v3447
    %v3522 = vpack.c.b16 %v3452, %v3450
    %v3523 = vpack.c.b16 %v3453, %v3451
    %v3524 = vpack.c.b16 %v3456, %v3454
    %v3525 = vpack.c.b16 %v3457, %v3455
    %v3526 = vpack.c.b16 %v3460, %v3458
    %v3527 = vpack.c.b16 %v3461, %v3459
    %v3528 = vpack.c.b16 %v3464, %v3462
    %v3529 = vpack.c.b16 %v3465, %v3463
    %3594 = vmatprep.subr.bf16.mxu0 %v3467
    %3595 = vmatpush1.bf16.msra.mxu0 %v3466
    %3596 = vmatprep.subr.bf16.mxu0 %v3469
    %3597 = vmatpush1.bf16.msra.mxu0 %v3468
    %3598 = vmatprep.subr.bf16.mxu0 %v3471
    %3599 = vmatpush1.bf16.msra.mxu0 %v3470
    %3600 = vmatprep.subr.bf16.mxu0 %v3473
    %3601 = vmatpush1.bf16.msra.mxu0 %v3472
    %3602 = vmatprep.subr.bf16.mxu0 %v3475
    %3603 = vmatpush1.bf16.msra.mxu0 %v3474
    %3604 = vmatprep.subr.bf16.mxu0 %v3477
    %3605 = vmatpush1.bf16.msra.mxu0 %v3476
    %3606 = vmatprep.subr.bf16.mxu0 %v3479
    %3607 = vmatpush1.bf16.msra.mxu0 %v3478
    %3608 = vmatprep.subr.bf16.mxu0 %v3481
    %3609 = vmatpush1.bf16.msra.mxu0 %v3480
    %3610 = vmatprep.subr.bf16.mxu0 %v3483
    %3611 = vmatpush1.bf16.msra.mxu0 %v3482
    %3612 = vmatprep.subr.bf16.mxu0 %v3485
    %3613 = vmatpush1.bf16.msra.mxu0 %v3484
    %3614 = vmatprep.subr.bf16.mxu0 %v3487
    %3615 = vmatpush1.bf16.msra.mxu0 %v3486
    %3616 = vmatprep.subr.bf16.mxu0 %v3489
    %3617 = vmatpush1.bf16.msra.mxu0 %v3488
    %3618 = vmatprep.subr.bf16.mxu0 %v3491
    %3619 = vmatpush1.bf16.msra.mxu0 %v3490
    %3620 = vmatprep.subr.bf16.mxu0 %v3493
    %3621 = vmatpush1.bf16.msra.mxu0 %v3492
    %3622 = vmatprep.subr.bf16.mxu0 %v3495
    %3623 = vmatpush1.bf16.msra.mxu0 %v3494
    %3624 = vmatprep.subr.bf16.mxu0 %v3497
    %3625 = vmatpush1.bf16.msra.mxu0 %v3496
    %3626 = vmatprep.mubr.bf16.mxu0 %v3072
    %3627 = vmatmul.mubr.bf16.gmra.mrb[0].mxu0 %v3071
    %v3628 = vpop.f32.mrb[0].mxu0
    %v3629 = vadd.f32 %v3267, %v3628
    %v3630 = vpop.f32.mrb[0].mxu0
    %v3631 = vadd.f32 %v3271, %v3630
    %v3632 = vpop.f32.mrb[0].mxu0
    %v3633 = vpop.f32.mrb[0].mxu0
    %3634 = vdwg.mxu0
    %3635 = vmatprep.subr.bf16.mxu0 %v3499
    %3636 = vmatpush1.bf16.msra.mxu0 %v3498
    %3637 = vmatprep.subr.bf16.mxu0 %v3501
    %3638 = vmatpush1.bf16.msra.mxu0 %v3500
    %3639 = vmatprep.subr.bf16.mxu0 %v3503
    %3640 = vmatpush1.bf16.msra.mxu0 %v3502
    %3641 = vmatprep.subr.bf16.mxu0 %v3505
    %3642 = vmatpush1.bf16.msra.mxu0 %v3504
    %3643 = vmatprep.subr.bf16.mxu0 %v3507
    %3644 = vmatpush1.bf16.msra.mxu0 %v3506
    %3645 = vmatprep.subr.bf16.mxu0 %v3509
    %3646 = vmatpush1.bf16.msra.mxu0 %v3508
    %3647 = vmatprep.subr.bf16.mxu0 %v3511
    %3648 = vmatpush1.bf16.msra.mxu0 %v3510
    %3649 = vmatprep.subr.bf16.mxu0 %v3513
    %3650 = vmatpush1.bf16.msra.mxu0 %v3512
    %3651 = vmatprep.subr.bf16.mxu0 %v3515
    %3652 = vmatpush1.bf16.msra.mxu0 %v3514
    %3653 = vmatprep.subr.bf16.mxu0 %v3517
    %3654 = vmatpush1.bf16.msra.mxu0 %v3516
    %3655 = vmatprep.subr.bf16.mxu0 %v3519
    %3656 = vmatpush1.bf16.msra.mxu0 %v3518
    %3657 = vmatprep.subr.bf16.mxu0 %v3521
    %3658 = vmatpush1.bf16.msra.mxu0 %v3520
    %3659 = vmatprep.subr.bf16.mxu0 %v3523
    %3660 = vmatpush1.bf16.msra.mxu0 %v3522
    %3661 = vmatprep.subr.bf16.mxu0 %v3525
    %3662 = vmatpush1.bf16.msra.mxu0 %v3524
    %3663 = vmatprep.subr.bf16.mxu0 %v3527
    %3664 = vmatpush1.bf16.msra.mxu0 %v3526
    %3665 = vmatprep.subr.bf16.mxu0 %v3529
    %3666 = vmatpush1.bf16.msra.mxu0 %v3528
    %3667 = vmatprep.mubr.bf16.mxu0 %v3074
    %3668 = vmatmul.mubr.bf16.gmra.mrb[0].mxu0 %v3073
    %v3669 = vpop.f32.mrb[0].mxu0
    %v3670 = vadd.f32 %v3629, %v3669
    %v3671 = vpop.f32.mrb[0].mxu0
    %v3672 = vadd.f32 %v3631, %v3671
    %v3673 = vpop.f32.mrb[0].mxu0
    %v3674 = vpop.f32.mrb[0].mxu0
    %3675 = vdwg.mxu0
    %v3676 = vadd.f32 %v3670, %v3672
    %3677 = vadd.xlane.f32.xlu0 %v3676
    %v3678 = vpop.xlane.xlu0 %3677
    %v3679 = vmul.f32 %v3670, %v3670
    %v3680 = vmul.f32 %v3672, %v3672
    %v3681 = vadd.f32 %v3679, %v3680
    %3682 = vadd.xlane.f32.xlu0 %v3681
    %v3683 = vpop.xlane.xlu0 %3682
    %v3684 = vmul.f32 %v3678, 0.00390625
    %v3685 = vmul.f32 %v3683, 0.00390625
    %v3686 = vmul.f32 %v3684, %v3684
    %v3687 = vsub.f32 %v3685, %v3686
    %v3688 = vmax.f32 %v3687, 0.0
    %v3689 = vsub.f32 %v3670, %v3684
    %v3690 = vsub.f32 %v3672, %v3684
    %v3691 = vadd.f32 %v3688, 1e-05
    %v3692 = vrsqrt.pop %v3691
    %v3693 = vmul.f32 %v3689, %v3692
    %v3694 = vmul.f32 %v3690, %v3692
    %v3696 = vlaneseq
    %v3697 = vshrl.u32 %v3696, 7
    %v3698 = vsub.s32 0, %v3697
    %v3699 = vrot.slane %v3260, %v3698
    %v3700 = vlaneseq
    %v3701 = vshrl.u32 %v3700, 7
    %v3702 = vsub.s32 1, %v3701
    %v3703 = vrot.slane %v3260, %v3702
    %v3706 = vmul.f32 %v3693, %v3699
    %v3707 = vmul.f32 %v3694, %v3703
    %v3709 = vlaneseq
    %v3710 = vshrl.u32 %v3709, 7
    %v3711 = vsub.s32 0, %v3710
    %v3712 = vrot.slane %v3262, %v3711
    %v3713 = vlaneseq
    %v3714 = vshrl.u32 %v3713, 7
    %v3715 = vsub.s32 1, %v3714
    %v3716 = vrot.slane %v3262, %v3715
    %v3719 = vadd.f32 %v3706, %v3712
    %v3720 = vadd.f32 %v3707, %v3716
    %v3721 = vmax.f32 %v3719, 0.0
    %v3722 = vmax.f32 %v3720, 0.0
    %v3723 = vpack.c.bf16 %v3721, %v3721
    %v3724 = vpack.c.bf16 %v3722, %v3722
    %v3725 = vld [vmem:[#allocation8] sm:$0xff]
    %v3726 = vld [vmem:[#allocation8 + $0x8] sm:$0xff]
    %v3727 = vld [vmem:[#allocation8 + $0x10] sm:$0xff]
    %v3728 = vld [vmem:[#allocation8 + $0x18] sm:$0xff]
    %v3729 = vld [vmem:[#allocation8 + $0x20] sm:$0xff]
    %v3730 = vld [vmem:[#allocation8 + $0x28] sm:$0xff]
    %v3731 = vld [vmem:[#allocation8 + $0x30] sm:$0xff]
    %v3732 = vld [vmem:[#allocation8 + $0x38] sm:$0xff]
    %v3733 = vld [vmem:[#allocation8 + $0x40] sm:$0xff]
    %v3734 = vld [vmem:[#allocation8 + $0x48] sm:$0xff]
    %v3735 = vld [vmem:[#allocation8 + $0x50] sm:$0xff]
    %v3736 = vld [vmem:[#allocation8 + $0x58] sm:$0xff]
    %v3737 = vld [vmem:[#allocation8 + $0x60] sm:$0xff]
    %v3738 = vld [vmem:[#allocation8 + $0x68] sm:$0xff]
    %v3739 = vld [vmem:[#allocation8 + $0x70] sm:$0xff]
    %v3740 = vld [vmem:[#allocation8 + $0x78] sm:$0xff]
    %v3741 = vld [vmem:[#allocation8 + $0x80] sm:$0xff]
    %v3742 = vld [vmem:[#allocation8 + $0x88] sm:$0xff]
    %v3743 = vld [vmem:[#allocation8 + $0x90] sm:$0xff]
    %v3744 = vld [vmem:[#allocation8 + $0x98] sm:$0xff]
    %v3745 = vld [vmem:[#allocation8 + $0xa0] sm:$0xff]
    %v3746 = vld [vmem:[#allocation8 + $0xa8] sm:$0xff]
    %v3747 = vld [vmem:[#allocation8 + $0xb0] sm:$0xff]
    %v3748 = vld [vmem:[#allocation8 + $0xb8] sm:$0xff]
    %v3749 = vld [vmem:[#allocation8 + $0xc0] sm:$0xff]
    %v3750 = vld [vmem:[#allocation8 + $0xc8] sm:$0xff]
    %v3751 = vld [vmem:[#allocation8 + $0xd0] sm:$0xff]
    %v3752 = vld [vmem:[#allocation8 + $0xd8] sm:$0xff]
    %v3753 = vld [vmem:[#allocation8 + $0xe0] sm:$0xff]
    %v3754 = vld [vmem:[#allocation8 + $0xe8] sm:$0xff]
    %v3755 = vld [vmem:[#allocation8 + $0xf0] sm:$0xff]
    %v3756 = vld [vmem:[#allocation8 + $0xf8] sm:$0xff]
    %s3757 = scalar_lea.vmem [#allocation14], 6
    %v3758 = vld [vmem:[%s3757] ss:$8 sm:$0x3]
    %s3759 = scalar_lea.vmem [#allocation14], 7
    %v3760 = vld [vmem:[%s3759] ss:$8 sm:$0x3]
    %s3761 = scalar_lea.vmem [#allocation14], 32
    %v3762 = vld [vmem:[%s3761] ss:$8 sm:$0x3]
    %v3764 = vlaneseq
    %v3765 = vshrl.u32 %v3764, 7
    %v3766 = vsub.s32 0, %v3765
    %v3767 = vrot.slane %v3758, %v3766
    %v3768 = vlaneseq
    %v3769 = vshrl.u32 %v3768, 7
    %v3770 = vsub.s32 1, %v3769
    %v3771 = vrot.slane %v3758, %v3770
    %v3806 = vunpack.c.l.b16 %v3725
    %v3807 = vunpack.c.h.b16 %v3725
    %v3808 = vunpack.c.l.b16 %v3726
    %v3809 = vunpack.c.h.b16 %v3726
    %v3810 = vunpack.c.l.b16 %v3727
    %v3811 = vunpack.c.h.b16 %v3727
    %v3812 = vunpack.c.l.b16 %v3728
    %v3813 = vunpack.c.h.b16 %v3728
    %v3814 = vunpack.c.l.b16 %v3729
    %v3815 = vunpack.c.h.b16 %v3729
    %v3816 = vunpack.c.l.b16 %v3730
    %v3817 = vunpack.c.h.b16 %v3730
    %v3818 = vunpack.c.l.b16 %v3731
    %v3819 = vunpack.c.h.b16 %v3731
    %v3820 = vunpack.c.l.b16 %v3732
    %v3821 = vunpack.c.h.b16 %v3732
    %v3822 = vunpack.c.l.b16 %v3733
    %v3823 = vunpack.c.h.b16 %v3733
    %v3824 = vunpack.c.l.b16 %v3734
    %v3825 = vunpack.c.h.b16 %v3734
    %v3826 = vunpack.c.l.b16 %v3735
    %v3827 = vunpack.c.h.b16 %v3735
    %v3828 = vunpack.c.l.b16 %v3736
    %v3829 = vunpack.c.h.b16 %v3736
    %v3830 = vunpack.c.l.b16 %v3737
    %v3831 = vunpack.c.h.b16 %v3737
    %v3832 = vunpack.c.l.b16 %v3738
    %v3833 = vunpack.c.h.b16 %v3738
    %v3834 = vunpack.c.l.b16 %v3739
    %v3835 = vunpack.c.h.b16 %v3739
    %v3836 = vunpack.c.l.b16 %v3740
    %v3837 = vunpack.c.h.b16 %v3740
    %v3838 = vunpack.c.l.b16 %v3741
    %v3839 = vunpack.c.h.b16 %v3741
    %v3840 = vunpack.c.l.b16 %v3742
    %v3841 = vunpack.c.h.b16 %v3742
    %v3842 = vunpack.c.l.b16 %v3743
    %v3843 = vunpack.c.h.b16 %v3743
    %v3844 = vunpack.c.l.b16 %v3744
    %v3845 = vunpack.c.h.b16 %v3744
    %v3846 = vunpack.c.l.b16 %v3745
    %v3847 = vunpack.c.h.b16 %v3745
    %v3848 = vunpack.c.l.b16 %v3746
    %v3849 = vunpack.c.h.b16 %v3746
    %v3850 = vunpack.c.l.b16 %v3747
    %v3851 = vunpack.c.h.b16 %v3747
    %v3852 = vunpack.c.l.b16 %v3748
    %v3853 = vunpack.c.h.b16 %v3748
    %v3854 = vunpack.c.l.b16 %v3749
    %v3855 = vunpack.c.h.b16 %v3749
    %v3856 = vunpack.c.l.b16 %v3750
    %v3857 = vunpack.c.h.b16 %v3750
    %v3858 = vunpack.c.l.b16 %v3751
    %v3859 = vunpack.c.h.b16 %v3751
    %v3860 = vunpack.c.l.b16 %v3752
    %v3861 = vunpack.c.h.b16 %v3752
    %v3862 = vunpack.c.l.b16 %v3753
    %v3863 = vunpack.c.h.b16 %v3753
    %v3864 = vunpack.c.l.b16 %v3754
    %v3865 = vunpack.c.h.b16 %v3754
    %v3866 = vunpack.c.l.b16 %v3755
    %v3867 = vunpack.c.h.b16 %v3755
    %v3868 = vunpack.c.l.b16 %v3756
    %v3869 = vunpack.c.h.b16 %v3756
    %v3870 = vpack.c.b16 %v3808, %v3806
    %v3871 = vpack.c.b16 %v3809, %v3807
    %v3872 = vpack.c.b16 %v3812, %v3810
    %v3873 = vpack.c.b16 %v3813, %v3811
    %v3874 = vpack.c.b16 %v3816, %v3814
    %v3875 = vpack.c.b16 %v3817, %v3815
    %v3876 = vpack.c.b16 %v3820, %v3818
    %v3877 = vpack.c.b16 %v3821, %v3819
    %v3878 = vpack.c.b16 %v3824, %v3822
    %v3879 = vpack.c.b16 %v3825, %v3823
    %v3880 = vpack.c.b16 %v3828, %v3826
    %v3881 = vpack.c.b16 %v3829, %v3827
    %v3882 = vpack.c.b16 %v3832, %v3830
    %v3883 = vpack.c.b16 %v3833, %v3831
    %v3884 = vpack.c.b16 %v3836, %v3834
    %v3885 = vpack.c.b16 %v3837, %v3835
    %v3886 = vpack.c.b16 %v3840, %v3838
    %v3887 = vpack.c.b16 %v3841, %v3839
    %v3888 = vpack.c.b16 %v3844, %v3842
    %v3889 = vpack.c.b16 %v3845, %v3843
    %v3890 = vpack.c.b16 %v3848, %v3846
    %v3891 = vpack.c.b16 %v3849, %v3847
    %v3892 = vpack.c.b16 %v3852, %v3850
    %v3893 = vpack.c.b16 %v3853, %v3851
    %v3894 = vpack.c.b16 %v3856, %v3854
    %v3895 = vpack.c.b16 %v3857, %v3855
    %v3896 = vpack.c.b16 %v3860, %v3858
    %v3897 = vpack.c.b16 %v3861, %v3859
    %v3898 = vpack.c.b16 %v3864, %v3862
    %v3899 = vpack.c.b16 %v3865, %v3863
    %v3900 = vpack.c.b16 %v3868, %v3866
    %v3901 = vpack.c.b16 %v3869, %v3867
    %3934 = vmatprep.subr.bf16.mxu0 %v3871
    %3935 = vmatpush1.bf16.msra.mxu0 %v3870
    %3936 = vmatprep.subr.bf16.mxu0 %v3873
    %3937 = vmatpush1.bf16.msra.mxu0 %v3872
    %3938 = vmatprep.subr.bf16.mxu0 %v3875
    %3939 = vmatpush1.bf16.msra.mxu0 %v3874
    %3940 = vmatprep.subr.bf16.mxu0 %v3877
    %3941 = vmatpush1.bf16.msra.mxu0 %v3876
    %3942 = vmatprep.subr.bf16.mxu0 %v3879
    %3943 = vmatpush1.bf16.msra.mxu0 %v3878
    %3944 = vmatprep.subr.bf16.mxu0 %v3881
    %3945 = vmatpush1.bf16.msra.mxu0 %v3880
    %3946 = vmatprep.subr.bf16.mxu0 %v3883
    %3947 = vmatpush1.bf16.msra.mxu0 %v3882
    %3948 = vmatprep.subr.bf16.mxu0 %v3885
    %3949 = vmatpush1.bf16.msra.mxu0 %v3884
    %3950 = vmatprep.subr.bf16.mxu0 %v3887
    %3951 = vmatpush1.bf16.msra.mxu0 %v3886
    %3952 = vmatprep.subr.bf16.mxu0 %v3889
    %3953 = vmatpush1.bf16.msra.mxu0 %v3888
    %3954 = vmatprep.subr.bf16.mxu0 %v3891
    %3955 = vmatpush1.bf16.msra.mxu0 %v3890
    %3956 = vmatprep.subr.bf16.mxu0 %v3893
    %3957 = vmatpush1.bf16.msra.mxu0 %v3892
    %3958 = vmatprep.subr.bf16.mxu0 %v3895
    %3959 = vmatpush1.bf16.msra.mxu0 %v3894
    %3960 = vmatprep.subr.bf16.mxu0 %v3897
    %3961 = vmatpush1.bf16.msra.mxu0 %v3896
    %3962 = vmatprep.subr.bf16.mxu0 %v3899
    %3963 = vmatpush1.bf16.msra.mxu0 %v3898
    %3964 = vmatprep.subr.bf16.mxu0 %v3901
    %3965 = vmatpush1.bf16.msra.mxu0 %v3900
    %3966 = vmatprep.mubr.bf16.mxu0 %v3724
    %3967 = vmatmul.mubr.bf16.gmra.mrb[0].mxu0 %v3723
    %v3968 = vpop.f32.mrb[0].mxu0
    %v3969 = vadd.f32 %v3767, %v3968
    %v3970 = vpop.f32.mrb[0].mxu0
    %v3971 = vadd.f32 %v3771, %v3970
    %v3972 = vpop.f32.mrb[0].mxu0
    %v3973 = vpop.f32.mrb[0].mxu0
    %3974 = vdwg.mxu0
    %v3975 = vadd.f32 %v3969, %v3971
    %3976 = vadd.xlane.f32.xlu0 %v3975
    %v3977 = vpop.xlane.xlu0 %3976
    %v3978 = vmul.f32 %v3969, %v3969
    %v3979 = vmul.f32 %v3971, %v3971
    %v3980 = vadd.f32 %v3978, %v3979
    %3981 = vadd.xlane.f32.xlu0 %v3980
    %v3982 = vpop.xlane.xlu0 %3981
    %v3983 = vmul.f32 %v3977, 0.00390625
    %v3984 = vmul.f32 %v3982, 0.00390625
    %v3985 = vmul.f32 %v3983, %v3983
    %v3986 = vsub.f32 %v3984, %v3985
    %v3987 = vmax.f32 %v3986, 0.0
    %v3988 = vsub.f32 %v3969, %v3983
    %v3989 = vsub.f32 %v3971, %v3983
    %v3990 = vadd.f32 %v3987, 1e-05
    %v3991 = vrsqrt.pop %v3990
    %v3992 = vmul.f32 %v3988, %v3991
    %v3993 = vmul.f32 %v3989, %v3991
    %v3995 = vlaneseq
    %v3996 = vshrl.u32 %v3995, 7
    %v3997 = vsub.s32 0, %v3996
    %v3998 = vrot.slane %v3760, %v3997
    %v3999 = vlaneseq
    %v4000 = vshrl.u32 %v3999, 7
    %v4001 = vsub.s32 1, %v4000
    %v4002 = vrot.slane %v3760, %v4001
    %v4005 = vmul.f32 %v3992, %v3998
    %v4006 = vmul.f32 %v3993, %v4002
    %v4008 = vlaneseq
    %v4009 = vshrl.u32 %v4008, 7
    %v4010 = vsub.s32 0, %v4009
    %v4011 = vrot.slane %v3762, %v4010
    %v4012 = vlaneseq
    %v4013 = vshrl.u32 %v4012, 7
    %v4014 = vsub.s32 1, %v4013
    %v4015 = vrot.slane %v3762, %v4014
    %v4018 = vadd.f32 %v4005, %v4011
    %v4019 = vadd.f32 %v4006, %v4015
    %v4020 = vmax.f32 %v4018, 0.0
    %v4021 = vmax.f32 %v4019, 0.0
    %v4022 = vpack.c.bf16 %v4020, %v4020
    %v4023 = vpack.c.bf16 %v4021, %v4021
    %v4024 = vld [vmem:[#allocation10] sm:$0xff]
    %v4025 = vld [vmem:[#allocation10 + $0x8] sm:$0xff]
    %v4026 = vld [vmem:[#allocation10 + $0x10] sm:$0xff]
    %v4027 = vld [vmem:[#allocation10 + $0x18] sm:$0xff]
    %v4028 = vld [vmem:[#allocation10 + $0x20] sm:$0xff]
    %v4029 = vld [vmem:[#allocation10 + $0x28] sm:$0xff]
    %v4030 = vld [vmem:[#allocation10 + $0x30] sm:$0xff]
    %v4031 = vld [vmem:[#allocation10 + $0x38] sm:$0xff]
    %v4032 = vld [vmem:[#allocation10 + $0x40] sm:$0xff]
    %v4033 = vld [vmem:[#allocation10 + $0x48] sm:$0xff]
    %v4034 = vld [vmem:[#allocation10 + $0x50] sm:$0xff]
    %v4035 = vld [vmem:[#allocation10 + $0x58] sm:$0xff]
    %v4036 = vld [vmem:[#allocation10 + $0x60] sm:$0xff]
    %v4037 = vld [vmem:[#allocation10 + $0x68] sm:$0xff]
    %v4038 = vld [vmem:[#allocation10 + $0x70] sm:$0xff]
    %v4039 = vld [vmem:[#allocation10 + $0x78] sm:$0xff]
    %v4040 = vld [vmem:[#allocation10 + $0x80] sm:$0xff]
    %v4041 = vld [vmem:[#allocation10 + $0x88] sm:$0xff]
    %v4042 = vld [vmem:[#allocation10 + $0x90] sm:$0xff]
    %v4043 = vld [vmem:[#allocation10 + $0x98] sm:$0xff]
    %v4044 = vld [vmem:[#allocation10 + $0xa0] sm:$0xff]
    %v4045 = vld [vmem:[#allocation10 + $0xa8] sm:$0xff]
    %v4046 = vld [vmem:[#allocation10 + $0xb0] sm:$0xff]
    %v4047 = vld [vmem:[#allocation10 + $0xb8] sm:$0xff]
    %v4048 = vld [vmem:[#allocation10 + $0xc0] sm:$0xff]
    %v4049 = vld [vmem:[#allocation10 + $0xc8] sm:$0xff]
    %v4050 = vld [vmem:[#allocation10 + $0xd0] sm:$0xff]
    %v4051 = vld [vmem:[#allocation10 + $0xd8] sm:$0xff]
    %v4052 = vld [vmem:[#allocation10 + $0xe0] sm:$0xff]
    %v4053 = vld [vmem:[#allocation10 + $0xe8] sm:$0xff]
    %v4054 = vld [vmem:[#allocation10 + $0xf0] sm:$0xff]
    %v4055 = vld [vmem:[#allocation10 + $0xf8] sm:$0xff]
    %v4056 = vld [vmem:[#allocation10 + $0x100] sm:$0xff]
    %v4057 = vld [vmem:[#allocation10 + $0x108] sm:$0xff]
    %v4058 = vld [vmem:[#allocation10 + $0x110] sm:$0xff]
    %v4059 = vld [vmem:[#allocation10 + $0x118] sm:$0xff]
    %v4060 = vld [vmem:[#allocation10 + $0x120] sm:$0xff]
    %v4061 = vld [vmem:[#allocation10 + $0x128] sm:$0xff]
    %v4062 = vld [vmem:[#allocation10 + $0x130] sm:$0xff]
    %v4063 = vld [vmem:[#allocation10 + $0x138] sm:$0xff]
    %v4064 = vld [vmem:[#allocation10 + $0x140] sm:$0xff]
    %v4065 = vld [vmem:[#allocation10 + $0x148] sm:$0xff]
    %v4066 = vld [vmem:[#allocation10 + $0x150] sm:$0xff]
    %v4067 = vld [vmem:[#allocation10 + $0x158] sm:$0xff]
    %v4068 = vld [vmem:[#allocation10 + $0x160] sm:$0xff]
    %v4069 = vld [vmem:[#allocation10 + $0x168] sm:$0xff]
    %v4070 = vld [vmem:[#allocation10 + $0x170] sm:$0xff]
    %v4071 = vld [vmem:[#allocation10 + $0x178] sm:$0xff]
    %v4072 = vld [vmem:[#allocation10 + $0x180] sm:$0xff]
    %v4073 = vld [vmem:[#allocation10 + $0x188] sm:$0xff]
    %v4074 = vld [vmem:[#allocation10 + $0x190] sm:$0xff]
    %v4075 = vld [vmem:[#allocation10 + $0x198] sm:$0xff]
    %v4076 = vld [vmem:[#allocation10 + $0x1a0] sm:$0xff]
    %v4077 = vld [vmem:[#allocation10 + $0x1a8] sm:$0xff]
    %v4078 = vld [vmem:[#allocation10 + $0x1b0] sm:$0xff]
    %v4079 = vld [vmem:[#allocation10 + $0x1b8] sm:$0xff]
    %v4080 = vld [vmem:[#allocation10 + $0x1c0] sm:$0xff]
    %v4081 = vld [vmem:[#allocation10 + $0x1c8] sm:$0xff]
    %v4082 = vld [vmem:[#allocation10 + $0x1d0] sm:$0xff]
    %v4083 = vld [vmem:[#allocation10 + $0x1d8] sm:$0xff]
    %v4084 = vld [vmem:[#allocation10 + $0x1e0] sm:$0xff]
    %v4085 = vld [vmem:[#allocation10 + $0x1e8] sm:$0xff]
    %v4086 = vld [vmem:[#allocation10 + $0x1f0] sm:$0xff]
    %v4087 = vld [vmem:[#allocation10 + $0x1f8] sm:$0xff]
    %s4088 = scalar_lea.vmem [#allocation14], 36
    %v4089 = vld [vmem:[%s4088] ss:$8 sm:$0x3]
    %s4090 = scalar_lea.vmem [#allocation14], 37
    %v4091 = vld [vmem:[%s4090] ss:$8 sm:$0x3]
    %s4092 = scalar_lea.vmem [#allocation14], 38
    %v4093 = vld [vmem:[%s4092] ss:$8 sm:$0x3]
    %v4095 = vlaneseq
    %v4096 = vshrl.u32 %v4095, 7
    %v4097 = vsub.s32 0, %v4096
    %v4098 = vrot.slane %v4089, %v4097
    %v4099 = vlaneseq
    %v4100 = vshrl.u32 %v4099, 7
    %v4101 = vsub.s32 1, %v4100
    %v4102 = vrot.slane %v4089, %v4101
    %v4169 = vunpack.c.l.b16 %v4024
    %v4170 = vunpack.c.h.b16 %v4024
    %v4171 = vunpack.c.l.b16 %v4025
    %v4172 = vunpack.c.h.b16 %v4025
    %v4173 = vunpack.c.l.b16 %v4026
    %v4174 = vunpack.c.h.b16 %v4026
    %v4175 = vunpack.c.l.b16 %v4027
    %v4176 = vunpack.c.h.b16 %v4027
    %v4177 = vunpack.c.l.b16 %v4028
    %v4178 = vunpack.c.h.b16 %v4028
    %v4179 = vunpack.c.l.b16 %v4029
    %v4180 = vunpack.c.h.b16 %v4029
    %v4181 = vunpack.c.l.b16 %v4030
    %v4182 = vunpack.c.h.b16 %v4030
    %v4183 = vunpack.c.l.b16 %v4031
    %v4184 = vunpack.c.h.b16 %v4031
    %v4185 = vunpack.c.l.b16 %v4032
    %v4186 = vunpack.c.h.b16 %v4032
    %v4187 = vunpack.c.l.b16 %v4033
    %v4188 = vunpack.c.h.b16 %v4033
    %v4189 = vunpack.c.l.b16 %v4034
    %v4190 = vunpack.c.h.b16 %v4034
    %v4191 = vunpack.c.l.b16 %v4035
    %v4192 = vunpack.c.h.b16 %v4035
    %v4193 = vunpack.c.l.b16 %v4036
    %v4194 = vunpack.c.h.b16 %v4036
    %v4195 = vunpack.c.l.b16 %v4037
    %v4196 = vunpack.c.h.b16 %v4037
    %v4197 = vunpack.c.l.b16 %v4038
    %v4198 = vunpack.c.h.b16 %v4038
    %v4199 = vunpack.c.l.b16 %v4039
    %v4200 = vunpack.c.h.b16 %v4039
    %v4201 = vunpack.c.l.b16 %v4040
    %v4202 = vunpack.c.h.b16 %v4040
    %v4203 = vunpack.c.l.b16 %v4041
    %v4204 = vunpack.c.h.b16 %v4041
    %v4205 = vunpack.c.l.b16 %v4042
    %v4206 = vunpack.c.h.b16 %v4042
    %v4207 = vunpack.c.l.b16 %v4043
    %v4208 = vunpack.c.h.b16 %v4043
    %v4209 = vunpack.c.l.b16 %v4044
    %v4210 = vunpack.c.h.b16 %v4044
    %v4211 = vunpack.c.l.b16 %v4045
    %v4212 = vunpack.c.h.b16 %v4045
    %v4213 = vunpack.c.l.b16 %v4046
    %v4214 = vunpack.c.h.b16 %v4046
    %v4215 = vunpack.c.l.b16 %v4047
    %v4216 = vunpack.c.h.b16 %v4047
    %v4217 = vunpack.c.l.b16 %v4048
    %v4218 = vunpack.c.h.b16 %v4048
    %v4219 = vunpack.c.l.b16 %v4049
    %v4220 = vunpack.c.h.b16 %v4049
    %v4221 = vunpack.c.l.b16 %v4050
    %v4222 = vunpack.c.h.b16 %v4050
    %v4223 = vunpack.c.l.b16 %v4051
    %v4224 = vunpack.c.h.b16 %v4051
    %v4225 = vunpack.c.l.b16 %v4052
    %v4226 = vunpack.c.h.b16 %v4052
    %v4227 = vunpack.c.l.b16 %v4053
    %v4228 = vunpack.c.h.b16 %v4053
    %v4229 = vunpack.c.l.b16 %v4054
    %v4230 = vunpack.c.h.b16 %v4054
    %v4231 = vunpack.c.l.b16 %v4055
    %v4232 = vunpack.c.h.b16 %v4055
    %v4233 = vunpack.c.l.b16 %v4056
    %v4234 = vunpack.c.h.b16 %v4056
    %v4235 = vunpack.c.l.b16 %v4057
    %v4236 = vunpack.c.h.b16 %v4057
    %v4237 = vunpack.c.l.b16 %v4058
    %v4238 = vunpack.c.h.b16 %v4058
    %v4239 = vunpack.c.l.b16 %v4059
    %v4240 = vunpack.c.h.b16 %v4059
    %v4241 = vunpack.c.l.b16 %v4060
    %v4242 = vunpack.c.h.b16 %v4060
    %v4243 = vunpack.c.l.b16 %v4061
    %v4244 = vunpack.c.h.b16 %v4061
    %v4245 = vunpack.c.l.b16 %v4062
    %v4246 = vunpack.c.h.b16 %v4062
    %v4247 = vunpack.c.l.b16 %v4063
    %v4248 = vunpack.c.h.b16 %v4063
    %v4249 = vunpack.c.l.b16 %v4064
    %v4250 = vunpack.c.h.b16 %v4064
    %v4251 = vunpack.c.l.b16 %v4065
    %v4252 = vunpack.c.h.b16 %v4065
    %v4253 = vunpack.c.l.b16 %v4066
    %v4254 = vunpack.c.h.b16 %v4066
    %v4255 = vunpack.c.l.b16 %v4067
    %v4256 = vunpack.c.h.b16 %v4067
    %v4257 = vunpack.c.l.b16 %v4068
    %v4258 = vunpack.c.h.b16 %v4068
    %v4259 = vunpack.c.l.b16 %v4069
    %v4260 = vunpack.c.h.b16 %v4069
    %v4261 = vunpack.c.l.b16 %v4070
    %v4262 = vunpack.c.h.b16 %v4070
    %v4263 = vunpack.c.l.b16 %v4071
    %v4264 = vunpack.c.h.b16 %v4071
    %v4265 = vunpack.c.l.b16 %v4072
    %v4266 = vunpack.c.h.b16 %v4072
    %v4267 = vunpack.c.l.b16 %v4073
    %v4268 = vunpack.c.h.b16 %v4073
    %v4269 = vunpack.c.l.b16 %v4074
    %v4270 = vunpack.c.h.b16 %v4074
    %v4271 = vunpack.c.l.b16 %v4075
    %v4272 = vunpack.c.h.b16 %v4075
    %v4273 = vunpack.c.l.b16 %v4076
    %v4274 = vunpack.c.h.b16 %v4076
    %v4275 = vunpack.c.l.b16 %v4077
    %v4276 = vunpack.c.h.b16 %v4077
    %v4277 = vunpack.c.l.b16 %v4078
    %v4278 = vunpack.c.h.b16 %v4078
    %v4279 = vunpack.c.l.b16 %v4079
    %v4280 = vunpack.c.h.b16 %v4079
    %v4281 = vunpack.c.l.b16 %v4080
    %v4282 = vunpack.c.h.b16 %v4080
    %v4283 = vunpack.c.l.b16 %v4081
    %v4284 = vunpack.c.h.b16 %v4081
    %v4285 = vunpack.c.l.b16 %v4082
    %v4286 = vunpack.c.h.b16 %v4082
    %v4287 = vunpack.c.l.b16 %v4083
    %v4288 = vunpack.c.h.b16 %v4083
    %v4289 = vunpack.c.l.b16 %v4084
    %v4290 = vunpack.c.h.b16 %v4084
    %v4291 = vunpack.c.l.b16 %v4085
    %v4292 = vunpack.c.h.b16 %v4085
    %v4293 = vunpack.c.l.b16 %v4086
    %v4294 = vunpack.c.h.b16 %v4086
    %v4295 = vunpack.c.l.b16 %v4087
    %v4296 = vunpack.c.h.b16 %v4087
    %v4297 = vpack.c.b16 %v4171, %v4169
    %v4298 = vpack.c.b16 %v4172, %v4170
    %v4299 = vpack.c.b16 %v4175, %v4173
    %v4300 = vpack.c.b16 %v4176, %v4174
    %v4301 = vpack.c.b16 %v4179, %v4177
    %v4302 = vpack.c.b16 %v4180, %v4178
    %v4303 = vpack.c.b16 %v4183, %v4181
    %v4304 = vpack.c.b16 %v4184, %v4182
    %v4305 = vpack.c.b16 %v4187, %v4185
    %v4306 = vpack.c.b16 %v4188, %v4186
    %v4307 = vpack.c.b16 %v4191, %v4189
    %v4308 = vpack.c.b16 %v4192, %v4190
    %v4309 = vpack.c.b16 %v4195, %v4193
    %v4310 = vpack.c.b16 %v4196, %v4194
    %v4311 = vpack.c.b16 %v4199, %v4197
    %v4312 = vpack.c.b16 %v4200, %v4198
    %v4313 = vpack.c.b16 %v4203, %v4201
    %v4314 = vpack.c.b16 %v4204, %v4202
    %v4315 = vpack.c.b16 %v4207, %v4205
    %v4316 = vpack.c.b16 %v4208, %v4206
    %v4317 = vpack.c.b16 %v4211, %v4209
    %v4318 = vpack.c.b16 %v4212, %v4210
    %v4319 = vpack.c.b16 %v4215, %v4213
    %v4320 = vpack.c.b16 %v4216, %v4214
    %v4321 = vpack.c.b16 %v4219, %v4217
    %v4322 = vpack.c.b16 %v4220, %v4218
    %v4323 = vpack.c.b16 %v4223, %v4221
    %v4324 = vpack.c.b16 %v4224, %v4222
    %v4325 = vpack.c.b16 %v4227, %v4225
    %v4326 = vpack.c.b16 %v4228, %v4226
    %v4327 = vpack.c.b16 %v4231, %v4229
    %v4328 = vpack.c.b16 %v4232, %v4230
    %v4329 = vpack.c.b16 %v4235, %v4233
    %v4330 = vpack.c.b16 %v4236, %v4234
    %v4331 = vpack.c.b16 %v4239, %v4237
    %v4332 = vpack.c.b16 %v4240, %v4238
    %v4333 = vpack.c.b16 %v4243, %v4241
    %v4334 = vpack.c.b16 %v4244, %v4242
    %v4335 = vpack.c.b16 %v4247, %v4245
    %v4336 = vpack.c.b16 %v4248, %v4246
    %v4337 = vpack.c.b16 %v4251, %v4249
    %v4338 = vpack.c.b16 %v4252, %v4250
    %v4339 = vpack.c.b16 %v4255, %v4253
    %v4340 = vpack.c.b16 %v4256, %v4254
    %v4341 = vpack.c.b16 %v4259, %v4257
    %v4342 = vpack.c.b16 %v4260, %v4258
    %v4343 = vpack.c.b16 %v4263, %v4261
    %v4344 = vpack.c.b16 %v4264, %v4262
    %v4345 = vpack.c.b16 %v4267, %v4265
    %v4346 = vpack.c.b16 %v4268, %v4266
    %v4347 = vpack.c.b16 %v4271, %v4269
    %v4348 = vpack.c.b16 %v4272, %v4270
    %v4349 = vpack.c.b16 %v4275, %v4273
    %v4350 = vpack.c.b16 %v4276, %v4274
    %v4351 = vpack.c.b16 %v4279, %v4277
    %v4352 = vpack.c.b16 %v4280, %v4278
    %v4353 = vpack.c.b16 %v4283, %v4281
    %v4354 = vpack.c.b16 %v4284, %v4282
    %v4355 = vpack.c.b16 %v4287, %v4285
    %v4356 = vpack.c.b16 %v4288, %v4286
    %v4357 = vpack.c.b16 %v4291, %v4289
    %v4358 = vpack.c.b16 %v4292, %v4290
    %v4359 = vpack.c.b16 %v4295, %v4293
    %v4360 = vpack.c.b16 %v4296, %v4294
    %4425 = vmatprep.subr.bf16.mxu0 %v4298
    %4426 = vmatpush1.bf16.msra.mxu0 %v4297
    %4427 = vmatprep.subr.bf16.mxu0 %v4300
    %4428 = vmatpush1.bf16.msra.mxu0 %v4299
    %4429 = vmatprep.subr.bf16.mxu0 %v4302
    %4430 = vmatpush1.bf16.msra.mxu0 %v4301
    %4431 = vmatprep.subr.bf16.mxu0 %v4304
    %4432 = vmatpush1.bf16.msra.mxu0 %v4303
    %4433 = vmatprep.subr.bf16.mxu0 %v4306
    %4434 = vmatpush1.bf16.msra.mxu0 %v4305
    %4435 = vmatprep.subr.bf16.mxu0 %v4308
    %4436 = vmatpush1.bf16.msra.mxu0 %v4307
    %4437 = vmatprep.subr.bf16.mxu0 %v4310
    %4438 = vmatpush1.bf16.msra.mxu0 %v4309
    %4439 = vmatprep.subr.bf16.mxu0 %v4312
    %4440 = vmatpush1.bf16.msra.mxu0 %v4311
    %4441 = vmatprep.subr.bf16.mxu0 %v4314
    %4442 = vmatpush1.bf16.msra.mxu0 %v4313
    %4443 = vmatprep.subr.bf16.mxu0 %v4316
    %4444 = vmatpush1.bf16.msra.mxu0 %v4315
    %4445 = vmatprep.subr.bf16.mxu0 %v4318
    %4446 = vmatpush1.bf16.msra.mxu0 %v4317
    %4447 = vmatprep.subr.bf16.mxu0 %v4320
    %4448 = vmatpush1.bf16.msra.mxu0 %v4319
    %4449 = vmatprep.subr.bf16.mxu0 %v4322
    %4450 = vmatpush1.bf16.msra.mxu0 %v4321
    %4451 = vmatprep.subr.bf16.mxu0 %v4324
    %4452 = vmatpush1.bf16.msra.mxu0 %v4323
    %4453 = vmatprep.subr.bf16.mxu0 %v4326
    %4454 = vmatpush1.bf16.msra.mxu0 %v4325
    %4455 = vmatprep.subr.bf16.mxu0 %v4328
    %4456 = vmatpush1.bf16.msra.mxu0 %v4327
    %4457 = vmatprep.mubr.bf16.mxu0 %v3190
    %4458 = vmatmul.mubr.bf16.gmra.mrb[0].mxu0 %v3189
    %v4459 = vpop.f32.mrb[0].mxu0
    %v4460 = vadd.f32 %v4098, %v4459
    %v4461 = vpop.f32.mrb[0].mxu0
    %v4462 = vadd.f32 %v4102, %v4461
    %v4463 = vpop.f32.mrb[0].mxu0
    %v4464 = vpop.f32.mrb[0].mxu0
    %4465 = vdwg.mxu0
    %4466 = vmatprep.subr.bf16.mxu0 %v4330
    %4467 = vmatpush1.bf16.msra.mxu0 %v4329
    %4468 = vmatprep.subr.bf16.mxu0 %v4332
    %4469 = vmatpush1.bf16.msra.mxu0 %v4331
    %4470 = vmatprep.subr.bf16.mxu0 %v4334
    %4471 = vmatpush1.bf16.msra.mxu0 %v4333
    %4472 = vmatprep.subr.bf16.mxu0 %v4336
    %4473 = vmatpush1.bf16.msra.mxu0 %v4335
    %4474 = vmatprep.subr.bf16.mxu0 %v4338
    %4475 = vmatpush1.bf16.msra.mxu0 %v4337
    %4476 = vmatprep.subr.bf16.mxu0 %v4340
    %4477 = vmatpush1.bf16.msra.mxu0 %v4339
    %4478 = vmatprep.subr.bf16.mxu0 %v4342
    %4479 = vmatpush1.bf16.msra.mxu0 %v4341
    %4480 = vmatprep.subr.bf16.mxu0 %v4344
    %4481 = vmatpush1.bf16.msra.mxu0 %v4343
    %4482 = vmatprep.subr.bf16.mxu0 %v4346
    %4483 = vmatpush1.bf16.msra.mxu0 %v4345
    %4484 = vmatprep.subr.bf16.mxu0 %v4348
    %4485 = vmatpush1.bf16.msra.mxu0 %v4347
    %4486 = vmatprep.subr.bf16.mxu0 %v4350
    %4487 = vmatpush1.bf16.msra.mxu0 %v4349
    %4488 = vmatprep.subr.bf16.mxu0 %v4352
    %4489 = vmatpush1.bf16.msra.mxu0 %v4351
    %4490 = vmatprep.subr.bf16.mxu0 %v4354
    %4491 = vmatpush1.bf16.msra.mxu0 %v4353
    %4492 = vmatprep.subr.bf16.mxu0 %v4356
    %4493 = vmatpush1.bf16.msra.mxu0 %v4355
    %4494 = vmatprep.subr.bf16.mxu0 %v4358
    %4495 = vmatpush1.bf16.msra.mxu0 %v4357
    %4496 = vmatprep.subr.bf16.mxu0 %v4360
    %4497 = vmatpush1.bf16.msra.mxu0 %v4359
    %4498 = vmatprep.mubr.bf16.mxu0 %v3192
    %4499 = vmatmul.mubr.bf16.gmra.mrb[0].mxu0 %v3191
    %v4500 = vpop.f32.mrb[0].mxu0
    %v4501 = vadd.f32 %v4460, %v4500
    %v4502 = vpop.f32.mrb[0].mxu0
    %v4503 = vadd.f32 %v4462, %v4502
    %v4504 = vpop.f32.mrb[0].mxu0
    %v4505 = vpop.f32.mrb[0].mxu0
    %4506 = vdwg.mxu0
    %v4507 = vadd.f32 %v4501, %v4503
    %4508 = vadd.xlane.f32.xlu0 %v4507
    %v4509 = vpop.xlane.xlu0 %4508
    %v4510 = vmul.f32 %v4501, %v4501
    %v4511 = vmul.f32 %v4503, %v4503
    %v4512 = vadd.f32 %v4510, %v4511
    %4513 = vadd.xlane.f32.xlu0 %v4512
    %v4514 = vpop.xlane.xlu0 %4513
    %v4515 = vmul.f32 %v4509, 0.00390625
    %v4516 = vmul.f32 %v4514, 0.00390625
    %v4517 = vmul.f32 %v4515, %v4515
    %v4518 = vsub.f32 %v4516, %v4517
    %v4519 = vmax.f32 %v4518, 0.0
    %v4520 = vsub.f32 %v4501, %v4515
    %v4521 = vsub.f32 %v4503, %v4515
    %v4522 = vadd.f32 %v4519, 1e-05
    %v4523 = vrsqrt.pop %v4522
    %v4524 = vmul.f32 %v4520, %v4523
    %v4525 = vmul.f32 %v4521, %v4523
    %v4527 = vlaneseq
    %v4528 = vshrl.u32 %v4527, 7
    %v4529 = vsub.s32 0, %v4528
    %v4530 = vrot.slane %v4091, %v4529
    %v4531 = vlaneseq
    %v4532 = vshrl.u32 %v4531, 7
    %v4533 = vsub.s32 1, %v4532
    %v4534 = vrot.slane %v4091, %v4533
    %v4537 = vmul.f32 %v4524, %v4530
    %v4538 = vmul.f32 %v4525, %v4534
    %v4540 = vlaneseq
    %v4541 = vshrl.u32 %v4540, 7
    %v4542 = vsub.s32 0, %v4541
    %v4543 = vrot.slane %v4093, %v4542
    %v4544 = vlaneseq
    %v4545 = vshrl.u32 %v4544, 7
    %v4546 = vsub.s32 1, %v4545
    %v4547 = vrot.slane %v4093, %v4546
    %v4550 = vadd.f32 %v4537, %v4543
    %v4551 = vadd.f32 %v4538, %v4547
    %v4552 = vmax.f32 %v4550, 0.0
    %v4553 = vmax.f32 %v4551, 0.0
    %v4554 = vpack.c.bf16 %v4552, %v4552
    %v4555 = vpack.c.bf16 %v4553, %v4553
    %v4556 = vld [vmem:[#allocation11] sm:$0xf]
    %v4557 = vld [vmem:[#allocation11 + $0x4] sm:$0xf]
    %v4558 = vld [vmem:[#allocation11 + $0x8] sm:$0xf]
    %v4559 = vld [vmem:[#allocation11 + $0xc] sm:$0xf]
    %v4560 = vld [vmem:[#allocation11 + $0x10] sm:$0xf]
    %v4561 = vld [vmem:[#allocation11 + $0x14] sm:$0xf]
    %v4562 = vld [vmem:[#allocation11 + $0x18] sm:$0xf]
    %v4563 = vld [vmem:[#allocation11 + $0x1c] sm:$0xf]
    %v4564 = vld [vmem:[#allocation11 + $0x20] sm:$0xf]
    %v4565 = vld [vmem:[#allocation11 + $0x24] sm:$0xf]
    %v4566 = vld [vmem:[#allocation11 + $0x28] sm:$0xf]
    %v4567 = vld [vmem:[#allocation11 + $0x2c] sm:$0xf]
    %v4568 = vld [vmem:[#allocation11 + $0x30] sm:$0xf]
    %v4569 = vld [vmem:[#allocation11 + $0x34] sm:$0xf]
    %v4570 = vld [vmem:[#allocation11 + $0x38] sm:$0xf]
    %v4571 = vld [vmem:[#allocation11 + $0x3c] sm:$0xf]
    %v4572 = vld [vmem:[#allocation11 + $0x40] sm:$0xf]
    %v4573 = vld [vmem:[#allocation11 + $0x44] sm:$0xf]
    %v4574 = vld [vmem:[#allocation11 + $0x48] sm:$0xf]
    %v4575 = vld [vmem:[#allocation11 + $0x4c] sm:$0xf]
    %v4576 = vld [vmem:[#allocation11 + $0x50] sm:$0xf]
    %v4577 = vld [vmem:[#allocation11 + $0x54] sm:$0xf]
    %v4578 = vld [vmem:[#allocation11 + $0x58] sm:$0xf]
    %v4579 = vld [vmem:[#allocation11 + $0x5c] sm:$0xf]
    %v4580 = vld [vmem:[#allocation11 + $0x60] sm:$0xf]
    %v4581 = vld [vmem:[#allocation11 + $0x64] sm:$0xf]
    %v4582 = vld [vmem:[#allocation11 + $0x68] sm:$0xf]
    %v4583 = vld [vmem:[#allocation11 + $0x6c] sm:$0xf]
    %v4584 = vld [vmem:[#allocation11 + $0x70] sm:$0xf]
    %v4585 = vld [vmem:[#allocation11 + $0x74] sm:$0xf]
    %v4586 = vld [vmem:[#allocation11 + $0x78] sm:$0xf]
    %v4587 = vld [vmem:[#allocation11 + $0x7c] sm:$0xf]
    %v4588 = vld [vmem:[#allocation14 + $0x27] ss:$0 sm:$0xff]
    %v4589 = vld [vmem:[#allocation14 + $0x40] ss:$0 sm:$0xff]
    %v4590 = vld [vmem:[#allocation14 + $0x41] ss:$0 sm:$0xff]
    %v4623 = vunpack.c.l.b16 %v4556
    %v4624 = vunpack.c.l.b16 %v4557
    %v4625 = vunpack.c.l.b16 %v4558
    %v4626 = vunpack.c.l.b16 %v4559
    %v4627 = vunpack.c.l.b16 %v4560
    %v4628 = vunpack.c.l.b16 %v4561
    %v4629 = vunpack.c.l.b16 %v4562
    %v4630 = vunpack.c.l.b16 %v4563
    %v4631 = vunpack.c.l.b16 %v4564
    %v4632 = vunpack.c.l.b16 %v4565
    %v4633 = vunpack.c.l.b16 %v4566
    %v4634 = vunpack.c.l.b16 %v4567
    %v4635 = vunpack.c.l.b16 %v4568
    %v4636 = vunpack.c.l.b16 %v4569
    %v4637 = vunpack.c.l.b16 %v4570
    %v4638 = vunpack.c.l.b16 %v4571
    %v4639 = vunpack.c.l.b16 %v4572
    %v4640 = vunpack.c.l.b16 %v4573
    %v4641 = vunpack.c.l.b16 %v4574
    %v4642 = vunpack.c.l.b16 %v4575
    %v4643 = vunpack.c.l.b16 %v4576
    %v4644 = vunpack.c.l.b16 %v4577
    %v4645 = vunpack.c.l.b16 %v4578
    %v4646 = vunpack.c.l.b16 %v4579
    %v4647 = vunpack.c.l.b16 %v4580
    %v4648 = vunpack.c.l.b16 %v4581
    %v4649 = vunpack.c.l.b16 %v4582
    %v4650 = vunpack.c.l.b16 %v4583
    %v4651 = vunpack.c.l.b16 %v4584
    %v4652 = vunpack.c.l.b16 %v4585
    %v4653 = vunpack.c.l.b16 %v4586
    %v4654 = vunpack.c.l.b16 %v4587
    %v4655 = vpack.c.b16 %v4624, %v4623
    %v4656 = vpack.c.b16 %v4626, %v4625
    %v4657 = vpack.c.b16 %v4628, %v4627
    %v4658 = vpack.c.b16 %v4630, %v4629
    %v4659 = vpack.c.b16 %v4632, %v4631
    %v4660 = vpack.c.b16 %v4634, %v4633
    %v4661 = vpack.c.b16 %v4636, %v4635
    %v4662 = vpack.c.b16 %v4638, %v4637
    %v4663 = vpack.c.b16 %v4640, %v4639
    %v4664 = vpack.c.b16 %v4642, %v4641
    %v4665 = vpack.c.b16 %v4644, %v4643
    %v4666 = vpack.c.b16 %v4646, %v4645
    %v4667 = vpack.c.b16 %v4648, %v4647
    %v4668 = vpack.c.b16 %v4650, %v4649
    %v4669 = vpack.c.b16 %v4652, %v4651
    %v4670 = vpack.c.b16 %v4654, %v4653
    %4687 = vmatprep.subr.bf16.mxu0 0
    %4688 = vmatpush1.bf16.msra.mxu0 %v4655
    %4689 = vmatprep.subr.bf16.mxu0 0
    %4690 = vmatpush1.bf16.msra.mxu0 %v4656
    %4691 = vmatprep.subr.bf16.mxu0 0
    %4692 = vmatpush1.bf16.msra.mxu0 %v4657
    %4693 = vmatprep.subr.bf16.mxu0 0
    %4694 = vmatpush1.bf16.msra.mxu0 %v4658
    %4695 = vmatprep.subr.bf16.mxu0 0
    %4696 = vmatpush1.bf16.msra.mxu0 %v4659
    %4697 = vmatprep.subr.bf16.mxu0 0
    %4698 = vmatpush1.bf16.msra.mxu0 %v4660
    %4699 = vmatprep.subr.bf16.mxu0 0
    %4700 = vmatpush1.bf16.msra.mxu0 %v4661
    %4701 = vmatprep.subr.bf16.mxu0 0
    %4702 = vmatpush1.bf16.msra.mxu0 %v4662
    %4703 = vmatprep.subr.bf16.mxu0 0
    %4704 = vmatpush1.bf16.msra.mxu0 %v4663
    %4705 = vmatprep.subr.bf16.mxu0 0
    %4706 = vmatpush1.bf16.msra.mxu0 %v4664
    %4707 = vmatprep.subr.bf16.mxu0 0
    %4708 = vmatpush1.bf16.msra.mxu0 %v4665
    %4709 = vmatprep.subr.bf16.mxu0 0
    %4710 = vmatpush1.bf16.msra.mxu0 %v4666
    %4711 = vmatprep.subr.bf16.mxu0 0
    %4712 = vmatpush1.bf16.msra.mxu0 %v4667
    %4713 = vmatprep.subr.bf16.mxu0 0
    %4714 = vmatpush1.bf16.msra.mxu0 %v4668
    %4715 = vmatprep.subr.bf16.mxu0 0
    %4716 = vmatpush1.bf16.msra.mxu0 %v4669
    %4717 = vmatprep.subr.bf16.mxu0 0
    %4718 = vmatpush1.bf16.msra.mxu0 %v4670
    %4719 = vmatprep.mubr.bf16.mxu0 %v4555
    %4720 = vmatmul.mubr.bf16.gmra.mrb[0].mxu0 %v4554
    %v4721 = vpop.f32.mrb[0].mxu0
    %v4722 = vadd.f32 %v4588, %v4721
    %v4723 = vpop.f32.mrb[0].mxu0
    %v4724 = vpop.f32.mrb[0].mxu0
    %v4725 = vpop.f32.mrb[0].mxu0
    %4726 = vdwg.mxu0
    %4727 = vadd.xlane.f32.xlu0 %v4722
    %v4728 = vpop.xlane.xlu0 %4727
    %v4729 = vmul.f32 %v4722, %v4722
    %4730 = vadd.xlane.f32.xlu0 %v4729
    %v4731 = vpop.xlane.xlu0 %4730
    %v4732 = vmul.f32 %v4728, 0.0078125
    %v4733 = vmul.f32 %v4731, 0.0078125
    %v4734 = vmul.f32 %v4732, %v4732
    %v4735 = vsub.f32 %v4733, %v4734
    %v4736 = vmax.f32 %v4735, 0.0
    %v4737 = vsub.f32 %v4722, %v4732
    %v4738 = vadd.f32 %v4736, 1e-05
    %v4739 = vrsqrt.pop %v4738
    %v4740 = vmul.f32 %v4737, %v4739
    %v4741 = vmul.f32 %v4740, %v4589
    %v4742 = vadd.f32 %v4741, %v4590
    %v4743 = vmax.f32 %v4742, 0.0
    %v4744 = vpack.c.bf16 %v4743, %v4743
    %v4745 = vld [vmem:[#allocation13] sm:$0xf]
    %v4746 = vld [vmem:[#allocation13 + $0x4] sm:$0xf]
    %v4747 = vld [vmem:[#allocation13 + $0x8] sm:$0xf]
    %v4748 = vld [vmem:[#allocation13 + $0xc] sm:$0xf]
    %v4749 = vld [vmem:[#allocation13 + $0x10] sm:$0xf]
    %v4750 = vld [vmem:[#allocation13 + $0x14] sm:$0xf]
    %v4751 = vld [vmem:[#allocation13 + $0x18] sm:$0xf]
    %v4752 = vld [vmem:[#allocation13 + $0x1c] sm:$0xf]
    %v4753 = vld [vmem:[#allocation13 + $0x20] sm:$0xf]
    %v4754 = vld [vmem:[#allocation13 + $0x24] sm:$0xf]
    %v4755 = vld [vmem:[#allocation13 + $0x28] sm:$0xf]
    %v4756 = vld [vmem:[#allocation13 + $0x2c] sm:$0xf]
    %v4757 = vld [vmem:[#allocation13 + $0x30] sm:$0xf]
    %v4758 = vld [vmem:[#allocation13 + $0x34] sm:$0xf]
    %v4759 = vld [vmem:[#allocation13 + $0x38] sm:$0xf]
    %v4760 = vld [vmem:[#allocation13 + $0x3c] sm:$0xf]
    %v4761 = vld [vmem:[#allocation13 + $0x40] sm:$0xf]
    %v4762 = vld [vmem:[#allocation13 + $0x44] sm:$0xf]
    %v4763 = vld [vmem:[#allocation13 + $0x48] sm:$0xf]
    %v4764 = vld [vmem:[#allocation13 + $0x4c] sm:$0xf]
    %v4765 = vld [vmem:[#allocation13 + $0x50] sm:$0xf]
    %v4766 = vld [vmem:[#allocation13 + $0x54] sm:$0xf]
    %v4767 = vld [vmem:[#allocation13 + $0x58] sm:$0xf]
    %v4768 = vld [vmem:[#allocation13 + $0x5c] sm:$0xf]
    %v4769 = vld [vmem:[#allocation13 + $0x60] sm:$0xf]
    %v4770 = vld [vmem:[#allocation13 + $0x64] sm:$0xf]
    %v4771 = vld [vmem:[#allocation13 + $0x68] sm:$0xf]
    %v4772 = vld [vmem:[#allocation13 + $0x6c] sm:$0xf]
    %v4773 = vld [vmem:[#allocation13 + $0x70] sm:$0xf]
    %v4774 = vld [vmem:[#allocation13 + $0x74] sm:$0xf]
    %v4775 = vld [vmem:[#allocation13 + $0x78] sm:$0xf]
    %v4776 = vld [vmem:[#allocation13 + $0x7c] sm:$0xf]
    %v4777 = vld [vmem:[#allocation13 + $0x80] sm:$0xf]
    %v4778 = vld [vmem:[#allocation13 + $0x84] sm:$0xf]
    %v4779 = vld [vmem:[#allocation13 + $0x88] sm:$0xf]
    %v4780 = vld [vmem:[#allocation13 + $0x8c] sm:$0xf]
    %v4781 = vld [vmem:[#allocation13 + $0x90] sm:$0xf]
    %v4782 = vld [vmem:[#allocation13 + $0x94] sm:$0xf]
    %v4783 = vld [vmem:[#allocation13 + $0x98] sm:$0xf]
    %v4784 = vld [vmem:[#allocation13 + $0x9c] sm:$0xf]
    %v4785 = vld [vmem:[#allocation13 + $0xa0] sm:$0xf]
    %v4786 = vld [vmem:[#allocation13 + $0xa4] sm:$0xf]
    %v4787 = vld [vmem:[#allocation13 + $0xa8] sm:$0xf]
    %v4788 = vld [vmem:[#allocation13 + $0xac] sm:$0xf]
    %v4789 = vld [vmem:[#allocation13 + $0xb0] sm:$0xf]
    %v4790 = vld [vmem:[#allocation13 + $0xb4] sm:$0xf]
    %v4791 = vld [vmem:[#allocation13 + $0xb8] sm:$0xf]
    %v4792 = vld [vmem:[#allocation13 + $0xbc] sm:$0xf]
    %v4793 = vld [vmem:[#allocation14 + $0x42] ss:$0 sm:$0xff]
    %v4842 = vunpack.c.l.b16 %v4745
    %v4843 = vunpack.c.l.b16 %v4746
    %v4844 = vunpack.c.l.b16 %v4747
    %v4845 = vunpack.c.l.b16 %v4748
    %v4846 = vunpack.c.l.b16 %v4749
    %v4847 = vunpack.c.l.b16 %v4750
    %v4848 = vunpack.c.l.b16 %v4751
    %v4849 = vunpack.c.l.b16 %v4752
    %v4850 = vunpack.c.l.b16 %v4753
    %v4851 = vunpack.c.l.b16 %v4754
    %v4852 = vunpack.c.l.b16 %v4755
    %v4853 = vunpack.c.l.b16 %v4756
    %v4854 = vunpack.c.l.b16 %v4757
    %v4855 = vunpack.c.l.b16 %v4758
    %v4856 = vunpack.c.l.b16 %v4759
    %v4857 = vunpack.c.l.b16 %v4760
    %v4858 = vunpack.c.l.b16 %v4761
    %v4859 = vunpack.c.l.b16 %v4762
    %v4860 = vunpack.c.l.b16 %v4763
    %v4861 = vunpack.c.l.b16 %v4764
    %v4862 = vunpack.c.l.b16 %v4765
    %v4863 = vunpack.c.l.b16 %v4766
    %v4864 = vunpack.c.l.b16 %v4767
    %v4865 = vunpack.c.l.b16 %v4768
    %v4866 = vunpack.c.l.b16 %v4769
    %v4867 = vunpack.c.l.b16 %v4770
    %v4868 = vunpack.c.l.b16 %v4771
    %v4869 = vunpack.c.l.b16 %v4772
    %v4870 = vunpack.c.l.b16 %v4773
    %v4871 = vunpack.c.l.b16 %v4774
    %v4872 = vunpack.c.l.b16 %v4775
    %v4873 = vunpack.c.l.b16 %v4776
    %v4874 = vunpack.c.l.b16 %v4777
    %v4875 = vunpack.c.l.b16 %v4778
    %v4876 = vunpack.c.l.b16 %v4779
    %v4877 = vunpack.c.l.b16 %v4780
    %v4878 = vunpack.c.l.b16 %v4781
    %v4879 = vunpack.c.l.b16 %v4782
    %v4880 = vunpack.c.l.b16 %v4783
    %v4881 = vunpack.c.l.b16 %v4784
    %v4882 = vunpack.c.l.b16 %v4785
    %v4883 = vunpack.c.l.b16 %v4786
    %v4884 = vunpack.c.l.b16 %v4787
    %v4885 = vunpack.c.l.b16 %v4788
    %v4886 = vunpack.c.l.b16 %v4789
    %v4887 = vunpack.c.l.b16 %v4790
    %v4888 = vunpack.c.l.b16 %v4791
    %v4889 = vunpack.c.l.b16 %v4792
    %v4890 = vpack.c.b16 %v4843, %v4842
    %v4891 = vpack.c.b16 %v4845, %v4844
    %v4892 = vpack.c.b16 %v4847, %v4846
    %v4893 = vpack.c.b16 %v4849, %v4848
    %v4894 = vpack.c.b16 %v4851, %v4850
    %v4895 = vpack.c.b16 %v4853, %v4852
    %v4896 = vpack.c.b16 %v4855, %v4854
    %v4897 = vpack.c.b16 %v4857, %v4856
    %v4898 = vpack.c.b16 %v4859, %v4858
    %v4899 = vpack.c.b16 %v4861, %v4860
    %v4900 = vpack.c.b16 %v4863, %v4862
    %v4901 = vpack.c.b16 %v4865, %v4864
    %v4902 = vpack.c.b16 %v4867, %v4866
    %v4903 = vpack.c.b16 %v4869, %v4868
    %v4904 = vpack.c.b16 %v4871, %v4870
    %v4905 = vpack.c.b16 %v4873, %v4872
    %v4906 = vpack.c.b16 %v4875, %v4874
    %v4907 = vpack.c.b16 %v4877, %v4876
    %v4908 = vpack.c.b16 %v4879, %v4878
    %v4909 = vpack.c.b16 %v4881, %v4880
    %v4910 = vpack.c.b16 %v4883, %v4882
    %v4911 = vpack.c.b16 %v4885, %v4884
    %v4912 = vpack.c.b16 %v4887, %v4886
    %v4913 = vpack.c.b16 %v4889, %v4888
    %4938 = vmatprep.subr.bf16.mxu0 0
    %4939 = vmatpush1.bf16.msra.mxu0 %v4890
    %4940 = vmatprep.subr.bf16.mxu0 0
    %4941 = vmatpush1.bf16.msra.mxu0 %v4891
    %4942 = vmatprep.subr.bf16.mxu0 0
    %4943 = vmatpush1.bf16.msra.mxu0 %v4892
    %4944 = vmatprep.subr.bf16.mxu0 0
    %4945 = vmatpush1.bf16.msra.mxu0 %v4893
    %4946 = vmatprep.subr.bf16.mxu0 0
    %4947 = vmatpush1.bf16.msra.mxu0 %v4894
    %4948 = vmatprep.subr.bf16.mxu0 0
    %4949 = vmatpush1.bf16.msra.mxu0 %v4895
    %4950 = vmatprep.subr.bf16.mxu0 0
    %4951 = vmatpush1.bf16.msra.mxu0 %v4896
    %4952 = vmatprep.subr.bf16.mxu0 0
    %4953 = vmatpush1.bf16.msra.mxu0 %v4897
    %4954 = vmatprep.subr.bf16.mxu0 0
    %4955 = vmatpush1.bf16.msra.mxu0 %v4898
    %4956 = vmatprep.subr.bf16.mxu0 0
    %4957 = vmatpush1.bf16.msra.mxu0 %v4899
    %4958 = vmatprep.subr.bf16.mxu0 0
    %4959 = vmatpush1.bf16.msra.mxu0 %v4900
    %4960 = vmatprep.subr.bf16.mxu0 0
    %4961 = vmatpush1.bf16.msra.mxu0 %v4901
    %4962 = vmatprep.subr.bf16.mxu0 0
    %4963 = vmatpush1.bf16.msra.mxu0 %v4902
    %4964 = vmatprep.subr.bf16.mxu0 0
    %4965 = vmatpush1.bf16.msra.mxu0 %v4903
    %4966 = vmatprep.subr.bf16.mxu0 0
    %4967 = vmatpush1.bf16.msra.mxu0 %v4904
    %4968 = vmatprep.subr.bf16.mxu0 0
    %4969 = vmatpush1.bf16.msra.mxu0 %v4905
    %4970 = vmatprep.mubr.bf16.mxu0 %v4023
    %4971 = vmatmul.mubr.bf16.gmra.mrb[0].mxu0 %v4022
    %v4972 = vpop.f32.mrb[0].mxu0
    %v4973 = vadd.f32 %v4793, %v4972
    %v4974 = vpop.f32.mrb[0].mxu0
    %v4975 = vpop.f32.mrb[0].mxu0
    %v4976 = vpop.f32.mrb[0].mxu0
    %4977 = vdwg.mxu0
    %4978 = vmatprep.subr.bf16.mxu0 0
    %4979 = vmatpush1.bf16.msra.mxu0 %v4906
    %4980 = vmatprep.subr.bf16.mxu0 0
    %4981 = vmatpush1.bf16.msra.mxu0 %v4907
    %4982 = vmatprep.subr.bf16.mxu0 0
    %4983 = vmatpush1.bf16.msra.mxu0 %v4908
    %4984 = vmatprep.subr.bf16.mxu0 0
    %4985 = vmatpush1.bf16.msra.mxu0 %v4909
    %4986 = vmatprep.subr.bf16.mxu0 0
    %4987 = vmatpush1.bf16.msra.mxu0 %v4910
    %4988 = vmatprep.subr.bf16.mxu0 0
    %4989 = vmatpush1.bf16.msra.mxu0 %v4911
    %4990 = vmatprep.subr.bf16.mxu0 0
    %4991 = vmatpush1.bf16.msra.mxu0 %v4912
    %4992 = vmatprep.subr.bf16.mxu0 0
    %4993 = vmatpush1.bf16.msra.mxu0 %v4913
    %4994 = vmatprep.subr.bf16.mxu0 0
    %4995 = vmatpush1.bf16.msra.mxu0 0
    %4996 = vmatprep.subr.bf16.mxu0 0
    %4997 = vmatpush1.bf16.msra.mxu0 0
    %4998 = vmatprep.subr.bf16.mxu0 0
    %4999 = vmatpush1.bf16.msra.mxu0 0
    %5000 = vmatprep.subr.bf16.mxu0 0
    %5001 = vmatpush1.bf16.msra.mxu0 0
    %5002 = vmatprep.subr.bf16.mxu0 0
    %5003 = vmatpush1.bf16.msra.mxu0 0
    %5004 = vmatprep.subr.bf16.mxu0 0
    %5005 = vmatpush1.bf16.msra.mxu0 0
    %5006 = vmatprep.subr.bf16.mxu0 0
    %5007 = vmatpush1.bf16.msra.mxu0 0
    %5008 = vmatprep.subr.bf16.mxu0 0
    %5009 = vmatpush1.bf16.msra.mxu0 0
    %5010 = vmatprep.mubr.bf16.mxu0 0
    %5011 = vmatmul.mubr.bf16.gmra.mrb[0].mxu0 %v4744
    %v5012 = vpop.f32.mrb[0].mxu0
    %v5013 = vadd.f32 %v4973, %v5012
    %v5014 = vpop.f32.mrb[0].mxu0
    %v5015 = vpop.f32.mrb[0].mxu0
    %v5016 = vpop.f32.mrb[0].mxu0
    %5017 = vdwg.mxu0
    %5018 = vst [vmem:[#allocation16] sm:$0xff] %v5013
    // Predicated region
    $region66: #{tpu_custom_call.1} parent=1 // pred_check
      _
    $region67: #{tpu_custom_call.1} parent=1 // pred_check_branch
      %5020 = sbr.rel (0) target = $region69
    $region68: #{tpu_custom_call.1} parent=1 // pred_region
      %s5022 = ssub.s32 128, 128
      %5023 = vsyncadd [#allocation4], %s5022
      %s5025 = sshll.u32 [#allocation16], 4
      %s5026 = int_to_ptr.vmem [resolvable:$true] %s5025
      %5028 = dma.vmem_to_hbm [thread:$0]  %s5026, 128, %s8, [#allocation4]
    $region69: #{tpu_custom_call.1} parent=1 // pred_fallthru
      _
    // Predicated region
    $region70: #{tpu_custom_call.1} parent=1 // pred_check
      _
    $region71: #{tpu_custom_call.1} parent=1 // pred_check_branch
      %5030 = sbr.rel (0) target = $region73
    $region72: #{tpu_custom_call.1} parent=1 // pred_region
      %5031 = dma.done [#allocation4], 128
    $region73: #{tpu_custom_call.1} parent=1 // pred_fallthru
      _
    %5032 = vsyncpa [#allocation3], 1
    %5033 = vsyncpa [#allocation6], 1
    %5034 = vsyncpa [#allocation9], 1
    %5035 = vsyncpa [#allocation12], 1
    %5036 = vsyncpa [#allocation15], 1
    %5037 = vsyncpa [#allocation4], 1

// kernel: tpu_custom_call.1
$region0: #{tpu_custom_call.1}
  #allocation0 [shape = 'u32[]', space=smem, size = 0x4, offset = 0x4, fixed_abs, tag = 'smem constant byte address 0x4 - core index']
  #allocation1 [shape = 'u32[144,128]{1,0:T(1,128)}', space=vmem, size = 0x12000, scoped, tag = 'internal scratch']
  %s0 = inlined_call_operand.hbm [shape: bf16[8,768], index: 0, kind: input, shape index: {}]
  %s1 = inlined_call_operand.hbm [shape: bf16[768,1024], index: 1, kind: input, shape index: {}]
  %s2 = inlined_call_operand.hbm [shape: bf16[512,256], index: 2, kind: input, shape index: {}]
  %s3 = inlined_call_operand.hbm [shape: bf16[256,256], index: 3, kind: input, shape index: {}]
  %s4 = inlined_call_operand.hbm [shape: bf16[512,256], index: 4, kind: input, shape index: {}]
  %s5 = inlined_call_operand.hbm [shape: bf16[256,128], index: 5, kind: input, shape index: {}]
  %s6 = inlined_call_operand.hbm [shape: bf16[384,128], index: 6, kind: input, shape index: {}]
  %s7 = inlined_call_operand.hbm [shape: f32[24,512], index: 7, kind: input, shape index: {}]
  %s8 = inlined_call_operand.hbm [shape: f32[8,128], index: 8, kind: output, shape index: {}]
  %s9 = sld [smem:[#allocation0]]
  $region74: #{tpu_custom_call.1} parent=0
    _
  %s11 = ssub.s32 1, %s9
  %s12 = scalar_select 0, %s11, %s9
  $region1: #{tpu_custom_call.1} parent=0
    #allocation2 [shape = 'u8[12288]{0}', space=vmem, size = 0x3000, scoped, tag = 'input window, operand 0, single buffered']
    #allocation3 [shape = 's32[1]{0}', space=sflag, size = 0x4, scoped, tag = 'scoped memory for tpu_custom_call.1']
    #allocation4 [shape = 's32[1]{0}', space=sflag, size = 0x4, scoped, tag = 'scoped memory for tpu_custom_call.1']
    #allocation5 [shape = 'u8[1572864]{0}', space=vmem, size = 0x180000, scoped, tag = 'input window, operand 1, single buffered']
    #allocation6 [shape = 's32[1]{0}', space=sflag, size = 0x4, scoped, tag = 'scoped memory for tpu_custom_call.1']
    #allocation7 [shape = 'u8[262144]{0}', space=vmem, size = 0x40000, scoped, tag = 'input window, operand 2, single buffered']
    #allocation8 [shape = 'u8[131072]{0}', space=vmem, size = 0x20000, scoped, tag = 'input window, operand 3, single buffered']
    #allocation9 [shape = 's32[1]{0}', space=sflag, size = 0x4, scoped, tag = 'scoped memory for tpu_custom_call.1']
    #allocation10 [shape = 'u8[262144]{0}', space=vmem, size = 0x40000, scoped, tag = 'input window, operand 4, single buffered']
    #allocation11 [shape = 'u8[65536]{0}', space=vmem, size = 0x10000, scoped, tag = 'input window, operand 5, single buffered']
    #allocation12 [shape = 's32[1]{0}', space=sflag, size = 0x4, scoped, tag = 'scoped memory for tpu_custom_call.1']
    #allocation13 [shape = 'u8[98304]{0}', space=vmem, size = 0x18000, scoped, tag = 'input window, operand 6, single buffered']
    #allocation14 [shape = 'u8[49152]{0}', space=vmem, size = 0xc000, scoped, tag = 'input window, operand 7, single buffered']
    #allocation15 [shape = 's32[1]{0}', space=sflag, size = 0x4, scoped, tag = 'scoped memory for tpu_custom_call.1']
    #allocation16 [shape = 'u8[4096]{0}', space=vmem, size = 0x1000, scoped, tag = 'output window, operand 0, single buffered']
    %13 = vsyncpa [#allocation3], 0
    %14 = vsyncpa [#allocation6], 0
    %15 = vsyncpa [#allocation9], 0
    %16 = vsyncpa [#allocation12], 0
    %17 = vsyncpa [#allocation15], 0
    %18 = vsyncpa [#allocation4], 0
    // Predicated region
    $region2: #{tpu_custom_call.1} parent=1 // pred_check
      _
    $region3: #{tpu_custom_call.1} parent=1 // pred_check_branch
      %20 = sbr.rel (0) target = $region5
    $region4: #{tpu_custom_call.1} parent=1 // pred_region
      %s22 = ssub.s32 384, 384
      %23 = vsyncadd [#allocation3], %s22
      %s25 = sshll.u32 [#allocation2], 4
      %s26 = int_to_ptr.vmem [resolvable:$true] %s25
      %28 = dma.hbm_to_vmem [thread:$0]  %s0, 384, %s26, [#allocation3]
    $region5: #{tpu_custom_call.1} parent=1 // pred_fallthru
      _
    // Predicated region
    $region6: #{tpu_custom_call.1} parent=1 // pred_check
      _
    $region7: #{tpu_custom_call.1} parent=1 // pred_check_branch
      %30 = sbr.rel (0) target = $region9
    $region8: #{tpu_custom_call.1} parent=1 // pred_region
      %s32 = ssub.s32 49152, 49152
      %33 = vsyncadd [#allocation6], %s32
      %s34 = sshll.u32 [#allocation5], 4
      %s35 = int_to_ptr.vmem [resolvable:$true] %s34
      %40 = dma.hbm_to_vmem [thread:$0]  %s1, 49152, %s35, [#allocation6], 512, 512, 32
    $region9: #{tpu_custom_call.1} parent=1 // pred_fallthru
      _
    // Predicated region
    $region10: #{tpu_custom_call.1} parent=1 // pred_check
      _
    $region11: #{tpu_custom_call.1} parent=1 // pred_check_branch
      %42 = sbr.rel (0) target = $region13
    $region12: #{tpu_custom_call.1} parent=1 // pred_region
      %s44 = ssub.s32 8192, 8192
      %45 = vsyncadd [#allocation6], %s44
      %s46 = sshll.u32 [#allocation7], 4
      %s47 = int_to_ptr.vmem [resolvable:$true] %s46
      %52 = dma.hbm_to_vmem [thread:$0]  %s2, 8192, %s47, [#allocation6], 128, 128, 8
    $region13: #{tpu_custom_call.1} parent=1 // pred_fallthru
      _
    // Predicated region
    $region14: #{tpu_custom_call.1} parent=1 // pred_check
      _
    $region15: #{tpu_custom_call.1} parent=1 // pred_check_branch
      %54 = sbr.rel (0) target = $region17
    $region16: #{tpu_custom_call.1} parent=1 // pred_region
      %s56 = ssub.s32 4096, 4096
      %57 = vsyncadd [#allocation9], %s56
      %s58 = sshll.u32 [#allocation8], 4
      %s59 = int_to_ptr.vmem [resolvable:$true] %s58
      %64 = dma.hbm_to_vmem [thread:$0]  %s3, 4096, %s59, [#allocation9], 128, 128, 8
    $region17: #{tpu_custom_call.1} parent=1 // pred_fallthru
      _
    // Predicated region
    $region18: #{tpu_custom_call.1} parent=1 // pred_check
      _
    $region19: #{tpu_custom_call.1} parent=1 // pred_check_branch
      %66 = sbr.rel (0) target = $region21
    $region20: #{tpu_custom_call.1} parent=1 // pred_region
      %s68 = ssub.s32 8192, 8192
      %69 = vsyncadd [#allocation9], %s68
      %s70 = sshll.u32 [#allocation10], 4
      %s71 = int_to_ptr.vmem [resolvable:$true] %s70
      %76 = dma.hbm_to_vmem [thread:$0]  %s4, 8192, %s71, [#allocation9], 128, 128, 8
    $region21: #{tpu_custom_call.1} parent=1 // pred_fallthru
      _
    // Predicated region
    $region22: #{tpu_custom_call.1} parent=1 // pred_check
      _
    $region23: #{tpu_custom_call.1} parent=1 // pred_check_branch
      %78 = sbr.rel (0) target = $region25
    $region24: #{tpu_custom_call.1} parent=1 // pred_region
      %s80 = ssub.s32 2048, 2048
      %81 = vsyncadd [#allocation12], %s80
      %s82 = sshll.u32 [#allocation11], 4
      %s83 = int_to_ptr.vmem [resolvable:$true] %s82
      %88 = dma.hbm_to_vmem [thread:$0]  %s5, 2048, %s83, [#allocation12], 64, 64, 4
    $region25: #{tpu_custom_call.1} parent=1 // pred_fallthru
      _
    // Predicated region
    $region26: #{tpu_custom_call.1} parent=1 // pred_check
      _
    $region27: #{tpu_custom_call.1} parent=1 // pred_check_branch
      %90 = sbr.rel (0) target = $region29
    $region28: #{tpu_custom_call.1} parent=1 // pred_region
      %s92 = ssub.s32 3072, 3072
      %93 = vsyncadd [#allocation12], %s92
      %s94 = sshll.u32 [#allocation13], 4
      %s95 = int_to_ptr.vmem [resolvable:$true] %s94
      %100 = dma.hbm_to_vmem [thread:$0]  %s6, 3072, %s95, [#allocation12], 64, 64, 4
    $region29: #{tpu_custom_call.1} parent=1 // pred_fallthru
      _
    // Predicated region
    $region30: #{tpu_custom_call.1} parent=1 // pred_check
      _
    $region31: #{tpu_custom_call.1} parent=1 // pred_check_branch
      %102 = sbr.rel (0) target = $region33
    $region32: #{tpu_custom_call.1} parent=1 // pred_region
      %s104 = ssub.s32 1536, 1536
      %105 = vsyncadd [#allocation15], %s104
      %s106 = sshll.u32 [#allocation14], 4
      %s107 = int_to_ptr.vmem [resolvable:$true] %s106
      %112 = dma.hbm_to_vmem [thread:$0]  %s7, 1536, %s107, [#allocation15], 512, 512, 32
    $region33: #{tpu_custom_call.1} parent=1 // pred_fallthru
      _
    // Predicated region
    $region34: #{tpu_custom_call.1} parent=1 // pred_check
      _
    $region35: #{tpu_custom_call.1} parent=1 // pred_check_branch
      %114 = sbr.rel (0) target = $region37
    $region36: #{tpu_custom_call.1} parent=1 // pred_region
      %115 = dma.done [#allocation3], 384
    $region37: #{tpu_custom_call.1} parent=1 // pred_fallthru
      _
    // Predicated region
    $region38: #{tpu_custom_call.1} parent=1 // pred_check
      _
    $region39: #{tpu_custom_call.1} parent=1 // pred_check_branch
      %117 = sbr.rel (0) target = $region41
    $region40: #{tpu_custom_call.1} parent=1 // pred_region
      %118 = dma.done [#allocation6], 49152
    $region41: #{tpu_custom_call.1} parent=1 // pred_fallthru
      _
    // Predicated region
    $region42: #{tpu_custom_call.1} parent=1 // pred_check
      _
    $region43: #{tpu_custom_call.1} parent=1 // pred_check_branch
      %120 = sbr.rel (0) target = $region45
    $region44: #{tpu_custom_call.1} parent=1 // pred_region
      %121 = dma.done [#allocation6], 8192
    $region45: #{tpu_custom_call.1} parent=1 // pred_fallthru
      _
    // Predicated region
    $region46: #{tpu_custom_call.1} parent=1 // pred_check
      _
    $region47: #{tpu_custom_call.1} parent=1 // pred_check_branch
      %123 = sbr.rel (0) target = $region49
    $region48: #{tpu_custom_call.1} parent=1 // pred_region
      %124 = dma.done [#allocation9], 4096
    $region49: #{tpu_custom_call.1} parent=1 // pred_fallthru
      _
    // Predicated region
    $region50: #{tpu_custom_call.1} parent=1 // pred_check
      _
    $region51: #{tpu_custom_call.1} parent=1 // pred_check_branch
      %126 = sbr.rel (0) target = $region53
    $region52: #{tpu_custom_call.1} parent=1 // pred_region
      %127 = dma.done [#allocation9], 8192
    $region53: #{tpu_custom_call.1} parent=1 // pred_fallthru
      _
    // Predicated region
    $region54: #{tpu_custom_call.1} parent=1 // pred_check
      _
    $region55: #{tpu_custom_call.1} parent=1 // pred_check_branch
      %129 = sbr.rel (0) target = $region57
    $region56: #{tpu_custom_call.1} parent=1 // pred_region
      %130 = dma.done [#allocation12], 2048
    $region57: #{tpu_custom_call.1} parent=1 // pred_fallthru
      _
    // Predicated region
    $region58: #{tpu_custom_call.1} parent=1 // pred_check
      _
    $region59: #{tpu_custom_call.1} parent=1 // pred_check_branch
      %132 = sbr.rel (0) target = $region61
    $region60: #{tpu_custom_call.1} parent=1 // pred_region
      %133 = dma.done [#allocation12], 3072
    $region61: #{tpu_custom_call.1} parent=1 // pred_fallthru
      _
    // Predicated region
    $region62: #{tpu_custom_call.1} parent=1 // pred_check
      _
    $region63: #{tpu_custom_call.1} parent=1 // pred_check_branch
      %135 = sbr.rel (0) target = $region65
    $region64: #{tpu_custom_call.1} parent=1 // pred_region
      %136 = dma.done [#allocation15], 1536
    $region65: #{tpu_custom_call.1} parent=1 // pred_fallthru
      _
    %v138 = vld [vmem:[#allocation2] sm:$0xff]
    %v139 = vld [vmem:[#allocation2 + $0x8] sm:$0xff]
    %v140 = vld [vmem:[#allocation2 + $0x10] sm:$0xff]
    %v141 = vld [vmem:[#allocation5] sm:$0xff]
    %v142 = vld [vmem:[#allocation5 + $0x8] sm:$0xff]
    %v143 = vld [vmem:[#allocation5 + $0x10] sm:$0xff]
    %v144 = vld [vmem:[#allocation5 + $0x18] sm:$0xff]
    %v145 = vld [vmem:[#allocation5 + $0x20] sm:$0xff]
    %v146 = vld [vmem:[#allocation5 + $0x28] sm:$0xff]
    %v147 = vld [vmem:[#allocation5 + $0x30] sm:$0xff]
    %v148 = vld [vmem:[#allocation5 + $0x38] sm:$0xff]
    %v149 = vld [vmem:[#allocation5 + $0x40] sm:$0xff]
    %v150 = vld [vmem:[#allocation5 + $0x48] sm:$0xff]
    %v151 = vld [vmem:[#allocation5 + $0x50] sm:$0xff]
    %v152 = vld [vmem:[#allocation5 + $0x58] sm:$0xff]
    %v153 = vld [vmem:[#allocation5 + $0x60] sm:$0xff]
    %v154 = vld [vmem:[#allocation5 + $0x68] sm:$0xff]
    %v155 = vld [vmem:[#allocation5 + $0x70] sm:$0xff]
    %v156 = vld [vmem:[#allocation5 + $0x78] sm:$0xff]
    %v157 = vld [vmem:[#allocation5 + $0x80] sm:$0xff]
    %v158 = vld [vmem:[#allocation5 + $0x88] sm:$0xff]
    %v159 = vld [vmem:[#allocation5 + $0x90] sm:$0xff]
    %v160 = vld [vmem:[#allocation5 + $0x98] sm:$0xff]
    %v161 = vld [vmem:[#allocation5 + $0xa0] sm:$0xff]
    %v162 = vld [vmem:[#allocation5 + $0xa8] sm:$0xff]
    %v163 = vld [vmem:[#allocation5 + $0xb0] sm:$0xff]
    %v164 = vld [vmem:[#allocation5 + $0xb8] sm:$0xff]
    %v165 = vld [vmem:[#allocation5 + $0xc0] sm:$0xff]
    %v166 = vld [vmem:[#allocation5 + $0xc8] sm:$0xff]
    %v167 = vld [vmem:[#allocation5 + $0xd0] sm:$0xff]
    %v168 = vld [vmem:[#allocation5 + $0xd8] sm:$0xff]
    %v169 = vld [vmem:[#allocation5 + $0xe0] sm:$0xff]
    %v170 = vld [vmem:[#allocation5 + $0xe8] sm:$0xff]
    %v171 = vld [vmem:[#allocation5 + $0xf0] sm:$0xff]
    %v172 = vld [vmem:[#allocation5 + $0xf8] sm:$0xff]
    %v173 = vld [vmem:[#allocation5 + $0x100] sm:$0xff]
    %v174 = vld [vmem:[#allocation5 + $0x108] sm:$0xff]
    %v175 = vld [vmem:[#allocation5 + $0x110] sm:$0xff]
    %v176 = vld [vmem:[#allocation5 + $0x118] sm:$0xff]
    %v177 = vld [vmem:[#allocation5 + $0x120] sm:$0xff]
    %v178 = vld [vmem:[#allocation5 + $0x128] sm:$0xff]
    %v179 = vld [vmem:[#allocation5 + $0x130] sm:$0xff]
    %v180 = vld [vmem:[#allocation5 + $0x138] sm:$0xff]
    %v181 = vld [vmem:[#allocation5 + $0x140] sm:$0xff]
    %v182 = vld [vmem:[#allocation5 + $0x148] sm:$0xff]
    %v183 = vld [vmem:[#allocation5 + $0x150] sm:$0xff]
    %v184 = vld [vmem:[#allocation5 + $0x158] sm:$0xff]
    %v185 = vld [vmem:[#allocation5 + $0x160] sm:$0xff]
    %v186 = vld [vmem:[#allocation5 + $0x168] sm:$0xff]
    %v187 = vld [vmem:[#allocation5 + $0x170] sm:$0xff]
    %v188 = vld [vmem:[#allocation5 + $0x178] sm:$0xff]
    %v189 = vld [vmem:[#allocation5 + $0x180] sm:$0xff]
    %v190 = vld [vmem:[#allocation5 + $0x188] sm:$0xff]
    %v191 = vld [vmem:[#allocation5 + $0x190] sm:$0xff]
    %v192 = vld [vmem:[#allocation5 + $0x198] sm:$0xff]
    %v193 = vld [vmem:[#allocation5 + $0x1a0] sm:$0xff]
    %v194 = vld [vmem:[#allocation5 + $0x1a8] sm:$0xff]
    %v195 = vld [vmem:[#allocation5 + $0x1b0] sm:$0xff]
    %v196 = vld [vmem:[#allocation5 + $0x1b8] sm:$0xff]
    %v197 = vld [vmem:[#allocation5 + $0x1c0] sm:$0xff]
    %v198 = vld [vmem:[#allocation5 + $0x1c8] sm:$0xff]
    %v199 = vld [vmem:[#allocation5 + $0x1d0] sm:$0xff]
    %v200 = vld [vmem:[#allocation5 + $0x1d8] sm:$0xff]
    %v201 = vld [vmem:[#allocation5 + $0x1e0] sm:$0xff]
    %v202 = vld [vmem:[#allocation5 + $0x1e8] sm:$0xff]
    %v203 = vld [vmem:[#allocation5 + $0x1f0] sm:$0xff]
    %v204 = vld [vmem:[#allocation5 + $0x1f8] sm:$0xff]
    %v205 = vld [vmem:[#allocation5 + $0x200] sm:$0xff]
    %v206 = vld [vmem:[#allocation5 + $0x208] sm:$0xff]
    %v207 = vld [vmem:[#allocation5 + $0x210] sm:$0xff]
    %v208 = vld [vmem:[#allocation5 + $0x218] sm:$0xff]
    %v209 = vld [vmem:[#allocation5 + $0x220] sm:$0xff]
    %v210 = vld [vmem:[#allocation5 + $0x228] sm:$0xff]
    %v211 = vld [vmem:[#allocation5 + $0x230] sm:$0xff]
    %v212 = vld [vmem:[#allocation5 + $0x238] sm:$0xff]
    %v213 = vld [vmem:[#allocation5 + $0x240] sm:$0xff]
    %v214 = vld [vmem:[#allocation5 + $0x248] sm:$0xff]
    %v215 = vld [vmem:[#allocation5 + $0x250] sm:$0xff]
    %v216 = vld [vmem:[#allocation5 + $0x258] sm:$0xff]
    %v217 = vld [vmem:[#allocation5 + $0x260] sm:$0xff]
    %v218 = vld [vmem:[#allocation5 + $0x268] sm:$0xff]
    %v219 = vld [vmem:[#allocation5 + $0x270] sm:$0xff]
    %v220 = vld [vmem:[#allocation5 + $0x278] sm:$0xff]
    %v221 = vld [vmem:[#allocation5 + $0x280] sm:$0xff]
    %v222 = vld [vmem:[#allocation5 + $0x288] sm:$0xff]
    %v223 = vld [vmem:[#allocation5 + $0x290] sm:$0xff]
    %v224 = vld [vmem:[#allocation5 + $0x298] sm:$0xff]
    %v225 = vld [vmem:[#allocation5 + $0x2a0] sm:$0xff]
    %v226 = vld [vmem:[#allocation5 + $0x2a8] sm:$0xff]
    %v227 = vld [vmem:[#allocation5 + $0x2b0] sm:$0xff]
    %v228 = vld [vmem:[#allocation5 + $0x2b8] sm:$0xff]
    %v229 = vld [vmem:[#allocation5 + $0x2c0] sm:$0xff]
    %v230 = vld [vmem:[#allocation5 + $0x2c8] sm:$0xff]
    %v231 = vld [vmem:[#allocation5 + $0x2d0] sm:$0xff]
    %v232 = vld [vmem:[#allocation5 + $0x2d8] sm:$0xff]
    %v233 = vld [vmem:[#allocation5 + $0x2e0] sm:$0xff]
    %v234 = vld [vmem:[#allocation5 + $0x2e8] sm:$0xff]
    %v235 = vld [vmem:[#allocation5 + $0x2f0] sm:$0xff]
    %v236 = vld [vmem:[#allocation5 + $0x2f8] sm:$0xff]
    %v237 = vld [vmem:[#allocation5 + $0x300] sm:$0xff]
    %v238 = vld [vmem:[#allocation5 + $0x308] sm:$0xff]
    %v239 = vld [vmem:[#allocation5 + $0x310] sm:$0xff]
    %v240 = vld [vmem:[#allocation5 + $0x318] sm:$0xff]
    %v241 = vld [vmem:[#allocation5 + $0x320] sm:$0xff]
    %v242 = vld [vmem:[#allocation5 + $0x328] sm:$0xff]
    %v243 = vld [vmem:[#allocation5 + $0x330] sm:$0xff]
    %v244 = vld [vmem:[#allocation5 + $0x338] sm:$0xff]
    %v245 = vld [vmem:[#allocation5 + $0x340] sm:$0xff]
    %v246 = vld [vmem:[#allocation5 + $0x348] sm:$0xff]
    %v247 = vld [vmem:[#allocation5 + $0x350] sm:$0xff]
    %v248 = vld [vmem:[#allocation5 + $0x358] sm:$0xff]
    %v249 = vld [vmem:[#allocation5 + $0x360] sm:$0xff]
    %v250 = vld [vmem:[#allocation5 + $0x368] sm:$0xff]
    %v251 = vld [vmem:[#allocation5 + $0x370] sm:$0xff]
    %v252 = vld [vmem:[#allocation5 + $0x378] sm:$0xff]
    %v253 = vld [vmem:[#allocation5 + $0x380] sm:$0xff]
    %v254 = vld [vmem:[#allocation5 + $0x388] sm:$0xff]
    %v255 = vld [vmem:[#allocation5 + $0x390] sm:$0xff]
    %v256 = vld [vmem:[#allocation5 + $0x398] sm:$0xff]
    %v257 = vld [vmem:[#allocation5 + $0x3a0] sm:$0xff]
    %v258 = vld [vmem:[#allocation5 + $0x3a8] sm:$0xff]
    %v259 = vld [vmem:[#allocation5 + $0x3b0] sm:$0xff]
    %v260 = vld [vmem:[#allocation5 + $0x3b8] sm:$0xff]
    %v261 = vld [vmem:[#allocation5 + $0x3c0] sm:$0xff]
    %v262 = vld [vmem:[#allocation5 + $0x3c8] sm:$0xff]
    %v263 = vld [vmem:[#allocation5 + $0x3d0] sm:$0xff]
    %v264 = vld [vmem:[#allocation5 + $0x3d8] sm:$0xff]
    %v265 = vld [vmem:[#allocation5 + $0x3e0] sm:$0xff]
    %v266 = vld [vmem:[#allocation5 + $0x3e8] sm:$0xff]
    %v267 = vld [vmem:[#allocation5 + $0x3f0] sm:$0xff]
    %v268 = vld [vmem:[#allocation5 + $0x3f8] sm:$0xff]
    %v269 = vld [vmem:[#allocation5 + $0x400] sm:$0xff]
    %v270 = vld [vmem:[#allocation5 + $0x408] sm:$0xff]
    %v271 = vld [vmem:[#allocation5 + $0x410] sm:$0xff]
    %v272 = vld [vmem:[#allocation5 + $0x418] sm:$0xff]
    %v273 = vld [vmem:[#allocation5 + $0x420] sm:$0xff]
    %v274 = vld [vmem:[#allocation5 + $0x428] sm:$0xff]
    %v275 = vld [vmem:[#allocation5 + $0x430] sm:$0xff]
    %v276 = vld [vmem:[#allocation5 + $0x438] sm:$0xff]
    %v277 = vld [vmem:[#allocation5 + $0x440] sm:$0xff]
    %v278 = vld [vmem:[#allocation5 + $0x448] sm:$0xff]
    %v279 = vld [vmem:[#allocation5 + $0x450] sm:$0xff]
    %v280 = vld [vmem:[#allocation5 + $0x458] sm:$0xff]
    %v281 = vld [vmem:[#allocation5 + $0x460] sm:$0xff]
    %v282 = vld [vmem:[#allocation5 + $0x468] sm:$0xff]
    %v283 = vld [vmem:[#allocation5 + $0x470] sm:$0xff]
    %v284 = vld [vmem:[#allocation5 + $0x478] sm:$0xff]
    %v285 = vld [vmem:[#allocation5 + $0x480] sm:$0xff]
    %v286 = vld [vmem:[#allocation5 + $0x488] sm:$0xff]
    %v287 = vld [vmem:[#allocation5 + $0x490] sm:$0xff]
    %v288 = vld [vmem:[#allocation5 + $0x498] sm:$0xff]
    %v289 = vld [vmem:[#allocation5 + $0x4a0] sm:$0xff]
    %v290 = vld [vmem:[#allocation5 + $0x4a8] sm:$0xff]
    %v291 = vld [vmem:[#allocation5 + $0x4b0] sm:$0xff]
    %v292 = vld [vmem:[#allocation5 + $0x4b8] sm:$0xff]
    %v293 = vld [vmem:[#allocation5 + $0x4c0] sm:$0xff]
    %v294 = vld [vmem:[#allocation5 + $0x4c8] sm:$0xff]
    %v295 = vld [vmem:[#allocation5 + $0x4d0] sm:$0xff]
    %v296 = vld [vmem:[#allocation5 + $0x4d8] sm:$0xff]
    %v297 = vld [vmem:[#allocation5 + $0x4e0] sm:$0xff]
    %v298 = vld [vmem:[#allocation5 + $0x4e8] sm:$0xff]
    %v299 = vld [vmem:[#allocation5 + $0x4f0] sm:$0xff]
    %v300 = vld [vmem:[#allocation5 + $0x4f8] sm:$0xff]
    %v301 = vld [vmem:[#allocation5 + $0x500] sm:$0xff]
    %v302 = vld [vmem:[#allocation5 + $0x508] sm:$0xff]
    %v303 = vld [vmem:[#allocation5 + $0x510] sm:$0xff]
    %v304 = vld [vmem:[#allocation5 + $0x518] sm:$0xff]
    %v305 = vld [vmem:[#allocation5 + $0x520] sm:$0xff]
    %v306 = vld [vmem:[#allocation5 + $0x528] sm:$0xff]
    %v307 = vld [vmem:[#allocation5 + $0x530] sm:$0xff]
    %v308 = vld [vmem:[#allocation5 + $0x538] sm:$0xff]
    %v309 = vld [vmem:[#allocation5 + $0x540] sm:$0xff]
    %v310 = vld [vmem:[#allocation5 + $0x548] sm:$0xff]
    %v311 = vld [vmem:[#allocation5 + $0x550] sm:$0xff]
    %v312 = vld [vmem:[#allocation5 + $0x558] sm:$0xff]
    %v313 = vld [vmem:[#allocation5 + $0x560] sm:$0xff]
    %v314 = vld [vmem:[#allocation5 + $0x568] sm:$0xff]
    %v315 = vld [vmem:[#allocation5 + $0x570] sm:$0xff]
    %v316 = vld [vmem:[#allocation5 + $0x578] sm:$0xff]
    %v317 = vld [vmem:[#allocation5 + $0x580] sm:$0xff]
    %v318 = vld [vmem:[#allocation5 + $0x588] sm:$0xff]
    %v319 = vld [vmem:[#allocation5 + $0x590] sm:$0xff]
    %v320 = vld [vmem:[#allocation5 + $0x598] sm:$0xff]
    %v321 = vld [vmem:[#allocation5 + $0x5a0] sm:$0xff]
    %v322 = vld [vmem:[#allocation5 + $0x5a8] sm:$0xff]
    %v323 = vld [vmem:[#allocation5 + $0x5b0] sm:$0xff]
    %v324 = vld [vmem:[#allocation5 + $0x5b8] sm:$0xff]
    %v325 = vld [vmem:[#allocation5 + $0x5c0] sm:$0xff]
    %v326 = vld [vmem:[#allocation5 + $0x5c8] sm:$0xff]
    %v327 = vld [vmem:[#allocation5 + $0x5d0] sm:$0xff]
    %v328 = vld [vmem:[#allocation5 + $0x5d8] sm:$0xff]
    %v329 = vld [vmem:[#allocation5 + $0x5e0] sm:$0xff]
    %v330 = vld [vmem:[#allocation5 + $0x5e8] sm:$0xff]
    %v331 = vld [vmem:[#allocation5 + $0x5f0] sm:$0xff]
    %v332 = vld [vmem:[#allocation5 + $0x5f8] sm:$0xff]
    %v333 = vld [vmem:[#allocation5 + $0x600] sm:$0xff]
    %v334 = vld [vmem:[#allocation5 + $0x608] sm:$0xff]
    %v335 = vld [vmem:[#allocation5 + $0x610] sm:$0xff]
    %v336 = vld [vmem:[#allocation5 + $0x618] sm:$0xff]
    %v337 = vld [vmem:[#allocation5 + $0x620] sm:$0xff]
    %v338 = vld [vmem:[#allocation5 + $0x628] sm:$0xff]
    %v339 = vld [vmem:[#allocation5 + $0x630] sm:$0xff]
    %v340 = vld [vmem:[#allocation5 + $0x638] sm:$0xff]
    %v341 = vld [vmem:[#allocation5 + $0x640] sm:$0xff]
    %v342 = vld [vmem:[#allocation5 + $0x648] sm:$0xff]
    %v343 = vld [vmem:[#allocation5 + $0x650] sm:$0xff]
    %v344 = vld [vmem:[#allocation5 + $0x658] sm:$0xff]
    %v345 = vld [vmem:[#allocation5 + $0x660] sm:$0xff]
    %v346 = vld [vmem:[#allocation5 + $0x668] sm:$0xff]
    %v347 = vld [vmem:[#allocation5 + $0x670] sm:$0xff]
    %v348 = vld [vmem:[#allocation5 + $0x678] sm:$0xff]
    %v349 = vld [vmem:[#allocation5 + $0x680] sm:$0xff]
    %v350 = vld [vmem:[#allocation5 + $0x688] sm:$0xff]
    %v351 = vld [vmem:[#allocation5 + $0x690] sm:$0xff]
    %v352 = vld [vmem:[#allocation5 + $0x698] sm:$0xff]
    %v353 = vld [vmem:[#allocation5 + $0x6a0] sm:$0xff]
    %v354 = vld [vmem:[#allocation5 + $0x6a8] sm:$0xff]
    %v355 = vld [vmem:[#allocation5 + $0x6b0] sm:$0xff]
    %v356 = vld [vmem:[#allocation5 + $0x6b8] sm:$0xff]
    %v357 = vld [vmem:[#allocation5 + $0x6c0] sm:$0xff]
    %v358 = vld [vmem:[#allocation5 + $0x6c8] sm:$0xff]
    %v359 = vld [vmem:[#allocation5 + $0x6d0] sm:$0xff]
    %v360 = vld [vmem:[#allocation5 + $0x6d8] sm:$0xff]
    %v361 = vld [vmem:[#allocation5 + $0x6e0] sm:$0xff]
    %v362 = vld [vmem:[#allocation5 + $0x6e8] sm:$0xff]
    %v363 = vld [vmem:[#allocation5 + $0x6f0] sm:$0xff]
    %v364 = vld [vmem:[#allocation5 + $0x6f8] sm:$0xff]
    %v365 = vld [vmem:[#allocation5 + $0x700] sm:$0xff]
    %v366 = vld [vmem:[#allocation5 + $0x708] sm:$0xff]
    %v367 = vld [vmem:[#allocation5 + $0x710] sm:$0xff]
    %v368 = vld [vmem:[#allocation5 + $0x718] sm:$0xff]
    %v369 = vld [vmem:[#allocation5 + $0x720] sm:$0xff]
    %v370 = vld [vmem:[#allocation5 + $0x728] sm:$0xff]
    %v371 = vld [vmem:[#allocation5 + $0x730] sm:$0xff]
    %v372 = vld [vmem:[#allocation5 + $0x738] sm:$0xff]
    %v373 = vld [vmem:[#allocation5 + $0x740] sm:$0xff]
    %v374 = vld [vmem:[#allocation5 + $0x748] sm:$0xff]
    %v375 = vld [vmem:[#allocation5 + $0x750] sm:$0xff]
    %v376 = vld [vmem:[#allocation5 + $0x758] sm:$0xff]
    %v377 = vld [vmem:[#allocation5 + $0x760] sm:$0xff]
    %v378 = vld [vmem:[#allocation5 + $0x768] sm:$0xff]
    %v379 = vld [vmem:[#allocation5 + $0x770] sm:$0xff]
    %v380 = vld [vmem:[#allocation5 + $0x778] sm:$0xff]
    %v381 = vld [vmem:[#allocation5 + $0x780] sm:$0xff]
    %v382 = vld [vmem:[#allocation5 + $0x788] sm:$0xff]
    %v383 = vld [vmem:[#allocation5 + $0x790] sm:$0xff]
    %v384 = vld [vmem:[#allocation5 + $0x798] sm:$0xff]
    %v385 = vld [vmem:[#allocation5 + $0x7a0] sm:$0xff]
    %v386 = vld [vmem:[#allocation5 + $0x7a8] sm:$0xff]
    %v387 = vld [vmem:[#allocation5 + $0x7b0] sm:$0xff]
    %v388 = vld [vmem:[#allocation5 + $0x7b8] sm:$0xff]
    %v389 = vld [vmem:[#allocation5 + $0x7c0] sm:$0xff]
    %v390 = vld [vmem:[#allocation5 + $0x7c8] sm:$0xff]
    %v391 = vld [vmem:[#allocation5 + $0x7d0] sm:$0xff]
    %v392 = vld [vmem:[#allocation5 + $0x7d8] sm:$0xff]
    %v393 = vld [vmem:[#allocation5 + $0x7e0] sm:$0xff]
    %v394 = vld [vmem:[#allocation5 + $0x7e8] sm:$0xff]
    %v395 = vld [vmem:[#allocation5 + $0x7f0] sm:$0xff]
    %v396 = vld [vmem:[#allocation5 + $0x7f8] sm:$0xff]
    %v397 = vld [vmem:[#allocation5 + $0x800] sm:$0xff]
    %v398 = vld [vmem:[#allocation5 + $0x808] sm:$0xff]
    %v399 = vld [vmem:[#allocation5 + $0x810] sm:$0xff]
    %v400 = vld [vmem:[#allocation5 + $0x818] sm:$0xff]
    %v401 = vld [vmem:[#allocation5 + $0x820] sm:$0xff]
    %v402 = vld [vmem:[#allocation5 + $0x828] sm:$0xff]
    %v403 = vld [vmem:[#allocation5 + $0x830] sm:$0xff]
    %v404 = vld [vmem:[#allocation5 + $0x838] sm:$0xff]
    %v405 = vld [vmem:[#allocation5 + $0x840] sm:$0xff]
    %v406 = vld [vmem:[#allocation5 + $0x848] sm:$0xff]
    %v407 = vld [vmem:[#allocation5 + $0x850] sm:$0xff]
    %v408 = vld [vmem:[#allocation5 + $0x858] sm:$0xff]
    %v409 = vld [vmem:[#allocation5 + $0x860] sm:$0xff]
    %v410 = vld [vmem:[#allocation5 + $0x868] sm:$0xff]
    %v411 = vld [vmem:[#allocation5 + $0x870] sm:$0xff]
    %v412 = vld [vmem:[#allocation5 + $0x878] sm:$0xff]
    %v413 = vld [vmem:[#allocation5 + $0x880] sm:$0xff]
    %v414 = vld [vmem:[#allocation5 + $0x888] sm:$0xff]
    %v415 = vld [vmem:[#allocation5 + $0x890] sm:$0xff]
    %v416 = vld [vmem:[#allocation5 + $0x898] sm:$0xff]
    %v417 = vld [vmem:[#allocation5 + $0x8a0] sm:$0xff]
    %v418 = vld [vmem:[#allocation5 + $0x8a8] sm:$0xff]
    %v419 = vld [vmem:[#allocation5 + $0x8b0] sm:$0xff]
    %v420 = vld [vmem:[#allocation5 + $0x8b8] sm:$0xff]
    %v421 = vld [vmem:[#allocation5 + $0x8c0] sm:$0xff]
    %v422 = vld [vmem:[#allocation5 + $0x8c8] sm:$0xff]
    %v423 = vld [vmem:[#allocation5 + $0x8d0] sm:$0xff]
    %v424 = vld [vmem:[#allocation5 + $0x8d8] sm:$0xff]
    %v425 = vld [vmem:[#allocation5 + $0x8e0] sm:$0xff]
    %v426 = vld [vmem:[#allocation5 + $0x8e8] sm:$0xff]
    %v427 = vld [vmem:[#allocation5 + $0x8f0] sm:$0xff]
    %v428 = vld [vmem:[#allocation5 + $0x8f8] sm:$0xff]
    %v429 = vld [vmem:[#allocation5 + $0x900] sm:$0xff]
    %v430 = vld [vmem:[#allocation5 + $0x908] sm:$0xff]
    %v431 = vld [vmem:[#allocation5 + $0x910] sm:$0xff]
    %v432 = vld [vmem:[#allocation5 + $0x918] sm:$0xff]
    %v433 = vld [vmem:[#allocation5 + $0x920] sm:$0xff]
    %v434 = vld [vmem:[#allocation5 + $0x928] sm:$0xff]
    %v435 = vld [vmem:[#allocation5 + $0x930] sm:$0xff]
    %v436 = vld [vmem:[#allocation5 + $0x938] sm:$0xff]
    %v437 = vld [vmem:[#allocation5 + $0x940] sm:$0xff]
    %v438 = vld [vmem:[#allocation5 + $0x948] sm:$0xff]
    %v439 = vld [vmem:[#allocation5 + $0x950] sm:$0xff]
    %v440 = vld [vmem:[#allocation5 + $0x958] sm:$0xff]
    %v441 = vld [vmem:[#allocation5 + $0x960] sm:$0xff]
    %v442 = vld [vmem:[#allocation5 + $0x968] sm:$0xff]
    %v443 = vld [vmem:[#allocation5 + $0x970] sm:$0xff]
    %v444 = vld [vmem:[#allocation5 + $0x978] sm:$0xff]
    %v445 = vld [vmem:[#allocation5 + $0x980] sm:$0xff]
    %v446 = vld [vmem:[#allocation5 + $0x988] sm:$0xff]
    %v447 = vld [vmem:[#allocation5 + $0x990] sm:$0xff]
    %v448 = vld [vmem:[#allocation5 + $0x998] sm:$0xff]
    %v449 = vld [vmem:[#allocation5 + $0x9a0] sm:$0xff]
    %v450 = vld [vmem:[#allocation5 + $0x9a8] sm:$0xff]
    %v451 = vld [vmem:[#allocation5 + $0x9b0] sm:$0xff]
    %v452 = vld [vmem:[#allocation5 + $0x9b8] sm:$0xff]
    %v453 = vld [vmem:[#allocation5 + $0x9c0] sm:$0xff]
    %v454 = vld [vmem:[#allocation5 + $0x9c8] sm:$0xff]
    %v455 = vld [vmem:[#allocation5 + $0x9d0] sm:$0xff]
    %v456 = vld [vmem:[#allocation5 + $0x9d8] sm:$0xff]
    %v457 = vld [vmem:[#allocation5 + $0x9e0] sm:$0xff]
    %v458 = vld [vmem:[#allocation5 + $0x9e8] sm:$0xff]
    %v459 = vld [vmem:[#allocation5 + $0x9f0] sm:$0xff]
    %v460 = vld [vmem:[#allocation5 + $0x9f8] sm:$0xff]
    %v461 = vld [vmem:[#allocation5 + $0xa00] sm:$0xff]
    %v462 = vld [vmem:[#allocation5 + $0xa08] sm:$0xff]
    %v463 = vld [vmem:[#allocation5 + $0xa10] sm:$0xff]
    %v464 = vld [vmem:[#allocation5 + $0xa18] sm:$0xff]
    %v465 = vld [vmem:[#allocation5 + $0xa20] sm:$0xff]
    %v466 = vld [vmem:[#allocation5 + $0xa28] sm:$0xff]
    %v467 = vld [vmem:[#allocation5 + $0xa30] sm:$0xff]
    %v468 = vld [vmem:[#allocation5 + $0xa38] sm:$0xff]
    %v469 = vld [vmem:[#allocation5 + $0xa40] sm:$0xff]
    %v470 = vld [vmem:[#allocation5 + $0xa48] sm:$0xff]
    %v471 = vld [vmem:[#allocation5 + $0xa50] sm:$0xff]
    %v472 = vld [vmem:[#allocation5 + $0xa58] sm:$0xff]
    %v473 = vld [vmem:[#allocation5 + $0xa60] sm:$0xff]
    %v474 = vld [vmem:[#allocation5 + $0xa68] sm:$0xff]
    %v475 = vld [vmem:[#allocation5 + $0xa70] sm:$0xff]
    %v476 = vld [vmem:[#allocation5 + $0xa78] sm:$0xff]
    %v477 = vld [vmem:[#allocation5 + $0xa80] sm:$0xff]
    %v478 = vld [vmem:[#allocation5 + $0xa88] sm:$0xff]
    %v479 = vld [vmem:[#allocation5 + $0xa90] sm:$0xff]
    %v480 = vld [vmem:[#allocation5 + $0xa98] sm:$0xff]
    %v481 = vld [vmem:[#allocation5 + $0xaa0] sm:$0xff]
    %v482 = vld [vmem:[#allocation5 + $0xaa8] sm:$0xff]
    %v483 = vld [vmem:[#allocation5 + $0xab0] sm:$0xff]
    %v484 = vld [vmem:[#allocation5 + $0xab8] sm:$0xff]
    %v485 = vld [vmem:[#allocation5 + $0xac0] sm:$0xff]
    %v486 = vld [vmem:[#allocation5 + $0xac8] sm:$0xff]
    %v487 = vld [vmem:[#allocation5 + $0xad0] sm:$0xff]
    %v488 = vld [vmem:[#allocation5 + $0xad8] sm:$0xff]
    %v489 = vld [vmem:[#allocation5 + $0xae0] sm:$0xff]
    %v490 = vld [vmem:[#allocation5 + $0xae8] sm:$0xff]
    %v491 = vld [vmem:[#allocation5 + $0xaf0] sm:$0xff]
    %v492 = vld [vmem:[#allocation5 + $0xaf8] sm:$0xff]
    %v493 = vld [vmem:[#allocation5 + $0xb00] sm:$0xff]
    %v494 = vld [vmem:[#allocation5 + $0xb08] sm:$0xff]
    %v495 = vld [vmem:[#allocation5 + $0xb10] sm:$0xff]
    %v496 = vld [vmem:[#allocation5 + $0xb18] sm:$0xff]
    %v497 = vld [vmem:[#allocation5 + $0xb20] sm:$0xff]
    %v498 = vld [vmem:[#allocation5 + $0xb28] sm:$0xff]
    %v499 = vld [vmem:[#allocation5 + $0xb30] sm:$0xff]
    %v500 = vld [vmem:[#allocation5 + $0xb38] sm:$0xff]
    %v501 = vld [vmem:[#allocation5 + $0xb40] sm:$0xff]
    %v502 = vld [vmem:[#allocation5 + $0xb48] sm:$0xff]
    %v503 = vld [vmem:[#allocation5 + $0xb50] sm:$0xff]
    %v504 = vld [vmem:[#allocation5 + $0xb58] sm:$0xff]
    %v505 = vld [vmem:[#allocation5 + $0xb60] sm:$0xff]
    %v506 = vld [vmem:[#allocation5 + $0xb68] sm:$0xff]
    %v507 = vld [vmem:[#allocation5 + $0xb70] sm:$0xff]
    %v508 = vld [vmem:[#allocation5 + $0xb78] sm:$0xff]
    %v509 = vld [vmem:[#allocation5 + $0xb80] sm:$0xff]
    %v510 = vld [vmem:[#allocation5 + $0xb88] sm:$0xff]
    %v511 = vld [vmem:[#allocation5 + $0xb90] sm:$0xff]
    %v512 = vld [vmem:[#allocation5 + $0xb98] sm:$0xff]
    %v513 = vld [vmem:[#allocation5 + $0xba0] sm:$0xff]
    %v514 = vld [vmem:[#allocation5 + $0xba8] sm:$0xff]
    %v515 = vld [vmem:[#allocation5 + $0xbb0] sm:$0xff]
    %v516 = vld [vmem:[#allocation5 + $0xbb8] sm:$0xff]
    %v517 = vld [vmem:[#allocation5 + $0xbc0] sm:$0xff]
    %v518 = vld [vmem:[#allocation5 + $0xbc8] sm:$0xff]
    %v519 = vld [vmem:[#allocation5 + $0xbd0] sm:$0xff]
    %v520 = vld [vmem:[#allocation5 + $0xbd8] sm:$0xff]
    %v521 = vld [vmem:[#allocation5 + $0xbe0] sm:$0xff]
    %v522 = vld [vmem:[#allocation5 + $0xbe8] sm:$0xff]
    %v523 = vld [vmem:[#allocation5 + $0xbf0] sm:$0xff]
    %v524 = vld [vmem:[#allocation5 + $0xbf8] sm:$0xff]
    %v528 = vunpack.c.l.b16 %v138
    %v529 = vunpack.c.h.b16 %v138
    %v530 = vunpack.c.l.b16 %v139
    %v531 = vunpack.c.h.b16 %v139
    %v532 = vunpack.c.l.b16 %v140
    %v533 = vunpack.c.h.b16 %v140
    %v534 = vpack.c.b16 %v528, %v528
    %v535 = vpack.c.b16 %v529, %v529
    %v536 = vpack.c.b16 %v530, %v530
    %v537 = vpack.c.b16 %v531, %v531
    %v538 = vpack.c.b16 %v532, %v532
    %v539 = vpack.c.b16 %v533, %v533
    %v930 = vunpack.c.l.b16 %v141
    %v931 = vunpack.c.h.b16 %v141
    %v932 = vunpack.c.l.b16 %v142
    %v933 = vunpack.c.h.b16 %v142
    %v934 = vunpack.c.l.b16 %v143
    %v935 = vunpack.c.h.b16 %v143
    %v936 = vunpack.c.l.b16 %v144
    %v937 = vunpack.c.h.b16 %v144
    %v938 = vunpack.c.l.b16 %v145
    %v939 = vunpack.c.h.b16 %v145
    %v940 = vunpack.c.l.b16 %v146
    %v941 = vunpack.c.h.b16 %v146
    %v942 = vunpack.c.l.b16 %v147
    %v943 = vunpack.c.h.b16 %v147
    %v944 = vunpack.c.l.b16 %v148
    %v945 = vunpack.c.h.b16 %v148
    %v946 = vunpack.c.l.b16 %v149
    %v947 = vunpack.c.h.b16 %v149
    %v948 = vunpack.c.l.b16 %v150
    %v949 = vunpack.c.h.b16 %v150
    %v950 = vunpack.c.l.b16 %v151
    %v951 = vunpack.c.h.b16 %v151
    %v952 = vunpack.c.l.b16 %v152
    %v953 = vunpack.c.h.b16 %v152
    %v954 = vunpack.c.l.b16 %v153
    %v955 = vunpack.c.h.b16 %v153
    %v956 = vunpack.c.l.b16 %v154
    %v957 = vunpack.c.h.b16 %v154
    %v958 = vunpack.c.l.b16 %v155
    %v959 = vunpack.c.h.b16 %v155
    %v960 = vunpack.c.l.b16 %v156
    %v961 = vunpack.c.h.b16 %v156
    %v962 = vunpack.c.l.b16 %v157
    %v963 = vunpack.c.h.b16 %v157
    %v964 = vunpack.c.l.b16 %v158
    %v965 = vunpack.c.h.b16 %v158
    %v966 = vunpack.c.l.b16 %v159
    %v967 = vunpack.c.h.b16 %v159
    %v968 = vunpack.c.l.b16 %v160
    %v969 = vunpack.c.h.b16 %v160
    %v970 = vunpack.c.l.b16 %v161
    %v971 = vunpack.c.h.b16 %v161
    %v972 = vunpack.c.l.b16 %v162
    %v973 = vunpack.c.h.b16 %v162
    %v974 = vunpack.c.l.b16 %v163
    %v975 = vunpack.c.h.b16 %v163
    %v976 = vunpack.c.l.b16 %v164
    %v977 = vunpack.c.h.b16 %v164
    %v978 = vunpack.c.l.b16 %v165
    %v979 = vunpack.c.h.b16 %v165
    %v980 = vunpack.c.l.b16 %v166
    %v981 = vunpack.c.h.b16 %v166
    %v982 = vunpack.c.l.b16 %v167
    %v983 = vunpack.c.h.b16 %v167
    %v984 = vunpack.c.l.b16 %v168
    %v985 = vunpack.c.h.b16 %v168
    %v986 = vunpack.c.l.b16 %v169
    %v987 = vunpack.c.h.b16 %v169
    %v988 = vunpack.c.l.b16 %v170
    %v989 = vunpack.c.h.b16 %v170
    %v990 = vunpack.c.l.b16 %v171
    %v991 = vunpack.c.h.b16 %v171
    %v992 = vunpack.c.l.b16 %v172
    %v993 = vunpack.c.h.b16 %v172
    %v994 = vunpack.c.l.b16 %v173
    %v995 = vunpack.c.h.b16 %v173
    %v996 = vunpack.c.l.b16 %v174
    %v997 = vunpack.c.h.b16 %v174
    %v998 = vunpack.c.l.b16 %v175
    %v999 = vunpack.c.h.b16 %v175
    %v1000 = vunpack.c.l.b16 %v176
    %v1001 = vunpack.c.h.b16 %v176
    %v1002 = vunpack.c.l.b16 %v177
    %v1003 = vunpack.c.h.b16 %v177
    %v1004 = vunpack.c.l.b16 %v178
    %v1005 = vunpack.c.h.b16 %v178
    %v1006 = vunpack.c.l.b16 %v179
    %v1007 = vunpack.c.h.b16 %v179
    %v1008 = vunpack.c.l.b16 %v180
    %v1009 = vunpack.c.h.b16 %v180
    %v1010 = vunpack.c.l.b16 %v181
    %v1011 = vunpack.c.h.b16 %v181
    %v1012 = vunpack.c.l.b16 %v182
    %v1013 = vunpack.c.h.b16 %v182
    %v1014 = vunpack.c.l.b16 %v183
    %v1015 = vunpack.c.h.b16 %v183
    %v1016 = vunpack.c.l.b16 %v184
    %v1017 = vunpack.c.h.b16 %v184
    %v1018 = vunpack.c.l.b16 %v185
    %v1019 = vunpack.c.h.b16 %v185
    %v1020 = vunpack.c.l.b16 %v186
    %v1021 = vunpack.c.h.b16 %v186
    %v1022 = vunpack.c.l.b16 %v187
    %v1023 = vunpack.c.h.b16 %v187
    %v1024 = vunpack.c.l.b16 %v188
    %v1025 = vunpack.c.h.b16 %v188
    %v1026 = vunpack.c.l.b16 %v189
    %v1027 = vunpack.c.h.b16 %v189
    %v1028 = vunpack.c.l.b16 %v190
    %v1029 = vunpack.c.h.b16 %v190
    %v1030 = vunpack.c.l.b16 %v191
    %v1031 = vunpack.c.h.b16 %v191
    %v1032 = vunpack.c.l.b16 %v192
    %v1033 = vunpack.c.h.b16 %v192
    %v1034 = vunpack.c.l.b16 %v193
    %v1035 = vunpack.c.h.b16 %v193
    %v1036 = vunpack.c.l.b16 %v194
    %v1037 = vunpack.c.h.b16 %v194
    %v1038 = vunpack.c.l.b16 %v195
    %v1039 = vunpack.c.h.b16 %v195
    %v1040 = vunpack.c.l.b16 %v196
    %v1041 = vunpack.c.h.b16 %v196
    %v1042 = vunpack.c.l.b16 %v197
    %v1043 = vunpack.c.h.b16 %v197
    %v1044 = vunpack.c.l.b16 %v198
    %v1045 = vunpack.c.h.b16 %v198
    %v1046 = vunpack.c.l.b16 %v199
    %v1047 = vunpack.c.h.b16 %v199
    %v1048 = vunpack.c.l.b16 %v200
    %v1049 = vunpack.c.h.b16 %v200
    %v1050 = vunpack.c.l.b16 %v201
    %v1051 = vunpack.c.h.b16 %v201
    %v1052 = vunpack.c.l.b16 %v202
    %v1053 = vunpack.c.h.b16 %v202
    %v1054 = vunpack.c.l.b16 %v203
    %v1055 = vunpack.c.h.b16 %v203
    %v1056 = vunpack.c.l.b16 %v204
    %v1057 = vunpack.c.h.b16 %v204
    %v1058 = vunpack.c.l.b16 %v205
    %v1059 = vunpack.c.h.b16 %v205
    %v1060 = vunpack.c.l.b16 %v206
    %v1061 = vunpack.c.h.b16 %v206
    %v1062 = vunpack.c.l.b16 %v207
    %v1063 = vunpack.c.h.b16 %v207
    %v1064 = vunpack.c.l.b16 %v208
    %v1065 = vunpack.c.h.b16 %v208
    %v1066 = vunpack.c.l.b16 %v209
    %v1067 = vunpack.c.h.b16 %v209
    %v1068 = vunpack.c.l.b16 %v210
    %v1069 = vunpack.c.h.b16 %v210
    %v1070 = vunpack.c.l.b16 %v211
    %v1071 = vunpack.c.h.b16 %v211
    %v1072 = vunpack.c.l.b16 %v212
    %v1073 = vunpack.c.h.b16 %v212
    %v1074 = vunpack.c.l.b16 %v213
    %v1075 = vunpack.c.h.b16 %v213
    %v1076 = vunpack.c.l.b16 %v214
    %v1077 = vunpack.c.h.b16 %v214
    %v1078 = vunpack.c.l.b16 %v215
    %v1079 = vunpack.c.h.b16 %v215
    %v1080 = vunpack.c.l.b16 %v216
    %v1081 = vunpack.c.h.b16 %v216
    %v1082 = vunpack.c.l.b16 %v217
    %v1083 = vunpack.c.h.b16 %v217
    %v1084 = vunpack.c.l.b16 %v218
    %v1085 = vunpack.c.h.b16 %v218
    %v1086 = vunpack.c.l.b16 %v219
    %v1087 = vunpack.c.h.b16 %v219
    %v1088 = vunpack.c.l.b16 %v220
    %v1089 = vunpack.c.h.b16 %v220
    %v1090 = vunpack.c.l.b16 %v221
    %v1091 = vunpack.c.h.b16 %v221
    %v1092 = vunpack.c.l.b16 %v222
    %v1093 = vunpack.c.h.b16 %v222
    %v1094 = vunpack.c.l.b16 %v223
    %v1095 = vunpack.c.h.b16 %v223
    %v1096 = vunpack.c.l.b16 %v224
    %v1097 = vunpack.c.h.b16 %v224
    %v1098 = vunpack.c.l.b16 %v225
    %v1099 = vunpack.c.h.b16 %v225
    %v1100 = vunpack.c.l.b16 %v226
    %v1101 = vunpack.c.h.b16 %v226
    %v1102 = vunpack.c.l.b16 %v227
    %v1103 = vunpack.c.h.b16 %v227
    %v1104 = vunpack.c.l.b16 %v228
    %v1105 = vunpack.c.h.b16 %v228
    %v1106 = vunpack.c.l.b16 %v229
    %v1107 = vunpack.c.h.b16 %v229
    %v1108 = vunpack.c.l.b16 %v230
    %v1109 = vunpack.c.h.b16 %v230
    %v1110 = vunpack.c.l.b16 %v231
    %v1111 = vunpack.c.h.b16 %v231
    %v1112 = vunpack.c.l.b16 %v232
    %v1113 = vunpack.c.h.b16 %v232
    %v1114 = vunpack.c.l.b16 %v233
    %v1115 = vunpack.c.h.b16 %v233
    %v1116 = vunpack.c.l.b16 %v234
    %v1117 = vunpack.c.h.b16 %v234
    %v1118 = vunpack.c.l.b16 %v235
    %v1119 = vunpack.c.h.b16 %v235
    %v1120 = vunpack.c.l.b16 %v236
    %v1121 = vunpack.c.h.b16 %v236
    %v1122 = vunpack.c.l.b16 %v237
    %v1123 = vunpack.c.h.b16 %v237
    %v1124 = vunpack.c.l.b16 %v238
    %v1125 = vunpack.c.h.b16 %v238
    %v1126 = vunpack.c.l.b16 %v239
    %v1127 = vunpack.c.h.b16 %v239
    %v1128 = vunpack.c.l.b16 %v240
    %v1129 = vunpack.c.h.b16 %v240
    %v1130 = vunpack.c.l.b16 %v241
    %v1131 = vunpack.c.h.b16 %v241
    %v1132 = vunpack.c.l.b16 %v242
    %v1133 = vunpack.c.h.b16 %v242
    %v1134 = vunpack.c.l.b16 %v243
    %v1135 = vunpack.c.h.b16 %v243
    %v1136 = vunpack.c.l.b16 %v244
    %v1137 = vunpack.c.h.b16 %v244
    %v1138 = vunpack.c.l.b16 %v245
    %v1139 = vunpack.c.h.b16 %v245
    %v1140 = vunpack.c.l.b16 %v246
    %v1141 = vunpack.c.h.b16 %v246
    %v1142 = vunpack.c.l.b16 %v247
    %v1143 = vunpack.c.h.b16 %v247
    %v1144 = vunpack.c.l.b16 %v248
    %v1145 = vunpack.c.h.b16 %v248
    %v1146 = vunpack.c.l.b16 %v249
    %v1147 = vunpack.c.h.b16 %v249
    %v1148 = vunpack.c.l.b16 %v250
    %v1149 = vunpack.c.h.b16 %v250
    %v1150 = vunpack.c.l.b16 %v251
    %v1151 = vunpack.c.h.b16 %v251
    %v1152 = vunpack.c.l.b16 %v252
    %v1153 = vunpack.c.h.b16 %v252
    %v1154 = vunpack.c.l.b16 %v253
    %v1155 = vunpack.c.h.b16 %v253
    %v1156 = vunpack.c.l.b16 %v254
    %v1157 = vunpack.c.h.b16 %v254
    %v1158 = vunpack.c.l.b16 %v255
    %v1159 = vunpack.c.h.b16 %v255
    %v1160 = vunpack.c.l.b16 %v256
    %v1161 = vunpack.c.h.b16 %v256
    %v1162 = vunpack.c.l.b16 %v257
    %v1163 = vunpack.c.h.b16 %v257
    %v1164 = vunpack.c.l.b16 %v258
    %v1165 = vunpack.c.h.b16 %v258
    %v1166 = vunpack.c.l.b16 %v259
    %v1167 = vunpack.c.h.b16 %v259
    %v1168 = vunpack.c.l.b16 %v260
    %v1169 = vunpack.c.h.b16 %v260
    %v1170 = vunpack.c.l.b16 %v261
    %v1171 = vunpack.c.h.b16 %v261
    %v1172 = vunpack.c.l.b16 %v262
    %v1173 = vunpack.c.h.b16 %v262
    %v1174 = vunpack.c.l.b16 %v263
    %v1175 = vunpack.c.h.b16 %v263
    %v1176 = vunpack.c.l.b16 %v264
    %v1177 = vunpack.c.h.b16 %v264
    %v1178 = vunpack.c.l.b16 %v265
    %v1179 = vunpack.c.h.b16 %v265
    %v1180 = vunpack.c.l.b16 %v266
    %v1181 = vunpack.c.h.b16 %v266
    %v1182 = vunpack.c.l.b16 %v267
    %v1183 = vunpack.c.h.b16 %v267
    %v1184 = vunpack.c.l.b16 %v268
    %v1185 = vunpack.c.h.b16 %v268
    %v1186 = vunpack.c.l.b16 %v269
    %v1187 = vunpack.c.h.b16 %v269
    %v1188 = vunpack.c.l.b16 %v270
    %v1189 = vunpack.c.h.b16 %v270
    %v1190 = vunpack.c.l.b16 %v271
    %v1191 = vunpack.c.h.b16 %v271
    %v1192 = vunpack.c.l.b16 %v272
    %v1193 = vunpack.c.h.b16 %v272
    %v1194 = vunpack.c.l.b16 %v273
    %v1195 = vunpack.c.h.b16 %v273
    %v1196 = vunpack.c.l.b16 %v274
    %v1197 = vunpack.c.h.b16 %v274
    %v1198 = vunpack.c.l.b16 %v275
    %v1199 = vunpack.c.h.b16 %v275
    %v1200 = vunpack.c.l.b16 %v276
    %v1201 = vunpack.c.h.b16 %v276
    %v1202 = vunpack.c.l.b16 %v277
    %v1203 = vunpack.c.h.b16 %v277
    %v1204 = vunpack.c.l.b16 %v278
    %v1205 = vunpack.c.h.b16 %v278
    %v1206 = vunpack.c.l.b16 %v279
    %v1207 = vunpack.c.h.b16 %v279
    %v1208 = vunpack.c.l.b16 %v280
    %v1209 = vunpack.c.h.b16 %v280
    %v1210 = vunpack.c.l.b16 %v281
    %v1211 = vunpack.c.h.b16 %v281
    %v1212 = vunpack.c.l.b16 %v282
    %v1213 = vunpack.c.h.b16 %v282
    %v1214 = vunpack.c.l.b16 %v283
    %v1215 = vunpack.c.h.b16 %v283
    %v1216 = vunpack.c.l.b16 %v284
    %v1217 = vunpack.c.h.b16 %v284
    %v1218 = vunpack.c.l.b16 %v285
    %v1219 = vunpack.c.h.b16 %v285
    %v1220 = vunpack.c.l.b16 %v286
    %v1221 = vunpack.c.h.b16 %v286
    %v1222 = vunpack.c.l.b16 %v287
    %v1223 = vunpack.c.h.b16 %v287
    %v1224 = vunpack.c.l.b16 %v288
    %v1225 = vunpack.c.h.b16 %v288
    %v1226 = vunpack.c.l.b16 %v289
    %v1227 = vunpack.c.h.b16 %v289
    %v1228 = vunpack.c.l.b16 %v290
    %v1229 = vunpack.c.h.b16 %v290
    %v1230 = vunpack.c.l.b16 %v291
    %v1231 = vunpack.c.h.b16 %v291
    %v1232 = vunpack.c.l.b16 %v292
    %v1233 = vunpack.c.h.b16 %v292
    %v1234 = vunpack.c.l.b16 %v293
    %v1235 = vunpack.c.h.b16 %v293
    %v1236 = vunpack.c.l.b16 %v294
    %v1237 = vunpack.c.h.b16 %v294
    %v1238 = vunpack.c.l.b16 %v295
    %v1239 = vunpack.c.h.b16 %v295
    %v1240 = vunpack.c.l.b16 %v296
    %v1241 = vunpack.c.h.b16 %v296
    %v1242 = vunpack.c.l.b16 %v297
    %v1243 = vunpack.c.h.b16 %v297
    %v1244 = vunpack.c.l.b16 %v298
    %v1245 = vunpack.c.h.b16 %v298
    %v1246 = vunpack.c.l.b16 %v299
    %v1247 = vunpack.c.h.b16 %v299
    %v1248 = vunpack.c.l.b16 %v300
    %v1249 = vunpack.c.h.b16 %v300
    %v1250 = vunpack.c.l.b16 %v301
    %v1251 = vunpack.c.h.b16 %v301
    %v1252 = vunpack.c.l.b16 %v302
    %v1253 = vunpack.c.h.b16 %v302
    %v1254 = vunpack.c.l.b16 %v303
    %v1255 = vunpack.c.h.b16 %v303
    %v1256 = vunpack.c.l.b16 %v304
    %v1257 = vunpack.c.h.b16 %v304
    %v1258 = vunpack.c.l.b16 %v305
    %v1259 = vunpack.c.h.b16 %v305
    %v1260 = vunpack.c.l.b16 %v306
    %v1261 = vunpack.c.h.b16 %v306
    %v1262 = vunpack.c.l.b16 %v307
    %v1263 = vunpack.c.h.b16 %v307
    %v1264 = vunpack.c.l.b16 %v308
    %v1265 = vunpack.c.h.b16 %v308
    %v1266 = vunpack.c.l.b16 %v309
    %v1267 = vunpack.c.h.b16 %v309
    %v1268 = vunpack.c.l.b16 %v310
    %v1269 = vunpack.c.h.b16 %v310
    %v1270 = vunpack.c.l.b16 %v311
    %v1271 = vunpack.c.h.b16 %v311
    %v1272 = vunpack.c.l.b16 %v312
    %v1273 = vunpack.c.h.b16 %v312
    %v1274 = vunpack.c.l.b16 %v313
    %v1275 = vunpack.c.h.b16 %v313
    %v1276 = vunpack.c.l.b16 %v314
    %v1277 = vunpack.c.h.b16 %v314
    %v1278 = vunpack.c.l.b16 %v315
    %v1279 = vunpack.c.h.b16 %v315
    %v1280 = vunpack.c.l.b16 %v316
    %v1281 = vunpack.c.h.b16 %v316
    %v1282 = vunpack.c.l.b16 %v317
    %v1283 = vunpack.c.h.b16 %v317
    %v1284 = vunpack.c.l.b16 %v318
    %v1285 = vunpack.c.h.b16 %v318
    %v1286 = vunpack.c.l.b16 %v319
    %v1287 = vunpack.c.h.b16 %v319
    %v1288 = vunpack.c.l.b16 %v320
    %v1289 = vunpack.c.h.b16 %v320
    %v1290 = vunpack.c.l.b16 %v321
    %v1291 = vunpack.c.h.b16 %v321
    %v1292 = vunpack.c.l.b16 %v322
    %v1293 = vunpack.c.h.b16 %v322
    %v1294 = vunpack.c.l.b16 %v323
    %v1295 = vunpack.c.h.b16 %v323
    %v1296 = vunpack.c.l.b16 %v324
    %v1297 = vunpack.c.h.b16 %v324
    %v1298 = vunpack.c.l.b16 %v325
    %v1299 = vunpack.c.h.b16 %v325
    %v1300 = vunpack.c.l.b16 %v326
    %v1301 = vunpack.c.h.b16 %v326
    %v1302 = vunpack.c.l.b16 %v327
    %v1303 = vunpack.c.h.b16 %v327
    %v1304 = vunpack.c.l.b16 %v328
    %v1305 = vunpack.c.h.b16 %v328
    %v1306 = vunpack.c.l.b16 %v329
    %v1307 = vunpack.c.h.b16 %v329
    %v1308 = vunpack.c.l.b16 %v330
    %v1309 = vunpack.c.h.b16 %v330
    %v1310 = vunpack.c.l.b16 %v331
    %v1311 = vunpack.c.h.b16 %v331
    %v1312 = vunpack.c.l.b16 %v332
    %v1313 = vunpack.c.h.b16 %v332
    %v1314 = vunpack.c.l.b16 %v333
    %v1315 = vunpack.c.h.b16 %v333
    %v1316 = vunpack.c.l.b16 %v334
    %v1317 = vunpack.c.h.b16 %v334
    %v1318 = vunpack.c.l.b16 %v335
    %v1319 = vunpack.c.h.b16 %v335
    %v1320 = vunpack.c.l.b16 %v336
    %v1321 = vunpack.c.h.b16 %v336
    %v1322 = vunpack.c.l.b16 %v337
    %v1323 = vunpack.c.h.b16 %v337
    %v1324 = vunpack.c.l.b16 %v338
    %v1325 = vunpack.c.h.b16 %v338
    %v1326 = vunpack.c.l.b16 %v339
    %v1327 = vunpack.c.h.b16 %v339
    %v1328 = vunpack.c.l.b16 %v340
    %v1329 = vunpack.c.h.b16 %v340
    %v1330 = vunpack.c.l.b16 %v341
    %v1331 = vunpack.c.h.b16 %v341
    %v1332 = vunpack.c.l.b16 %v342
    %v1333 = vunpack.c.h.b16 %v342
    %v1334 = vunpack.c.l.b16 %v343
    %v1335 = vunpack.c.h.b16 %v343
    %v1336 = vunpack.c.l.b16 %v344
    %v1337 = vunpack.c.h.b16 %v344
    %v1338 = vunpack.c.l.b16 %v345
    %v1339 = vunpack.c.h.b16 %v345
    %v1340 = vunpack.c.l.b16 %v346
    %v1341 = vunpack.c.h.b16 %v346
    %v1342 = vunpack.c.l.b16 %v347
    %v1343 = vunpack.c.h.b16 %v347
    %v1344 = vunpack.c.l.b16 %v348
    %v1345 = vunpack.c.h.b16 %v348
    %v1346 = vunpack.c.l.b16 %v349
    %v1347 = vunpack.c.h.b16 %v349
    %v1348 = vunpack.c.l.b16 %v350
    %v1349 = vunpack.c.h.b16 %v350
    %v1350 = vunpack.c.l.b16 %v351
    %v1351 = vunpack.c.h.b16 %v351
    %v1352 = vunpack.c.l.b16 %v352
    %v1353 = vunpack.c.h.b16 %v352
    %v1354 = vunpack.c.l.b16 %v353
    %v1355 = vunpack.c.h.b16 %v353
    %v1356 = vunpack.c.l.b16 %v354
    %v1357 = vunpack.c.h.b16 %v354
    %v1358 = vunpack.c.l.b16 %v355
    %v1359 = vunpack.c.h.b16 %v355
    %v1360 = vunpack.c.l.b16 %v356
    %v1361 = vunpack.c.h.b16 %v356
    %v1362 = vunpack.c.l.b16 %v357
    %v1363 = vunpack.c.h.b16 %v357
    %v1364 = vunpack.c.l.b16 %v358
    %v1365 = vunpack.c.h.b16 %v358
    %v1366 = vunpack.c.l.b16 %v359
    %v1367 = vunpack.c.h.b16 %v359
    %v1368 = vunpack.c.l.b16 %v360
    %v1369 = vunpack.c.h.b16 %v360
    %v1370 = vunpack.c.l.b16 %v361
    %v1371 = vunpack.c.h.b16 %v361
    %v1372 = vunpack.c.l.b16 %v362
    %v1373 = vunpack.c.h.b16 %v362
    %v1374 = vunpack.c.l.b16 %v363
    %v1375 = vunpack.c.h.b16 %v363
    %v1376 = vunpack.c.l.b16 %v364
    %v1377 = vunpack.c.h.b16 %v364
    %v1378 = vunpack.c.l.b16 %v365
    %v1379 = vunpack.c.h.b16 %v365
    %v1380 = vunpack.c.l.b16 %v366
    %v1381 = vunpack.c.h.b16 %v366
    %v1382 = vunpack.c.l.b16 %v367
    %v1383 = vunpack.c.h.b16 %v367
    %v1384 = vunpack.c.l.b16 %v368
    %v1385 = vunpack.c.h.b16 %v368
    %v1386 = vunpack.c.l.b16 %v369
    %v1387 = vunpack.c.h.b16 %v369
    %v1388 = vunpack.c.l.b16 %v370
    %v1389 = vunpack.c.h.b16 %v370
    %v1390 = vunpack.c.l.b16 %v371
    %v1391 = vunpack.c.h.b16 %v371
    %v1392 = vunpack.c.l.b16 %v372
    %v1393 = vunpack.c.h.b16 %v372
    %v1394 = vunpack.c.l.b16 %v373
    %v1395 = vunpack.c.h.b16 %v373
    %v1396 = vunpack.c.l.b16 %v374
    %v1397 = vunpack.c.h.b16 %v374
    %v1398 = vunpack.c.l.b16 %v375
    %v1399 = vunpack.c.h.b16 %v375
    %v1400 = vunpack.c.l.b16 %v376
    %v1401 = vunpack.c.h.b16 %v376
    %v1402 = vunpack.c.l.b16 %v377
    %v1403 = vunpack.c.h.b16 %v377
    %v1404 = vunpack.c.l.b16 %v378
    %v1405 = vunpack.c.h.b16 %v378
    %v1406 = vunpack.c.l.b16 %v379
    %v1407 = vunpack.c.h.b16 %v379
    %v1408 = vunpack.c.l.b16 %v380
    %v1409 = vunpack.c.h.b16 %v380
    %v1410 = vunpack.c.l.b16 %v381
    %v1411 = vunpack.c.h.b16 %v381
    %v1412 = vunpack.c.l.b16 %v382
    %v1413 = vunpack.c.h.b16 %v382
    %v1414 = vunpack.c.l.b16 %v383
    %v1415 = vunpack.c.h.b16 %v383
    %v1416 = vunpack.c.l.b16 %v384
    %v1417 = vunpack.c.h.b16 %v384
    %v1418 = vunpack.c.l.b16 %v385
    %v1419 = vunpack.c.h.b16 %v385
    %v1420 = vunpack.c.l.b16 %v386
    %v1421 = vunpack.c.h.b16 %v386
    %v1422 = vunpack.c.l.b16 %v387
    %v1423 = vunpack.c.h.b16 %v387
    %v1424 = vunpack.c.l.b16 %v388
    %v1425 = vunpack.c.h.b16 %v388
    %v1426 = vunpack.c.l.b16 %v389
    %v1427 = vunpack.c.h.b16 %v389
    %v1428 = vunpack.c.l.b16 %v390
    %v1429 = vunpack.c.h.b16 %v390
    %v1430 = vunpack.c.l.b16 %v391
    %v1431 = vunpack.c.h.b16 %v391
    %v1432 = vunpack.c.l.b16 %v392
    %v1433 = vunpack.c.h.b16 %v392
    %v1434 = vunpack.c.l.b16 %v393
    %v1435 = vunpack.c.h.b16 %v393
    %v1436 = vunpack.c.l.b16 %v394
    %v1437 = vunpack.c.h.b16 %v394
    %v1438 = vunpack.c.l.b16 %v395
    %v1439 = vunpack.c.h.b16 %v395
    %v1440 = vunpack.c.l.b16 %v396
    %v1441 = vunpack.c.h.b16 %v396
    %v1442 = vunpack.c.l.b16 %v397
    %v1443 = vunpack.c.h.b16 %v397
    %v1444 = vunpack.c.l.b16 %v398
    %v1445 = vunpack.c.h.b16 %v398
    %v1446 = vunpack.c.l.b16 %v399
    %v1447 = vunpack.c.h.b16 %v399
    %v1448 = vunpack.c.l.b16 %v400
    %v1449 = vunpack.c.h.b16 %v400
    %v1450 = vunpack.c.l.b16 %v401
    %v1451 = vunpack.c.h.b16 %v401
    %v1452 = vunpack.c.l.b16 %v402
    %v1453 = vunpack.c.h.b16 %v402
    %v1454 = vunpack.c.l.b16 %v403
    %v1455 = vunpack.c.h.b16 %v403
    %v1456 = vunpack.c.l.b16 %v404
    %v1457 = vunpack.c.h.b16 %v404
    %v1458 = vunpack.c.l.b16 %v405
    %v1459 = vunpack.c.h.b16 %v405
    %v1460 = vunpack.c.l.b16 %v406
    %v1461 = vunpack.c.h.b16 %v406
    %v1462 = vunpack.c.l.b16 %v407
    %v1463 = vunpack.c.h.b16 %v407
    %v1464 = vunpack.c.l.b16 %v408
    %v1465 = vunpack.c.h.b16 %v408
    %v1466 = vunpack.c.l.b16 %v409
    %v1467 = vunpack.c.h.b16 %v409
    %v1468 = vunpack.c.l.b16 %v410
    %v1469 = vunpack.c.h.b16 %v410
    %v1470 = vunpack.c.l.b16 %v411
    %v1471 = vunpack.c.h.b16 %v411
    %v1472 = vunpack.c.l.b16 %v412
    %v1473 = vunpack.c.h.b16 %v412
    %v1474 = vunpack.c.l.b16 %v413
    %v1475 = vunpack.c.h.b16 %v413
    %v1476 = vunpack.c.l.b16 %v414
    %v1477 = vunpack.c.h.b16 %v414
    %v1478 = vunpack.c.l.b16 %v415
    %v1479 = vunpack.c.h.b16 %v415
    %v1480 = vunpack.c.l.b16 %v416
    %v1481 = vunpack.c.h.b16 %v416
    %v1482 = vunpack.c.l.b16 %v417
    %v1483 = vunpack.c.h.b16 %v417
    %v1484 = vunpack.c.l.b16 %v418
    %v1485 = vunpack.c.h.b16 %v418
    %v1486 = vunpack.c.l.b16 %v419
    %v1487 = vunpack.c.h.b16 %v419
    %v1488 = vunpack.c.l.b16 %v420
    %v1489 = vunpack.c.h.b16 %v420
    %v1490 = vunpack.c.l.b16 %v421
    %v1491 = vunpack.c.h.b16 %v421
    %v1492 = vunpack.c.l.b16 %v422
    %v1493 = vunpack.c.h.b16 %v422
    %v1494 = vunpack.c.l.b16 %v423
    %v1495 = vunpack.c.h.b16 %v423
    %v1496 = vunpack.c.l.b16 %v424
    %v1497 = vunpack.c.h.b16 %v424
    %v1498 = vunpack.c.l.b16 %v425
    %v1499 = vunpack.c.h.b16 %v425
    %v1500 = vunpack.c.l.b16 %v426
    %v1501 = vunpack.c.h.b16 %v426
    %v1502 = vunpack.c.l.b16 %v427
    %v1503 = vunpack.c.h.b16 %v427
    %v1504 = vunpack.c.l.b16 %v428
    %v1505 = vunpack.c.h.b16 %v428
    %v1506 = vunpack.c.l.b16 %v429
    %v1507 = vunpack.c.h.b16 %v429
    %v1508 = vunpack.c.l.b16 %v430
    %v1509 = vunpack.c.h.b16 %v430
    %v1510 = vunpack.c.l.b16 %v431
    %v1511 = vunpack.c.h.b16 %v431
    %v1512 = vunpack.c.l.b16 %v432
    %v1513 = vunpack.c.h.b16 %v432
    %v1514 = vunpack.c.l.b16 %v433
    %v1515 = vunpack.c.h.b16 %v433
    %v1516 = vunpack.c.l.b16 %v434
    %v1517 = vunpack.c.h.b16 %v434
    %v1518 = vunpack.c.l.b16 %v435
    %v1519 = vunpack.c.h.b16 %v435
    %v1520 = vunpack.c.l.b16 %v436
    %v1521 = vunpack.c.h.b16 %v436
    %v1522 = vunpack.c.l.b16 %v437
    %v1523 = vunpack.c.h.b16 %v437
    %v1524 = vunpack.c.l.b16 %v438
    %v1525 = vunpack.c.h.b16 %v438
    %v1526 = vunpack.c.l.b16 %v439
    %v1527 = vunpack.c.h.b16 %v439
    %v1528 = vunpack.c.l.b16 %v440
    %v1529 = vunpack.c.h.b16 %v440
    %v1530 = vunpack.c.l.b16 %v441
    %v1531 = vunpack.c.h.b16 %v441
    %v1532 = vunpack.c.l.b16 %v442
    %v1533 = vunpack.c.h.b16 %v442
    %v1534 = vunpack.c.l.b16 %v443
    %v1535 = vunpack.c.h.b16 %v443
    %v1536 = vunpack.c.l.b16 %v444
    %v1537 = vunpack.c.h.b16 %v444
    %v1538 = vunpack.c.l.b16 %v445
    %v1539 = vunpack.c.h.b16 %v445
    %v1540 = vunpack.c.l.b16 %v446
    %v1541 = vunpack.c.h.b16 %v446
    %v1542 = vunpack.c.l.b16 %v447
    %v1543 = vunpack.c.h.b16 %v447
    %v1544 = vunpack.c.l.b16 %v448
    %v1545 = vunpack.c.h.b16 %v448
    %v1546 = vunpack.c.l.b16 %v449
    %v1547 = vunpack.c.h.b16 %v449
    %v1548 = vunpack.c.l.b16 %v450
    %v1549 = vunpack.c.h.b16 %v450
    %v1550 = vunpack.c.l.b16 %v451
    %v1551 = vunpack.c.h.b16 %v451
    %v1552 = vunpack.c.l.b16 %v452
    %v1553 = vunpack.c.h.b16 %v452
    %v1554 = vunpack.c.l.b16 %v453
    %v1555 = vunpack.c.h.b16 %v453
    %v1556 = vunpack.c.l.b16 %v454
    %v1557 = vunpack.c.h.b16 %v454
    %v1558 = vunpack.c.l.b16 %v455
    %v1559 = vunpack.c.h.b16 %v455
    %v1560 = vunpack.c.l.b16 %v456
    %v1561 = vunpack.c.h.b16 %v456
    %v1562 = vunpack.c.l.b16 %v457
    %v1563 = vunpack.c.h.b16 %v457
    %v1564 = vunpack.c.l.b16 %v458
    %v1565 = vunpack.c.h.b16 %v458
    %v1566 = vunpack.c.l.b16 %v459
    %v1567 = vunpack.c.h.b16 %v459
    %v1568 = vunpack.c.l.b16 %v460
    %v1569 = vunpack.c.h.b16 %v460
    %v1570 = vunpack.c.l.b16 %v461
    %v1571 = vunpack.c.h.b16 %v461
    %v1572 = vunpack.c.l.b16 %v462
    %v1573 = vunpack.c.h.b16 %v462
    %v1574 = vunpack.c.l.b16 %v463
    %v1575 = vunpack.c.h.b16 %v463
    %v1576 = vunpack.c.l.b16 %v464
    %v1577 = vunpack.c.h.b16 %v464
    %v1578 = vunpack.c.l.b16 %v465
    %v1579 = vunpack.c.h.b16 %v465
    %v1580 = vunpack.c.l.b16 %v466
    %v1581 = vunpack.c.h.b16 %v466
    %v1582 = vunpack.c.l.b16 %v467
    %v1583 = vunpack.c.h.b16 %v467
    %v1584 = vunpack.c.l.b16 %v468
    %v1585 = vunpack.c.h.b16 %v468
    %v1586 = vunpack.c.l.b16 %v469
    %v1587 = vunpack.c.h.b16 %v469
    %v1588 = vunpack.c.l.b16 %v470
    %v1589 = vunpack.c.h.b16 %v470
    %v1590 = vunpack.c.l.b16 %v471
    %v1591 = vunpack.c.h.b16 %v471
    %v1592 = vunpack.c.l.b16 %v472
    %v1593 = vunpack.c.h.b16 %v472
    %v1594 = vunpack.c.l.b16 %v473
    %v1595 = vunpack.c.h.b16 %v473
    %v1596 = vunpack.c.l.b16 %v474
    %v1597 = vunpack.c.h.b16 %v474
    %v1598 = vunpack.c.l.b16 %v475
    %v1599 = vunpack.c.h.b16 %v475
    %v1600 = vunpack.c.l.b16 %v476
    %v1601 = vunpack.c.h.b16 %v476
    %v1602 = vunpack.c.l.b16 %v477
    %v1603 = vunpack.c.h.b16 %v477
    %v1604 = vunpack.c.l.b16 %v478
    %v1605 = vunpack.c.h.b16 %v478
    %v1606 = vunpack.c.l.b16 %v479
    %v1607 = vunpack.c.h.b16 %v479
    %v1608 = vunpack.c.l.b16 %v480
    %v1609 = vunpack.c.h.b16 %v480
    %v1610 = vunpack.c.l.b16 %v481
    %v1611 = vunpack.c.h.b16 %v481
    %v1612 = vunpack.c.l.b16 %v482
    %v1613 = vunpack.c.h.b16 %v482
    %v1614 = vunpack.c.l.b16 %v483
    %v1615 = vunpack.c.h.b16 %v483
    %v1616 = vunpack.c.l.b16 %v484
    %v1617 = vunpack.c.h.b16 %v484
    %v1618 = vunpack.c.l.b16 %v485
    %v1619 = vunpack.c.h.b16 %v485
    %v1620 = vunpack.c.l.b16 %v486
    %v1621 = vunpack.c.h.b16 %v486
    %v1622 = vunpack.c.l.b16 %v487
    %v1623 = vunpack.c.h.b16 %v487
    %v1624 = vunpack.c.l.b16 %v488
    %v1625 = vunpack.c.h.b16 %v488
    %v1626 = vunpack.c.l.b16 %v489
    %v1627 = vunpack.c.h.b16 %v489
    %v1628 = vunpack.c.l.b16 %v490
    %v1629 = vunpack.c.h.b16 %v490
    %v1630 = vunpack.c.l.b16 %v491
    %v1631 = vunpack.c.h.b16 %v491
    %v1632 = vunpack.c.l.b16 %v492
    %v1633 = vunpack.c.h.b16 %v492
    %v1634 = vunpack.c.l.b16 %v493
    %v1635 = vunpack.c.h.b16 %v493
    %v1636 = vunpack.c.l.b16 %v494
    %v1637 = vunpack.c.h.b16 %v494
    %v1638 = vunpack.c.l.b16 %v495
    %v1639 = vunpack.c.h.b16 %v495
    %v1640 = vunpack.c.l.b16 %v496
    %v1641 = vunpack.c.h.b16 %v496
    %v1642 = vunpack.c.l.b16 %v497
    %v1643 = vunpack.c.h.b16 %v497
    %v1644 = vunpack.c.l.b16 %v498
    %v1645 = vunpack.c.h.b16 %v498
    %v1646 = vunpack.c.l.b16 %v499
    %v1647 = vunpack.c.h.b16 %v499
    %v1648 = vunpack.c.l.b16 %v500
    %v1649 = vunpack.c.h.b16 %v500
    %v1650 = vunpack.c.l.b16 %v501
    %v1651 = vunpack.c.h.b16 %v501
    %v1652 = vunpack.c.l.b16 %v502
    %v1653 = vunpack.c.h.b16 %v502
    %v1654 = vunpack.c.l.b16 %v503
    %v1655 = vunpack.c.h.b16 %v503
    %v1656 = vunpack.c.l.b16 %v504
    %v1657 = vunpack.c.h.b16 %v504
    %v1658 = vunpack.c.l.b16 %v505
    %v1659 = vunpack.c.h.b16 %v505
    %v1660 = vunpack.c.l.b16 %v506
    %v1661 = vunpack.c.h.b16 %v506
    %v1662 = vunpack.c.l.b16 %v507
    %v1663 = vunpack.c.h.b16 %v507
    %v1664 = vunpack.c.l.b16 %v508
    %v1665 = vunpack.c.h.b16 %v508
    %v1666 = vunpack.c.l.b16 %v509
    %v1667 = vunpack.c.h.b16 %v509
    %v1668 = vunpack.c.l.b16 %v510
    %v1669 = vunpack.c.h.b16 %v510
    %v1670 = vunpack.c.l.b16 %v511
    %v1671 = vunpack.c.h.b16 %v511
    %v1672 = vunpack.c.l.b16 %v512
    %v1673 = vunpack.c.h.b16 %v512
    %v1674 = vunpack.c.l.b16 %v513
    %v1675 = vunpack.c.h.b16 %v513
    %v1676 = vunpack.c.l.b16 %v514
    %v1677 = vunpack.c.h.b16 %v514
    %v1678 = vunpack.c.l.b16 %v515
    %v1679 = vunpack.c.h.b16 %v515
    %v1680 = vunpack.c.l.b16 %v516
    %v1681 = vunpack.c.h.b16 %v516
    %v1682 = vunpack.c.l.b16 %v517
    %v1683 = vunpack.c.h.b16 %v517
    %v1684 = vunpack.c.l.b16 %v518
    %v1685 = vunpack.c.h.b16 %v518
    %v1686 = vunpack.c.l.b16 %v519
    %v1687 = vunpack.c.h.b16 %v519
    %v1688 = vunpack.c.l.b16 %v520
    %v1689 = vunpack.c.h.b16 %v520
    %v1690 = vunpack.c.l.b16 %v521
    %v1691 = vunpack.c.h.b16 %v521
    %v1692 = vunpack.c.l.b16 %v522
    %v1693 = vunpack.c.h.b16 %v522
    %v1694 = vunpack.c.l.b16 %v523
    %v1695 = vunpack.c.h.b16 %v523
    %v1696 = vunpack.c.l.b16 %v524
    %v1697 = vunpack.c.h.b16 %v524
    %v1698 = vpack.c.b16 %v938, %v930
    %v1699 = vpack.c.b16 %v939, %v931
    %v1700 = vpack.c.b16 %v940, %v932
    %v1701 = vpack.c.b16 %v941, %v933
    %v1702 = vpack.c.b16 %v942, %v934
    %v1703 = vpack.c.b16 %v943, %v935
    %v1704 = vpack.c.b16 %v944, %v936
    %v1705 = vpack.c.b16 %v945, %v937
    %v1706 = vpack.c.b16 %v954, %v946
    %v1707 = vpack.c.b16 %v955, %v947
    %v1708 = vpack.c.b16 %v956, %v948
    %v1709 = vpack.c.b16 %v957, %v949
    %v1710 = vpack.c.b16 %v958, %v950
    %v1711 = vpack.c.b16 %v959, %v951
    %v1712 = vpack.c.b16 %v960, %v952
    %v1713 = vpack.c.b16 %v961, %v953
    %v1714 = vpack.c.b16 %v970, %v962
    %v1715 = vpack.c.b16 %v971, %v963
    %v1716 = vpack.c.b16 %v972, %v964
    %v1717 = vpack.c.b16 %v973, %v965
    %v1718 = vpack.c.b16 %v974, %v966
    %v1719 = vpack.c.b16 %v975, %v967
    %v1720 = vpack.c.b16 %v976, %v968
    %v1721 = vpack.c.b16 %v977, %v969
    %v1722 = vpack.c.b16 %v986, %v978
    %v1723 = vpack.c.b16 %v987, %v979
    %v1724 = vpack.c.b16 %v988, %v980
    %v1725 = vpack.c.b16 %v989, %v981
    %v1726 = vpack.c.b16 %v990, %v982
    %v1727 = vpack.c.b16 %v991, %v983
    %v1728 = vpack.c.b16 %v992, %v984
    %v1729 = vpack.c.b16 %v993, %v985
    %v1730 = vpack.c.b16 %v1002, %v994
    %v1731 = vpack.c.b16 %v1003, %v995
    %v1732 = vpack.c.b16 %v1004, %v996
    %v1733 = vpack.c.b16 %v1005, %v997
    %v1734 = vpack.c.b16 %v1006, %v998
    %v1735 = vpack.c.b16 %v1007, %v999
    %v1736 = vpack.c.b16 %v1008, %v1000
    %v1737 = vpack.c.b16 %v1009, %v1001
    %v1738 = vpack.c.b16 %v1018, %v1010
    %v1739 = vpack.c.b16 %v1019, %v1011
    %v1740 = vpack.c.b16 %v1020, %v1012
    %v1741 = vpack.c.b16 %v1021, %v1013
    %v1742 = vpack.c.b16 %v1022, %v1014
    %v1743 = vpack.c.b16 %v1023, %v1015
    %v1744 = vpack.c.b16 %v1024, %v1016
    %v1745 = vpack.c.b16 %v1025, %v1017
    %v1746 = vpack.c.b16 %v1034, %v1026
    %v1747 = vpack.c.b16 %v1035, %v1027
    %v1748 = vpack.c.b16 %v1036, %v1028
    %v1749 = vpack.c.b16 %v1037, %v1029
    %v1750 = vpack.c.b16 %v1038, %v1030
    %v1751 = vpack.c.b16 %v1039, %v1031
    %v1752 = vpack.c.b16 %v1040, %v1032
    %v1753 = vpack.c.b16 %v1041, %v1033
    %v1754 = vpack.c.b16 %v1050, %v1042
    %v1755 = vpack.c.b16 %v1051, %v1043
    %v1756 = vpack.c.b16 %v1052, %v1044
    %v1757 = vpack.c.b16 %v1053, %v1045
    %v1758 = vpack.c.b16 %v1054, %v1046
    %v1759 = vpack.c.b16 %v1055, %v1047
    %v1760 = vpack.c.b16 %v1056, %v1048
    %v1761 = vpack.c.b16 %v1057, %v1049
    %v1762 = vpack.c.b16 %v1066, %v1058
    %v1763 = vpack.c.b16 %v1067, %v1059
    %v1764 = vpack.c.b16 %v1068, %v1060
    %v1765 = vpack.c.b16 %v1069, %v1061
    %v1766 = vpack.c.b16 %v1070, %v1062
    %v1767 = vpack.c.b16 %v1071, %v1063
    %v1768 = vpack.c.b16 %v1072, %v1064
    %v1769 = vpack.c.b16 %v1073, %v1065
    %v1770 = vpack.c.b16 %v1082, %v1074
    %v1771 = vpack.c.b16 %v1083, %v1075
    %v1772 = vpack.c.b16 %v1084, %v1076
    %v1773 = vpack.c.b16 %v1085, %v1077
    %v1774 = vpack.c.b16 %v1086, %v1078
    %v1775 = vpack.c.b16 %v1087, %v1079
    %v1776 = vpack.c.b16 %v1088, %v1080
    %v1777 = vpack.c.b16 %v1089, %v1081
    %v1778 = vpack.c.b16 %v1098, %v1090
    %v1779 = vpack.c.b16 %v1099, %v1091
    %v1780 = vpack.c.b16 %v1100, %v1092
    %v1781 = vpack.c.b16 %v1101, %v1093
    %v1782 = vpack.c.b16 %v1102, %v1094
    %v1783 = vpack.c.b16 %v1103, %v1095
    %v1784 = vpack.c.b16 %v1104, %v1096
    %v1785 = vpack.c.b16 %v1105, %v1097
    %v1786 = vpack.c.b16 %v1114, %v1106
    %v1787 = vpack.c.b16 %v1115, %v1107
    %v1788 = vpack.c.b16 %v1116, %v1108
    %v1789 = vpack.c.b16 %v1117, %v1109
    %v1790 = vpack.c.b16 %v1118, %v1110
    %v1791 = vpack.c.b16 %v1119, %v1111
    %v1792 = vpack.c.b16 %v1120, %v1112
    %v1793 = vpack.c.b16 %v1121, %v1113
    %v1794 = vpack.c.b16 %v1130, %v1122
    %v1795 = vpack.c.b16 %v1131, %v1123
    %v1796 = vpack.c.b16 %v1132, %v1124
    %v1797 = vpack.c.b16 %v1133, %v1125
    %v1798 = vpack.c.b16 %v1134, %v1126
    %v1799 = vpack.c.b16 %v1135, %v1127
    %v1800 = vpack.c.b16 %v1136, %v1128
    %v1801 = vpack.c.b16 %v1137, %v1129
    %v1802 = vpack.c.b16 %v1146, %v1138
    %v1803 = vpack.c.b16 %v1147, %v1139
    %v1804 = vpack.c.b16 %v1148, %v1140
    %v1805 = vpack.c.b16 %v1149, %v1141
    %v1806 = vpack.c.b16 %v1150, %v1142
    %v1807 = vpack.c.b16 %v1151, %v1143
    %v1808 = vpack.c.b16 %v1152, %v1144
    %v1809 = vpack.c.b16 %v1153, %v1145
    %v1810 = vpack.c.b16 %v1162, %v1154
    %v1811 = vpack.c.b16 %v1163, %v1155
    %v1812 = vpack.c.b16 %v1164, %v1156
    %v1813 = vpack.c.b16 %v1165, %v1157
    %v1814 = vpack.c.b16 %v1166, %v1158
    %v1815 = vpack.c.b16 %v1167, %v1159
    %v1816 = vpack.c.b16 %v1168, %v1160
    %v1817 = vpack.c.b16 %v1169, %v1161
    %v1818 = vpack.c.b16 %v1178, %v1170
    %v1819 = vpack.c.b16 %v1179, %v1171
    %v1820 = vpack.c.b16 %v1180, %v1172
    %v1821 = vpack.c.b16 %v1181, %v1173
    %v1822 = vpack.c.b16 %v1182, %v1174
    %v1823 = vpack.c.b16 %v1183, %v1175
    %v1824 = vpack.c.b16 %v1184, %v1176
    %v1825 = vpack.c.b16 %v1185, %v1177
    %v1826 = vpack.c.b16 %v1194, %v1186
    %v1827 = vpack.c.b16 %v1195, %v1187
    %v1828 = vpack.c.b16 %v1196, %v1188
    %v1829 = vpack.c.b16 %v1197, %v1189
    %v1830 = vpack.c.b16 %v1198, %v1190
    %v1831 = vpack.c.b16 %v1199, %v1191
    %v1832 = vpack.c.b16 %v1200, %v1192
    %v1833 = vpack.c.b16 %v1201, %v1193
    %v1834 = vpack.c.b16 %v1210, %v1202
    %v1835 = vpack.c.b16 %v1211, %v1203
    %v1836 = vpack.c.b16 %v1212, %v1204
    %v1837 = vpack.c.b16 %v1213, %v1205
    %v1838 = vpack.c.b16 %v1214, %v1206
    %v1839 = vpack.c.b16 %v1215, %v1207
    %v1840 = vpack.c.b16 %v1216, %v1208
    %v1841 = vpack.c.b16 %v1217, %v1209
    %v1842 = vpack.c.b16 %v1226, %v1218
    %v1843 = vpack.c.b16 %v1227, %v1219
    %v1844 = vpack.c.b16 %v1228, %v1220
    %v1845 = vpack.c.b16 %v1229, %v1221
    %v1846 = vpack.c.b16 %v1230, %v1222
    %v1847 = vpack.c.b16 %v1231, %v1223
    %v1848 = vpack.c.b16 %v1232, %v1224
    %v1849 = vpack.c.b16 %v1233, %v1225
    %v1850 = vpack.c.b16 %v1242, %v1234
    %v1851 = vpack.c.b16 %v1243, %v1235
    %v1852 = vpack.c.b16 %v1244, %v1236
    %v1853 = vpack.c.b16 %v1245, %v1237
    %v1854 = vpack.c.b16 %v1246, %v1238
    %v1855 = vpack.c.b16 %v1247, %v1239
    %v1856 = vpack.c.b16 %v1248, %v1240
    %v1857 = vpack.c.b16 %v1249, %v1241
    %v1858 = vpack.c.b16 %v1258, %v1250
    %v1859 = vpack.c.b16 %v1259, %v1251
    %v1860 = vpack.c.b16 %v1260, %v1252
    %v1861 = vpack.c.b16 %v1261, %v1253
    %v1862 = vpack.c.b16 %v1262, %v1254
    %v1863 = vpack.c.b16 %v1263, %v1255
    %v1864 = vpack.c.b16 %v1264, %v1256
    %v1865 = vpack.c.b16 %v1265, %v1257
    %v1866 = vpack.c.b16 %v1274, %v1266
    %v1867 = vpack.c.b16 %v1275, %v1267
    %v1868 = vpack.c.b16 %v1276, %v1268
    %v1869 = vpack.c.b16 %v1277, %v1269
    %v1870 = vpack.c.b16 %v1278, %v1270
    %v1871 = vpack.c.b16 %v1279, %v1271
    %v1872 = vpack.c.b16 %v1280, %v1272
    %v1873 = vpack.c.b16 %v1281, %v1273
    %v1874 = vpack.c.b16 %v1290, %v1282
    %v1875 = vpack.c.b16 %v1291, %v1283
    %v1876 = vpack.c.b16 %v1292, %v1284
    %v1877 = vpack.c.b16 %v1293, %v1285
    %v1878 = vpack.c.b16 %v1294, %v1286
    %v1879 = vpack.c.b16 %v1295, %v1287
    %v1880 = vpack.c.b16 %v1296, %v1288
    %v1881 = vpack.c.b16 %v1297, %v1289
    %v1882 = vpack.c.b16 %v1306, %v1298
    %v1883 = vpack.c.b16 %v1307, %v1299
    %v1884 = vpack.c.b16 %v1308, %v1300
    %v1885 = vpack.c.b16 %v1309, %v1301
    %v1886 = vpack.c.b16 %v1310, %v1302
    %v1887 = vpack.c.b16 %v1311, %v1303
    %v1888 = vpack.c.b16 %v1312, %v1304
    %v1889 = vpack.c.b16 %v1313, %v1305
    %v1890 = vpack.c.b16 %v1322, %v1314
    %v1891 = vpack.c.b16 %v1323, %v1315
    %v1892 = vpack.c.b16 %v1324, %v1316
    %v1893 = vpack.c.b16 %v1325, %v1317
    %v1894 = vpack.c.b16 %v1326, %v1318
    %v1895 = vpack.c.b16 %v1327, %v1319
    %v1896 = vpack.c.b16 %v1328, %v1320
    %v1897 = vpack.c.b16 %v1329, %v1321
    %v1898 = vpack.c.b16 %v1338, %v1330
    %v1899 = vpack.c.b16 %v1339, %v1331
    %v1900 = vpack.c.b16 %v1340, %v1332
    %v1901 = vpack.c.b16 %v1341, %v1333
    %v1902 = vpack.c.b16 %v1342, %v1334
    %v1903 = vpack.c.b16 %v1343, %v1335
    %v1904 = vpack.c.b16 %v1344, %v1336
    %v1905 = vpack.c.b16 %v1345, %v1337
    %v1906 = vpack.c.b16 %v1354, %v1346
    %v1907 = vpack.c.b16 %v1355, %v1347
    %v1908 = vpack.c.b16 %v1356, %v1348
    %v1909 = vpack.c.b16 %v1357, %v1349
    %v1910 = vpack.c.b16 %v1358, %v1350
    %v1911 = vpack.c.b16 %v1359, %v1351
    %v1912 = vpack.c.b16 %v1360, %v1352
    %v1913 = vpack.c.b16 %v1361, %v1353
    %v1914 = vpack.c.b16 %v1370, %v1362
    %v1915 = vpack.c.b16 %v1371, %v1363
    %v1916 = vpack.c.b16 %v1372, %v1364
    %v1917 = vpack.c.b16 %v1373, %v1365
    %v1918 = vpack.c.b16 %v1374, %v1366
    %v1919 = vpack.c.b16 %v1375, %v1367
    %v1920 = vpack.c.b16 %v1376, %v1368
    %v1921 = vpack.c.b16 %v1377, %v1369
    %v1922 = vpack.c.b16 %v1386, %v1378
    %v1923 = vpack.c.b16 %v1387, %v1379
    %v1924 = vpack.c.b16 %v1388, %v1380
    %v1925 = vpack.c.b16 %v1389, %v1381
    %v1926 = vpack.c.b16 %v1390, %v1382
    %v1927 = vpack.c.b16 %v1391, %v1383
    %v1928 = vpack.c.b16 %v1392, %v1384
    %v1929 = vpack.c.b16 %v1393, %v1385
    %v1930 = vpack.c.b16 %v1402, %v1394
    %v1931 = vpack.c.b16 %v1403, %v1395
    %v1932 = vpack.c.b16 %v1404, %v1396
    %v1933 = vpack.c.b16 %v1405, %v1397
    %v1934 = vpack.c.b16 %v1406, %v1398
    %v1935 = vpack.c.b16 %v1407, %v1399
    %v1936 = vpack.c.b16 %v1408, %v1400
    %v1937 = vpack.c.b16 %v1409, %v1401
    %v1938 = vpack.c.b16 %v1418, %v1410
    %v1939 = vpack.c.b16 %v1419, %v1411
    %v1940 = vpack.c.b16 %v1420, %v1412
    %v1941 = vpack.c.b16 %v1421, %v1413
    %v1942 = vpack.c.b16 %v1422, %v1414
    %v1943 = vpack.c.b16 %v1423, %v1415
    %v1944 = vpack.c.b16 %v1424, %v1416
    %v1945 = vpack.c.b16 %v1425, %v1417
    %v1946 = vpack.c.b16 %v1434, %v1426
    %v1947 = vpack.c.b16 %v1435, %v1427
    %v1948 = vpack.c.b16 %v1436, %v1428
    %v1949 = vpack.c.b16 %v1437, %v1429
    %v1950 = vpack.c.b16 %v1438, %v1430
    %v1951 = vpack.c.b16 %v1439, %v1431
    %v1952 = vpack.c.b16 %v1440, %v1432
    %v1953 = vpack.c.b16 %v1441, %v1433
    %v1954 = vpack.c.b16 %v1450, %v1442
    %v1955 = vpack.c.b16 %v1451, %v1443
    %v1956 = vpack.c.b16 %v1452, %v1444
    %v1957 = vpack.c.b16 %v1453, %v1445
    %v1958 = vpack.c.b16 %v1454, %v1446
    %v1959 = vpack.c.b16 %v1455, %v1447
    %v1960 = vpack.c.b16 %v1456, %v1448
    %v1961 = vpack.c.b16 %v1457, %v1449
    %v1962 = vpack.c.b16 %v1466, %v1458
    %v1963 = vpack.c.b16 %v1467, %v1459
    %v1964 = vpack.c.b16 %v1468, %v1460
    %v1965 = vpack.c.b16 %v1469, %v1461
    %v1966 = vpack.c.b16 %v1470, %v1462
    %v1967 = vpack.c.b16 %v1471, %v1463
    %v1968 = vpack.c.b16 %v1472, %v1464
    %v1969 = vpack.c.b16 %v1473, %v1465
    %v1970 = vpack.c.b16 %v1482, %v1474
    %v1971 = vpack.c.b16 %v1483, %v1475
    %v1972 = vpack.c.b16 %v1484, %v1476
    %v1973 = vpack.c.b16 %v1485, %v1477
    %v1974 = vpack.c.b16 %v1486, %v1478
    %v1975 = vpack.c.b16 %v1487, %v1479
    %v1976 = vpack.c.b16 %v1488, %v1480
    %v1977 = vpack.c.b16 %v1489, %v1481
    %v1978 = vpack.c.b16 %v1498, %v1490
    %v1979 = vpack.c.b16 %v1499, %v1491
    %v1980 = vpack.c.b16 %v1500, %v1492
    %v1981 = vpack.c.b16 %v1501, %v1493
    %v1982 = vpack.c.b16 %v1502, %v1494
    %v1983 = vpack.c.b16 %v1503, %v1495
    %v1984 = vpack.c.b16 %v1504, %v1496
    %v1985 = vpack.c.b16 %v1505, %v1497
    %v1986 = vpack.c.b16 %v1514, %v1506
    %v1987 = vpack.c.b16 %v1515, %v1507
    %v1988 = vpack.c.b16 %v1516, %v1508
    %v1989 = vpack.c.b16 %v1517, %v1509
    %v1990 = vpack.c.b16 %v1518, %v1510
    %v1991 = vpack.c.b16 %v1519, %v1511
    %v1992 = vpack.c.b16 %v1520, %v1512
    %v1993 = vpack.c.b16 %v1521, %v1513
    %v1994 = vpack.c.b16 %v1530, %v1522
    %v1995 = vpack.c.b16 %v1531, %v1523
    %v1996 = vpack.c.b16 %v1532, %v1524
    %v1997 = vpack.c.b16 %v1533, %v1525
    %v1998 = vpack.c.b16 %v1534, %v1526
    %v1999 = vpack.c.b16 %v1535, %v1527
    %v2000 = vpack.c.b16 %v1536, %v1528
    %v2001 = vpack.c.b16 %v1537, %v1529
    %v2002 = vpack.c.b16 %v1546, %v1538
    %v2003 = vpack.c.b16 %v1547, %v1539
    %v2004 = vpack.c.b16 %v1548, %v1540
    %v2005 = vpack.c.b16 %v1549, %v1541
    %v2006 = vpack.c.b16 %v1550, %v1542
    %v2007 = vpack.c.b16 %v1551, %v1543
    %v2008 = vpack.c.b16 %v1552, %v1544
    %v2009 = vpack.c.b16 %v1553, %v1545
    %v2010 = vpack.c.b16 %v1562, %v1554
    %v2011 = vpack.c.b16 %v1563, %v1555
    %v2012 = vpack.c.b16 %v1564, %v1556
    %v2013 = vpack.c.b16 %v1565, %v1557
    %v2014 = vpack.c.b16 %v1566, %v1558
    %v2015 = vpack.c.b16 %v1567, %v1559
    %v2016 = vpack.c.b16 %v1568, %v1560
    %v2017 = vpack.c.b16 %v1569, %v1561
    %v2018 = vpack.c.b16 %v1578, %v1570
    %v2019 = vpack.c.b16 %v1579, %v1571
    %v2020 = vpack.c.b16 %v1580, %v1572
    %v2021 = vpack.c.b16 %v1581, %v1573
    %v2022 = vpack.c.b16 %v1582, %v1574
    %v2023 = vpack.c.b16 %v1583, %v1575
    %v2024 = vpack.c.b16 %v1584, %v1576
    %v2025 = vpack.c.b16 %v1585, %v1577
    %v2026 = vpack.c.b16 %v1594, %v1586
    %v2027 = vpack.c.b16 %v1595, %v1587
    %v2028 = vpack.c.b16 %v1596, %v1588
    %v2029 = vpack.c.b16 %v1597, %v1589
    %v2030 = vpack.c.b16 %v1598, %v1590
    %v2031 = vpack.c.b16 %v1599, %v1591
    %v2032 = vpack.c.b16 %v1600, %v1592
    %v2033 = vpack.c.b16 %v1601, %v1593
    %v2034 = vpack.c.b16 %v1610, %v1602
    %v2035 = vpack.c.b16 %v1611, %v1603
    %v2036 = vpack.c.b16 %v1612, %v1604
    %v2037 = vpack.c.b16 %v1613, %v1605
    %v2038 = vpack.c.b16 %v1614, %v1606
    %v2039 = vpack.c.b16 %v1615, %v1607
    %v2040 = vpack.c.b16 %v1616, %v1608
    %v2041 = vpack.c.b16 %v1617, %v1609
    %v2042 = vpack.c.b16 %v1626, %v1618
    %v2043 = vpack.c.b16 %v1627, %v1619
    %v2044 = vpack.c.b16 %v1628, %v1620
    %v2045 = vpack.c.b16 %v1629, %v1621
    %v2046 = vpack.c.b16 %v1630, %v1622
    %v2047 = vpack.c.b16 %v1631, %v1623
    %v2048 = vpack.c.b16 %v1632, %v1624
    %v2049 = vpack.c.b16 %v1633, %v1625
    %v2050 = vpack.c.b16 %v1642, %v1634
    %v2051 = vpack.c.b16 %v1643, %v1635
    %v2052 = vpack.c.b16 %v1644, %v1636
    %v2053 = vpack.c.b16 %v1645, %v1637
    %v2054 = vpack.c.b16 %v1646, %v1638
    %v2055 = vpack.c.b16 %v1647, %v1639
    %v2056 = vpack.c.b16 %v1648, %v1640
    %v2057 = vpack.c.b16 %v1649, %v1641
    %v2058 = vpack.c.b16 %v1658, %v1650
    %v2059 = vpack.c.b16 %v1659, %v1651
    %v2060 = vpack.c.b16 %v1660, %v1652
    %v2061 = vpack.c.b16 %v1661, %v1653
    %v2062 = vpack.c.b16 %v1662, %v1654
    %v2063 = vpack.c.b16 %v1663, %v1655
    %v2064 = vpack.c.b16 %v1664, %v1656
    %v2065 = vpack.c.b16 %v1665, %v1657
    %v2066 = vpack.c.b16 %v1674, %v1666
    %v2067 = vpack.c.b16 %v1675, %v1667
    %v2068 = vpack.c.b16 %v1676, %v1668
    %v2069 = vpack.c.b16 %v1677, %v1669
    %v2070 = vpack.c.b16 %v1678, %v1670
    %v2071 = vpack.c.b16 %v1679, %v1671
    %v2072 = vpack.c.b16 %v1680, %v1672
    %v2073 = vpack.c.b16 %v1681, %v1673
    %v2074 = vpack.c.b16 %v1690, %v1682
    %v2075 = vpack.c.b16 %v1691, %v1683
    %v2076 = vpack.c.b16 %v1692, %v1684
    %v2077 = vpack.c.b16 %v1693, %v1685
    %v2078 = vpack.c.b16 %v1694, %v1686
    %v2079 = vpack.c.b16 %v1695, %v1687
    %v2080 = vpack.c.b16 %v1696, %v1688
    %v2081 = vpack.c.b16 %v1697, %v1689
    %2466 = vmatprep.subr.bf16.mxu0 %v1699
    %2467 = vmatpush1.bf16.msra.mxu0 %v1698
    %2468 = vmatprep.subr.bf16.mxu0 %v1707
    %2469 = vmatpush1.bf16.msra.mxu0 %v1706
    %2470 = vmatprep.subr.bf16.mxu0 %v1715
    %2471 = vmatpush1.bf16.msra.mxu0 %v1714
    %2472 = vmatprep.subr.bf16.mxu0 %v1723
    %2473 = vmatpush1.bf16.msra.mxu0 %v1722
    %2474 = vmatprep.subr.bf16.mxu0 %v1731
    %2475 = vmatpush1.bf16.msra.mxu0 %v1730
    %2476 = vmatprep.subr.bf16.mxu0 %v1739
    %2477 = vmatpush1.bf16.msra.mxu0 %v1738
    %2478 = vmatprep.subr.bf16.mxu0 %v1747
    %2479 = vmatpush1.bf16.msra.mxu0 %v1746
    %2480 = vmatprep.subr.bf16.mxu0 %v1755
    %2481 = vmatpush1.bf16.msra.mxu0 %v1754
    %2482 = vmatprep.subr.bf16.mxu0 %v1763
    %2483 = vmatpush1.bf16.msra.mxu0 %v1762
    %2484 = vmatprep.subr.bf16.mxu0 %v1771
    %2485 = vmatpush1.bf16.msra.mxu0 %v1770
    %2486 = vmatprep.subr.bf16.mxu0 %v1779
    %2487 = vmatpush1.bf16.msra.mxu0 %v1778
    %2488 = vmatprep.subr.bf16.mxu0 %v1787
    %2489 = vmatpush1.bf16.msra.mxu0 %v1786
    %2490 = vmatprep.subr.bf16.mxu0 %v1795
    %2491 = vmatpush1.bf16.msra.mxu0 %v1794
    %2492 = vmatprep.subr.bf16.mxu0 %v1803
    %2493 = vmatpush1.bf16.msra.mxu0 %v1802
    %2494 = vmatprep.subr.bf16.mxu0 %v1811
    %2495 = vmatpush1.bf16.msra.mxu0 %v1810
    %2496 = vmatprep.subr.bf16.mxu0 %v1819
    %2497 = vmatpush1.bf16.msra.mxu0 %v1818
    %2498 = vmatprep.mubr.bf16.mxu0 %v535
    %2499 = vmatmul.mubr.bf16.gmra.mrb[0].mxu0 %v534
    %v2500 = vpop.f32.mrb[0].mxu0
    %v2501 = vadd.f32 0.0, %v2500
    %v2502 = vpop.f32.mrb[0].mxu0
    %v2503 = vadd.f32 0.0, %v2502
    %v2504 = vpop.f32.mrb[0].mxu0
    %v2505 = vpop.f32.mrb[0].mxu0
    %2506 = vdwg.mxu0
    %2507 = vmatprep.subr.bf16.mxu0 %v1827
    %2508 = vmatpush1.bf16.msra.mxu0 %v1826
    %2509 = vmatprep.subr.bf16.mxu0 %v1835
    %2510 = vmatpush1.bf16.msra.mxu0 %v1834
    %2511 = vmatprep.subr.bf16.mxu0 %v1843
    %2512 = vmatpush1.bf16.msra.mxu0 %v1842
    %2513 = vmatprep.subr.bf16.mxu0 %v1851
    %2514 = vmatpush1.bf16.msra.mxu0 %v1850
    %2515 = vmatprep.subr.bf16.mxu0 %v1859
    %2516 = vmatpush1.bf16.msra.mxu0 %v1858
    %2517 = vmatprep.subr.bf16.mxu0 %v1867
    %2518 = vmatpush1.bf16.msra.mxu0 %v1866
    %2519 = vmatprep.subr.bf16.mxu0 %v1875
    %2520 = vmatpush1.bf16.msra.mxu0 %v1874
    %2521 = vmatprep.subr.bf16.mxu0 %v1883
    %2522 = vmatpush1.bf16.msra.mxu0 %v1882
    %2523 = vmatprep.subr.bf16.mxu0 %v1891
    %2524 = vmatpush1.bf16.msra.mxu0 %v1890
    %2525 = vmatprep.subr.bf16.mxu0 %v1899
    %2526 = vmatpush1.bf16.msra.mxu0 %v1898
    %2527 = vmatprep.subr.bf16.mxu0 %v1907
    %2528 = vmatpush1.bf16.msra.mxu0 %v1906
    %2529 = vmatprep.subr.bf16.mxu0 %v1915
    %2530 = vmatpush1.bf16.msra.mxu0 %v1914
    %2531 = vmatprep.subr.bf16.mxu0 %v1923
    %2532 = vmatpush1.bf16.msra.mxu0 %v1922
    %2533 = vmatprep.subr.bf16.mxu0 %v1931
    %2534 = vmatpush1.bf16.msra.mxu0 %v1930
    %2535 = vmatprep.subr.bf16.mxu0 %v1939
    %2536 = vmatpush1.bf16.msra.mxu0 %v1938
    %2537 = vmatprep.subr.bf16.mxu0 %v1947
    %2538 = vmatpush1.bf16.msra.mxu0 %v1946
    %2539 = vmatprep.mubr.bf16.mxu0 %v537
    %2540 = vmatmul.mubr.bf16.gmra.mrb[0].mxu0 %v536
    %v2541 = vpop.f32.mrb[0].mxu0
    %v2542 = vadd.f32 %v2501, %v2541
    %v2543 = vpop.f32.mrb[0].mxu0
    %v2544 = vadd.f32 %v2503, %v2543
    %v2545 = vpop.f32.mrb[0].mxu0
    %v2546 = vpop.f32.mrb[0].mxu0
    %2547 = vdwg.mxu0
    %2548 = vmatprep.subr.bf16.mxu0 %v1955
    %2549 = vmatpush1.bf16.msra.mxu0 %v1954
    %2550 = vmatprep.subr.bf16.mxu0 %v1963
    %2551 = vmatpush1.bf16.msra.mxu0 %v1962
    %2552 = vmatprep.subr.bf16.mxu0 %v1971
    %2553 = vmatpush1.bf16.msra.mxu0 %v1970
    %2554 = vmatprep.subr.bf16.mxu0 %v1979
    %2555 = vmatpush1.bf16.msra.mxu0 %v1978
    %2556 = vmatprep.subr.bf16.mxu0 %v1987
    %2557 = vmatpush1.bf16.msra.mxu0 %v1986
    %2558 = vmatprep.subr.bf16.mxu0 %v1995
    %2559 = vmatpush1.bf16.msra.mxu0 %v1994
    %2560 = vmatprep.subr.bf16.mxu0 %v2003
    %2561 = vmatpush1.bf16.msra.mxu0 %v2002
    %2562 = vmatprep.subr.bf16.mxu0 %v2011
    %2563 = vmatpush1.bf16.msra.mxu0 %v2010
    %2564 = vmatprep.subr.bf16.mxu0 %v2019
    %2565 = vmatpush1.bf16.msra.mxu0 %v2018
    %2566 = vmatprep.subr.bf16.mxu0 %v2027
    %2567 = vmatpush1.bf16.msra.mxu0 %v2026
    %2568 = vmatprep.subr.bf16.mxu0 %v2035
    %2569 = vmatpush1.bf16.msra.mxu0 %v2034
    %2570 = vmatprep.subr.bf16.mxu0 %v2043
    %2571 = vmatpush1.bf16.msra.mxu0 %v2042
    %2572 = vmatprep.subr.bf16.mxu0 %v2051
    %2573 = vmatpush1.bf16.msra.mxu0 %v2050
    %2574 = vmatprep.subr.bf16.mxu0 %v2059
    %2575 = vmatpush1.bf16.msra.mxu0 %v2058
    %2576 = vmatprep.subr.bf16.mxu0 %v2067
    %2577 = vmatpush1.bf16.msra.mxu0 %v2066
    %2578 = vmatprep.subr.bf16.mxu0 %v2075
    %2579 = vmatpush1.bf16.msra.mxu0 %v2074
    %2580 = vmatprep.mubr.bf16.mxu0 %v539
    %2581 = vmatmul.mubr.bf16.gmra.mrb[0].mxu0 %v538
    %v2582 = vpop.f32.mrb[0].mxu0
    %v2583 = vadd.f32 %v2542, %v2582
    %v2584 = vpop.f32.mrb[0].mxu0
    %v2585 = vadd.f32 %v2544, %v2584
    %v2586 = vpop.f32.mrb[0].mxu0
    %v2587 = vpop.f32.mrb[0].mxu0
    %2588 = vdwg.mxu0
    %2589 = vmatprep.subr.bf16.mxu0 %v1701
    %2590 = vmatpush1.bf16.msra.mxu0 %v1700
    %2591 = vmatprep.subr.bf16.mxu0 %v1709
    %2592 = vmatpush1.bf16.msra.mxu0 %v1708
    %2593 = vmatprep.subr.bf16.mxu0 %v1717
    %2594 = vmatpush1.bf16.msra.mxu0 %v1716
    %2595 = vmatprep.subr.bf16.mxu0 %v1725
    %2596 = vmatpush1.bf16.msra.mxu0 %v1724
    %2597 = vmatprep.subr.bf16.mxu0 %v1733
    %2598 = vmatpush1.bf16.msra.mxu0 %v1732
    %2599 = vmatprep.subr.bf16.mxu0 %v1741
    %2600 = vmatpush1.bf16.msra.mxu0 %v1740
    %2601 = vmatprep.subr.bf16.mxu0 %v1749
    %2602 = vmatpush1.bf16.msra.mxu0 %v1748
    %2603 = vmatprep.subr.bf16.mxu0 %v1757
    %2604 = vmatpush1.bf16.msra.mxu0 %v1756
    %2605 = vmatprep.subr.bf16.mxu0 %v1765
    %2606 = vmatpush1.bf16.msra.mxu0 %v1764
    %2607 = vmatprep.subr.bf16.mxu0 %v1773
    %2608 = vmatpush1.bf16.msra.mxu0 %v1772
    %2609 = vmatprep.subr.bf16.mxu0 %v1781
    %2610 = vmatpush1.bf16.msra.mxu0 %v1780
    %2611 = vmatprep.subr.bf16.mxu0 %v1789
    %2612 = vmatpush1.bf16.msra.mxu0 %v1788
    %2613 = vmatprep.subr.bf16.mxu0 %v1797
    %2614 = vmatpush1.bf16.msra.mxu0 %v1796
    %2615 = vmatprep.subr.bf16.mxu0 %v1805
    %2616 = vmatpush1.bf16.msra.mxu0 %v1804
    %2617 = vmatprep.subr.bf16.mxu0 %v1813
    %2618 = vmatpush1.bf16.msra.mxu0 %v1812
    %2619 = vmatprep.subr.bf16.mxu0 %v1821
    %2620 = vmatpush1.bf16.msra.mxu0 %v1820
    %2621 = vmatprep.mubr.bf16.mxu0 %v535
    %2622 = vmatmul.mubr.bf16.gmra.mrb[0].mxu0 %v534
    %v2623 = vpop.f32.mrb[0].mxu0
    %v2624 = vadd.f32 0.0, %v2623
    %v2625 = vpop.f32.mrb[0].mxu0
    %v2626 = vadd.f32 0.0, %v2625
    %v2627 = vpop.f32.mrb[0].mxu0
    %v2628 = vpop.f32.mrb[0].mxu0
    %2629 = vdwg.mxu0
    %2630 = vmatprep.subr.bf16.mxu0 %v1829
    %2631 = vmatpush1.bf16.msra.mxu0 %v1828
    %2632 = vmatprep.subr.bf16.mxu0 %v1837
    %2633 = vmatpush1.bf16.msra.mxu0 %v1836
    %2634 = vmatprep.subr.bf16.mxu0 %v1845
    %2635 = vmatpush1.bf16.msra.mxu0 %v1844
    %2636 = vmatprep.subr.bf16.mxu0 %v1853
    %2637 = vmatpush1.bf16.msra.mxu0 %v1852
    %2638 = vmatprep.subr.bf16.mxu0 %v1861
    %2639 = vmatpush1.bf16.msra.mxu0 %v1860
    %2640 = vmatprep.subr.bf16.mxu0 %v1869
    %2641 = vmatpush1.bf16.msra.mxu0 %v1868
    %2642 = vmatprep.subr.bf16.mxu0 %v1877
    %2643 = vmatpush1.bf16.msra.mxu0 %v1876
    %2644 = vmatprep.subr.bf16.mxu0 %v1885
    %2645 = vmatpush1.bf16.msra.mxu0 %v1884
    %2646 = vmatprep.subr.bf16.mxu0 %v1893
    %2647 = vmatpush1.bf16.msra.mxu0 %v1892
    %2648 = vmatprep.subr.bf16.mxu0 %v1901
    %2649 = vmatpush1.bf16.msra.mxu0 %v1900
    %2650 = vmatprep.subr.bf16.mxu0 %v1909
    %2651 = vmatpush1.bf16.msra.mxu0 %v1908
    %2652 = vmatprep.subr.bf16.mxu0 %v1917
    %2653 = vmatpush1.bf16.msra.mxu0 %v1916
    %2654 = vmatprep.subr.bf16.mxu0 %v1925
    %2655 = vmatpush1.bf16.msra.mxu0 %v1924
    %2656 = vmatprep.subr.bf16.mxu0 %v1933
    %2657 = vmatpush1.bf16.msra.mxu0 %v1932
    %2658 = vmatprep.subr.bf16.mxu0 %v1941
    %2659 = vmatpush1.bf16.msra.mxu0 %v1940
    %2660 = vmatprep.subr.bf16.mxu0 %v1949
    %2661 = vmatpush1.bf16.msra.mxu0 %v1948
    %2662 = vmatprep.mubr.bf16.mxu0 %v537
    %2663 = vmatmul.mubr.bf16.gmra.mrb[0].mxu0 %v536
    %v2664 = vpop.f32.mrb[0].mxu0
    %v2665 = vadd.f32 %v2624, %v2664
    %v2666 = vpop.f32.mrb[0].mxu0
    %v2667 = vadd.f32 %v2626, %v2666
    %v2668 = vpop.f32.mrb[0].mxu0
    %v2669 = vpop.f32.mrb[0].mxu0
    %2670 = vdwg.mxu0
    %2671 = vmatprep.subr.bf16.mxu0 %v1957
    %2672 = vmatpush1.bf16.msra.mxu0 %v1956
    %2673 = vmatprep.subr.bf16.mxu0 %v1965
    %2674 = vmatpush1.bf16.msra.mxu0 %v1964
    %2675 = vmatprep.subr.bf16.mxu0 %v1973
    %2676 = vmatpush1.bf16.msra.mxu0 %v1972
    %2677 = vmatprep.subr.bf16.mxu0 %v1981
    %2678 = vmatpush1.bf16.msra.mxu0 %v1980
    %2679 = vmatprep.subr.bf16.mxu0 %v1989
    %2680 = vmatpush1.bf16.msra.mxu0 %v1988
    %2681 = vmatprep.subr.bf16.mxu0 %v1997
    %2682 = vmatpush1.bf16.msra.mxu0 %v1996
    %2683 = vmatprep.subr.bf16.mxu0 %v2005
    %2684 = vmatpush1.bf16.msra.mxu0 %v2004
    %2685 = vmatprep.subr.bf16.mxu0 %v2013
    %2686 = vmatpush1.bf16.msra.mxu0 %v2012
    %2687 = vmatprep.subr.bf16.mxu0 %v2021
    %2688 = vmatpush1.bf16.msra.mxu0 %v2020
    %2689 = vmatprep.subr.bf16.mxu0 %v2029
    %2690 = vmatpush1.bf16.msra.mxu0 %v2028
    %2691 = vmatprep.subr.bf16.mxu0 %v2037
    %2692 = vmatpush1.bf16.msra.mxu0 %v2036
    %2693 = vmatprep.subr.bf16.mxu0 %v2045
    %2694 = vmatpush1.bf16.msra.mxu0 %v2044
    %2695 = vmatprep.subr.bf16.mxu0 %v2053
    %2696 = vmatpush1.bf16.msra.mxu0 %v2052
    %2697 = vmatprep.subr.bf16.mxu0 %v2061
    %2698 = vmatpush1.bf16.msra.mxu0 %v2060
    %2699 = vmatprep.subr.bf16.mxu0 %v2069
    %2700 = vmatpush1.bf16.msra.mxu0 %v2068
    %2701 = vmatprep.subr.bf16.mxu0 %v2077
    %2702 = vmatpush1.bf16.msra.mxu0 %v2076
    %2703 = vmatprep.mubr.bf16.mxu0 %v539
    %2704 = vmatmul.mubr.bf16.gmra.mrb[0].mxu0 %v538
    %v2705 = vpop.f32.mrb[0].mxu0
    %v2706 = vadd.f32 %v2665, %v2705
    %v2707 = vpop.f32.mrb[0].mxu0
    %v2708 = vadd.f32 %v2667, %v2707
    %v2709 = vpop.f32.mrb[0].mxu0
    %v2710 = vpop.f32.mrb[0].mxu0
    %2711 = vdwg.mxu0
    %2712 = vmatprep.subr.bf16.mxu0 %v1703
    %2713 = vmatpush1.bf16.msra.mxu0 %v1702
    %2714 = vmatprep.subr.bf16.mxu0 %v1711
    %2715 = vmatpush1.bf16.msra.mxu0 %v1710
    %2716 = vmatprep.subr.bf16.mxu0 %v1719
    %2717 = vmatpush1.bf16.msra.mxu0 %v1718
    %2718 = vmatprep.subr.bf16.mxu0 %v1727
    %2719 = vmatpush1.bf16.msra.mxu0 %v1726
    %2720 = vmatprep.subr.bf16.mxu0 %v1735
    %2721 = vmatpush1.bf16.msra.mxu0 %v1734
    %2722 = vmatprep.subr.bf16.mxu0 %v1743
    %2723 = vmatpush1.bf16.msra.mxu0 %v1742
    %2724 = vmatprep.subr.bf16.mxu0 %v1751
    %2725 = vmatpush1.bf16.msra.mxu0 %v1750
    %2726 = vmatprep.subr.bf16.mxu0 %v1759
    %2727 = vmatpush1.bf16.msra.mxu0 %v1758
    %2728 = vmatprep.subr.bf16.mxu0 %v1767
    %2729 = vmatpush1.bf16.msra.mxu0 %v1766
    %2730 = vmatprep.subr.bf16.mxu0 %v1775
    %2731 = vmatpush1.bf16.msra.mxu0 %v1774
    %2732 = vmatprep.subr.bf16.mxu0 %v1783
    %2733 = vmatpush1.bf16.msra.mxu0 %v1782
    %2734 = vmatprep.subr.bf16.mxu0 %v1791
    %2735 = vmatpush1.bf16.msra.mxu0 %v1790
    %2736 = vmatprep.subr.bf16.mxu0 %v1799
    %2737 = vmatpush1.bf16.msra.mxu0 %v1798
    %2738 = vmatprep.subr.bf16.mxu0 %v1807
    %2739 = vmatpush1.bf16.msra.mxu0 %v1806
    %2740 = vmatprep.subr.bf16.mxu0 %v1815
    %2741 = vmatpush1.bf16.msra.mxu0 %v1814
    %2742 = vmatprep.subr.bf16.mxu0 %v1823
    %2743 = vmatpush1.bf16.msra.mxu0 %v1822
    %2744 = vmatprep.mubr.bf16.mxu0 %v535
    %2745 = vmatmul.mubr.bf16.gmra.mrb[0].mxu0 %v534
    %v2746 = vpop.f32.mrb[0].mxu0
    %v2747 = vadd.f32 0.0, %v2746
    %v2748 = vpop.f32.mrb[0].mxu0
    %v2749 = vadd.f32 0.0, %v2748
    %v2750 = vpop.f32.mrb[0].mxu0
    %v2751 = vpop.f32.mrb[0].mxu0
    %2752 = vdwg.mxu0
    %2753 = vmatprep.subr.bf16.mxu0 %v1831
    %2754 = vmatpush1.bf16.msra.mxu0 %v1830
    %2755 = vmatprep.subr.bf16.mxu0 %v1839
    %2756 = vmatpush1.bf16.msra.mxu0 %v1838
    %2757 = vmatprep.subr.bf16.mxu0 %v1847
    %2758 = vmatpush1.bf16.msra.mxu0 %v1846
    %2759 = vmatprep.subr.bf16.mxu0 %v1855
    %2760 = vmatpush1.bf16.msra.mxu0 %v1854
    %2761 = vmatprep.subr.bf16.mxu0 %v1863
    %2762 = vmatpush1.bf16.msra.mxu0 %v1862
    %2763 = vmatprep.subr.bf16.mxu0 %v1871
    %2764 = vmatpush1.bf16.msra.mxu0 %v1870
    %2765 = vmatprep.subr.bf16.mxu0 %v1879
    %2766 = vmatpush1.bf16.msra.mxu0 %v1878
    %2767 = vmatprep.subr.bf16.mxu0 %v1887
    %2768 = vmatpush1.bf16.msra.mxu0 %v1886
    %2769 = vmatprep.subr.bf16.mxu0 %v1895
    %2770 = vmatpush1.bf16.msra.mxu0 %v1894
    %2771 = vmatprep.subr.bf16.mxu0 %v1903
    %2772 = vmatpush1.bf16.msra.mxu0 %v1902
    %2773 = vmatprep.subr.bf16.mxu0 %v1911
    %2774 = vmatpush1.bf16.msra.mxu0 %v1910
    %2775 = vmatprep.subr.bf16.mxu0 %v1919
    %2776 = vmatpush1.bf16.msra.mxu0 %v1918
    %2777 = vmatprep.subr.bf16.mxu0 %v1927
    %2778 = vmatpush1.bf16.msra.mxu0 %v1926
    %2779 = vmatprep.subr.bf16.mxu0 %v1935
    %2780 = vmatpush1.bf16.msra.mxu0 %v1934
    %2781 = vmatprep.subr.bf16.mxu0 %v1943
    %2782 = vmatpush1.bf16.msra.mxu0 %v1942
    %2783 = vmatprep.subr.bf16.mxu0 %v1951
    %2784 = vmatpush1.bf16.msra.mxu0 %v1950
    %2785 = vmatprep.mubr.bf16.mxu0 %v537
    %2786 = vmatmul.mubr.bf16.gmra.mrb[0].mxu0 %v536
    %v2787 = vpop.f32.mrb[0].mxu0
    %v2788 = vadd.f32 %v2747, %v2787
    %v2789 = vpop.f32.mrb[0].mxu0
    %v2790 = vadd.f32 %v2749, %v2789
    %v2791 = vpop.f32.mrb[0].mxu0
    %v2792 = vpop.f32.mrb[0].mxu0
    %2793 = vdwg.mxu0
    %2794 = vmatprep.subr.bf16.mxu0 %v1959
    %2795 = vmatpush1.bf16.msra.mxu0 %v1958
    %2796 = vmatprep.subr.bf16.mxu0 %v1967
    %2797 = vmatpush1.bf16.msra.mxu0 %v1966
    %2798 = vmatprep.subr.bf16.mxu0 %v1975
    %2799 = vmatpush1.bf16.msra.mxu0 %v1974
    %2800 = vmatprep.subr.bf16.mxu0 %v1983
    %2801 = vmatpush1.bf16.msra.mxu0 %v1982
    %2802 = vmatprep.subr.bf16.mxu0 %v1991
    %2803 = vmatpush1.bf16.msra.mxu0 %v1990
    %2804 = vmatprep.subr.bf16.mxu0 %v1999
    %2805 = vmatpush1.bf16.msra.mxu0 %v1998
    %2806 = vmatprep.subr.bf16.mxu0 %v2007
    %2807 = vmatpush1.bf16.msra.mxu0 %v2006
    %2808 = vmatprep.subr.bf16.mxu0 %v2015
    %2809 = vmatpush1.bf16.msra.mxu0 %v2014
    %2810 = vmatprep.subr.bf16.mxu0 %v2023
    %2811 = vmatpush1.bf16.msra.mxu0 %v2022
    %2812 = vmatprep.subr.bf16.mxu0 %v2031
    %2813 = vmatpush1.bf16.msra.mxu0 %v2030
    %2814 = vmatprep.subr.bf16.mxu0 %v2039
    %2815 = vmatpush1.bf16.msra.mxu0 %v2038
    %2816 = vmatprep.subr.bf16.mxu0 %v2047
    %2817 = vmatpush1.bf16.msra.mxu0 %v2046
    %2818 = vmatprep.subr.bf16.mxu0 %v2055
    %2819 = vmatpush1.bf16.msra.mxu0 %v2054
    %2820 = vmatprep.subr.bf16.mxu0 %v2063
    %2821 = vmatpush1.bf16.msra.mxu0 %v2062
    %2822 = vmatprep.subr.bf16.mxu0 %v2071
    %2823 = vmatpush1.bf16.msra.mxu0 %v2070
    %2824 = vmatprep.subr.bf16.mxu0 %v2079
    %2825 = vmatpush1.bf16.msra.mxu0 %v2078
    %2826 = vmatprep.mubr.bf16.mxu0 %v539
    %2827 = vmatmul.mubr.bf16.gmra.mrb[0].mxu0 %v538
    %v2828 = vpop.f32.mrb[0].mxu0
    %v2829 = vadd.f32 %v2788, %v2828
    %v2830 = vpop.f32.mrb[0].mxu0
    %v2831 = vadd.f32 %v2790, %v2830
    %v2832 = vpop.f32.mrb[0].mxu0
    %v2833 = vpop.f32.mrb[0].mxu0
    %2834 = vdwg.mxu0
    %2835 = vmatprep.subr.bf16.mxu0 %v1705
    %2836 = vmatpush1.bf16.msra.mxu0 %v1704
    %2837 = vmatprep.subr.bf16.mxu0 %v1713
    %2838 = vmatpush1.bf16.msra.mxu0 %v1712
    %2839 = vmatprep.subr.bf16.mxu0 %v1721
    %2840 = vmatpush1.bf16.msra.mxu0 %v1720
    %2841 = vmatprep.subr.bf16.mxu0 %v1729
    %2842 = vmatpush1.bf16.msra.mxu0 %v1728
    %2843 = vmatprep.subr.bf16.mxu0 %v1737
    %2844 = vmatpush1.bf16.msra.mxu0 %v1736
    %2845 = vmatprep.subr.bf16.mxu0 %v1745
    %2846 = vmatpush1.bf16.msra.mxu0 %v1744
    %2847 = vmatprep.subr.bf16.mxu0 %v1753
    %2848 = vmatpush1.bf16.msra.mxu0 %v1752
    %2849 = vmatprep.subr.bf16.mxu0 %v1761
    %2850 = vmatpush1.bf16.msra.mxu0 %v1760
    %2851 = vmatprep.subr.bf16.mxu0 %v1769
    %2852 = vmatpush1.bf16.msra.mxu0 %v1768
    %2853 = vmatprep.subr.bf16.mxu0 %v1777
    %2854 = vmatpush1.bf16.msra.mxu0 %v1776
    %2855 = vmatprep.subr.bf16.mxu0 %v1785
    %2856 = vmatpush1.bf16.msra.mxu0 %v1784
    %2857 = vmatprep.subr.bf16.mxu0 %v1793
    %2858 = vmatpush1.bf16.msra.mxu0 %v1792
    %2859 = vmatprep.subr.bf16.mxu0 %v1801
    %2860 = vmatpush1.bf16.msra.mxu0 %v1800
    %2861 = vmatprep.subr.bf16.mxu0 %v1809
    %2862 = vmatpush1.bf16.msra.mxu0 %v1808
    %2863 = vmatprep.subr.bf16.mxu0 %v1817
    %2864 = vmatpush1.bf16.msra.mxu0 %v1816
    %2865 = vmatprep.subr.bf16.mxu0 %v1825
    %2866 = vmatpush1.bf16.msra.mxu0 %v1824
    %2867 = vmatprep.mubr.bf16.mxu0 %v535
    %2868 = vmatmul.mubr.bf16.gmra.mrb[0].mxu0 %v534
    %v2869 = vpop.f32.mrb[0].mxu0
    %v2870 = vadd.f32 0.0, %v2869
    %v2871 = vpop.f32.mrb[0].mxu0
    %v2872 = vadd.f32 0.0, %v2871
    %v2873 = vpop.f32.mrb[0].mxu0
    %v2874 = vpop.f32.mrb[0].mxu0
    %2875 = vdwg.mxu0
    %2876 = vmatprep.subr.bf16.mxu0 %v1833
    %2877 = vmatpush1.bf16.msra.mxu0 %v1832
    %2878 = vmatprep.subr.bf16.mxu0 %v1841
    %2879 = vmatpush1.bf16.msra.mxu0 %v1840
    %2880 = vmatprep.subr.bf16.mxu0 %v1849
    %2881 = vmatpush1.bf16.msra.mxu0 %v1848
    %2882 = vmatprep.subr.bf16.mxu0 %v1857
    %2883 = vmatpush1.bf16.msra.mxu0 %v1856
    %2884 = vmatprep.subr.bf16.mxu0 %v1865
    %2885 = vmatpush1.bf16.msra.mxu0 %v1864
    %2886 = vmatprep.subr.bf16.mxu0 %v1873
    %2887 = vmatpush1.bf16.msra.mxu0 %v1872
    %2888 = vmatprep.subr.bf16.mxu0 %v1881
    %2889 = vmatpush1.bf16.msra.mxu0 %v1880
    %2890 = vmatprep.subr.bf16.mxu0 %v1889
    %2891 = vmatpush1.bf16.msra.mxu0 %v1888
    %2892 = vmatprep.subr.bf16.mxu0 %v1897
    %2893 = vmatpush1.bf16.msra.mxu0 %v1896
    %2894 = vmatprep.subr.bf16.mxu0 %v1905
    %2895 = vmatpush1.bf16.msra.mxu0 %v1904
    %2896 = vmatprep.subr.bf16.mxu0 %v1913
    %2897 = vmatpush1.bf16.msra.mxu0 %v1912
    %2898 = vmatprep.subr.bf16.mxu0 %v1921
    %2899 = vmatpush1.bf16.msra.mxu0 %v1920
    %2900 = vmatprep.subr.bf16.mxu0 %v1929
    %2901 = vmatpush1.bf16.msra.mxu0 %v1928
    %2902 = vmatprep.subr.bf16.mxu0 %v1937
    %2903 = vmatpush1.bf16.msra.mxu0 %v1936
    %2904 = vmatprep.subr.bf16.mxu0 %v1945
    %2905 = vmatpush1.bf16.msra.mxu0 %v1944
    %2906 = vmatprep.subr.bf16.mxu0 %v1953
    %2907 = vmatpush1.bf16.msra.mxu0 %v1952
    %2908 = vmatprep.mubr.bf16.mxu0 %v537
    %2909 = vmatmul.mubr.bf16.gmra.mrb[0].mxu0 %v536
    %v2910 = vpop.f32.mrb[0].mxu0
    %v2911 = vadd.f32 %v2870, %v2910
    %v2912 = vpop.f32.mrb[0].mxu0
    %v2913 = vadd.f32 %v2872, %v2912
    %v2914 = vpop.f32.mrb[0].mxu0
    %v2915 = vpop.f32.mrb[0].mxu0
    %2916 = vdwg.mxu0
    %2917 = vmatprep.subr.bf16.mxu0 %v1961
    %2918 = vmatpush1.bf16.msra.mxu0 %v1960
    %2919 = vmatprep.subr.bf16.mxu0 %v1969
    %2920 = vmatpush1.bf16.msra.mxu0 %v1968
    %2921 = vmatprep.subr.bf16.mxu0 %v1977
    %2922 = vmatpush1.bf16.msra.mxu0 %v1976
    %2923 = vmatprep.subr.bf16.mxu0 %v1985
    %2924 = vmatpush1.bf16.msra.mxu0 %v1984
    %2925 = vmatprep.subr.bf16.mxu0 %v1993
    %2926 = vmatpush1.bf16.msra.mxu0 %v1992
    %2927 = vmatprep.subr.bf16.mxu0 %v2001
    %2928 = vmatpush1.bf16.msra.mxu0 %v2000
    %2929 = vmatprep.subr.bf16.mxu0 %v2009
    %2930 = vmatpush1.bf16.msra.mxu0 %v2008
    %2931 = vmatprep.subr.bf16.mxu0 %v2017
    %2932 = vmatpush1.bf16.msra.mxu0 %v2016
    %2933 = vmatprep.subr.bf16.mxu0 %v2025
    %2934 = vmatpush1.bf16.msra.mxu0 %v2024
    %2935 = vmatprep.subr.bf16.mxu0 %v2033
    %2936 = vmatpush1.bf16.msra.mxu0 %v2032
    %2937 = vmatprep.subr.bf16.mxu0 %v2041
    %2938 = vmatpush1.bf16.msra.mxu0 %v2040
    %2939 = vmatprep.subr.bf16.mxu0 %v2049
    %2940 = vmatpush1.bf16.msra.mxu0 %v2048
    %2941 = vmatprep.subr.bf16.mxu0 %v2057
    %2942 = vmatpush1.bf16.msra.mxu0 %v2056
    %2943 = vmatprep.subr.bf16.mxu0 %v2065
    %2944 = vmatpush1.bf16.msra.mxu0 %v2064
    %2945 = vmatprep.subr.bf16.mxu0 %v2073
    %2946 = vmatpush1.bf16.msra.mxu0 %v2072
    %2947 = vmatprep.subr.bf16.mxu0 %v2081
    %2948 = vmatpush1.bf16.msra.mxu0 %v2080
    %2949 = vmatprep.mubr.bf16.mxu0 %v539
    %2950 = vmatmul.mubr.bf16.gmra.mrb[0].mxu0 %v538
    %v2951 = vpop.f32.mrb[0].mxu0
    %v2952 = vadd.f32 %v2911, %v2951
    %v2953 = vpop.f32.mrb[0].mxu0
    %v2954 = vadd.f32 %v2913, %v2953
    %v2955 = vpop.f32.mrb[0].mxu0
    %v2956 = vpop.f32.mrb[0].mxu0
    %2957 = vdwg.mxu0
    %v2958 = vld [vmem:[#allocation14] ss:$8 sm:$0xf]
    %s2959 = scalar_lea.vmem [#allocation14], 1
    %v2960 = vld [vmem:[%s2959] ss:$8 sm:$0xf]
    %s2961 = scalar_lea.vmem [#allocation14], 2
    %v2962 = vld [vmem:[%s2961] ss:$8 sm:$0xf]
    %v2964 = vlaneseq
    %v2965 = vshrl.u32 %v2964, 7
    %v2966 = vsub.s32 0, %v2965
    %v2967 = vrot.slane %v2958, %v2966
    %v2968 = vlaneseq
    %v2969 = vshrl.u32 %v2968, 7
    %v2970 = vsub.s32 1, %v2969
    %v2971 = vrot.slane %v2958, %v2970
    %v2972 = vlaneseq
    %v2973 = vshrl.u32 %v2972, 7
    %v2974 = vsub.s32 2, %v2973
    %v2975 = vrot.slane %v2958, %v2974
    %v2976 = vlaneseq
    %v2977 = vshrl.u32 %v2976, 7
    %v2978 = vsub.s32 3, %v2977
    %v2979 = vrot.slane %v2958, %v2978
    %v2984 = vadd.f32 %v2583, %v2967
    %v2985 = vadd.f32 %v2585, %v2971
    %v2986 = vadd.f32 %v2706, %v2975
    %v2987 = vadd.f32 %v2708, %v2979
    %v2988 = vadd.f32 %v2984, %v2985
    %v2989 = vadd.f32 %v2988, %v2986
    %v2990 = vadd.f32 %v2989, %v2987
    %2991 = vadd.xlane.f32.xlu0 %v2990
    %v2992 = vpop.xlane.xlu0 %2991
    %v2993 = vmul.f32 %v2984, %v2984
    %v2994 = vmul.f32 %v2985, %v2985
    %v2995 = vmul.f32 %v2986, %v2986
    %v2996 = vmul.f32 %v2987, %v2987
    %v2997 = vadd.f32 %v2993, %v2994
    %v2998 = vadd.f32 %v2997, %v2995
    %v2999 = vadd.f32 %v2998, %v2996
    %3000 = vadd.xlane.f32.xlu0 %v2999
    %v3001 = vpop.xlane.xlu0 %3000
    %v3002 = vmul.f32 %v2992, 0.001953125
    %v3003 = vmul.f32 %v3001, 0.001953125
    %v3004 = vmul.f32 %v3002, %v3002
    %v3005 = vsub.f32 %v3003, %v3004
    %v3006 = vmax.f32 %v3005, 0.0
    %v3007 = vsub.f32 %v2984, %v3002
    %v3008 = vsub.f32 %v2985, %v3002
    %v3009 = vsub.f32 %v2986, %v3002
    %v3010 = vsub.f32 %v2987, %v3002
    %v3011 = vadd.f32 %v3006, 1e-05
    %v3012 = vrsqrt.pop %v3011
    %v3013 = vmul.f32 %v3007, %v3012
    %v3014 = vmul.f32 %v3008, %v3012
    %v3015 = vmul.f32 %v3009, %v3012
    %v3016 = vmul.f32 %v3010, %v3012
    %v3018 = vlaneseq
    %v3019 = vshrl.u32 %v3018, 7
    %v3020 = vsub.s32 0, %v3019
    %v3021 = vrot.slane %v2960, %v3020
    %v3022 = vlaneseq
    %v3023 = vshrl.u32 %v3022, 7
    %v3024 = vsub.s32 1, %v3023
    %v3025 = vrot.slane %v2960, %v3024
    %v3026 = vlaneseq
    %v3027 = vshrl.u32 %v3026, 7
    %v3028 = vsub.s32 2, %v3027
    %v3029 = vrot.slane %v2960, %v3028
    %v3030 = vlaneseq
    %v3031 = vshrl.u32 %v3030, 7
    %v3032 = vsub.s32 3, %v3031
    %v3033 = vrot.slane %v2960, %v3032
    %v3038 = vmul.f32 %v3013, %v3021
    %v3039 = vmul.f32 %v3014, %v3025
    %v3040 = vmul.f32 %v3015, %v3029
    %v3041 = vmul.f32 %v3016, %v3033
    %v3043 = vlaneseq
    %v3044 = vshrl.u32 %v3043, 7
    %v3045 = vsub.s32 0, %v3044
    %v3046 = vrot.slane %v2962, %v3045
    %v3047 = vlaneseq
    %v3048 = vshrl.u32 %v3047, 7
    %v3049 = vsub.s32 1, %v3048
    %v3050 = vrot.slane %v2962, %v3049
    %v3051 = vlaneseq
    %v3052 = vshrl.u32 %v3051, 7
    %v3053 = vsub.s32 2, %v3052
    %v3054 = vrot.slane %v2962, %v3053
    %v3055 = vlaneseq
    %v3056 = vshrl.u32 %v3055, 7
    %v3057 = vsub.s32 3, %v3056
    %v3058 = vrot.slane %v2962, %v3057
    %v3063 = vadd.f32 %v3038, %v3046
    %v3064 = vadd.f32 %v3039, %v3050
    %v3065 = vadd.f32 %v3040, %v3054
    %v3066 = vadd.f32 %v3041, %v3058
    %v3067 = vmax.f32 %v3063, 0.0
    %v3068 = vmax.f32 %v3064, 0.0
    %v3069 = vmax.f32 %v3065, 0.0
    %v3070 = vmax.f32 %v3066, 0.0
    %v3071 = vpack.c.bf16 %v3067, %v3067
    %v3072 = vpack.c.bf16 %v3068, %v3068
    %v3073 = vpack.c.bf16 %v3069, %v3069
    %v3074 = vpack.c.bf16 %v3070, %v3070
    %s3075 = scalar_lea.vmem [#allocation14], 33
    %v3076 = vld [vmem:[%s3075] ss:$8 sm:$0xf]
    %s3077 = scalar_lea.vmem [#allocation14], 34
    %v3078 = vld [vmem:[%s3077] ss:$8 sm:$0xf]
    %s3079 = scalar_lea.vmem [#allocation14], 35
    %v3080 = vld [vmem:[%s3079] ss:$8 sm:$0xf]
    %v3082 = vlaneseq
    %v3083 = vshrl.u32 %v3082, 7
    %v3084 = vsub.s32 0, %v3083
    %v3085 = vrot.slane %v3076, %v3084
    %v3086 = vlaneseq
    %v3087 = vshrl.u32 %v3086, 7
    %v3088 = vsub.s32 1, %v3087
    %v3089 = vrot.slane %v3076, %v3088
    %v3090 = vlaneseq
    %v3091 = vshrl.u32 %v3090, 7
    %v3092 = vsub.s32 2, %v3091
    %v3093 = vrot.slane %v3076, %v3092
    %v3094 = vlaneseq
    %v3095 = vshrl.u32 %v3094, 7
    %v3096 = vsub.s32 3, %v3095
    %v3097 = vrot.slane %v3076, %v3096
    %v3102 = vadd.f32 %v2829, %v3085
    %v3103 = vadd.f32 %v2831, %v3089
    %v3104 = vadd.f32 %v2952, %v3093
    %v3105 = vadd.f32 %v2954, %v3097
    %v3106 = vadd.f32 %v3102, %v3103
    %v3107 = vadd.f32 %v3106, %v3104
    %v3108 = vadd.f32 %v3107, %v3105
    %3109 = vadd.xlane.f32.xlu0 %v3108
    %v3110 = vpop.xlane.xlu0 %3109
    %v3111 = vmul.f32 %v3102, %v3102
    %v3112 = vmul.f32 %v3103, %v3103
    %v3113 = vmul.f32 %v3104, %v3104
    %v3114 = vmul.f32 %v3105, %v3105
    %v3115 = vadd.f32 %v3111, %v3112
    %v3116 = vadd.f32 %v3115, %v3113
    %v3117 = vadd.f32 %v3116, %v3114
    %3118 = vadd.xlane.f32.xlu0 %v3117
    %v3119 = vpop.xlane.xlu0 %3118
    %v3120 = vmul.f32 %v3110, 0.001953125
    %v3121 = vmul.f32 %v3119, 0.001953125
    %v3122 = vmul.f32 %v3120, %v3120
    %v3123 = vsub.f32 %v3121, %v3122
    %v3124 = vmax.f32 %v3123, 0.0
    %v3125 = vsub.f32 %v3102, %v3120
    %v3126 = vsub.f32 %v3103, %v3120
    %v3127 = vsub.f32 %v3104, %v3120
    %v3128 = vsub.f32 %v3105, %v3120
    %v3129 = vadd.f32 %v3124, 1e-05
    %v3130 = vrsqrt.pop %v3129
    %v3131 = vmul.f32 %v3125, %v3130
    %v3132 = vmul.f32 %v3126, %v3130
    %v3133 = vmul.f32 %v3127, %v3130
    %v3134 = vmul.f32 %v3128, %v3130
    %v3136 = vlaneseq
    %v3137 = vshrl.u32 %v3136, 7
    %v3138 = vsub.s32 0, %v3137
    %v3139 = vrot.slane %v3078, %v3138
    %v3140 = vlaneseq
    %v3141 = vshrl.u32 %v3140, 7
    %v3142 = vsub.s32 1, %v3141
    %v3143 = vrot.slane %v3078, %v3142
    %v3144 = vlaneseq
    %v3145 = vshrl.u32 %v3144, 7
    %v3146 = vsub.s32 2, %v3145
    %v3147 = vrot.slane %v3078, %v3146
    %v3148 = vlaneseq
    %v3149 = vshrl.u32 %v3148, 7
    %v3150 = vsub.s32 3, %v3149
    %v3151 = vrot.slane %v3078, %v3150
    %v3156 = vmul.f32 %v3131, %v3139
    %v3157 = vmul.f32 %v3132, %v3143
    %v3158 = vmul.f32 %v3133, %v3147
    %v3159 = vmul.f32 %v3134, %v3151
    %v3161 = vlaneseq
    %v3162 = vshrl.u32 %v3161, 7
    %v3163 = vsub.s32 0, %v3162
    %v3164 = vrot.slane %v3080, %v3163
    %v3165 = vlaneseq
    %v3166 = vshrl.u32 %v3165, 7
    %v3167 = vsub.s32 1, %v3166
    %v3168 = vrot.slane %v3080, %v3167
    %v3169 = vlaneseq
    %v3170 = vshrl.u32 %v3169, 7
    %v3171 = vsub.s32 2, %v3170
    %v3172 = vrot.slane %v3080, %v3171
    %v3173 = vlaneseq
    %v3174 = vshrl.u32 %v3173, 7
    %v3175 = vsub.s32 3, %v3174
    %v3176 = vrot.slane %v3080, %v3175
    %v3181 = vadd.f32 %v3156, %v3164
    %v3182 = vadd.f32 %v3157, %v3168
    %v3183 = vadd.f32 %v3158, %v3172
    %v3184 = vadd.f32 %v3159, %v3176
    %v3185 = vmax.f32 %v3181, 0.0
    %v3186 = vmax.f32 %v3182, 0.0
    %v3187 = vmax.f32 %v3183, 0.0
    %v3188 = vmax.f32 %v3184, 0.0
    %v3189 = vpack.c.bf16 %v3185, %v3185
    %v3190 = vpack.c.bf16 %v3186, %v3186
    %v3191 = vpack.c.bf16 %v3187, %v3187
    %v3192 = vpack.c.bf16 %v3188, %v3188
    %v3193 = vld [vmem:[#allocation7] sm:$0xff]
    %v3194 = vld [vmem:[#allocation7 + $0x8] sm:$0xff]
    %v3195 = vld [vmem:[#allocation7 + $0x10] sm:$0xff]
    %v3196 = vld [vmem:[#allocation7 + $0x18] sm:$0xff]
    %v3197 = vld [vmem:[#allocation7 + $0x20] sm:$0xff]
    %v3198 = vld [vmem:[#allocation7 + $0x28] sm:$0xff]
    %v3199 = vld [vmem:[#allocation7 + $0x30] sm:$0xff]
    %v3200 = vld [vmem:[#allocation7 + $0x38] sm:$0xff]
    %v3201 = vld [vmem:[#allocation7 + $0x40] sm:$0xff]
    %v3202 = vld [vmem:[#allocation7 + $0x48] sm:$0xff]
    %v3203 = vld [vmem:[#allocation7 + $0x50] sm:$0xff]
    %v3204 = vld [vmem:[#allocation7 + $0x58] sm:$0xff]
    %v3205 = vld [vmem:[#allocation7 + $0x60] sm:$0xff]
    %v3206 = vld [vmem:[#allocation7 + $0x68] sm:$0xff]
    %v3207 = vld [vmem:[#allocation7 + $0x70] sm:$0xff]
    %v3208 = vld [vmem:[#allocation7 + $0x78] sm:$0xff]
    %v3209 = vld [vmem:[#allocation7 + $0x80] sm:$0xff]
    %v3210 = vld [vmem:[#allocation7 + $0x88] sm:$0xff]
    %v3211 = vld [vmem:[#allocation7 + $0x90] sm:$0xff]
    %v3212 = vld [vmem:[#allocation7 + $0x98] sm:$0xff]
    %v3213 = vld [vmem:[#allocation7 + $0xa0] sm:$0xff]
    %v3214 = vld [vmem:[#allocation7 + $0xa8] sm:$0xff]
    %v3215 = vld [vmem:[#allocation7 + $0xb0] sm:$0xff]
    %v3216 = vld [vmem:[#allocation7 + $0xb8] sm:$0xff]
    %v3217 = vld [vmem:[#allocation7 + $0xc0] sm:$0xff]
    %v3218 = vld [vmem:[#allocation7 + $0xc8] sm:$0xff]
    %v3219 = vld [vmem:[#allocation7 + $0xd0] sm:$0xff]
    %v3220 = vld [vmem:[#allocation7 + $0xd8] sm:$0xff]
    %v3221 = vld [vmem:[#allocation7 + $0xe0] sm:$0xff]
    %v3222 = vld [vmem:[#allocation7 + $0xe8] sm:$0xff]
    %v3223 = vld [vmem:[#allocation7 + $0xf0] sm:$0xff]
    %v3224 = vld [vmem:[#allocation7 + $0xf8] sm:$0xff]
    %v3225 = vld [vmem:[#allocation7 + $0x100] sm:$0xff]
    %v3226 = vld [vmem:[#allocation7 + $0x108] sm:$0xff]
    %v3227 = vld [vmem:[#allocation7 + $0x110] sm:$0xff]
    %v3228 = vld [vmem:[#allocation7 + $0x118] sm:$0xff]
    %v3229 = vld [vmem:[#allocation7 + $0x120] sm:$0xff]
    %v3230 = vld [vmem:[#allocation7 + $0x128] sm:$0xff]
    %v3231 = vld [vmem:[#allocation7 + $0x130] sm:$0xff]
    %v3232 = vld [vmem:[#allocation7 + $0x138] sm:$0xff]
    %v3233 = vld [vmem:[#allocation7 + $0x140] sm:$0xff]
    %v3234 = vld [vmem:[#allocation7 + $0x148] sm:$0xff]
    %v3235 = vld [vmem:[#allocation7 + $0x150] sm:$0xff]
    %v3236 = vld [vmem:[#allocation7 + $0x158] sm:$0xff]
    %v3237 = vld [vmem:[#allocation7 + $0x160] sm:$0xff]
    %v3238 = vld [vmem:[#allocation7 + $0x168] sm:$0xff]
    %v3239 = vld [vmem:[#allocation7 + $0x170] sm:$0xff]
    %v3240 = vld [vmem:[#allocation7 + $0x178] sm:$0xff]
    %v3241 = vld [vmem:[#allocation7 + $0x180] sm:$0xff]
    %v3242 = vld [vmem:[#allocation7 + $0x188] sm:$0xff]
    %v3243 = vld [vmem:[#allocation7 + $0x190] sm:$0xff]
    %v3244 = vld [vmem:[#allocation7 + $0x198] sm:$0xff]
    %v3245 = vld [vmem:[#allocation7 + $0x1a0] sm:$0xff]
    %v3246 = vld [vmem:[#allocation7 + $0x1a8] sm:$0xff]
    %v3247 = vld [vmem:[#allocation7 + $0x1b0] sm:$0xff]
    %v3248 = vld [vmem:[#allocation7 + $0x1b8] sm:$0xff]
    %v3249 = vld [vmem:[#allocation7 + $0x1c0] sm:$0xff]
    %v3250 = vld [vmem:[#allocation7 + $0x1c8] sm:$0xff]
    %v3251 = vld [vmem:[#allocation7 + $0x1d0] sm:$0xff]
    %v3252 = vld [vmem:[#allocation7 + $0x1d8] sm:$0xff]
    %v3253 = vld [vmem:[#allocation7 + $0x1e0] sm:$0xff]
    %v3254 = vld [vmem:[#allocation7 + $0x1e8] sm:$0xff]
    %v3255 = vld [vmem:[#allocation7 + $0x1f0] sm:$0xff]
    %v3256 = vld [vmem:[#allocation7 + $0x1f8] sm:$0xff]
    %s3257 = scalar_lea.vmem [#allocation14], 3
    %v3258 = vld [vmem:[%s3257] ss:$8 sm:$0x3]
    %s3259 = scalar_lea.vmem [#allocation14], 4
    %v3260 = vld [vmem:[%s3259] ss:$8 sm:$0x3]
    %s3261 = scalar_lea.vmem [#allocation14], 5
    %v3262 = vld [vmem:[%s3261] ss:$8 sm:$0x3]
    %v3264 = vlaneseq
    %v3265 = vshrl.u32 %v3264, 7
    %v3266 = vsub.s32 0, %v3265
    %v3267 = vrot.slane %v3258, %v3266
    %v3268 = vlaneseq
    %v3269 = vshrl.u32 %v3268, 7
    %v3270 = vsub.s32 1, %v3269
    %v3271 = vrot.slane %v3258, %v3270
    %v3338 = vunpack.c.l.b16 %v3193
    %v3339 = vunpack.c.h.b16 %v3193
    %v3340 = vunpack.c.l.b16 %v3194
    %v3341 = vunpack.c.h.b16 %v3194
    %v3342 = vunpack.c.l.b16 %v3195
    %v3343 = vunpack.c.h.b16 %v3195
    %v3344 = vunpack.c.l.b16 %v3196
    %v3345 = vunpack.c.h.b16 %v3196
    %v3346 = vunpack.c.l.b16 %v3197
    %v3347 = vunpack.c.h.b16 %v3197
    %v3348 = vunpack.c.l.b16 %v3198
    %v3349 = vunpack.c.h.b16 %v3198
    %v3350 = vunpack.c.l.b16 %v3199
    %v3351 = vunpack.c.h.b16 %v3199
    %v3352 = vunpack.c.l.b16 %v3200
    %v3353 = vunpack.c.h.b16 %v3200
    %v3354 = vunpack.c.l.b16 %v3201
    %v3355 = vunpack.c.h.b16 %v3201
    %v3356 = vunpack.c.l.b16 %v3202
    %v3357 = vunpack.c.h.b16 %v3202
    %v3358 = vunpack.c.l.b16 %v3203
    %v3359 = vunpack.c.h.b16 %v3203
    %v3360 = vunpack.c.l.b16 %v3204
    %v3361 = vunpack.c.h.b16 %v3204
    %v3362 = vunpack.c.l.b16 %v3205
    %v3363 = vunpack.c.h.b16 %v3205
    %v3364 = vunpack.c.l.b16 %v3206
    %v3365 = vunpack.c.h.b16 %v3206
    %v3366 = vunpack.c.l.b16 %v3207
    %v3367 = vunpack.c.h.b16 %v3207
    %v3368 = vunpack.c.l.b16 %v3208
    %v3369 = vunpack.c.h.b16 %v3208
    %v3370 = vunpack.c.l.b16 %v3209
    %v3371 = vunpack.c.h.b16 %v3209
    %v3372 = vunpack.c.l.b16 %v3210
    %v3373 = vunpack.c.h.b16 %v3210
    %v3374 = vunpack.c.l.b16 %v3211
    %v3375 = vunpack.c.h.b16 %v3211
    %v3376 = vunpack.c.l.b16 %v3212
    %v3377 = vunpack.c.h.b16 %v3212
    %v3378 = vunpack.c.l.b16 %v3213
    %v3379 = vunpack.c.h.b16 %v3213
    %v3380 = vunpack.c.l.b16 %v3214
    %v3381 = vunpack.c.h.b16 %v3214
    %v3382 = vunpack.c.l.b16 %v3215
    %v3383 = vunpack.c.h.b16 %v3215
    %v3384 = vunpack.c.l.b16 %v3216
    %v3385 = vunpack.c.h.b16 %v3216
    %v3386 = vunpack.c.l.b16 %v3217
    %v3387 = vunpack.c.h.b16 %v3217
    %v3388 = vunpack.c.l.b16 %v3218
    %v3389 = vunpack.c.h.b16 %v3218
    %v3390 = vunpack.c.l.b16 %v3219
    %v3391 = vunpack.c.h.b16 %v3219
    %v3392 = vunpack.c.l.b16 %v3220
    %v3393 = vunpack.c.h.b16 %v3220
    %v3394 = vunpack.c.l.b16 %v3221
    %v3395 = vunpack.c.h.b16 %v3221
    %v3396 = vunpack.c.l.b16 %v3222
    %v3397 = vunpack.c.h.b16 %v3222
    %v3398 = vunpack.c.l.b16 %v3223
    %v3399 = vunpack.c.h.b16 %v3223
    %v3400 = vunpack.c.l.b16 %v3224
    %v3401 = vunpack.c.h.b16 %v3224
    %v3402 = vunpack.c.l.b16 %v3225
    %v3403 = vunpack.c.h.b16 %v3225
    %v3404 = vunpack.c.l.b16 %v3226
    %v3405 = vunpack.c.h.b16 %v3226
    %v3406 = vunpack.c.l.b16 %v3227
    %v3407 = vunpack.c.h.b16 %v3227
    %v3408 = vunpack.c.l.b16 %v3228
    %v3409 = vunpack.c.h.b16 %v3228
    %v3410 = vunpack.c.l.b16 %v3229
    %v3411 = vunpack.c.h.b16 %v3229
    %v3412 = vunpack.c.l.b16 %v3230
    %v3413 = vunpack.c.h.b16 %v3230
    %v3414 = vunpack.c.l.b16 %v3231
    %v3415 = vunpack.c.h.b16 %v3231
    %v3416 = vunpack.c.l.b16 %v3232
    %v3417 = vunpack.c.h.b16 %v3232
    %v3418 = vunpack.c.l.b16 %v3233
    %v3419 = vunpack.c.h.b16 %v3233
    %v3420 = vunpack.c.l.b16 %v3234
    %v3421 = vunpack.c.h.b16 %v3234
    %v3422 = vunpack.c.l.b16 %v3235
    %v3423 = vunpack.c.h.b16 %v3235
    %v3424 = vunpack.c.l.b16 %v3236
    %v3425 = vunpack.c.h.b16 %v3236
    %v3426 = vunpack.c.l.b16 %v3237
    %v3427 = vunpack.c.h.b16 %v3237
    %v3428 = vunpack.c.l.b16 %v3238
    %v3429 = vunpack.c.h.b16 %v3238
    %v3430 = vunpack.c.l.b16 %v3239
    %v3431 = vunpack.c.h.b16 %v3239
    %v3432 = vunpack.c.l.b16 %v3240
    %v3433 = vunpack.c.h.b16 %v3240
    %v3434 = vunpack.c.l.b16 %v3241
    %v3435 = vunpack.c.h.b16 %v3241
    %v3436 = vunpack.c.l.b16 %v3242
    %v3437 = vunpack.c.h.b16 %v3242
    %v3438 = vunpack.c.l.b16 %v3243
    %v3439 = vunpack.c.h.b16 %v3243
    %v3440 = vunpack.c.l.b16 %v3244
    %v3441 = vunpack.c.h.b16 %v3244
    %v3442 = vunpack.c.l.b16 %v3245
    %v3443 = vunpack.c.h.b16 %v3245
    %v3444 = vunpack.c.l.b16 %v3246
    %v3445 = vunpack.c.h.b16 %v3246
    %v3446 = vunpack.c.l.b16 %v3247
    %v3447 = vunpack.c.h.b16 %v3247
    %v3448 = vunpack.c.l.b16 %v3248
    %v3449 = vunpack.c.h.b16 %v3248
    %v3450 = vunpack.c.l.b16 %v3249
    %v3451 = vunpack.c.h.b16 %v3249
    %v3452 = vunpack.c.l.b16 %v3250
    %v3453 = vunpack.c.h.b16 %v3250
    %v3454 = vunpack.c.l.b16 %v3251
    %v3455 = vunpack.c.h.b16 %v3251
    %v3456 = vunpack.c.l.b16 %v3252
    %v3457 = vunpack.c.h.b16 %v3252
    %v3458 = vunpack.c.l.b16 %v3253
    %v3459 = vunpack.c.h.b16 %v3253
    %v3460 = vunpack.c.l.b16 %v3254
    %v3461 = vunpack.c.h.b16 %v3254
    %v3462 = vunpack.c.l.b16 %v3255
    %v3463 = vunpack.c.h.b16 %v3255
    %v3464 = vunpack.c.l.b16 %v3256
    %v3465 = vunpack.c.h.b16 %v3256
    %v3466 = vpack.c.b16 %v3340, %v3338
    %v3467 = vpack.c.b16 %v3341, %v3339
    %v3468 = vpack.c.b16 %v3344, %v3342
    %v3469 = vpack.c.b16 %v3345, %v3343
    %v3470 = vpack.c.b16 %v3348, %v3346
    %v3471 = vpack.c.b16 %v3349, %v3347
    %v3472 = vpack.c.b16 %v3352, %v3350
    %v3473 = vpack.c.b16 %v3353, %v3351
    %v3474 = vpack.c.b16 %v3356, %v3354
    %v3475 = vpack.c.b16 %v3357, %v3355
    %v3476 = vpack.c.b16 %v3360, %v3358
    %v3477 = vpack.c.b16 %v3361, %v3359
    %v3478 = vpack.c.b16 %v3364, %v3362
    %v3479 = vpack.c.b16 %v3365, %v3363
    %v3480 = vpack.c.b16 %v3368, %v3366
    %v3481 = vpack.c.b16 %v3369, %v3367
    %v3482 = vpack.c.b16 %v3372, %v3370
    %v3483 = vpack.c.b16 %v3373, %v3371
    %v3484 = vpack.c.b16 %v3376, %v3374
    %v3485 = vpack.c.b16 %v3377, %v3375
    %v3486 = vpack.c.b16 %v3380, %v3378
    %v3487 = vpack.c.b16 %v3381, %v3379
    %v3488 = vpack.c.b16 %v3384, %v3382
    %v3489 = vpack.c.b16 %v3385, %v3383
    %v3490 = vpack.c.b16 %v3388, %v3386
    %v3491 = vpack.c.b16 %v3389, %v3387
    %v3492 = vpack.c.b16 %v3392, %v3390
    %v3493 = vpack.c.b16 %v3393, %v3391
    %v3494 = vpack.c.b16 %v3396, %v3394
    %v3495 = vpack.c.b16 %v3397, %v3395
    %v3496 = vpack.c.b16 %v3400, %v3398
    %v3497 = vpack.c.b16 %v3401, %v3399
    %v3498 = vpack.c.b16 %v3404, %v3402
    %v3499 = vpack.c.b16 %v3405, %v3403
    %v3500 = vpack.c.b16 %v3408, %v3406
    %v3501 = vpack.c.b16 %v3409, %v3407
    %v3502 = vpack.c.b16 %v3412, %v3410
    %v3503 = vpack.c.b16 %v3413, %v3411
    %v3504 = vpack.c.b16 %v3416, %v3414
    %v3505 = vpack.c.b16 %v3417, %v3415
    %v3506 = vpack.c.b16 %v3420, %v3418
    %v3507 = vpack.c.b16 %v3421, %v3419
    %v3508 = vpack.c.b16 %v3424, %v3422
    %v3509 = vpack.c.b16 %v3425, %v3423
    %v3510 = vpack.c.b16 %v3428, %v3426
    %v3511 = vpack.c.b16 %v3429, %v3427
    %v3512 = vpack.c.b16 %v3432, %v3430
    %v3513 = vpack.c.b16 %v3433, %v3431
    %v3514 = vpack.c.b16 %v3436, %v3434
    %v3515 = vpack.c.b16 %v3437, %v3435
    %v3516 = vpack.c.b16 %v3440, %v3438
    %v3517 = vpack.c.b16 %v3441, %v3439
    %v3518 = vpack.c.b16 %v3444, %v3442
    %v3519 = vpack.c.b16 %v3445, %v3443
    %v3520 = vpack.c.b16 %v3448, %v3446
    %v3521 = vpack.c.b16 %v3449, %v3447
    %v3522 = vpack.c.b16 %v3452, %v3450
    %v3523 = vpack.c.b16 %v3453, %v3451
    %v3524 = vpack.c.b16 %v3456, %v3454
    %v3525 = vpack.c.b16 %v3457, %v3455
    %v3526 = vpack.c.b16 %v3460, %v3458
    %v3527 = vpack.c.b16 %v3461, %v3459
    %v3528 = vpack.c.b16 %v3464, %v3462
    %v3529 = vpack.c.b16 %v3465, %v3463
    %3594 = vmatprep.subr.bf16.mxu0 %v3467
    %3595 = vmatpush1.bf16.msra.mxu0 %v3466
    %3596 = vmatprep.subr.bf16.mxu0 %v3469
    %3597 = vmatpush1.bf16.msra.mxu0 %v3468
    %3598 = vmatprep.subr.bf16.mxu0 %v3471
    %3599 = vmatpush1.bf16.msra.mxu0 %v3470
    %3600 = vmatprep.subr.bf16.mxu0 %v3473
    %3601 = vmatpush1.bf16.msra.mxu0 %v3472
    %3602 = vmatprep.subr.bf16.mxu0 %v3475
    %3603 = vmatpush1.bf16.msra.mxu0 %v3474
    %3604 = vmatprep.subr.bf16.mxu0 %v3477
    %3605 = vmatpush1.bf16.msra.mxu0 %v3476
    %3606 = vmatprep.subr.bf16.mxu0 %v3479
    %3607 = vmatpush1.bf16.msra.mxu0 %v3478
    %3608 = vmatprep.subr.bf16.mxu0 %v3481
    %3609 = vmatpush1.bf16.msra.mxu0 %v3480
    %3610 = vmatprep.subr.bf16.mxu0 %v3483
    %3611 = vmatpush1.bf16.msra.mxu0 %v3482
    %3612 = vmatprep.subr.bf16.mxu0 %v3485
    %3613 = vmatpush1.bf16.msra.mxu0 %v3484
    %3614 = vmatprep.subr.bf16.mxu0 %v3487
    %3615 = vmatpush1.bf16.msra.mxu0 %v3486
    %3616 = vmatprep.subr.bf16.mxu0 %v3489
    %3617 = vmatpush1.bf16.msra.mxu0 %v3488
    %3618 = vmatprep.subr.bf16.mxu0 %v3491
    %3619 = vmatpush1.bf16.msra.mxu0 %v3490
    %3620 = vmatprep.subr.bf16.mxu0 %v3493
    %3621 = vmatpush1.bf16.msra.mxu0 %v3492
    %3622 = vmatprep.subr.bf16.mxu0 %v3495
    %3623 = vmatpush1.bf16.msra.mxu0 %v3494
    %3624 = vmatprep.subr.bf16.mxu0 %v3497
    %3625 = vmatpush1.bf16.msra.mxu0 %v3496
    %3626 = vmatprep.mubr.bf16.mxu0 %v3072
    %3627 = vmatmul.mubr.bf16.gmra.mrb[0].mxu0 %v3071
    %v3628 = vpop.f32.mrb[0].mxu0
    %v3629 = vadd.f32 %v3267, %v3628
    %v3630 = vpop.f32.mrb[0].mxu0
    %v3631 = vadd.f32 %v3271, %v3630
    %v3632 = vpop.f32.mrb[0].mxu0
    %v3633 = vpop.f32.mrb[0].mxu0
    %3634 = vdwg.mxu0
    %3635 = vmatprep.subr.bf16.mxu0 %v3499
    %3636 = vmatpush1.bf16.msra.mxu0 %v3498
    %3637 = vmatprep.subr.bf16.mxu0 %v3501
    %3638 = vmatpush1.bf16.msra.mxu0 %v3500
    %3639 = vmatprep.subr.bf16.mxu0 %v3503
    %3640 = vmatpush1.bf16.msra.mxu0 %v3502
    %3641 = vmatprep.subr.bf16.mxu0 %v3505
    %3642 = vmatpush1.bf16.msra.mxu0 %v3504
    %3643 = vmatprep.subr.bf16.mxu0 %v3507
    %3644 = vmatpush1.bf16.msra.mxu0 %v3506
    %3645 = vmatprep.subr.bf16.mxu0 %v3509
    %3646 = vmatpush1.bf16.msra.mxu0 %v3508
    %3647 = vmatprep.subr.bf16.mxu0 %v3511
    %3648 = vmatpush1.bf16.msra.mxu0 %v3510
    %3649 = vmatprep.subr.bf16.mxu0 %v3513
    %3650 = vmatpush1.bf16.msra.mxu0 %v3512
    %3651 = vmatprep.subr.bf16.mxu0 %v3515
    %3652 = vmatpush1.bf16.msra.mxu0 %v3514
    %3653 = vmatprep.subr.bf16.mxu0 %v3517
    %3654 = vmatpush1.bf16.msra.mxu0 %v3516
    %3655 = vmatprep.subr.bf16.mxu0 %v3519
    %3656 = vmatpush1.bf16.msra.mxu0 %v3518
    %3657 = vmatprep.subr.bf16.mxu0 %v3521
    %3658 = vmatpush1.bf16.msra.mxu0 %v3520
    %3659 = vmatprep.subr.bf16.mxu0 %v3523
    %3660 = vmatpush1.bf16.msra.mxu0 %v3522
    %3661 = vmatprep.subr.bf16.mxu0 %v3525
    %3662 = vmatpush1.bf16.msra.mxu0 %v3524
    %3663 = vmatprep.subr.bf16.mxu0 %v3527
    %3664 = vmatpush1.bf16.msra.mxu0 %v3526
    %3665 = vmatprep.subr.bf16.mxu0 %v3529
    %3666 = vmatpush1.bf16.msra.mxu0 %v3528
    %3667 = vmatprep.mubr.bf16.mxu0 %v3074
    %3668 = vmatmul.mubr.bf16.gmra.mrb[0].mxu0 %v3073
    %v3669 = vpop.f32.mrb[0].mxu0
    %v3670 = vadd.f32 %v3629, %v3669
    %v3671 = vpop.f32.mrb[0].mxu0
    %v3672 = vadd.f32 %v3631, %v3671
    %v3673 = vpop.f32.mrb[0].mxu0
    %v3674 = vpop.f32.mrb[0].mxu0
    %3675 = vdwg.mxu0
    %v3676 = vadd.f32 %v3670, %v3672
    %3677 = vadd.xlane.f32.xlu0 %v3676
    %v3678 = vpop.xlane.xlu0 %3677
    %v3679 = vmul.f32 %v3670, %v3670
    %v3680 = vmul.f32 %v3672, %v3672
    %v3681 = vadd.f32 %v3679, %v3680
    %3682 = vadd.xlane.f32.xlu0 %v3681
    %v3683 = vpop.xlane.xlu0 %3682
    %v3684 = vmul.f32 %v3678, 0.00390625
    %v3685 = vmul.f32 %v3683, 0.00390625
    %v3686 = vmul.f32 %v3684, %v3684
    %v3687 = vsub.f32 %v3685, %v3686
    %v3688 = vmax.f32 %v3687, 0.0
    %v3689 = vsub.f32 %v3670, %v3684
    %v3690 = vsub.f32 %v3672, %v3684
    %v3691 = vadd.f32 %v3688, 1e-05
    %v3692 = vrsqrt.pop %v3691
    %v3693 = vmul.f32 %v3689, %v3692
    %v3694 = vmul.f32 %v3690, %v3692
    %v3696 = vlaneseq
    %v3697 = vshrl.u32 %v3696, 7
    %v3698 = vsub.s32 0, %v3697
    %v3699 = vrot.slane %v3260, %v3698
    %v3700 = vlaneseq
    %v3701 = vshrl.u32 %v3700, 7
    %v3702 = vsub.s32 1, %v3701
    %v3703 = vrot.slane %v3260, %v3702
    %v3706 = vmul.f32 %v3693, %v3699
    %v3707 = vmul.f32 %v3694, %v3703
    %v3709 = vlaneseq
    %v3710 = vshrl.u32 %v3709, 7
    %v3711 = vsub.s32 0, %v3710
    %v3712 = vrot.slane %v3262, %v3711
    %v3713 = vlaneseq
    %v3714 = vshrl.u32 %v3713, 7
    %v3715 = vsub.s32 1, %v3714
    %v3716 = vrot.slane %v3262, %v3715
    %v3719 = vadd.f32 %v3706, %v3712
    %v3720 = vadd.f32 %v3707, %v3716
    %v3721 = vmax.f32 %v3719, 0.0
    %v3722 = vmax.f32 %v3720, 0.0
    %v3723 = vpack.c.bf16 %v3721, %v3721
    %v3724 = vpack.c.bf16 %v3722, %v3722
    %v3725 = vld [vmem:[#allocation8] sm:$0xff]
    %v3726 = vld [vmem:[#allocation8 + $0x8] sm:$0xff]
    %v3727 = vld [vmem:[#allocation8 + $0x10] sm:$0xff]
    %v3728 = vld [vmem:[#allocation8 + $0x18] sm:$0xff]
    %v3729 = vld [vmem:[#allocation8 + $0x20] sm:$0xff]
    %v3730 = vld [vmem:[#allocation8 + $0x28] sm:$0xff]
    %v3731 = vld [vmem:[#allocation8 + $0x30] sm:$0xff]
    %v3732 = vld [vmem:[#allocation8 + $0x38] sm:$0xff]
    %v3733 = vld [vmem:[#allocation8 + $0x40] sm:$0xff]
    %v3734 = vld [vmem:[#allocation8 + $0x48] sm:$0xff]
    %v3735 = vld [vmem:[#allocation8 + $0x50] sm:$0xff]
    %v3736 = vld [vmem:[#allocation8 + $0x58] sm:$0xff]
    %v3737 = vld [vmem:[#allocation8 + $0x60] sm:$0xff]
    %v3738 = vld [vmem:[#allocation8 + $0x68] sm:$0xff]
    %v3739 = vld [vmem:[#allocation8 + $0x70] sm:$0xff]
    %v3740 = vld [vmem:[#allocation8 + $0x78] sm:$0xff]
    %v3741 = vld [vmem:[#allocation8 + $0x80] sm:$0xff]
    %v3742 = vld [vmem:[#allocation8 + $0x88] sm:$0xff]
    %v3743 = vld [vmem:[#allocation8 + $0x90] sm:$0xff]
    %v3744 = vld [vmem:[#allocation8 + $0x98] sm:$0xff]
    %v3745 = vld [vmem:[#allocation8 + $0xa0] sm:$0xff]
    %v3746 = vld [vmem:[#allocation8 + $0xa8] sm:$0xff]
    %v3747 = vld [vmem:[#allocation8 + $0xb0] sm:$0xff]
    %v3748 = vld [vmem:[#allocation8 + $0xb8] sm:$0xff]
    %v3749 = vld [vmem:[#allocation8 + $0xc0] sm:$0xff]
    %v3750 = vld [vmem:[#allocation8 + $0xc8] sm:$0xff]
    %v3751 = vld [vmem:[#allocation8 + $0xd0] sm:$0xff]
    %v3752 = vld [vmem:[#allocation8 + $0xd8] sm:$0xff]
    %v3753 = vld [vmem:[#allocation8 + $0xe0] sm:$0xff]
    %v3754 = vld [vmem:[#allocation8 + $0xe8] sm:$0xff]
    %v3755 = vld [vmem:[#allocation8 + $0xf0] sm:$0xff]
    %v3756 = vld [vmem:[#allocation8 + $0xf8] sm:$0xff]
    %s3757 = scalar_lea.vmem [#allocation14], 6
    %v3758 = vld [vmem:[%s3757] ss:$8 sm:$0x3]
    %s3759 = scalar_lea.vmem [#allocation14], 7
    %v3760 = vld [vmem:[%s3759] ss:$8 sm:$0x3]
    %s3761 = scalar_lea.vmem [#allocation14], 32
    %v3762 = vld [vmem:[%s3761] ss:$8 sm:$0x3]
    %v3764 = vlaneseq
    %v3765 = vshrl.u32 %v3764, 7
    %v3766 = vsub.s32 0, %v3765
    %v3767 = vrot.slane %v3758, %v3766
    %v3768 = vlaneseq
    %v3769 = vshrl.u32 %v3768, 7
    %v3770 = vsub.s32 1, %v3769
    %v3771 = vrot.slane %v3758, %v3770
    %v3806 = vunpack.c.l.b16 %v3725
    %v3807 = vunpack.c.h.b16 %v3725
    %v3808 = vunpack.c.l.b16 %v3726
    %v3809 = vunpack.c.h.b16 %v3726
    %v3810 = vunpack.c.l.b16 %v3727
    %v3811 = vunpack.c.h.b16 %v3727
    %v3812 = vunpack.c.l.b16 %v3728
    %v3813 = vunpack.c.h.b16 %v3728
    %v3814 = vunpack.c.l.b16 %v3729
    %v3815 = vunpack.c.h.b16 %v3729
    %v3816 = vunpack.c.l.b16 %v3730
    %v3817 = vunpack.c.h.b16 %v3730
    %v3818 = vunpack.c.l.b16 %v3731
    %v3819 = vunpack.c.h.b16 %v3731
    %v3820 = vunpack.c.l.b16 %v3732
    %v3821 = vunpack.c.h.b16 %v3732
    %v3822 = vunpack.c.l.b16 %v3733
    %v3823 = vunpack.c.h.b16 %v3733
    %v3824 = vunpack.c.l.b16 %v3734
    %v3825 = vunpack.c.h.b16 %v3734
    %v3826 = vunpack.c.l.b16 %v3735
    %v3827 = vunpack.c.h.b16 %v3735
    %v3828 = vunpack.c.l.b16 %v3736
    %v3829 = vunpack.c.h.b16 %v3736
    %v3830 = vunpack.c.l.b16 %v3737
    %v3831 = vunpack.c.h.b16 %v3737
    %v3832 = vunpack.c.l.b16 %v3738
    %v3833 = vunpack.c.h.b16 %v3738
    %v3834 = vunpack.c.l.b16 %v3739
    %v3835 = vunpack.c.h.b16 %v3739
    %v3836 = vunpack.c.l.b16 %v3740
    %v3837 = vunpack.c.h.b16 %v3740
    %v3838 = vunpack.c.l.b16 %v3741
    %v3839 = vunpack.c.h.b16 %v3741
    %v3840 = vunpack.c.l.b16 %v3742
    %v3841 = vunpack.c.h.b16 %v3742
    %v3842 = vunpack.c.l.b16 %v3743
    %v3843 = vunpack.c.h.b16 %v3743
    %v3844 = vunpack.c.l.b16 %v3744
    %v3845 = vunpack.c.h.b16 %v3744
    %v3846 = vunpack.c.l.b16 %v3745
    %v3847 = vunpack.c.h.b16 %v3745
    %v3848 = vunpack.c.l.b16 %v3746
    %v3849 = vunpack.c.h.b16 %v3746
    %v3850 = vunpack.c.l.b16 %v3747
    %v3851 = vunpack.c.h.b16 %v3747
    %v3852 = vunpack.c.l.b16 %v3748
    %v3853 = vunpack.c.h.b16 %v3748
    %v3854 = vunpack.c.l.b16 %v3749
    %v3855 = vunpack.c.h.b16 %v3749
    %v3856 = vunpack.c.l.b16 %v3750
    %v3857 = vunpack.c.h.b16 %v3750
    %v3858 = vunpack.c.l.b16 %v3751
    %v3859 = vunpack.c.h.b16 %v3751
    %v3860 = vunpack.c.l.b16 %v3752
    %v3861 = vunpack.c.h.b16 %v3752
    %v3862 = vunpack.c.l.b16 %v3753
    %v3863 = vunpack.c.h.b16 %v3753
    %v3864 = vunpack.c.l.b16 %v3754
    %v3865 = vunpack.c.h.b16 %v3754
    %v3866 = vunpack.c.l.b16 %v3755
    %v3867 = vunpack.c.h.b16 %v3755
    %v3868 = vunpack.c.l.b16 %v3756
    %v3869 = vunpack.c.h.b16 %v3756
    %v3870 = vpack.c.b16 %v3808, %v3806
    %v3871 = vpack.c.b16 %v3809, %v3807
    %v3872 = vpack.c.b16 %v3812, %v3810
    %v3873 = vpack.c.b16 %v3813, %v3811
    %v3874 = vpack.c.b16 %v3816, %v3814
    %v3875 = vpack.c.b16 %v3817, %v3815
    %v3876 = vpack.c.b16 %v3820, %v3818
    %v3877 = vpack.c.b16 %v3821, %v3819
    %v3878 = vpack.c.b16 %v3824, %v3822
    %v3879 = vpack.c.b16 %v3825, %v3823
    %v3880 = vpack.c.b16 %v3828, %v3826
    %v3881 = vpack.c.b16 %v3829, %v3827
    %v3882 = vpack.c.b16 %v3832, %v3830
    %v3883 = vpack.c.b16 %v3833, %v3831
    %v3884 = vpack.c.b16 %v3836, %v3834
    %v3885 = vpack.c.b16 %v3837, %v3835
    %v3886 = vpack.c.b16 %v3840, %v3838
    %v3887 = vpack.c.b16 %v3841, %v3839
    %v3888 = vpack.c.b16 %v3844, %v3842
    %v3889 = vpack.c.b16 %v3845, %v3843
    %v3890 = vpack.c.b16 %v3848, %v3846
    %v3891 = vpack.c.b16 %v3849, %v3847
    %v3892 = vpack.c.b16 %v3852, %v3850
    %v3893 = vpack.c.b16 %v3853, %v3851
    %v3894 = vpack.c.b16 %v3856, %v3854
    %v3895 = vpack.c.b16 %v3857, %v3855
    %v3896 = vpack.c.b16 %v3860, %v3858
    %v3897 = vpack.c.b16 %v3861, %v3859
    %v3898 = vpack.c.b16 %v3864, %v3862
    %v3899 = vpack.c.b16 %v3865, %v3863
    %v3900 = vpack.c.b16 %v3868, %v3866
    %v3901 = vpack.c.b16 %v3869, %v3867
    %3934 = vmatprep.subr.bf16.mxu0 %v3871
    %3935 = vmatpush1.bf16.msra.mxu0 %v3870
    %3936 = vmatprep.subr.bf16.mxu0 %v3873
    %3937 = vmatpush1.bf16.msra.mxu0 %v3872
    %3938 = vmatprep.subr.bf16.mxu0 %v3875
    %3939 = vmatpush1.bf16.msra.mxu0 %v3874
    %3940 = vmatprep.subr.bf16.mxu0 %v3877
    %3941 = vmatpush1.bf16.msra.mxu0 %v3876
    %3942 = vmatprep.subr.bf16.mxu0 %v3879
    %3943 = vmatpush1.bf16.msra.mxu0 %v3878
    %3944 = vmatprep.subr.bf16.mxu0 %v3881
    %3945 = vmatpush1.bf16.msra.mxu0 %v3880
    %3946 = vmatprep.subr.bf16.mxu0 %v3883
    %3947 = vmatpush1.bf16.msra.mxu0 %v3882
    %3948 = vmatprep.subr.bf16.mxu0 %v3885
    %3949 = vmatpush1.bf16.msra.mxu0 %v3884
    %3950 = vmatprep.subr.bf16.mxu0 %v3887
    %3951 = vmatpush1.bf16.msra.mxu0 %v3886
    %3952 = vmatprep.subr.bf16.mxu0 %v3889
    %3953 = vmatpush1.bf16.msra.mxu0 %v3888
    %3954 = vmatprep.subr.bf16.mxu0 %v3891
    %3955 = vmatpush1.bf16.msra.mxu0 %v3890
    %3956 = vmatprep.subr.bf16.mxu0 %v3893
    %3957 = vmatpush1.bf16.msra.mxu0 %v3892
    %3958 = vmatprep.subr.bf16.mxu0 %v3895
    %3959 = vmatpush1.bf16.msra.mxu0 %v3894
    %3960 = vmatprep.subr.bf16.mxu0 %v3897
    %3961 = vmatpush1.bf16.msra.mxu0 %v3896
    %3962 = vmatprep.subr.bf16.mxu0 %v3899
    %3963 = vmatpush1.bf16.msra.mxu0 %v3898
    %3964 = vmatprep.subr.bf16.mxu0 %v3901
    %3965 = vmatpush1.bf16.msra.mxu0 %v3900
    %3966 = vmatprep.mubr.bf16.mxu0 %v3724
    %3967 = vmatmul.mubr.bf16.gmra.mrb[0].mxu0 %v3723
    %v3968 = vpop.f32.mrb[0].mxu0
    %v3969 = vadd.f32 %v3767, %v3968
    %v3970 = vpop.f32.mrb[0].mxu0
    %v3971 = vadd.f32 %v3771, %v3970
    %v3972 = vpop.f32.mrb[0].mxu0
    %v3973 = vpop.f32.mrb[0].mxu0
    %3974 = vdwg.mxu0
    %v3975 = vadd.f32 %v3969, %v3971
    %3976 = vadd.xlane.f32.xlu0 %v3975
    %v3977 = vpop.xlane.xlu0 %3976
    %v3978 = vmul.f32 %v3969, %v3969
    %v3979 = vmul.f32 %v3971, %v3971
    %v3980 = vadd.f32 %v3978, %v3979
    %3981 = vadd.xlane.f32.xlu0 %v3980
    %v3982 = vpop.xlane.xlu0 %3981
    %v3983 = vmul.f32 %v3977, 0.00390625
    %v3984 = vmul.f32 %v3982, 0.00390625
    %v3985 = vmul.f32 %v3983, %v3983
    %v3986 = vsub.f32 %v3984, %v3985
    %v3987 = vmax.f32 %v3986, 0.0
    %v3988 = vsub.f32 %v3969, %v3983
    %v3989 = vsub.f32 %v3971, %v3983
    %v3990 = vadd.f32 %v3987, 1e-05
    %v3991 = vrsqrt.pop %v3990
    %v3992 = vmul.f32 %v3988, %v3991
    %v3993 = vmul.f32 %v3989, %v3991
    %v3995 = vlaneseq
    %v3996 = vshrl.u32 %v3995, 7
    %v3997 = vsub.s32 0, %v3996
    %v3998 = vrot.slane %v3760, %v3997
    %v3999 = vlaneseq
    %v4000 = vshrl.u32 %v3999, 7
    %v4001 = vsub.s32 1, %v4000
    %v4002 = vrot.slane %v3760, %v4001
    %v4005 = vmul.f32 %v3992, %v3998
    %v4006 = vmul.f32 %v3993, %v4002
    %v4008 = vlaneseq
    %v4009 = vshrl.u32 %v4008, 7
    %v4010 = vsub.s32 0, %v4009
    %v4011 = vrot.slane %v3762, %v4010
    %v4012 = vlaneseq
    %v4013 = vshrl.u32 %v4012, 7
    %v4014 = vsub.s32 1, %v4013
    %v4015 = vrot.slane %v3762, %v4014
    %v4018 = vadd.f32 %v4005, %v4011
    %v4019 = vadd.f32 %v4006, %v4015
    %v4020 = vmax.f32 %v4018, 0.0
    %v4021 = vmax.f32 %v4019, 0.0
    %v4022 = vpack.c.bf16 %v4020, %v4020
    %v4023 = vpack.c.bf16 %v4021, %v4021
    %v4024 = vld [vmem:[#allocation10] sm:$0xff]
    %v4025 = vld [vmem:[#allocation10 + $0x8] sm:$0xff]
    %v4026 = vld [vmem:[#allocation10 + $0x10] sm:$0xff]
    %v4027 = vld [vmem:[#allocation10 + $0x18] sm:$0xff]
    %v4028 = vld [vmem:[#allocation10 + $0x20] sm:$0xff]
    %v4029 = vld [vmem:[#allocation10 + $0x28] sm:$0xff]
    %v4030 = vld [vmem:[#allocation10 + $0x30] sm:$0xff]
    %v4031 = vld [vmem:[#allocation10 + $0x38] sm:$0xff]
    %v4032 = vld [vmem:[#allocation10 + $0x40] sm:$0xff]
    %v4033 = vld [vmem:[#allocation10 + $0x48] sm:$0xff]
    %v4034 = vld [vmem:[#allocation10 + $0x50] sm:$0xff]
    %v4035 = vld [vmem:[#allocation10 + $0x58] sm:$0xff]
    %v4036 = vld [vmem:[#allocation10 + $0x60] sm:$0xff]
    %v4037 = vld [vmem:[#allocation10 + $0x68] sm:$0xff]
    %v4038 = vld [vmem:[#allocation10 + $0x70] sm:$0xff]
    %v4039 = vld [vmem:[#allocation10 + $0x78] sm:$0xff]
    %v4040 = vld [vmem:[#allocation10 + $0x80] sm:$0xff]
    %v4041 = vld [vmem:[#allocation10 + $0x88] sm:$0xff]
    %v4042 = vld [vmem:[#allocation10 + $0x90] sm:$0xff]
    %v4043 = vld [vmem:[#allocation10 + $0x98] sm:$0xff]
    %v4044 = vld [vmem:[#allocation10 + $0xa0] sm:$0xff]
    %v4045 = vld [vmem:[#allocation10 + $0xa8] sm:$0xff]
    %v4046 = vld [vmem:[#allocation10 + $0xb0] sm:$0xff]
    %v4047 = vld [vmem:[#allocation10 + $0xb8] sm:$0xff]
    %v4048 = vld [vmem:[#allocation10 + $0xc0] sm:$0xff]
    %v4049 = vld [vmem:[#allocation10 + $0xc8] sm:$0xff]
    %v4050 = vld [vmem:[#allocation10 + $0xd0] sm:$0xff]
    %v4051 = vld [vmem:[#allocation10 + $0xd8] sm:$0xff]
    %v4052 = vld [vmem:[#allocation10 + $0xe0] sm:$0xff]
    %v4053 = vld [vmem:[#allocation10 + $0xe8] sm:$0xff]
    %v4054 = vld [vmem:[#allocation10 + $0xf0] sm:$0xff]
    %v4055 = vld [vmem:[#allocation10 + $0xf8] sm:$0xff]
    %v4056 = vld [vmem:[#allocation10 + $0x100] sm:$0xff]
    %v4057 = vld [vmem:[#allocation10 + $0x108] sm:$0xff]
    %v4058 = vld [vmem:[#allocation10 + $0x110] sm:$0xff]
    %v4059 = vld [vmem:[#allocation10 + $0x118] sm:$0xff]
    %v4060 = vld [vmem:[#allocation10 + $0x120] sm:$0xff]
    %v4061 = vld [vmem:[#allocation10 + $0x128] sm:$0xff]
    %v4062 = vld [vmem:[#allocation10 + $0x130] sm:$0xff]
    %v4063 = vld [vmem:[#allocation10 + $0x138] sm:$0xff]
    %v4064 = vld [vmem:[#allocation10 + $0x140] sm:$0xff]
    %v4065 = vld [vmem:[#allocation10 + $0x148] sm:$0xff]
    %v4066 = vld [vmem:[#allocation10 + $0x150] sm:$0xff]
    %v4067 = vld [vmem:[#allocation10 + $0x158] sm:$0xff]
    %v4068 = vld [vmem:[#allocation10 + $0x160] sm:$0xff]
    %v4069 = vld [vmem:[#allocation10 + $0x168] sm:$0xff]
    %v4070 = vld [vmem:[#allocation10 + $0x170] sm:$0xff]
    %v4071 = vld [vmem:[#allocation10 + $0x178] sm:$0xff]
    %v4072 = vld [vmem:[#allocation10 + $0x180] sm:$0xff]
    %v4073 = vld [vmem:[#allocation10 + $0x188] sm:$0xff]
    %v4074 = vld [vmem:[#allocation10 + $0x190] sm:$0xff]
    %v4075 = vld [vmem:[#allocation10 + $0x198] sm:$0xff]
    %v4076 = vld [vmem:[#allocation10 + $0x1a0] sm:$0xff]
    %v4077 = vld [vmem:[#allocation10 + $0x1a8] sm:$0xff]
    %v4078 = vld [vmem:[#allocation10 + $0x1b0] sm:$0xff]
    %v4079 = vld [vmem:[#allocation10 + $0x1b8] sm:$0xff]
    %v4080 = vld [vmem:[#allocation10 + $0x1c0] sm:$0xff]
    %v4081 = vld [vmem:[#allocation10 + $0x1c8] sm:$0xff]
    %v4082 = vld [vmem:[#allocation10 + $0x1d0] sm:$0xff]
    %v4083 = vld [vmem:[#allocation10 + $0x1d8] sm:$0xff]
    %v4084 = vld [vmem:[#allocation10 + $0x1e0] sm:$0xff]
    %v4085 = vld [vmem:[#allocation10 + $0x1e8] sm:$0xff]
    %v4086 = vld [vmem:[#allocation10 + $0x1f0] sm:$0xff]
    %v4087 = vld [vmem:[#allocation10 + $0x1f8] sm:$0xff]
    %s4088 = scalar_lea.vmem [#allocation14], 36
    %v4089 = vld [vmem:[%s4088] ss:$8 sm:$0x3]
    %s4090 = scalar_lea.vmem [#allocation14], 37
    %v4091 = vld [vmem:[%s4090] ss:$8 sm:$0x3]
    %s4092 = scalar_lea.vmem [#allocation14], 38
    %v4093 = vld [vmem:[%s4092] ss:$8 sm:$0x3]
    %v4095 = vlaneseq
    %v4096 = vshrl.u32 %v4095, 7
    %v4097 = vsub.s32 0, %v4096
    %v4098 = vrot.slane %v4089, %v4097
    %v4099 = vlaneseq
    %v4100 = vshrl.u32 %v4099, 7
    %v4101 = vsub.s32 1, %v4100
    %v4102 = vrot.slane %v4089, %v4101
    %v4169 = vunpack.c.l.b16 %v4024
    %v4170 = vunpack.c.h.b16 %v4024
    %v4171 = vunpack.c.l.b16 %v4025
    %v4172 = vunpack.c.h.b16 %v4025
    %v4173 = vunpack.c.l.b16 %v4026
    %v4174 = vunpack.c.h.b16 %v4026
    %v4175 = vunpack.c.l.b16 %v4027
    %v4176 = vunpack.c.h.b16 %v4027
    %v4177 = vunpack.c.l.b16 %v4028
    %v4178 = vunpack.c.h.b16 %v4028
    %v4179 = vunpack.c.l.b16 %v4029
    %v4180 = vunpack.c.h.b16 %v4029
    %v4181 = vunpack.c.l.b16 %v4030
    %v4182 = vunpack.c.h.b16 %v4030
    %v4183 = vunpack.c.l.b16 %v4031
    %v4184 = vunpack.c.h.b16 %v4031
    %v4185 = vunpack.c.l.b16 %v4032
    %v4186 = vunpack.c.h.b16 %v4032
    %v4187 = vunpack.c.l.b16 %v4033
    %v4188 = vunpack.c.h.b16 %v4033
    %v4189 = vunpack.c.l.b16 %v4034
    %v4190 = vunpack.c.h.b16 %v4034
    %v4191 = vunpack.c.l.b16 %v4035
    %v4192 = vunpack.c.h.b16 %v4035
    %v4193 = vunpack.c.l.b16 %v4036
    %v4194 = vunpack.c.h.b16 %v4036
    %v4195 = vunpack.c.l.b16 %v4037
    %v4196 = vunpack.c.h.b16 %v4037
    %v4197 = vunpack.c.l.b16 %v4038
    %v4198 = vunpack.c.h.b16 %v4038
    %v4199 = vunpack.c.l.b16 %v4039
    %v4200 = vunpack.c.h.b16 %v4039
    %v4201 = vunpack.c.l.b16 %v4040
    %v4202 = vunpack.c.h.b16 %v4040
    %v4203 = vunpack.c.l.b16 %v4041
    %v4204 = vunpack.c.h.b16 %v4041
    %v4205 = vunpack.c.l.b16 %v4042
    %v4206 = vunpack.c.h.b16 %v4042
    %v4207 = vunpack.c.l.b16 %v4043
    %v4208 = vunpack.c.h.b16 %v4043
    %v4209 = vunpack.c.l.b16 %v4044
    %v4210 = vunpack.c.h.b16 %v4044
    %v4211 = vunpack.c.l.b16 %v4045
    %v4212 = vunpack.c.h.b16 %v4045
    %v4213 = vunpack.c.l.b16 %v4046
    %v4214 = vunpack.c.h.b16 %v4046
    %v4215 = vunpack.c.l.b16 %v4047
    %v4216 = vunpack.c.h.b16 %v4047
    %v4217 = vunpack.c.l.b16 %v4048
    %v4218 = vunpack.c.h.b16 %v4048
    %v4219 = vunpack.c.l.b16 %v4049
    %v4220 = vunpack.c.h.b16 %v4049
    %v4221 = vunpack.c.l.b16 %v4050
    %v4222 = vunpack.c.h.b16 %v4050
    %v4223 = vunpack.c.l.b16 %v4051
    %v4224 = vunpack.c.h.b16 %v4051
    %v4225 = vunpack.c.l.b16 %v4052
    %v4226 = vunpack.c.h.b16 %v4052
    %v4227 = vunpack.c.l.b16 %v4053
    %v4228 = vunpack.c.h.b16 %v4053
    %v4229 = vunpack.c.l.b16 %v4054
    %v4230 = vunpack.c.h.b16 %v4054
    %v4231 = vunpack.c.l.b16 %v4055
    %v4232 = vunpack.c.h.b16 %v4055
    %v4233 = vunpack.c.l.b16 %v4056
    %v4234 = vunpack.c.h.b16 %v4056
    %v4235 = vunpack.c.l.b16 %v4057
    %v4236 = vunpack.c.h.b16 %v4057
    %v4237 = vunpack.c.l.b16 %v4058
    %v4238 = vunpack.c.h.b16 %v4058
    %v4239 = vunpack.c.l.b16 %v4059
    %v4240 = vunpack.c.h.b16 %v4059
    %v4241 = vunpack.c.l.b16 %v4060
    %v4242 = vunpack.c.h.b16 %v4060
    %v4243 = vunpack.c.l.b16 %v4061
    %v4244 = vunpack.c.h.b16 %v4061
    %v4245 = vunpack.c.l.b16 %v4062
    %v4246 = vunpack.c.h.b16 %v4062
    %v4247 = vunpack.c.l.b16 %v4063
    %v4248 = vunpack.c.h.b16 %v4063
    %v4249 = vunpack.c.l.b16 %v4064
    %v4250 = vunpack.c.h.b16 %v4064
    %v4251 = vunpack.c.l.b16 %v4065
    %v4252 = vunpack.c.h.b16 %v4065
    %v4253 = vunpack.c.l.b16 %v4066
    %v4254 = vunpack.c.h.b16 %v4066
    %v4255 = vunpack.c.l.b16 %v4067
    %v4256 = vunpack.c.h.b16 %v4067
    %v4257 = vunpack.c.l.b16 %v4068
    %v4258 = vunpack.c.h.b16 %v4068
    %v4259 = vunpack.c.l.b16 %v4069
    %v4260 = vunpack.c.h.b16 %v4069
    %v4261 = vunpack.c.l.b16 %v4070
    %v4262 = vunpack.c.h.b16 %v4070
    %v4263 = vunpack.c.l.b16 %v4071
    %v4264 = vunpack.c.h.b16 %v4071
    %v4265 = vunpack.c.l.b16 %v4072
    %v4266 = vunpack.c.h.b16 %v4072
    %v4267 = vunpack.c.l.b16 %v4073
    %v4268 = vunpack.c.h.b16 %v4073
    %v4269 = vunpack.c.l.b16 %v4074
    %v4270 = vunpack.c.h.b16 %v4074
    %v4271 = vunpack.c.l.b16 %v4075
    %v4272 = vunpack.c.h.b16 %v4075
    %v4273 = vunpack.c.l.b16 %v4076
    %v4274 = vunpack.c.h.b16 %v4076
    %v4275 = vunpack.c.l.b16 %v4077
    %v4276 = vunpack.c.h.b16 %v4077
    %v4277 = vunpack.c.l.b16 %v4078
    %v4278 = vunpack.c.h.b16 %v4078
    %v4279 = vunpack.c.l.b16 %v4079
    %v4280 = vunpack.c.h.b16 %v4079
    %v4281 = vunpack.c.l.b16 %v4080
    %v4282 = vunpack.c.h.b16 %v4080
    %v4283 = vunpack.c.l.b16 %v4081
    %v4284 = vunpack.c.h.b16 %v4081
    %v4285 = vunpack.c.l.b16 %v4082
    %v4286 = vunpack.c.h.b16 %v4082
    %v4287 = vunpack.c.l.b16 %v4083
    %v4288 = vunpack.c.h.b16 %v4083
    %v4289 = vunpack.c.l.b16 %v4084
    %v4290 = vunpack.c.h.b16 %v4084
    %v4291 = vunpack.c.l.b16 %v4085
    %v4292 = vunpack.c.h.b16 %v4085
    %v4293 = vunpack.c.l.b16 %v4086
    %v4294 = vunpack.c.h.b16 %v4086
    %v4295 = vunpack.c.l.b16 %v4087
    %v4296 = vunpack.c.h.b16 %v4087
    %v4297 = vpack.c.b16 %v4171, %v4169
    %v4298 = vpack.c.b16 %v4172, %v4170
    %v4299 = vpack.c.b16 %v4175, %v4173
    %v4300 = vpack.c.b16 %v4176, %v4174
    %v4301 = vpack.c.b16 %v4179, %v4177
    %v4302 = vpack.c.b16 %v4180, %v4178
    %v4303 = vpack.c.b16 %v4183, %v4181
    %v4304 = vpack.c.b16 %v4184, %v4182
    %v4305 = vpack.c.b16 %v4187, %v4185
    %v4306 = vpack.c.b16 %v4188, %v4186
    %v4307 = vpack.c.b16 %v4191, %v4189
    %v4308 = vpack.c.b16 %v4192, %v4190
    %v4309 = vpack.c.b16 %v4195, %v4193
    %v4310 = vpack.c.b16 %v4196, %v4194
    %v4311 = vpack.c.b16 %v4199, %v4197
    %v4312 = vpack.c.b16 %v4200, %v4198
    %v4313 = vpack.c.b16 %v4203, %v4201
    %v4314 = vpack.c.b16 %v4204, %v4202
    %v4315 = vpack.c.b16 %v4207, %v4205
    %v4316 = vpack.c.b16 %v4208, %v4206
    %v4317 = vpack.c.b16 %v4211, %v4209
    %v4318 = vpack.c.b16 %v4212, %v4210
    %v4319 = vpack.c.b16 %v4215, %v4213
    %v4320 = vpack.c.b16 %v4216, %v4214
    %v4321 = vpack.c.b16 %v4219, %v4217
    %v4322 = vpack.c.b16 %v4220, %v4218
    %v4323 = vpack.c.b16 %v4223, %v4221
    %v4324 = vpack.c.b16 %v4224, %v4222
    %v4325 = vpack.c.b16 %v4227, %v4225
    %v4326 = vpack.c.b16 %v4228, %v4226
    %v4327 = vpack.c.b16 %v4231, %v4229
    %v4328 = vpack.c.b16 %v4232, %v4230
    %v4329 = vpack.c.b16 %v4235, %v4233
    %v4330 = vpack.c.b16 %v4236, %v4234
    %v4331 = vpack.c.b16 %v4239, %v4237
    %v4332 = vpack.c.b16 %v4240, %v4238
    %v4333 = vpack.c.b16 %v4243, %v4241
    %v4334 = vpack.c.b16 %v4244, %v4242
    %v4335 = vpack.c.b16 %v4247, %v4245
    %v4336 = vpack.c.b16 %v4248, %v4246
    %v4337 = vpack.c.b16 %v4251, %v4249
    %v4338 = vpack.c.b16 %v4252, %v4250
    %v4339 = vpack.c.b16 %v4255, %v4253
    %v4340 = vpack.c.b16 %v4256, %v4254
    %v4341 = vpack.c.b16 %v4259, %v4257
    %v4342 = vpack.c.b16 %v4260, %v4258
    %v4343 = vpack.c.b16 %v4263, %v4261
    %v4344 = vpack.c.b16 %v4264, %v4262
    %v4345 = vpack.c.b16 %v4267, %v4265
    %v4346 = vpack.c.b16 %v4268, %v4266
    %v4347 = vpack.c.b16 %v4271, %v4269
    %v4348 = vpack.c.b16 %v4272, %v4270
    %v4349 = vpack.c.b16 %v4275, %v4273
    %v4350 = vpack.c.b16 %v4276, %v4274
    %v4351 = vpack.c.b16 %v4279, %v4277
    %v4352 = vpack.c.b16 %v4280, %v4278
    %v4353 = vpack.c.b16 %v4283, %v4281
    %v4354 = vpack.c.b16 %v4284, %v4282
    %v4355 = vpack.c.b16 %v4287, %v4285
    %v4356 = vpack.c.b16 %v4288, %v4286
    %v4357 = vpack.c.b16 %v4291, %v4289
    %v4358 = vpack.c.b16 %v4292, %v4290
    %v4359 = vpack.c.b16 %v4295, %v4293
    %v4360 = vpack.c.b16 %v4296, %v4294
    %4425 = vmatprep.subr.bf16.mxu0 %v4298
    %4426 = vmatpush1.bf16.msra.mxu0 %v4297
    %4427 = vmatprep.subr.bf16.mxu0 %v4300
    %4428 = vmatpush1.bf16.msra.mxu0 %v4299
    %4429 = vmatprep.subr.bf16.mxu0 %v4302
    %4430 = vmatpush1.bf16.msra.mxu0 %v4301
    %4431 = vmatprep.subr.bf16.mxu0 %v4304
    %4432 = vmatpush1.bf16.msra.mxu0 %v4303
    %4433 = vmatprep.subr.bf16.mxu0 %v4306
    %4434 = vmatpush1.bf16.msra.mxu0 %v4305
    %4435 = vmatprep.subr.bf16.mxu0 %v4308
    %4436 = vmatpush1.bf16.msra.mxu0 %v4307
    %4437 = vmatprep.subr.bf16.mxu0 %v4310
    %4438 = vmatpush1.bf16.msra.mxu0 %v4309
    %4439 = vmatprep.subr.bf16.mxu0 %v4312
    %4440 = vmatpush1.bf16.msra.mxu0 %v4311
    %4441 = vmatprep.subr.bf16.mxu0 %v4314
    %4442 = vmatpush1.bf16.msra.mxu0 %v4313
    %4443 = vmatprep.subr.bf16.mxu0 %v4316
    %4444 = vmatpush1.bf16.msra.mxu0 %v4315
    %4445 = vmatprep.subr.bf16.mxu0 %v4318
    %4446 = vmatpush1.bf16.msra.mxu0 %v4317
    %4447 = vmatprep.subr.bf16.mxu0 %v4320
    %4448 = vmatpush1.bf16.msra.mxu0 %v4319
    %4449 = vmatprep.subr.bf16.mxu0 %v4322
    %4450 = vmatpush1.bf16.msra.mxu0 %v4321
    %4451 = vmatprep.subr.bf16.mxu0 %v4324
    %4452 = vmatpush1.bf16.msra.mxu0 %v4323
    %4453 = vmatprep.subr.bf16.mxu0 %v4326
    %4454 = vmatpush1.bf16.msra.mxu0 %v4325
    %4455 = vmatprep.subr.bf16.mxu0 %v4328
    %4456 = vmatpush1.bf16.msra.mxu0 %v4327
    %4457 = vmatprep.mubr.bf16.mxu0 %v3190
    %4458 = vmatmul.mubr.bf16.gmra.mrb[0].mxu0 %v3189
    %v4459 = vpop.f32.mrb[0].mxu0
    %v4460 = vadd.f32 %v4098, %v4459
    %v4461 = vpop.f32.mrb[0].mxu0
    %v4462 = vadd.f32 %v4102, %v4461
    %v4463 = vpop.f32.mrb[0].mxu0
    %v4464 = vpop.f32.mrb[0].mxu0
    %4465 = vdwg.mxu0
    %4466 = vmatprep.subr.bf16.mxu0 %v4330
    %4467 = vmatpush1.bf16.msra.mxu0 %v4329
    %4468 = vmatprep.subr.bf16.mxu0 %v4332
    %4469 = vmatpush1.bf16.msra.mxu0 %v4331
    %4470 = vmatprep.subr.bf16.mxu0 %v4334
    %4471 = vmatpush1.bf16.msra.mxu0 %v4333
    %4472 = vmatprep.subr.bf16.mxu0 %v4336
    %4473 = vmatpush1.bf16.msra.mxu0 %v4335
    %4474 = vmatprep.subr.bf16.mxu0 %v4338
    %4475 = vmatpush1.bf16.msra.mxu0 %v4337
    %4476 = vmatprep.subr.bf16.mxu0 %v4340
    %4477 = vmatpush1.bf16.msra.mxu0 %v4339
    %4478 = vmatprep.subr.bf16.mxu0 %v4342
    %4479 = vmatpush1.bf16.msra.mxu0 %v4341
    %4480 = vmatprep.subr.bf16.mxu0 %v4344
    %4481 = vmatpush1.bf16.msra.mxu0 %v4343
    %4482 = vmatprep.subr.bf16.mxu0 %v4346
    %4483 = vmatpush1.bf16.msra.mxu0 %v4345
    %4484 = vmatprep.subr.bf16.mxu0 %v4348
    %4485 = vmatpush1.bf16.msra.mxu0 %v4347
    %4486 = vmatprep.subr.bf16.mxu0 %v4350
    %4487 = vmatpush1.bf16.msra.mxu0 %v4349
    %4488 = vmatprep.subr.bf16.mxu0 %v4352
    %4489 = vmatpush1.bf16.msra.mxu0 %v4351
    %4490 = vmatprep.subr.bf16.mxu0 %v4354
    %4491 = vmatpush1.bf16.msra.mxu0 %v4353
    %4492 = vmatprep.subr.bf16.mxu0 %v4356
    %4493 = vmatpush1.bf16.msra.mxu0 %v4355
    %4494 = vmatprep.subr.bf16.mxu0 %v4358
    %4495 = vmatpush1.bf16.msra.mxu0 %v4357
    %4496 = vmatprep.subr.bf16.mxu0 %v4360
    %4497 = vmatpush1.bf16.msra.mxu0 %v4359
    %4498 = vmatprep.mubr.bf16.mxu0 %v3192
    %4499 = vmatmul.mubr.bf16.gmra.mrb[0].mxu0 %v3191
    %v4500 = vpop.f32.mrb[0].mxu0
    %v4501 = vadd.f32 %v4460, %v4500
    %v4502 = vpop.f32.mrb[0].mxu0
    %v4503 = vadd.f32 %v4462, %v4502
    %v4504 = vpop.f32.mrb[0].mxu0
    %v4505 = vpop.f32.mrb[0].mxu0
    %4506 = vdwg.mxu0
    %v4507 = vadd.f32 %v4501, %v4503
    %4508 = vadd.xlane.f32.xlu0 %v4507
    %v4509 = vpop.xlane.xlu0 %4508
    %v4510 = vmul.f32 %v4501, %v4501
    %v4511 = vmul.f32 %v4503, %v4503
    %v4512 = vadd.f32 %v4510, %v4511
    %4513 = vadd.xlane.f32.xlu0 %v4512
    %v4514 = vpop.xlane.xlu0 %4513
    %v4515 = vmul.f32 %v4509, 0.00390625
    %v4516 = vmul.f32 %v4514, 0.00390625
    %v4517 = vmul.f32 %v4515, %v4515
    %v4518 = vsub.f32 %v4516, %v4517
    %v4519 = vmax.f32 %v4518, 0.0
    %v4520 = vsub.f32 %v4501, %v4515
    %v4521 = vsub.f32 %v4503, %v4515
    %v4522 = vadd.f32 %v4519, 1e-05
    %v4523 = vrsqrt.pop %v4522
    %v4524 = vmul.f32 %v4520, %v4523
    %v4525 = vmul.f32 %v4521, %v4523
    %v4527 = vlaneseq
    %v4528 = vshrl.u32 %v4527, 7
    %v4529 = vsub.s32 0, %v4528
    %v4530 = vrot.slane %v4091, %v4529
    %v4531 = vlaneseq
    %v4532 = vshrl.u32 %v4531, 7
    %v4533 = vsub.s32 1, %v4532
    %v4534 = vrot.slane %v4091, %v4533
    %v4537 = vmul.f32 %v4524, %v4530
    %v4538 = vmul.f32 %v4525, %v4534
    %v4540 = vlaneseq
    %v4541 = vshrl.u32 %v4540, 7
    %v4542 = vsub.s32 0, %v4541
    %v4543 = vrot.slane %v4093, %v4542
    %v4544 = vlaneseq
    %v4545 = vshrl.u32 %v4544, 7
    %v4546 = vsub.s32 1, %v4545
    %v4547 = vrot.slane %v4093, %v4546
    %v4550 = vadd.f32 %v4537, %v4543
    %v4551 = vadd.f32 %v4538, %v4547
    %v4552 = vmax.f32 %v4550, 0.0
    %v4553 = vmax.f32 %v4551, 0.0
    %v4554 = vpack.c.bf16 %v4552, %v4552
    %v4555 = vpack.c.bf16 %v4553, %v4553
    %v4556 = vld [vmem:[#allocation11] sm:$0xf]
    %v4557 = vld [vmem:[#allocation11 + $0x4] sm:$0xf]
    %v4558 = vld [vmem:[#allocation11 + $0x8] sm:$0xf]
    %v4559 = vld [vmem:[#allocation11 + $0xc] sm:$0xf]
    %v4560 = vld [vmem:[#allocation11 + $0x10] sm:$0xf]
    %v4561 = vld [vmem:[#allocation11 + $0x14] sm:$0xf]
    %v4562 = vld [vmem:[#allocation11 + $0x18] sm:$0xf]
    %v4563 = vld [vmem:[#allocation11 + $0x1c] sm:$0xf]
    %v4564 = vld [vmem:[#allocation11 + $0x20] sm:$0xf]
    %v4565 = vld [vmem:[#allocation11 + $0x24] sm:$0xf]
    %v4566 = vld [vmem:[#allocation11 + $0x28] sm:$0xf]
    %v4567 = vld [vmem:[#allocation11 + $0x2c] sm:$0xf]
    %v4568 = vld [vmem:[#allocation11 + $0x30] sm:$0xf]
    %v4569 = vld [vmem:[#allocation11 + $0x34] sm:$0xf]
    %v4570 = vld [vmem:[#allocation11 + $0x38] sm:$0xf]
    %v4571 = vld [vmem:[#allocation11 + $0x3c] sm:$0xf]
    %v4572 = vld [vmem:[#allocation11 + $0x40] sm:$0xf]
    %v4573 = vld [vmem:[#allocation11 + $0x44] sm:$0xf]
    %v4574 = vld [vmem:[#allocation11 + $0x48] sm:$0xf]
    %v4575 = vld [vmem:[#allocation11 + $0x4c] sm:$0xf]
    %v4576 = vld [vmem:[#allocation11 + $0x50] sm:$0xf]
    %v4577 = vld [vmem:[#allocation11 + $0x54] sm:$0xf]
    %v4578 = vld [vmem:[#allocation11 + $0x58] sm:$0xf]
    %v4579 = vld [vmem:[#allocation11 + $0x5c] sm:$0xf]
    %v4580 = vld [vmem:[#allocation11 + $0x60] sm:$0xf]
    %v4581 = vld [vmem:[#allocation11 + $0x64] sm:$0xf]
    %v4582 = vld [vmem:[#allocation11 + $0x68] sm:$0xf]
    %v4583 = vld [vmem:[#allocation11 + $0x6c] sm:$0xf]
    %v4584 = vld [vmem:[#allocation11 + $0x70] sm:$0xf]
    %v4585 = vld [vmem:[#allocation11 + $0x74] sm:$0xf]
    %v4586 = vld [vmem:[#allocation11 + $0x78] sm:$0xf]
    %v4587 = vld [vmem:[#allocation11 + $0x7c] sm:$0xf]
    %v4588 = vld [vmem:[#allocation14 + $0x27] ss:$0 sm:$0xff]
    %v4589 = vld [vmem:[#allocation14 + $0x40] ss:$0 sm:$0xff]
    %v4590 = vld [vmem:[#allocation14 + $0x41] ss:$0 sm:$0xff]
    %v4623 = vunpack.c.l.b16 %v4556
    %v4624 = vunpack.c.l.b16 %v4557
    %v4625 = vunpack.c.l.b16 %v4558
    %v4626 = vunpack.c.l.b16 %v4559
    %v4627 = vunpack.c.l.b16 %v4560
    %v4628 = vunpack.c.l.b16 %v4561
    %v4629 = vunpack.c.l.b16 %v4562
    %v4630 = vunpack.c.l.b16 %v4563
    %v4631 = vunpack.c.l.b16 %v4564
    %v4632 = vunpack.c.l.b16 %v4565
    %v4633 = vunpack.c.l.b16 %v4566
    %v4634 = vunpack.c.l.b16 %v4567
    %v4635 = vunpack.c.l.b16 %v4568
    %v4636 = vunpack.c.l.b16 %v4569
    %v4637 = vunpack.c.l.b16 %v4570
    %v4638 = vunpack.c.l.b16 %v4571
    %v4639 = vunpack.c.l.b16 %v4572
    %v4640 = vunpack.c.l.b16 %v4573
    %v4641 = vunpack.c.l.b16 %v4574
    %v4642 = vunpack.c.l.b16 %v4575
    %v4643 = vunpack.c.l.b16 %v4576
    %v4644 = vunpack.c.l.b16 %v4577
    %v4645 = vunpack.c.l.b16 %v4578
    %v4646 = vunpack.c.l.b16 %v4579
    %v4647 = vunpack.c.l.b16 %v4580
    %v4648 = vunpack.c.l.b16 %v4581
    %v4649 = vunpack.c.l.b16 %v4582
    %v4650 = vunpack.c.l.b16 %v4583
    %v4651 = vunpack.c.l.b16 %v4584
    %v4652 = vunpack.c.l.b16 %v4585
    %v4653 = vunpack.c.l.b16 %v4586
    %v4654 = vunpack.c.l.b16 %v4587
    %v4655 = vpack.c.b16 %v4624, %v4623
    %v4656 = vpack.c.b16 %v4626, %v4625
    %v4657 = vpack.c.b16 %v4628, %v4627
    %v4658 = vpack.c.b16 %v4630, %v4629
    %v4659 = vpack.c.b16 %v4632, %v4631
    %v4660 = vpack.c.b16 %v4634, %v4633
    %v4661 = vpack.c.b16 %v4636, %v4635
    %v4662 = vpack.c.b16 %v4638, %v4637
    %v4663 = vpack.c.b16 %v4640, %v4639
    %v4664 = vpack.c.b16 %v4642, %v4641
    %v4665 = vpack.c.b16 %v4644, %v4643
    %v4666 = vpack.c.b16 %v4646, %v4645
    %v4667 = vpack.c.b16 %v4648, %v4647
    %v4668 = vpack.c.b16 %v4650, %v4649
    %v4669 = vpack.c.b16 %v4652, %v4651
    %v4670 = vpack.c.b16 %v4654, %v4653
    %4687 = vmatprep.subr.bf16.mxu0 0
    %4688 = vmatpush1.bf16.msra.mxu0 %v4655
    %4689 = vmatprep.subr.bf16.mxu0 0
    %4690 = vmatpush1.bf16.msra.mxu0 %v4656
    %4691 = vmatprep.subr.bf16.mxu0 0
    %4692 = vmatpush1.bf16.msra.mxu0 %v4657
    %4693 = vmatprep.subr.bf16.mxu0 0
    %4694 = vmatpush1.bf16.msra.mxu0 %v4658
    %4695 = vmatprep.subr.bf16.mxu0 0
    %4696 = vmatpush1.bf16.msra.mxu0 %v4659
    %4697 = vmatprep.subr.bf16.mxu0 0
    %4698 = vmatpush1.bf16.msra.mxu0 %v4660
    %4699 = vmatprep.subr.bf16.mxu0 0
    %4700 = vmatpush1.bf16.msra.mxu0 %v4661
    %4701 = vmatprep.subr.bf16.mxu0 0
    %4702 = vmatpush1.bf16.msra.mxu0 %v4662
    %4703 = vmatprep.subr.bf16.mxu0 0
    %4704 = vmatpush1.bf16.msra.mxu0 %v4663
    %4705 = vmatprep.subr.bf16.mxu0 0
    %4706 = vmatpush1.bf16.msra.mxu0 %v4664
    %4707 = vmatprep.subr.bf16.mxu0 0
    %4708 = vmatpush1.bf16.msra.mxu0 %v4665
    %4709 = vmatprep.subr.bf16.mxu0 0
    %4710 = vmatpush1.bf16.msra.mxu0 %v4666
    %4711 = vmatprep.subr.bf16.mxu0 0
    %4712 = vmatpush1.bf16.msra.mxu0 %v4667
    %4713 = vmatprep.subr.bf16.mxu0 0
    %4714 = vmatpush1.bf16.msra.mxu0 %v4668
    %4715 = vmatprep.subr.bf16.mxu0 0
    %4716 = vmatpush1.bf16.msra.mxu0 %v4669
    %4717 = vmatprep.subr.bf16.mxu0 0
    %4718 = vmatpush1.bf16.msra.mxu0 %v4670
    %4719 = vmatprep.mubr.bf16.mxu0 %v4555
    %4720 = vmatmul.mubr.bf16.gmra.mrb[0].mxu0 %v4554
    %v4721 = vpop.f32.mrb[0].mxu0
    %v4722 = vadd.f32 %v4588, %v4721
    %v4723 = vpop.f32.mrb[0].mxu0
    %v4724 = vpop.f32.mrb[0].mxu0
    %v4725 = vpop.f32.mrb[0].mxu0
    %4726 = vdwg.mxu0
    %4727 = vadd.xlane.f32.xlu0 %v4722
    %v4728 = vpop.xlane.xlu0 %4727
    %v4729 = vmul.f32 %v4722, %v4722
    %4730 = vadd.xlane.f32.xlu0 %v4729
    %v4731 = vpop.xlane.xlu0 %4730
    %v4732 = vmul.f32 %v4728, 0.0078125
    %v4733 = vmul.f32 %v4731, 0.0078125
    %v4734 = vmul.f32 %v4732, %v4732
    %v4735 = vsub.f32 %v4733, %v4734
    %v4736 = vmax.f32 %v4735, 0.0
    %v4737 = vsub.f32 %v4722, %v4732
    %v4738 = vadd.f32 %v4736, 1e-05
    %v4739 = vrsqrt.pop %v4738
    %v4740 = vmul.f32 %v4737, %v4739
    %v4741 = vmul.f32 %v4740, %v4589
    %v4742 = vadd.f32 %v4741, %v4590
    %v4743 = vmax.f32 %v4742, 0.0
    %v4744 = vpack.c.bf16 %v4743, %v4743
    %v4745 = vld [vmem:[#allocation13] sm:$0xf]
    %v4746 = vld [vmem:[#allocation13 + $0x4] sm:$0xf]
    %v4747 = vld [vmem:[#allocation13 + $0x8] sm:$0xf]
    %v4748 = vld [vmem:[#allocation13 + $0xc] sm:$0xf]
    %v4749 = vld [vmem:[#allocation13 + $0x10] sm:$0xf]
    %v4750 = vld [vmem:[#allocation13 + $0x14] sm:$0xf]
    %v4751 = vld [vmem:[#allocation13 + $0x18] sm:$0xf]
    %v4752 = vld [vmem:[#allocation13 + $0x1c] sm:$0xf]
    %v4753 = vld [vmem:[#allocation13 + $0x20] sm:$0xf]
    %v4754 = vld [vmem:[#allocation13 + $0x24] sm:$0xf]
    %v4755 = vld [vmem:[#allocation13 + $0x28] sm:$0xf]
    %v4756 = vld [vmem:[#allocation13 + $0x2c] sm:$0xf]
    %v4757 = vld [vmem:[#allocation13 + $0x30] sm:$0xf]
    %v4758 = vld [vmem:[#allocation13 + $0x34] sm:$0xf]
    %v4759 = vld [vmem:[#allocation13 + $0x38] sm:$0xf]
    %v4760 = vld [vmem:[#allocation13 + $0x3c] sm:$0xf]
    %v4761 = vld [vmem:[#allocation13 + $0x40] sm:$0xf]
    %v4762 = vld [vmem:[#allocation13 + $0x44] sm:$0xf]
    %v4763 = vld [vmem:[#allocation13 + $0x48] sm:$0xf]
    %v4764 = vld [vmem:[#allocation13 + $0x4c] sm:$0xf]
    %v4765 = vld [vmem:[#allocation13 + $0x50] sm:$0xf]
    %v4766 = vld [vmem:[#allocation13 + $0x54] sm:$0xf]
    %v4767 = vld [vmem:[#allocation13 + $0x58] sm:$0xf]
    %v4768 = vld [vmem:[#allocation13 + $0x5c] sm:$0xf]
    %v4769 = vld [vmem:[#allocation13 + $0x60] sm:$0xf]
    %v4770 = vld [vmem:[#allocation13 + $0x64] sm:$0xf]
    %v4771 = vld [vmem:[#allocation13 + $0x68] sm:$0xf]
    %v4772 = vld [vmem:[#allocation13 + $0x6c] sm:$0xf]
    %v4773 = vld [vmem:[#allocation13 + $0x70] sm:$0xf]
    %v4774 = vld [vmem:[#allocation13 + $0x74] sm:$0xf]
    %v4775 = vld [vmem:[#allocation13 + $0x78] sm:$0xf]
    %v4776 = vld [vmem:[#allocation13 + $0x7c] sm:$0xf]
    %v4777 = vld [vmem:[#allocation13 + $0x80] sm:$0xf]
    %v4778 = vld [vmem:[#allocation13 + $0x84] sm:$0xf]
    %v4779 = vld [vmem:[#allocation13 + $0x88] sm:$0xf]
    %v4780 = vld [vmem:[#allocation13 + $0x8c] sm:$0xf]
    %v4781 = vld [vmem:[#allocation13 + $0x90] sm:$0xf]
    %v4782 = vld [vmem:[#allocation13 + $0x94] sm:$0xf]
    %v4783 = vld [vmem:[#allocation13 + $0x98] sm:$0xf]
    %v4784 = vld [vmem:[#allocation13 + $0x9c] sm:$0xf]
    %v4785 = vld [vmem:[#allocation13 + $0xa0] sm:$0xf]
    %v4786 = vld [vmem:[#allocation13 + $0xa4] sm:$0xf]
    %v4787 = vld [vmem:[#allocation13 + $0xa8] sm:$0xf]
    %v4788 = vld [vmem:[#allocation13 + $0xac] sm:$0xf]
    %v4789 = vld [vmem:[#allocation13 + $0xb0] sm:$0xf]
    %v4790 = vld [vmem:[#allocation13 + $0xb4] sm:$0xf]
    %v4791 = vld [vmem:[#allocation13 + $0xb8] sm:$0xf]
    %v4792 = vld [vmem:[#allocation13 + $0xbc] sm:$0xf]
    %v4793 = vld [vmem:[#allocation14 + $0x42] ss:$0 sm:$0xff]
    %v4842 = vunpack.c.l.b16 %v4745
    %v4843 = vunpack.c.l.b16 %v4746
    %v4844 = vunpack.c.l.b16 %v4747
    %v4845 = vunpack.c.l.b16 %v4748
    %v4846 = vunpack.c.l.b16 %v4749
    %v4847 = vunpack.c.l.b16 %v4750
    %v4848 = vunpack.c.l.b16 %v4751
    %v4849 = vunpack.c.l.b16 %v4752
    %v4850 = vunpack.c.l.b16 %v4753
    %v4851 = vunpack.c.l.b16 %v4754
    %v4852 = vunpack.c.l.b16 %v4755
    %v4853 = vunpack.c.l.b16 %v4756
    %v4854 = vunpack.c.l.b16 %v4757
    %v4855 = vunpack.c.l.b16 %v4758
    %v4856 = vunpack.c.l.b16 %v4759
    %v4857 = vunpack.c.l.b16 %v4760
    %v4858 = vunpack.c.l.b16 %v4761
    %v4859 = vunpack.c.l.b16 %v4762
    %v4860 = vunpack.c.l.b16 %v4763
    %v4861 = vunpack.c.l.b16 %v4764
    %v4862 = vunpack.c.l.b16 %v4765
    %v4863 = vunpack.c.l.b16 %v4766
    %v4864 = vunpack.c.l.b16 %v4767
    %v4865 = vunpack.c.l.b16 %v4768
    %v4866 = vunpack.c.l.b16 %v4769
    %v4867 = vunpack.c.l.b16 %v4770
    %v4868 = vunpack.c.l.b16 %v4771
    %v4869 = vunpack.c.l.b16 %v4772
    %v4870 = vunpack.c.l.b16 %v4773
    %v4871 = vunpack.c.l.b16 %v4774
    %v4872 = vunpack.c.l.b16 %v4775
    %v4873 = vunpack.c.l.b16 %v4776
    %v4874 = vunpack.c.l.b16 %v4777
    %v4875 = vunpack.c.l.b16 %v4778
    %v4876 = vunpack.c.l.b16 %v4779
    %v4877 = vunpack.c.l.b16 %v4780
    %v4878 = vunpack.c.l.b16 %v4781
    %v4879 = vunpack.c.l.b16 %v4782
    %v4880 = vunpack.c.l.b16 %v4783
    %v4881 = vunpack.c.l.b16 %v4784
    %v4882 = vunpack.c.l.b16 %v4785
    %v4883 = vunpack.c.l.b16 %v4786
    %v4884 = vunpack.c.l.b16 %v4787
    %v4885 = vunpack.c.l.b16 %v4788
    %v4886 = vunpack.c.l.b16 %v4789
    %v4887 = vunpack.c.l.b16 %v4790
    %v4888 = vunpack.c.l.b16 %v4791
    %v4889 = vunpack.c.l.b16 %v4792
    %v4890 = vpack.c.b16 %v4843, %v4842
    %v4891 = vpack.c.b16 %v4845, %v4844
    %v4892 = vpack.c.b16 %v4847, %v4846
    %v4893 = vpack.c.b16 %v4849, %v4848
    %v4894 = vpack.c.b16 %v4851, %v4850
    %v4895 = vpack.c.b16 %v4853, %v4852
    %v4896 = vpack.c.b16 %v4855, %v4854
    %v4897 = vpack.c.b16 %v4857, %v4856
    %v4898 = vpack.c.b16 %v4859, %v4858
    %v4899 = vpack.c.b16 %v4861, %v4860
    %v4900 = vpack.c.b16 %v4863, %v4862
    %v4901 = vpack.c.b16 %v4865, %v4864
    %v4902 = vpack.c.b16 %v4867, %v4866
    %v4903 = vpack.c.b16 %v4869, %v4868
    %v4904 = vpack.c.b16 %v4871, %v4870
    %v4905 = vpack.c.b16 %v4873, %v4872
    %v4906 = vpack.c.b16 %v4875, %v4874
    %v4907 = vpack.c.b16 %v4877, %v4876
    %v4908 = vpack.c.b16 %v4879, %v4878
    %v4909 = vpack.c.b16 %v4881, %v4880
    %v4910 = vpack.c.b16 %v4883, %v4882
    %v4911 = vpack.c.b16 %v4885, %v4884
    %v4912 = vpack.c.b16 %v4887, %v4886
    %v4913 = vpack.c.b16 %v4889, %v4888
    %4938 = vmatprep.subr.bf16.mxu0 0
    %4939 = vmatpush1.bf16.msra.mxu0 %v4890
    %4940 = vmatprep.subr.bf16.mxu0 0
    %4941 = vmatpush1.bf16.msra.mxu0 %v4891
    %4942 = vmatprep.subr.bf16.mxu0 0
    %4943 = vmatpush1.bf16.msra.mxu0 %v4892
    %4944 = vmatprep.subr.bf16.mxu0 0
    %4945 = vmatpush1.bf16.msra.mxu0 %v4893
    %4946 = vmatprep.subr.bf16.mxu0 0
    %4947 = vmatpush1.bf16.msra.mxu0 %v4894
    %4948 = vmatprep.subr.bf16.mxu0 0
    %4949 = vmatpush1.bf16.msra.mxu0 %v4895
    %4950 = vmatprep.subr.bf16.mxu0 0
    %4951 = vmatpush1.bf16.msra.mxu0 %v4896
    %4952 = vmatprep.subr.bf16.mxu0 0
    %4953 = vmatpush1.bf16.msra.mxu0 %v4897
    %4954 = vmatprep.subr.bf16.mxu0 0
    %4955 = vmatpush1.bf16.msra.mxu0 %v4898
    %4956 = vmatprep.subr.bf16.mxu0 0
    %4957 = vmatpush1.bf16.msra.mxu0 %v4899
    %4958 = vmatprep.subr.bf16.mxu0 0
    %4959 = vmatpush1.bf16.msra.mxu0 %v4900
    %4960 = vmatprep.subr.bf16.mxu0 0
    %4961 = vmatpush1.bf16.msra.mxu0 %v4901
    %4962 = vmatprep.subr.bf16.mxu0 0
    %4963 = vmatpush1.bf16.msra.mxu0 %v4902
    %4964 = vmatprep.subr.bf16.mxu0 0
    %4965 = vmatpush1.bf16.msra.mxu0 %v4903
    %4966 = vmatprep.subr.bf16.mxu0 0
    %4967 = vmatpush1.bf16.msra.mxu0 %v4904
    %4968 = vmatprep.subr.bf16.mxu0 0
    %4969 = vmatpush1.bf16.msra.mxu0 %v4905
    %4970 = vmatprep.mubr.bf16.mxu0 %v4023
    %4971 = vmatmul.mubr.bf16.gmra.mrb[0].mxu0 %v4022
    %v4972 = vpop.f32.mrb[0].mxu0
    %v4973 = vadd.f32 %v4793, %v4972
    %v4974 = vpop.f32.mrb[0].mxu0
    %v4975 = vpop.f32.mrb[0].mxu0
    %v4976 = vpop.f32.mrb[0].mxu0
    %4977 = vdwg.mxu0
    %4978 = vmatprep.subr.bf16.mxu0 0
    %4979 = vmatpush1.bf16.msra.mxu0 %v4906
    %4980 = vmatprep.subr.bf16.mxu0 0
    %4981 = vmatpush1.bf16.msra.mxu0 %v4907
    %4982 = vmatprep.subr.bf16.mxu0 0
    %4983 = vmatpush1.bf16.msra.mxu0 %v4908
    %4984 = vmatprep.subr.bf16.mxu0 0
    %4985 = vmatpush1.bf16.msra.mxu0 %v4909
    %4986 = vmatprep.subr.bf16.mxu0 0
    %4987 = vmatpush1.bf16.msra.mxu0 %v4910
    %4988 = vmatprep.subr.bf16.mxu0 0
    %4989 = vmatpush1.bf16.msra.mxu0 %v4911
    %4990 = vmatprep.subr.bf16.mxu0 0
    %4991 = vmatpush1.bf16.msra.mxu0 %v4912
    %4992 = vmatprep.subr.bf16.mxu0 0
    %4993 = vmatpush1.bf16.msra.mxu0 %v4913
    %4994 = vmatprep.subr.bf16.mxu0 0
    %4995 = vmatpush1.bf16.msra.mxu0 0
    %4996 = vmatprep.subr.bf16.mxu0 0
    %4997 = vmatpush1.bf16.msra.mxu0 0
    %4998 = vmatprep.subr.bf16.mxu0 0
    %4999 = vmatpush1.bf16.msra.mxu0 0
    %5000 = vmatprep.subr.bf16.mxu0 0
    %5001 = vmatpush1.bf16.msra.mxu0 0
    %5002 = vmatprep.subr.bf16.mxu0 0
    %5003 = vmatpush1.bf16.msra.mxu0 0
    %5004 = vmatprep.subr.bf16.mxu0 0
    %5005 = vmatpush1.bf16.msra.mxu0 0
    %5006 = vmatprep.subr.bf16.mxu0 0
    %5007 = vmatpush1.bf16.msra.mxu0 0
    %5008 = vmatprep.subr.bf16.mxu0 0
    %5009 = vmatpush1.bf16.msra.mxu0 0
    %5010 = vmatprep.mubr.bf16.mxu0 0
    %5011 = vmatmul.mubr.bf16.gmra.mrb[0].mxu0 %v4744
    %v5012 = vpop.f32.mrb[0].mxu0
    %v5013 = vadd.f32 %v4973, %v5012
    %v5014 = vpop.f32.mrb[0].mxu0
    %v5015 = vpop.f32.mrb[0].mxu0
    %v5016 = vpop.f32.mrb[0].mxu0
    %5017 = vdwg.mxu0
    %5018 = vst [vmem:[#allocation16] sm:$0xff] %v5013
    // Predicated region
    $region66: #{tpu_custom_call.1} parent=1 // pred_check
      _
    $region67: #{tpu_custom_call.1} parent=1 // pred_check_branch
      %5020 = sbr.rel (0) target = $region69
    $region68: #{tpu_custom_call.1} parent=1 // pred_region
      %s5022 = ssub.s32 128, 128
      %5023 = vsyncadd [#allocation4], %s5022
      %s5025 = sshll.u32 [#allocation16], 4
      %s5026 = int_to_ptr.vmem [resolvable:$true] %s5025
      %5028 = dma.vmem_to_hbm [thread:$0]  %s5026, 128, %s8, [#allocation4]
    $region69: #{tpu_custom_call.1} parent=1 // pred_fallthru
      _
    // Predicated region
    $region70: #{tpu_custom_call.1} parent=1 // pred_check
      _
    $region71: #{tpu_custom_call.1} parent=1 // pred_check_branch
      %5030 = sbr.rel (0) target = $region73
    $region72: #{tpu_custom_call.1} parent=1 // pred_region
      %5031 = dma.done [#allocation4], 128
    $region73: #{tpu_custom_call.1} parent=1 // pred_fallthru
      _
    %5032 = vsyncpa [#allocation3], 1
    %5033 = vsyncpa [#allocation6], 1
    %5034 = vsyncpa [#allocation9], 1
    %5035 = vsyncpa [#allocation12], 1
    %5036 = vsyncpa [#allocation15], 1
    %5037 = vsyncpa [#allocation4], 1

</llo_original>
